<compile_context>
chip_gen: v6e
topology: v6e:2x2x1
jax: 0.10.0
libtpu: 0.0.40
codegen_flags: <defaults>
</compile_context>

<pallas_src>
import math
import numpy as np
import jax
import jax.numpy as jnp
from jax.experimental import pallas as pl
from jax.experimental.pallas import tpu as pltpu


# ----------------------------- Pallas kernel -------------------------------

def lstm_kernel(x_ref,                     # (T*B, Dp)  bf16, time-major rows
                wih0_ref,                  # (Dp, 4H)   bf16
                b0_ref, b1_ref,            # (1, 4H)    f32 (b_ih + b_hh)
                wfc_ref, bfc_ref,          # (H, O) bf16, (1, O) f32
                whh0_hbm,                  # (H, 4H)    bf16, HBM (pl.ANY)
                w1_hbm,                    # (2H, 4H)   bf16, HBM (pl.ANY), [wih1; whh1]
                out_ref, hn_ref, cn_ref,   # (B,O), (2,B,H), (2,B,H)  f32
                gx_ref,                    # VMEM scratch (T*B, 4H) f32
                whh0_v,                    # VMEM scratch (H, 4H) bf16
                w1_v,                      # VMEM scratch (2H, 4H) bf16
                sem):                      # DMA semaphores (2,)
    f32 = jnp.float32
    bf16 = jnp.bfloat16
    H = whh0_v.shape[0]
    B = hn_ref.shape[1]
    T = x_ref.shape[0] // B

    # ---- start the recurrent-weight DMAs; the hoisted gx matmul hides them ----
    cp_w1 = pltpu.make_async_copy(w1_hbm, w1_v, sem.at[0])      # needed first
    cp_w1.start()
    if T > 1:
        cp_whh0 = pltpu.make_async_copy(whh0_hbm, whh0_v, sem.at[1])
        cp_whh0.start()

    # Hoisted, non-recurrent layer-0 input projection for ALL time steps:
    # one dense (T*B, Dp) x (Dp, 4H) MXU matmul, combined bias b0 folded in.
    # Written to VMEM scratch so it is never a live value across the loop.
    gx_ref[...] = (jnp.dot(x_ref[...], wih0_ref[...],
                           preferred_element_type=f32) + b0_ref[...])

    # Hoist the b1 broadcast out of the unrolled loop (JAX does not CSE
    # broadcast_in_dim; otherwise T copies get emitted).
    bias1 = jnp.broadcast_to(b1_ref[...], (B, 4 * H))

    def gates(pre):
        # PyTorch gate order [i, f, g, o]; lane slices at 256-aligned offsets.
        # sigmoid(x) = 0.5*(1 + tanh(0.5*x)): one EUP op + cheap VPU math.
        def sg(v):
            return 0.5 * (1.0 + jnp.tanh(0.5 * v))
        i = sg(pre[:, 0 * H:1 * H])
        f = sg(pre[:, 1 * H:2 * H])
        g = jnp.tanh(pre[:, 2 * H:3 * H])
        o = sg(pre[:, 3 * H:4 * H])
        return i, f, g, o

    # h0 / c0 default to zeros (the h0=None / c0=None path of the module).
    h0 = jnp.zeros((B, H), f32)
    c0 = jnp.zeros((B, H), f32)
    h1 = jnp.zeros((B, H), f32)
    c1 = jnp.zeros((B, H), f32)

    # Fully unrolled recurrence (T is a small static int); h/c live in vregs,
    # weights are read directly from VMEM each step (MXU is VMEM-fed).
    for t in range(T):
        gx_t = gx_ref[pl.ds(t * B, B), :]

        # ---- layer 0 ----
        if t == 0:
            pre0 = gx_t                       # h0 == 0: recurrent term is zero
        else:
            if t == 1:
                cp_whh0.wait()                # first real use of whh0
            pre0 = gx_t + jnp.dot(h0.astype(bf16), whh0_v[...],
                                  preferred_element_type=f32)
        i0, f0, g0, o0 = gates(pre0)
        c0 = f0 * c0 + i0 * g0
        h0 = o0 * jnp.tanh(c0)

        # ---- layer 1 (fused wih1/whh1 dot: [h0, h1] @ [wih1; whh1]) ----
        if t == 0:
            cp_w1.wait()                      # first use of the fused weight
        hh = jnp.concatenate([h0, h1], axis=1).astype(bf16)      # (B, 2H)
        pre1 = jnp.dot(hh, w1_v[...], preferred_element_type=f32) + bias1
        i1, f1, g1, o1 = gates(pre1)
        c1 = f1 * c1 + i1 * g1
        h1 = o1 * jnp.tanh(c1)

    # fc(out[:, -1, :]) and final (hn, cn)
    out_ref[...] = (jnp.dot(h1.astype(bf16), wfc_ref[...],
                            preferred_element_type=f32) + bfc_ref[...])
    hn_ref[0] = h0
    hn_ref[1] = h1
    cn_ref[0] = c0
    cn_ref[1] = c1


# ------------------------------- wrapper ------------------------------------

def lstm_forward(x, params):
    """x: (B, T, D) batch_first, float32.  Returns (out, (hn, cn)),
    equivalent to the PyTorch module with h0 = c0 = zeros."""
    B, T, D = x.shape
    H = params["whh0"].shape[0]
    O = params["wfc"].shape[1]
    bf16 = jnp.bfloat16

    Bp = ((B + 7) // 8) * 8          # full sublane-group occupancy
    Dp = ((D + 127) // 128) * 128    # lane / MXU-K aligned contraction dim

    # Zero-pad batch & feature dims, go time-major, flatten to (T*Bp, Dp),
    # cast to bf16; fuses into one XLA op.
    xp = jnp.pad(x, ((0, Bp - B), (0, 0), (0, Dp - D)))
    x2d = jnp.transpose(xp, (1, 0, 2)).reshape(T * Bp, Dp).astype(bf16)

    # bf16 weights (MXU-native), f32 biases.  Layer-1 weights fused: (2H, 4H).
    wih0 = jnp.pad(params["wih0"], ((0, Dp - D), (0, 0))).astype(bf16)
    whh0 = params["whh0"].astype(bf16)
    w1 = jnp.concatenate([params["wih1"], params["whh1"]], axis=0).astype(bf16)
    wfc = params["wfc"].astype(bf16)
    b0, b1, bfc = params["b0"], params["b1"], params["bfc"]

    full = lambda shape: pl.BlockSpec(shape, lambda i: (0,) * len(shape))
    any_spec = pl.BlockSpec(memory_space=pl.ANY)   # raw HBM ref, manual DMA

    grid_spec = pltpu.PrefetchScalarGridSpec(
        num_scalar_prefetch=0,
        grid=(1,),   # whole recurrence in one invocation
        in_specs=[
            full((T * Bp, Dp)),       # x, time-major
            full((Dp, 4 * H)),        # wih0 (feeds the hoisted matmul)
            full((1, 4 * H)),         # b0
            full((1, 4 * H)),         # b1
            full((H, O)),             # wfc
            full((1, O)),             # bfc
            any_spec,                 # whh0  (DMA'd inside the kernel)
            any_spec,                 # fused [wih1; whh1]
        ],
        out_specs=[
            full((Bp, O)),
            full((2, Bp, H)),
            full((2, Bp, H)),
        ],
        scratch_shapes=[
            pltpu.VMEM((T * Bp, 4 * H), jnp.float32),   # gx scratch
            pltpu.VMEM((H, 4 * H), bf16),               # whh0 landing buffer
            pltpu.VMEM((2 * H, 4 * H), bf16),           # fused layer-1 weight
            pltpu.SemaphoreType.DMA((2,)),
        ],
    )

    out, hn, cn = pl.pallas_call(
        lstm_kernel,
        out_shape=(
            jax.ShapeDtypeStruct((Bp, O), jnp.float32),
            jax.ShapeDtypeStruct((2, Bp, H), jnp.float32),
            jax.ShapeDtypeStruct((2, Bp, H), jnp.float32),
        ),
        grid_spec=grid_spec,
        compiler_params=pltpu.CompilerParams(
            dimension_semantics=("arbitrary",)),
    )(x2d, wih0, b0, b1, wfc, bfc, whh0, w1)

    # Drop the batch padding.
    return out[:B], (hn[:, :B, :], cn[:, :B, :])


# ------------------------- deterministic params ------------------------------

def init_params(key, input_size, hidden_size, num_layers, output_size):
    assert num_layers == 2
    H = hidden_size
    bound = 1.0 / math.sqrt(H)
    ks = jax.random.split(key, 12)
    u = lambda k, shape, b: jax.random.uniform(
        k, shape, jnp.float32, minval=-b, maxval=b)
    params = {
        # layer 0 (input -> hidden), weights stored transposed for x @ W
        "wih0": u(ks[0], (input_size, 4 * H), bound),
        "whh0": u(ks[1], (H, 4 * H), bound),
        "b0":   u(ks[2], (1, 4 * H), bound) + u(ks[3], (1, 4 * H), bound),
        # layer 1 (hidden -> hidden)
        "wih1": u(ks[4], (H, 4 * H), bound),
        "whh1": u(ks[5], (H, 4 * H), bound),
        "b1":   u(ks[6], (1, 4 * H), bound) + u(ks[7], (1, 4 * H), bound),
        # fc: Linear(hidden, output)
        "wfc":  u(ks[8], (H, output_size), bound),
        "bfc":  u(ks[9], (1, output_size), bound),
    }
    return params


# --------------------------- pure-JAX reference ------------------------------

def lstm_ref(x, p):
    """Reference with the SAME numerics choices as the kernel
    (bf16 weights & matmul inputs, f32 accumulation, f32 gate math)."""
    f32, bf16 = jnp.float32, jnp.bfloat16
    B, T, D = x.shape
    H = p["whh0"].shape[0]
    wih0 = p["wih0"].astype(bf16)
    whh0 = p["whh0"].astype(bf16)
    wih1 = p["wih1"].astype(bf16)
    whh1 = p["whh1"].astype(bf16)
    wfc = p["wfc"].astype(bf16)

    def cell(x_t, h, c, wih, whh, b):
        pre = (jnp.dot(x_t.astype(bf16), wih, preferred_element_type=f32)
               + jnp.dot(h.astype(bf16), whh, preferred_element_type=f32)
               + b)
        i = jax.nn.sigmoid(pre[:, :H])
        f = jax.nn.sigmoid(pre[:, H:2 * H])
        g = jnp.tanh(pre[:, 2 * H:3 * H])
        o = jax.nn.sigmoid(pre[:, 3 * H:])
        c = f * c + i * g
        return o * jnp.tanh(c), c

    h0 = jnp.zeros((B, H), f32); c0 = jnp.zeros((B, H), f32)
    h1 = jnp.zeros((B, H), f32); c1 = jnp.zeros((B, H), f32)
    for t in range(T):
        h0, c0 = cell(x[:, t], h0, c0, wih0, whh0, p["b0"])
        h1, c1 = cell(h0, h1, c1, wih1, whh1, p["b1"])
    out = jnp.dot(h1.astype(bf16), wfc, preferred_element_type=f32) + p["bfc"]
    return out, (jnp.stack([h0, h1]), jnp.stack([c0, c1]))


# --------------------------------- main --------------------------------------

if __name__ == "__main__":
    input_size = 239
    hidden_size = 256
    num_layers = 2
    output_size = 5
    batch = 2
    seq = 8

    key = jax.random.PRNGKey(0)
    kx, kp = jax.random.split(key)
    x = jax.random.normal(kx, (batch, seq, input_size), dtype=jnp.float32)
    params = init_params(kp, input_size, hidden_size, num_layers, output_size)

    fwd = jax.jit(lstm_forward)
    out, (hn, cn) = fwd(x, params)
    jax.block_until_ready((out, hn, cn))

    out_r, (hn_r, cn_r) = lstm_ref(x, params)
    np.testing.assert_allclose(np.asarray(out), np.asarray(out_r),
                               rtol=1e-3, atol=1e-3)
    np.testing.assert_allclose(np.asarray(hn), np.asarray(hn_r),
                               rtol=1e-3, atol=1e-3)
    np.testing.assert_allclose(np.asarray(cn), np.asarray(cn_r),
                               rtol=1e-3, atol=1e-3)

    print("KERNEL_OK")
</pallas_src>

<mosaic_0001>
module attributes {stable_mosaic.version = 11 : i64} {
  func.func @lstm_kernel(%arg0: i32, %arg1: memref<64x256xbf16, #tpu.memory_space<vmem>>, %arg2: memref<256x1024xbf16, #tpu.memory_space<vmem>>, %arg3: memref<1x1024xf32, #tpu.memory_space<vmem>>, %arg4: memref<1x1024xf32, #tpu.memory_space<vmem>>, %arg5: memref<256x5xbf16, #tpu.memory_space<vmem>>, %arg6: memref<1x5xf32, #tpu.memory_space<vmem>>, %arg7: memref<256x1024xbf16, #tpu.memory_space<any>>, %arg8: memref<512x1024xbf16, #tpu.memory_space<any>>, %arg9: memref<8x5xf32, #tpu.memory_space<vmem>>, %arg10: memref<2x8x256xf32, #tpu.memory_space<vmem>>, %arg11: memref<2x8x256xf32, #tpu.memory_space<vmem>>, %arg12: memref<64x1024xf32, #tpu.memory_space<vmem>>, %arg13: memref<256x1024xbf16, #tpu.memory_space<vmem>>, %arg14: memref<512x1024xbf16, #tpu.memory_space<vmem>>, %arg15: memref<2x!tpu.dma_semaphore, #tpu.memory_space<semaphore_mem>>) attributes {dimension_semantics = [#tpu.dimension_semantics<arbitrary>], iteration_bounds = array<i64: 1>, scalar_prefetch = 0 : i64, scratch_operands = 4 : i64, tpu.core_type = #tpu.core_type<tc>, window_params = [{pipeline_mode = #tpu.pipeline_mode<synchronous>, transform_indices = @transform_0, window_bounds = array<i64: 64, 256>}, {pipeline_mode = #tpu.pipeline_mode<synchronous>, transform_indices = @transform_1, window_bounds = array<i64: 256, 1024>}, {pipeline_mode = #tpu.pipeline_mode<synchronous>, transform_indices = @transform_2, window_bounds = array<i64: 1, 1024>}, {pipeline_mode = #tpu.pipeline_mode<synchronous>, transform_indices = @transform_3, window_bounds = array<i64: 1, 1024>}, {pipeline_mode = #tpu.pipeline_mode<synchronous>, transform_indices = @transform_4, window_bounds = array<i64: 256, 5>}, {pipeline_mode = #tpu.pipeline_mode<synchronous>, transform_indices = @transform_5, window_bounds = array<i64: 1, 5>}, {}, {}, {pipeline_mode = #tpu.pipeline_mode<synchronous>, transform_indices = @transform_8, window_bounds = array<i64: 8, 5>}, {pipeline_mode = #tpu.pipeline_mode<synchronous>, transform_indices = @transform_9, window_bounds = array<i64: 2, 8, 256>}, {pipeline_mode = #tpu.pipeline_mode<synchronous>, transform_indices = @transform_10, window_bounds = array<i64: 2, 8, 256>}]} {
    %c0_i32 = arith.constant 0 : i32
    %0 = tpu.memref_slice %arg15[%c0_i32] : memref<2x!tpu.dma_semaphore, #tpu.memory_space<semaphore_mem>> -> memref<1x!tpu.dma_semaphore, #tpu.memory_space<semaphore_mem>>
    %1 = tpu.memref_squeeze %0 : memref<1x!tpu.dma_semaphore, #tpu.memory_space<semaphore_mem>> -> memref<!tpu.dma_semaphore, #tpu.memory_space<semaphore_mem>>
    tpu.enqueue_dma source(%arg8 : memref<512x1024xbf16, #tpu.memory_space<any>>) target(%arg14 : memref<512x1024xbf16, #tpu.memory_space<vmem>>) target_semaphore(%1 : memref<!tpu.dma_semaphore, #tpu.memory_space<semaphore_mem>>)
    %c1_i32 = arith.constant 1 : i32
    %2 = tpu.memref_slice %arg15[%c1_i32] : memref<2x!tpu.dma_semaphore, #tpu.memory_space<semaphore_mem>> -> memref<1x!tpu.dma_semaphore, #tpu.memory_space<semaphore_mem>>
    %3 = tpu.memref_squeeze %2 : memref<1x!tpu.dma_semaphore, #tpu.memory_space<semaphore_mem>> -> memref<!tpu.dma_semaphore, #tpu.memory_space<semaphore_mem>>
    tpu.enqueue_dma source(%arg7 : memref<256x1024xbf16, #tpu.memory_space<any>>) target(%arg13 : memref<256x1024xbf16, #tpu.memory_space<vmem>>) target_semaphore(%3 : memref<!tpu.dma_semaphore, #tpu.memory_space<semaphore_mem>>)
    %c0 = arith.constant 0 : index
    %c0_0 = arith.constant 0 : index
    %4 = vector.load %arg1[%c0, %c0_0] : memref<64x256xbf16, #tpu.memory_space<vmem>>, vector<64x256xbf16>
    %c0_1 = arith.constant 0 : index
    %c0_2 = arith.constant 0 : index
    %5 = vector.load %arg2[%c0_1, %c0_2] : memref<256x1024xbf16, #tpu.memory_space<vmem>>, vector<256x1024xbf16>
    %cst = arith.constant dense<0.000000e+00> : vector<64x1024xf32>
    %6 = tpu.matmul %4, %5, %cst {dimension_numbers = #tpu.dot_dimension_numbers<[1], [0], [0], [1], [0, 0, 1, 1], [], []>} : vector<64x256xbf16>, vector<256x1024xbf16>, vector<64x1024xf32> -> vector<64x1024xf32>
    %c0_3 = arith.constant 0 : index
    %c0_4 = arith.constant 0 : index
    %7 = vector.load %arg3[%c0_3, %c0_4] : memref<1x1024xf32, #tpu.memory_space<vmem>>, vector<1x1024xf32>
    %8 = vector.broadcast %7 : vector<1x1024xf32> to vector<64x1024xf32>
    %9 = arith.addf %6, %8 : vector<64x1024xf32>
    %c0_5 = arith.constant 0 : index
    %c0_6 = arith.constant 0 : index
    %10 = vector.load %arg12[%c0_5, %c0_6] : memref<64x1024xf32, #tpu.memory_space<vmem>>, vector<64x1024xf32>
    tpu.vector_store %arg12[%c0_5, %c0_6], %9 {strides = array<i32>} : memref<64x1024xf32, #tpu.memory_space<vmem>>, vector<64x1024xf32>,
    %c0_7 = arith.constant 0 : index
    %c0_8 = arith.constant 0 : index
    %11 = vector.load %arg4[%c0_7, %c0_8] : memref<1x1024xf32, #tpu.memory_space<vmem>>, vector<1x1024xf32>
    %12 = vector.shape_cast %11 : vector<1x1024xf32> to vector<1x1024xf32>
    %13 = vector.broadcast %12 : vector<1x1024xf32> to vector<8x1024xf32>
    %cst_9 = arith.constant 0.000000e+00 : f32
    %14 = vector.broadcast %cst_9 : f32 to vector<8x256xf32>
    %cst_10 = arith.constant 0.000000e+00 : f32
    %15 = vector.broadcast %cst_10 : f32 to vector<8x256xf32>
    %cst_11 = arith.constant 0.000000e+00 : f32
    %16 = vector.broadcast %cst_11 : f32 to vector<8x256xf32>
    %c0_12 = arith.constant 0 : index
    %c0_13 = arith.constant 0 : index
    %17 = vector.load %arg12[%c0_12, %c0_13] : memref<64x1024xf32, #tpu.memory_space<vmem>>, vector<8x1024xf32>
    %18 = vector.extract_strided_slice %17 {offsets = [0, 0], sizes = [8, 256], strides = [1, 1]} : vector<8x1024xf32> to vector<8x256xf32>
    %cst_14 = arith.constant 5.000000e-01 : f32
    %19 = vector.broadcast %cst_14 : f32 to vector<8x256xf32>
    %20 = arith.mulf %19, %18 : vector<8x256xf32>
    %21 = math.tanh %20 : vector<8x256xf32>
    %cst_15 = arith.constant 1.000000e+00 : f32
    %22 = vector.broadcast %cst_15 : f32 to vector<8x256xf32>
    %23 = arith.addf %22, %21 : vector<8x256xf32>
    %cst_16 = arith.constant 5.000000e-01 : f32
    %24 = vector.broadcast %cst_16 : f32 to vector<8x256xf32>
    %25 = arith.mulf %24, %23 : vector<8x256xf32>
    %26 = vector.extract_strided_slice %17 {offsets = [0, 256], sizes = [8, 256], strides = [1, 1]} : vector<8x1024xf32> to vector<8x256xf32>
    %cst_17 = arith.constant 5.000000e-01 : f32
    %27 = vector.broadcast %cst_17 : f32 to vector<8x256xf32>
    %28 = arith.mulf %27, %26 : vector<8x256xf32>
    %29 = math.tanh %28 : vector<8x256xf32>
    %cst_18 = arith.constant 1.000000e+00 : f32
    %30 = vector.broadcast %cst_18 : f32 to vector<8x256xf32>
    %31 = arith.addf %30, %29 : vector<8x256xf32>
    %cst_19 = arith.constant 5.000000e-01 : f32
    %32 = vector.broadcast %cst_19 : f32 to vector<8x256xf32>
    %33 = arith.mulf %32, %31 : vector<8x256xf32>
    %34 = vector.extract_strided_slice %17 {offsets = [0, 512], sizes = [8, 256], strides = [1, 1]} : vector<8x1024xf32> to vector<8x256xf32>
    %35 = math.tanh %34 : vector<8x256xf32>
    %36 = vector.extract_strided_slice %17 {offsets = [0, 768], sizes = [8, 256], strides = [1, 1]} : vector<8x1024xf32> to vector<8x256xf32>
    %cst_20 = arith.constant 5.000000e-01 : f32
    %37 = vector.broadcast %cst_20 : f32 to vector<8x256xf32>
    %38 = arith.mulf %37, %36 : vector<8x256xf32>
    %39 = math.tanh %38 : vector<8x256xf32>
    %cst_21 = arith.constant 1.000000e+00 : f32
    %40 = vector.broadcast %cst_21 : f32 to vector<8x256xf32>
    %41 = arith.addf %40, %39 : vector<8x256xf32>
    %cst_22 = arith.constant 5.000000e-01 : f32
    %42 = vector.broadcast %cst_22 : f32 to vector<8x256xf32>
    %43 = arith.mulf %42, %41 : vector<8x256xf32>
    %44 = arith.mulf %33, %14 : vector<8x256xf32>
    %45 = arith.mulf %25, %35 : vector<8x256xf32>
    %46 = arith.addf %44, %45 : vector<8x256xf32>
    %47 = math.tanh %46 : vector<8x256xf32>
    %48 = arith.mulf %43, %47 : vector<8x256xf32>
    %c0_i32_23 = arith.constant 0 : i32
    %49 = tpu.memref_slice %arg15[%c0_i32_23] : memref<2x!tpu.dma_semaphore, #tpu.memory_space<semaphore_mem>> -> memref<1x!tpu.dma_semaphore, #tpu.memory_space<semaphore_mem>>
    %50 = tpu.memref_squeeze %49 : memref<1x!tpu.dma_semaphore, #tpu.memory_space<semaphore_mem>> -> memref<!tpu.dma_semaphore, #tpu.memory_space<semaphore_mem>>
    tpu.wait_dma2 semaphore(%50 : memref<!tpu.dma_semaphore, #tpu.memory_space<semaphore_mem>>) src(%arg8 : memref<512x1024xbf16, #tpu.memory_space<any>>) dst(%arg14 : memref<512x1024xbf16, #tpu.memory_space<vmem>>)
    %51 = tpu.concatenate %48, %15 in 1 : vector<8x256xf32>, vector<8x256xf32> -> vector<8x512xf32>
    %52 = arith.truncf %51 : vector<8x512xf32> to vector<8x512xbf16>
    %c0_24 = arith.constant 0 : index
    %c0_25 = arith.constant 0 : index
    %53 = vector.load %arg14[%c0_24, %c0_25] : memref<512x1024xbf16, #tpu.memory_space<vmem>>, vector<512x1024xbf16>
    %cst_26 = arith.constant dense<0.000000e+00> : vector<8x1024xf32>
    %54 = tpu.matmul %52, %53, %cst_26 {dimension_numbers = #tpu.dot_dimension_numbers<[1], [0], [0], [1], [0, 0, 1, 1], [], []>} : vector<8x512xbf16>, vector<512x1024xbf16>, vector<8x1024xf32> -> vector<8x1024xf32>
    %55 = arith.addf %54, %13 : vector<8x1024xf32>
    %56 = vector.extract_strided_slice %55 {offsets = [0, 0], sizes = [8, 256], strides = [1, 1]} : vector<8x1024xf32> to vector<8x256xf32>
    %cst_27 = arith.constant 5.000000e-01 : f32
    %57 = vector.broadcast %cst_27 : f32 to vector<8x256xf32>
    %58 = arith.mulf %57, %56 : vector<8x256xf32>
    %59 = math.tanh %58 : vector<8x256xf32>
    %cst_28 = arith.constant 1.000000e+00 : f32
    %60 = vector.broadcast %cst_28 : f32 to vector<8x256xf32>
    %61 = arith.addf %60, %59 : vector<8x256xf32>
    %cst_29 = arith.constant 5.000000e-01 : f32
    %62 = vector.broadcast %cst_29 : f32 to vector<8x256xf32>
    %63 = arith.mulf %62, %61 : vector<8x256xf32>
    %64 = vector.extract_strided_slice %55 {offsets = [0, 256], sizes = [8, 256], strides = [1, 1]} : vector<8x1024xf32> to vector<8x256xf32>
    %cst_30 = arith.constant 5.000000e-01 : f32
    %65 = vector.broadcast %cst_30 : f32 to vector<8x256xf32>
    %66 = arith.mulf %65, %64 : vector<8x256xf32>
    %67 = math.tanh %66 : vector<8x256xf32>
    %cst_31 = arith.constant 1.000000e+00 : f32
    %68 = vector.broadcast %cst_31 : f32 to vector<8x256xf32>
    %69 = arith.addf %68, %67 : vector<8x256xf32>
    %cst_32 = arith.constant 5.000000e-01 : f32
    %70 = vector.broadcast %cst_32 : f32 to vector<8x256xf32>
    %71 = arith.mulf %70, %69 : vector<8x256xf32>
    %72 = vector.extract_strided_slice %55 {offsets = [0, 512], sizes = [8, 256], strides = [1, 1]} : vector<8x1024xf32> to vector<8x256xf32>
    %73 = math.tanh %72 : vector<8x256xf32>
    %74 = vector.extract_strided_slice %55 {offsets = [0, 768], sizes = [8, 256], strides = [1, 1]} : vector<8x1024xf32> to vector<8x256xf32>
    %cst_33 = arith.constant 5.000000e-01 : f32
    %75 = vector.broadcast %cst_33 : f32 to vector<8x256xf32>
    %76 = arith.mulf %75, %74 : vector<8x256xf32>
    %77 = math.tanh %76 : vector<8x256xf32>
    %cst_34 = arith.constant 1.000000e+00 : f32
    %78 = vector.broadcast %cst_34 : f32 to vector<8x256xf32>
    %79 = arith.addf %78, %77 : vector<8x256xf32>
    %cst_35 = arith.constant 5.000000e-01 : f32
    %80 = vector.broadcast %cst_35 : f32 to vector<8x256xf32>
    %81 = arith.mulf %80, %79 : vector<8x256xf32>
    %82 = arith.mulf %71, %16 : vector<8x256xf32>
    %83 = arith.mulf %63, %73 : vector<8x256xf32>
    %84 = arith.addf %82, %83 : vector<8x256xf32>
    %85 = math.tanh %84 : vector<8x256xf32>
    %86 = arith.mulf %81, %85 : vector<8x256xf32>
    %c8 = arith.constant 8 : index
    %c0_36 = arith.constant 0 : index
    %87 = vector.load %arg12[%c8, %c0_36] : memref<64x1024xf32, #tpu.memory_space<vmem>>, vector<8x1024xf32>
    %c1_i32_37 = arith.constant 1 : i32
    %88 = tpu.memref_slice %arg15[%c1_i32_37] : memref<2x!tpu.dma_semaphore, #tpu.memory_space<semaphore_mem>> -> memref<1x!tpu.dma_semaphore, #tpu.memory_space<semaphore_mem>>
    %89 = tpu.memref_squeeze %88 : memref<1x!tpu.dma_semaphore, #tpu.memory_space<semaphore_mem>> -> memref<!tpu.dma_semaphore, #tpu.memory_space<semaphore_mem>>
    tpu.wait_dma2 semaphore(%89 : memref<!tpu.dma_semaphore, #tpu.memory_space<semaphore_mem>>) src(%arg7 : memref<256x1024xbf16, #tpu.memory_space<any>>) dst(%arg13 : memref<256x1024xbf16, #tpu.memory_space<vmem>>)
    %90 = arith.truncf %48 : vector<8x256xf32> to vector<8x256xbf16>
    %c0_38 = arith.constant 0 : index
    %c0_39 = arith.constant 0 : index
    %91 = vector.load %arg13[%c0_38, %c0_39] : memref<256x1024xbf16, #tpu.memory_space<vmem>>, vector<256x1024xbf16>
    %cst_40 = arith.constant dense<0.000000e+00> : vector<8x1024xf32>
    %92 = tpu.matmul %90, %91, %cst_40 {dimension_numbers = #tpu.dot_dimension_numbers<[1], [0], [0], [1], [0, 0, 1, 1], [], []>} : vector<8x256xbf16>, vector<256x1024xbf16>, vector<8x1024xf32> -> vector<8x1024xf32>
    %93 = arith.addf %87, %92 : vector<8x1024xf32>
    %94 = vector.extract_strided_slice %93 {offsets = [0, 0], sizes = [8, 256], strides = [1, 1]} : vector<8x1024xf32> to vector<8x256xf32>
    %cst_41 = arith.constant 5.000000e-01 : f32
    %95 = vector.broadcast %cst_41 : f32 to vector<8x256xf32>
    %96 = arith.mulf %95, %94 : vector<8x256xf32>
    %97 = math.tanh %96 : vector<8x256xf32>
    %cst_42 = arith.constant 1.000000e+00 : f32
    %98 = vector.broadcast %cst_42 : f32 to vector<8x256xf32>
    %99 = arith.addf %98, %97 : vector<8x256xf32>
    %cst_43 = arith.constant 5.000000e-01 : f32
    %100 = vector.broadcast %cst_43 : f32 to vector<8x256xf32>
    %101 = arith.mulf %100, %99 : vector<8x256xf32>
    %102 = vector.extract_strided_slice %93 {offsets = [0, 256], sizes = [8, 256], strides = [1, 1]} : vector<8x1024xf32> to vector<8x256xf32>
    %cst_44 = arith.constant 5.000000e-01 : f32
    %103 = vector.broadcast %cst_44 : f32 to vector<8x256xf32>
    %104 = arith.mulf %103, %102 : vector<8x256xf32>
    %105 = math.tanh %104 : vector<8x256xf32>
    %cst_45 = arith.constant 1.000000e+00 : f32
    %106 = vector.broadcast %cst_45 : f32 to vector<8x256xf32>
    %107 = arith.addf %106, %105 : vector<8x256xf32>
    %cst_46 = arith.constant 5.000000e-01 : f32
    %108 = vector.broadcast %cst_46 : f32 to vector<8x256xf32>
    %109 = arith.mulf %108, %107 : vector<8x256xf32>
    %110 = vector.extract_strided_slice %93 {offsets = [0, 512], sizes = [8, 256], strides = [1, 1]} : vector<8x1024xf32> to vector<8x256xf32>
    %111 = math.tanh %110 : vector<8x256xf32>
    %112 = vector.extract_strided_slice %93 {offsets = [0, 768], sizes = [8, 256], strides = [1, 1]} : vector<8x1024xf32> to vector<8x256xf32>
    %cst_47 = arith.constant 5.000000e-01 : f32
    %113 = vector.broadcast %cst_47 : f32 to vector<8x256xf32>
    %114 = arith.mulf %113, %112 : vector<8x256xf32>
    %115 = math.tanh %114 : vector<8x256xf32>
    %cst_48 = arith.constant 1.000000e+00 : f32
    %116 = vector.broadcast %cst_48 : f32 to vector<8x256xf32>
    %117 = arith.addf %116, %115 : vector<8x256xf32>
    %cst_49 = arith.constant 5.000000e-01 : f32
    %118 = vector.broadcast %cst_49 : f32 to vector<8x256xf32>
    %119 = arith.mulf %118, %117 : vector<8x256xf32>
    %120 = arith.mulf %109, %46 : vector<8x256xf32>
    %121 = arith.mulf %101, %111 : vector<8x256xf32>
    %122 = arith.addf %120, %121 : vector<8x256xf32>
    %123 = math.tanh %122 : vector<8x256xf32>
    %124 = arith.mulf %119, %123 : vector<8x256xf32>
    %125 = tpu.concatenate %124, %86 in 1 : vector<8x256xf32>, vector<8x256xf32> -> vector<8x512xf32>
    %126 = arith.truncf %125 : vector<8x512xf32> to vector<8x512xbf16>
    %c0_50 = arith.constant 0 : index
    %c0_51 = arith.constant 0 : index
    %127 = vector.load %arg14[%c0_50, %c0_51] : memref<512x1024xbf16, #tpu.memory_space<vmem>>, vector<512x1024xbf16>
    %cst_52 = arith.constant dense<0.000000e+00> : vector<8x1024xf32>
    %128 = tpu.matmul %126, %127, %cst_52 {dimension_numbers = #tpu.dot_dimension_numbers<[1], [0], [0], [1], [0, 0, 1, 1], [], []>} : vector<8x512xbf16>, vector<512x1024xbf16>, vector<8x1024xf32> -> vector<8x1024xf32>
    %129 = arith.addf %128, %13 : vector<8x1024xf32>
    %130 = vector.extract_strided_slice %129 {offsets = [0, 0], sizes = [8, 256], strides = [1, 1]} : vector<8x1024xf32> to vector<8x256xf32>
    %cst_53 = arith.constant 5.000000e-01 : f32
    %131 = vector.broadcast %cst_53 : f32 to vector<8x256xf32>
    %132 = arith.mulf %131, %130 : vector<8x256xf32>
    %133 = math.tanh %132 : vector<8x256xf32>
    %cst_54 = arith.constant 1.000000e+00 : f32
    %134 = vector.broadcast %cst_54 : f32 to vector<8x256xf32>
    %135 = arith.addf %134, %133 : vector<8x256xf32>
    %cst_55 = arith.constant 5.000000e-01 : f32
    %136 = vector.broadcast %cst_55 : f32 to vector<8x256xf32>
    %137 = arith.mulf %136, %135 : vector<8x256xf32>
    %138 = vector.extract_strided_slice %129 {offsets = [0, 256], sizes = [8, 256], strides = [1, 1]} : vector<8x1024xf32> to vector<8x256xf32>
    %cst_56 = arith.constant 5.000000e-01 : f32
    %139 = vector.broadcast %cst_56 : f32 to vector<8x256xf32>
    %140 = arith.mulf %139, %138 : vector<8x256xf32>
    %141 = math.tanh %140 : vector<8x256xf32>
    %cst_57 = arith.constant 1.000000e+00 : f32
    %142 = vector.broadcast %cst_57 : f32 to vector<8x256xf32>
    %143 = arith.addf %142, %141 : vector<8x256xf32>
    %cst_58 = arith.constant 5.000000e-01 : f32
    %144 = vector.broadcast %cst_58 : f32 to vector<8x256xf32>
    %145 = arith.mulf %144, %143 : vector<8x256xf32>
    %146 = vector.extract_strided_slice %129 {offsets = [0, 512], sizes = [8, 256], strides = [1, 1]} : vector<8x1024xf32> to vector<8x256xf32>
    %147 = math.tanh %146 : vector<8x256xf32>
    %148 = vector.extract_strided_slice %129 {offsets = [0, 768], sizes = [8, 256], strides = [1, 1]} : vector<8x1024xf32> to vector<8x256xf32>
    %cst_59 = arith.constant 5.000000e-01 : f32
    %149 = vector.broadcast %cst_59 : f32 to vector<8x256xf32>
    %150 = arith.mulf %149, %148 : vector<8x256xf32>
    %151 = math.tanh %150 : vector<8x256xf32>
    %cst_60 = arith.constant 1.000000e+00 : f32
    %152 = vector.broadcast %cst_60 : f32 to vector<8x256xf32>
    %153 = arith.addf %152, %151 : vector<8x256xf32>
    %cst_61 = arith.constant 5.000000e-01 : f32
    %154 = vector.broadcast %cst_61 : f32 to vector<8x256xf32>
    %155 = arith.mulf %154, %153 : vector<8x256xf32>
    %156 = arith.mulf %145, %84 : vector<8x256xf32>
    %157 = arith.mulf %137, %147 : vector<8x256xf32>
    %158 = arith.addf %156, %157 : vector<8x256xf32>
    %159 = math.tanh %158 : vector<8x256xf32>
    %160 = arith.mulf %155, %159 : vector<8x256xf32>
    %c16 = arith.constant 16 : index
    %c0_62 = arith.constant 0 : index
    %161 = vector.load %arg12[%c16, %c0_62] : memref<64x1024xf32, #tpu.memory_space<vmem>>, vector<8x1024xf32>
    %162 = arith.truncf %124 : vector<8x256xf32> to vector<8x256xbf16>
    %c0_63 = arith.constant 0 : index
    %c0_64 = arith.constant 0 : index
    %163 = vector.load %arg13[%c0_63, %c0_64] : memref<256x1024xbf16, #tpu.memory_space<vmem>>, vector<256x1024xbf16>
    %cst_65 = arith.constant dense<0.000000e+00> : vector<8x1024xf32>
    %164 = tpu.matmul %162, %163, %cst_65 {dimension_numbers = #tpu.dot_dimension_numbers<[1], [0], [0], [1], [0, 0, 1, 1], [], []>} : vector<8x256xbf16>, vector<256x1024xbf16>, vector<8x1024xf32> -> vector<8x1024xf32>
    %165 = arith.addf %161, %164 : vector<8x1024xf32>
    %166 = vector.extract_strided_slice %165 {offsets = [0, 0], sizes = [8, 256], strides = [1, 1]} : vector<8x1024xf32> to vector<8x256xf32>
    %cst_66 = arith.constant 5.000000e-01 : f32
    %167 = vector.broadcast %cst_66 : f32 to vector<8x256xf32>
    %168 = arith.mulf %167, %166 : vector<8x256xf32>
    %169 = math.tanh %168 : vector<8x256xf32>
    %cst_67 = arith.constant 1.000000e+00 : f32
    %170 = vector.broadcast %cst_67 : f32 to vector<8x256xf32>
    %171 = arith.addf %170, %169 : vector<8x256xf32>
    %cst_68 = arith.constant 5.000000e-01 : f32
    %172 = vector.broadcast %cst_68 : f32 to vector<8x256xf32>
    %173 = arith.mulf %172, %171 : vector<8x256xf32>
    %174 = vector.extract_strided_slice %165 {offsets = [0, 256], sizes = [8, 256], strides = [1, 1]} : vector<8x1024xf32> to vector<8x256xf32>
    %cst_69 = arith.constant 5.000000e-01 : f32
    %175 = vector.broadcast %cst_69 : f32 to vector<8x256xf32>
    %176 = arith.mulf %175, %174 : vector<8x256xf32>
    %177 = math.tanh %176 : vector<8x256xf32>
    %cst_70 = arith.constant 1.000000e+00 : f32
    %178 = vector.broadcast %cst_70 : f32 to vector<8x256xf32>
    %179 = arith.addf %178, %177 : vector<8x256xf32>
    %cst_71 = arith.constant 5.000000e-01 : f32
    %180 = vector.broadcast %cst_71 : f32 to vector<8x256xf32>
    %181 = arith.mulf %180, %179 : vector<8x256xf32>
    %182 = vector.extract_strided_slice %165 {offsets = [0, 512], sizes = [8, 256], strides = [1, 1]} : vector<8x1024xf32> to vector<8x256xf32>
    %183 = math.tanh %182 : vector<8x256xf32>
    %184 = vector.extract_strided_slice %165 {offsets = [0, 768], sizes = [8, 256], strides = [1, 1]} : vector<8x1024xf32> to vector<8x256xf32>
    %cst_72 = arith.constant 5.000000e-01 : f32
    %185 = vector.broadcast %cst_72 : f32 to vector<8x256xf32>
    %186 = arith.mulf %185, %184 : vector<8x256xf32>
    %187 = math.tanh %186 : vector<8x256xf32>
    %cst_73 = arith.constant 1.000000e+00 : f32
    %188 = vector.broadcast %cst_73 : f32 to vector<8x256xf32>
    %189 = arith.addf %188, %187 : vector<8x256xf32>
    %cst_74 = arith.constant 5.000000e-01 : f32
    %190 = vector.broadcast %cst_74 : f32 to vector<8x256xf32>
    %191 = arith.mulf %190, %189 : vector<8x256xf32>
    %192 = arith.mulf %181, %122 : vector<8x256xf32>
    %193 = arith.mulf %173, %183 : vector<8x256xf32>
    %194 = arith.addf %192, %193 : vector<8x256xf32>
    %195 = math.tanh %194 : vector<8x256xf32>
    %196 = arith.mulf %191, %195 : vector<8x256xf32>
    %197 = tpu.concatenate %196, %160 in 1 : vector<8x256xf32>, vector<8x256xf32> -> vector<8x512xf32>
    %198 = arith.truncf %197 : vector<8x512xf32> to vector<8x512xbf16>
    %c0_75 = arith.constant 0 : index
    %c0_76 = arith.constant 0 : index
    %199 = vector.load %arg14[%c0_75, %c0_76] : memref<512x1024xbf16, #tpu.memory_space<vmem>>, vector<512x1024xbf16>
    %cst_77 = arith.constant dense<0.000000e+00> : vector<8x1024xf32>
    %200 = tpu.matmul %198, %199, %cst_77 {dimension_numbers = #tpu.dot_dimension_numbers<[1], [0], [0], [1], [0, 0, 1, 1], [], []>} : vector<8x512xbf16>, vector<512x1024xbf16>, vector<8x1024xf32> -> vector<8x1024xf32>
    %201 = arith.addf %200, %13 : vector<8x1024xf32>
    %202 = vector.extract_strided_slice %201 {offsets = [0, 0], sizes = [8, 256], strides = [1, 1]} : vector<8x1024xf32> to vector<8x256xf32>
    %cst_78 = arith.constant 5.000000e-01 : f32
    %203 = vector.broadcast %cst_78 : f32 to vector<8x256xf32>
    %204 = arith.mulf %203, %202 : vector<8x256xf32>
    %205 = math.tanh %204 : vector<8x256xf32>
    %cst_79 = arith.constant 1.000000e+00 : f32
    %206 = vector.broadcast %cst_79 : f32 to vector<8x256xf32>
    %207 = arith.addf %206, %205 : vector<8x256xf32>
    %cst_80 = arith.constant 5.000000e-01 : f32
    %208 = vector.broadcast %cst_80 : f32 to vector<8x256xf32>
    %209 = arith.mulf %208, %207 : vector<8x256xf32>
    %210 = vector.extract_strided_slice %201 {offsets = [0, 256], sizes = [8, 256], strides = [1, 1]} : vector<8x1024xf32> to vector<8x256xf32>
    %cst_81 = arith.constant 5.000000e-01 : f32
    %211 = vector.broadcast %cst_81 : f32 to vector<8x256xf32>
    %212 = arith.mulf %211, %210 : vector<8x256xf32>
    %213 = math.tanh %212 : vector<8x256xf32>
    %cst_82 = arith.constant 1.000000e+00 : f32
    %214 = vector.broadcast %cst_82 : f32 to vector<8x256xf32>
    %215 = arith.addf %214, %213 : vector<8x256xf32>
    %cst_83 = arith.constant 5.000000e-01 : f32
    %216 = vector.broadcast %cst_83 : f32 to vector<8x256xf32>
    %217 = arith.mulf %216, %215 : vector<8x256xf32>
    %218 = vector.extract_strided_slice %201 {offsets = [0, 512], sizes = [8, 256], strides = [1, 1]} : vector<8x1024xf32> to vector<8x256xf32>
    %219 = math.tanh %218 : vector<8x256xf32>
    %220 = vector.extract_strided_slice %201 {offsets = [0, 768], sizes = [8, 256], strides = [1, 1]} : vector<8x1024xf32> to vector<8x256xf32>
    %cst_84 = arith.constant 5.000000e-01 : f32
    %221 = vector.broadcast %cst_84 : f32 to vector<8x256xf32>
    %222 = arith.mulf %221, %220 : vector<8x256xf32>
    %223 = math.tanh %222 : vector<8x256xf32>
    %cst_85 = arith.constant 1.000000e+00 : f32
    %224 = vector.broadcast %cst_85 : f32 to vector<8x256xf32>
    %225 = arith.addf %224, %223 : vector<8x256xf32>
    %cst_86 = arith.constant 5.000000e-01 : f32
    %226 = vector.broadcast %cst_86 : f32 to vector<8x256xf32>
    %227 = arith.mulf %226, %225 : vector<8x256xf32>
    %228 = arith.mulf %217, %158 : vector<8x256xf32>
    %229 = arith.mulf %209, %219 : vector<8x256xf32>
    %230 = arith.addf %228, %229 : vector<8x256xf32>
    %231 = math.tanh %230 : vector<8x256xf32>
    %232 = arith.mulf %227, %231 : vector<8x256xf32>
    %c24 = arith.constant 24 : index
    %c0_87 = arith.constant 0 : index
    %233 = vector.load %arg12[%c24, %c0_87] : memref<64x1024xf32, #tpu.memory_space<vmem>>, vector<8x1024xf32>
    %234 = arith.truncf %196 : vector<8x256xf32> to vector<8x256xbf16>
    %c0_88 = arith.constant 0 : index
    %c0_89 = arith.constant 0 : index
    %235 = vector.load %arg13[%c0_88, %c0_89] : memref<256x1024xbf16, #tpu.memory_space<vmem>>, vector<256x1024xbf16>
    %cst_90 = arith.constant dense<0.000000e+00> : vector<8x1024xf32>
    %236 = tpu.matmul %234, %235, %cst_90 {dimension_numbers = #tpu.dot_dimension_numbers<[1], [0], [0], [1], [0, 0, 1, 1], [], []>} : vector<8x256xbf16>, vector<256x1024xbf16>, vector<8x1024xf32> -> vector<8x1024xf32>
    %237 = arith.addf %233, %236 : vector<8x1024xf32>
    %238 = vector.extract_strided_slice %237 {offsets = [0, 0], sizes = [8, 256], strides = [1, 1]} : vector<8x1024xf32> to vector<8x256xf32>
    %cst_91 = arith.constant 5.000000e-01 : f32
    %239 = vector.broadcast %cst_91 : f32 to vector<8x256xf32>
    %240 = arith.mulf %239, %238 : vector<8x256xf32>
    %241 = math.tanh %240 : vector<8x256xf32>
    %cst_92 = arith.constant 1.000000e+00 : f32
    %242 = vector.broadcast %cst_92 : f32 to vector<8x256xf32>
    %243 = arith.addf %242, %241 : vector<8x256xf32>
    %cst_93 = arith.constant 5.000000e-01 : f32
    %244 = vector.broadcast %cst_93 : f32 to vector<8x256xf32>
    %245 = arith.mulf %244, %243 : vector<8x256xf32>
    %246 = vector.extract_strided_slice %237 {offsets = [0, 256], sizes = [8, 256], strides = [1, 1]} : vector<8x1024xf32> to vector<8x256xf32>
    %cst_94 = arith.constant 5.000000e-01 : f32
    %247 = vector.broadcast %cst_94 : f32 to vector<8x256xf32>
    %248 = arith.mulf %247, %246 : vector<8x256xf32>
    %249 = math.tanh %248 : vector<8x256xf32>
    %cst_95 = arith.constant 1.000000e+00 : f32
    %250 = vector.broadcast %cst_95 : f32 to vector<8x256xf32>
    %251 = arith.addf %250, %249 : vector<8x256xf32>
    %cst_96 = arith.constant 5.000000e-01 : f32
    %252 = vector.broadcast %cst_96 : f32 to vector<8x256xf32>
    %253 = arith.mulf %252, %251 : vector<8x256xf32>
    %254 = vector.extract_strided_slice %237 {offsets = [0, 512], sizes = [8, 256], strides = [1, 1]} : vector<8x1024xf32> to vector<8x256xf32>
    %255 = math.tanh %254 : vector<8x256xf32>
    %256 = vector.extract_strided_slice %237 {offsets = [0, 768], sizes = [8, 256], strides = [1, 1]} : vector<8x1024xf32> to vector<8x256xf32>
    %cst_97 = arith.constant 5.000000e-01 : f32
    %257 = vector.broadcast %cst_97 : f32 to vector<8x256xf32>
    %258 = arith.mulf %257, %256 : vector<8x256xf32>
    %259 = math.tanh %258 : vector<8x256xf32>
    %cst_98 = arith.constant 1.000000e+00 : f32
    %260 = vector.broadcast %cst_98 : f32 to vector<8x256xf32>
    %261 = arith.addf %260, %259 : vector<8x256xf32>
    %cst_99 = arith.constant 5.000000e-01 : f32
    %262 = vector.broadcast %cst_99 : f32 to vector<8x256xf32>
    %263 = arith.mulf %262, %261 : vector<8x256xf32>
    %264 = arith.mulf %253, %194 : vector<8x256xf32>
    %265 = arith.mulf %245, %255 : vector<8x256xf32>
    %266 = arith.addf %264, %265 : vector<8x256xf32>
    %267 = math.tanh %266 : vector<8x256xf32>
    %268 = arith.mulf %263, %267 : vector<8x256xf32>
    %269 = tpu.concatenate %268, %232 in 1 : vector<8x256xf32>, vector<8x256xf32> -> vector<8x512xf32>
    %270 = arith.truncf %269 : vector<8x512xf32> to vector<8x512xbf16>
    %c0_100 = arith.constant 0 : index
    %c0_101 = arith.constant 0 : index
    %271 = vector.load %arg14[%c0_100, %c0_101] : memref<512x1024xbf16, #tpu.memory_space<vmem>>, vector<512x1024xbf16>
    %cst_102 = arith.constant dense<0.000000e+00> : vector<8x1024xf32>
    %272 = tpu.matmul %270, %271, %cst_102 {dimension_numbers = #tpu.dot_dimension_numbers<[1], [0], [0], [1], [0, 0, 1, 1], [], []>} : vector<8x512xbf16>, vector<512x1024xbf16>, vector<8x1024xf32> -> vector<8x1024xf32>
    %273 = arith.addf %272, %13 : vector<8x1024xf32>
    %274 = vector.extract_strided_slice %273 {offsets = [0, 0], sizes = [8, 256], strides = [1, 1]} : vector<8x1024xf32> to vector<8x256xf32>
    %cst_103 = arith.constant 5.000000e-01 : f32
    %275 = vector.broadcast %cst_103 : f32 to vector<8x256xf32>
    %276 = arith.mulf %275, %274 : vector<8x256xf32>
    %277 = math.tanh %276 : vector<8x256xf32>
    %cst_104 = arith.constant 1.000000e+00 : f32
    %278 = vector.broadcast %cst_104 : f32 to vector<8x256xf32>
    %279 = arith.addf %278, %277 : vector<8x256xf32>
    %cst_105 = arith.constant 5.000000e-01 : f32
    %280 = vector.broadcast %cst_105 : f32 to vector<8x256xf32>
    %281 = arith.mulf %280, %279 : vector<8x256xf32>
    %282 = vector.extract_strided_slice %273 {offsets = [0, 256], sizes = [8, 256], strides = [1, 1]} : vector<8x1024xf32> to vector<8x256xf32>
    %cst_106 = arith.constant 5.000000e-01 : f32
    %283 = vector.broadcast %cst_106 : f32 to vector<8x256xf32>
    %284 = arith.mulf %283, %282 : vector<8x256xf32>
    %285 = math.tanh %284 : vector<8x256xf32>
    %cst_107 = arith.constant 1.000000e+00 : f32
    %286 = vector.broadcast %cst_107 : f32 to vector<8x256xf32>
    %287 = arith.addf %286, %285 : vector<8x256xf32>
    %cst_108 = arith.constant 5.000000e-01 : f32
    %288 = vector.broadcast %cst_108 : f32 to vector<8x256xf32>
    %289 = arith.mulf %288, %287 : vector<8x256xf32>
    %290 = vector.extract_strided_slice %273 {offsets = [0, 512], sizes = [8, 256], strides = [1, 1]} : vector<8x1024xf32> to vector<8x256xf32>
    %291 = math.tanh %290 : vector<8x256xf32>
    %292 = vector.extract_strided_slice %273 {offsets = [0, 768], sizes = [8, 256], strides = [1, 1]} : vector<8x1024xf32> to vector<8x256xf32>
    %cst_109 = arith.constant 5.000000e-01 : f32
    %293 = vector.broadcast %cst_109 : f32 to vector<8x256xf32>
    %294 = arith.mulf %293, %292 : vector<8x256xf32>
    %295 = math.tanh %294 : vector<8x256xf32>
    %cst_110 = arith.constant 1.000000e+00 : f32
    %296 = vector.broadcast %cst_110 : f32 to vector<8x256xf32>
    %297 = arith.addf %296, %295 : vector<8x256xf32>
    %cst_111 = arith.constant 5.000000e-01 : f32
    %298 = vector.broadcast %cst_111 : f32 to vector<8x256xf32>
    %299 = arith.mulf %298, %297 : vector<8x256xf32>
    %300 = arith.mulf %289, %230 : vector<8x256xf32>
    %301 = arith.mulf %281, %291 : vector<8x256xf32>
    %302 = arith.addf %300, %301 : vector<8x256xf32>
    %303 = math.tanh %302 : vector<8x256xf32>
    %304 = arith.mulf %299, %303 : vector<8x256xf32>
    %c32 = arith.constant 32 : index
    %c0_112 = arith.constant 0 : index
    %305 = vector.load %arg12[%c32, %c0_112] : memref<64x1024xf32, #tpu.memory_space<vmem>>, vector<8x1024xf32>
    %306 = arith.truncf %268 : vector<8x256xf32> to vector<8x256xbf16>
    %c0_113 = arith.constant 0 : index
    %c0_114 = arith.constant 0 : index
    %307 = vector.load %arg13[%c0_113, %c0_114] : memref<256x1024xbf16, #tpu.memory_space<vmem>>, vector<256x1024xbf16>
    %cst_115 = arith.constant dense<0.000000e+00> : vector<8x1024xf32>
    %308 = tpu.matmul %306, %307, %cst_115 {dimension_numbers = #tpu.dot_dimension_numbers<[1], [0], [0], [1], [0, 0, 1, 1], [], []>} : vector<8x256xbf16>, vector<256x1024xbf16>, vector<8x1024xf32> -> vector<8x1024xf32>
    %309 = arith.addf %305, %308 : vector<8x1024xf32>
    %310 = vector.extract_strided_slice %309 {offsets = [0, 0], sizes = [8, 256], strides = [1, 1]} : vector<8x1024xf32> to vector<8x256xf32>
    %cst_116 = arith.constant 5.000000e-01 : f32
    %311 = vector.broadcast %cst_116 : f32 to vector<8x256xf32>
    %312 = arith.mulf %311, %310 : vector<8x256xf32>
    %313 = math.tanh %312 : vector<8x256xf32>
    %cst_117 = arith.constant 1.000000e+00 : f32
    %314 = vector.broadcast %cst_117 : f32 to vector<8x256xf32>
    %315 = arith.addf %314, %313 : vector<8x256xf32>
    %cst_118 = arith.constant 5.000000e-01 : f32
    %316 = vector.broadcast %cst_118 : f32 to vector<8x256xf32>
    %317 = arith.mulf %316, %315 : vector<8x256xf32>
    %318 = vector.extract_strided_slice %309 {offsets = [0, 256], sizes = [8, 256], strides = [1, 1]} : vector<8x1024xf32> to vector<8x256xf32>
    %cst_119 = arith.constant 5.000000e-01 : f32
    %319 = vector.broadcast %cst_119 : f32 to vector<8x256xf32>
    %320 = arith.mulf %319, %318 : vector<8x256xf32>
    %321 = math.tanh %320 : vector<8x256xf32>
    %cst_120 = arith.constant 1.000000e+00 : f32
    %322 = vector.broadcast %cst_120 : f32 to vector<8x256xf32>
    %323 = arith.addf %322, %321 : vector<8x256xf32>
    %cst_121 = arith.constant 5.000000e-01 : f32
    %324 = vector.broadcast %cst_121 : f32 to vector<8x256xf32>
    %325 = arith.mulf %324, %323 : vector<8x256xf32>
    %326 = vector.extract_strided_slice %309 {offsets = [0, 512], sizes = [8, 256], strides = [1, 1]} : vector<8x1024xf32> to vector<8x256xf32>
    %327 = math.tanh %326 : vector<8x256xf32>
    %328 = vector.extract_strided_slice %309 {offsets = [0, 768], sizes = [8, 256], strides = [1, 1]} : vector<8x1024xf32> to vector<8x256xf32>
    %cst_122 = arith.constant 5.000000e-01 : f32
    %329 = vector.broadcast %cst_122 : f32 to vector<8x256xf32>
    %330 = arith.mulf %329, %328 : vector<8x256xf32>
    %331 = math.tanh %330 : vector<8x256xf32>
    %cst_123 = arith.constant 1.000000e+00 : f32
    %332 = vector.broadcast %cst_123 : f32 to vector<8x256xf32>
    %333 = arith.addf %332, %331 : vector<8x256xf32>
    %cst_124 = arith.constant 5.000000e-01 : f32
    %334 = vector.broadcast %cst_124 : f32 to vector<8x256xf32>
    %335 = arith.mulf %334, %333 : vector<8x256xf32>
    %336 = arith.mulf %325, %266 : vector<8x256xf32>
    %337 = arith.mulf %317, %327 : vector<8x256xf32>
    %338 = arith.addf %336, %337 : vector<8x256xf32>
    %339 = math.tanh %338 : vector<8x256xf32>
    %340 = arith.mulf %335, %339 : vector<8x256xf32>
    %341 = tpu.concatenate %340, %304 in 1 : vector<8x256xf32>, vector<8x256xf32> -> vector<8x512xf32>
    %342 = arith.truncf %341 : vector<8x512xf32> to vector<8x512xbf16>
    %c0_125 = arith.constant 0 : index
    %c0_126 = arith.constant 0 : index
    %343 = vector.load %arg14[%c0_125, %c0_126] : memref<512x1024xbf16, #tpu.memory_space<vmem>>, vector<512x1024xbf16>
    %cst_127 = arith.constant dense<0.000000e+00> : vector<8x1024xf32>
    %344 = tpu.matmul %342, %343, %cst_127 {dimension_numbers = #tpu.dot_dimension_numbers<[1], [0], [0], [1], [0, 0, 1, 1], [], []>} : vector<8x512xbf16>, vector<512x1024xbf16>, vector<8x1024xf32> -> vector<8x1024xf32>
    %345 = arith.addf %344, %13 : vector<8x1024xf32>
    %346 = vector.extract_strided_slice %345 {offsets = [0, 0], sizes = [8, 256], strides = [1, 1]} : vector<8x1024xf32> to vector<8x256xf32>
    %cst_128 = arith.constant 5.000000e-01 : f32
    %347 = vector.broadcast %cst_128 : f32 to vector<8x256xf32>
    %348 = arith.mulf %347, %346 : vector<8x256xf32>
    %349 = math.tanh %348 : vector<8x256xf32>
    %cst_129 = arith.constant 1.000000e+00 : f32
    %350 = vector.broadcast %cst_129 : f32 to vector<8x256xf32>
    %351 = arith.addf %350, %349 : vector<8x256xf32>
    %cst_130 = arith.constant 5.000000e-01 : f32
    %352 = vector.broadcast %cst_130 : f32 to vector<8x256xf32>
    %353 = arith.mulf %352, %351 : vector<8x256xf32>
    %354 = vector.extract_strided_slice %345 {offsets = [0, 256], sizes = [8, 256], strides = [1, 1]} : vector<8x1024xf32> to vector<8x256xf32>
    %cst_131 = arith.constant 5.000000e-01 : f32
    %355 = vector.broadcast %cst_131 : f32 to vector<8x256xf32>
    %356 = arith.mulf %355, %354 : vector<8x256xf32>
    %357 = math.tanh %356 : vector<8x256xf32>
    %cst_132 = arith.constant 1.000000e+00 : f32
    %358 = vector.broadcast %cst_132 : f32 to vector<8x256xf32>
    %359 = arith.addf %358, %357 : vector<8x256xf32>
    %cst_133 = arith.constant 5.000000e-01 : f32
    %360 = vector.broadcast %cst_133 : f32 to vector<8x256xf32>
    %361 = arith.mulf %360, %359 : vector<8x256xf32>
    %362 = vector.extract_strided_slice %345 {offsets = [0, 512], sizes = [8, 256], strides = [1, 1]} : vector<8x1024xf32> to vector<8x256xf32>
    %363 = math.tanh %362 : vector<8x256xf32>
    %364 = vector.extract_strided_slice %345 {offsets = [0, 768], sizes = [8, 256], strides = [1, 1]} : vector<8x1024xf32> to vector<8x256xf32>
    %cst_134 = arith.constant 5.000000e-01 : f32
    %365 = vector.broadcast %cst_134 : f32 to vector<8x256xf32>
    %366 = arith.mulf %365, %364 : vector<8x256xf32>
    %367 = math.tanh %366 : vector<8x256xf32>
    %cst_135 = arith.constant 1.000000e+00 : f32
    %368 = vector.broadcast %cst_135 : f32 to vector<8x256xf32>
    %369 = arith.addf %368, %367 : vector<8x256xf32>
    %cst_136 = arith.constant 5.000000e-01 : f32
    %370 = vector.broadcast %cst_136 : f32 to vector<8x256xf32>
    %371 = arith.mulf %370, %369 : vector<8x256xf32>
    %372 = arith.mulf %361, %302 : vector<8x256xf32>
    %373 = arith.mulf %353, %363 : vector<8x256xf32>
    %374 = arith.addf %372, %373 : vector<8x256xf32>
    %375 = math.tanh %374 : vector<8x256xf32>
    %376 = arith.mulf %371, %375 : vector<8x256xf32>
    %c40 = arith.constant 40 : index
    %c0_137 = arith.constant 0 : index
    %377 = vector.load %arg12[%c40, %c0_137] : memref<64x1024xf32, #tpu.memory_space<vmem>>, vector<8x1024xf32>
    %378 = arith.truncf %340 : vector<8x256xf32> to vector<8x256xbf16>
    %c0_138 = arith.constant 0 : index
    %c0_139 = arith.constant 0 : index
    %379 = vector.load %arg13[%c0_138, %c0_139] : memref<256x1024xbf16, #tpu.memory_space<vmem>>, vector<256x1024xbf16>
    %cst_140 = arith.constant dense<0.000000e+00> : vector<8x1024xf32>
    %380 = tpu.matmul %378, %379, %cst_140 {dimension_numbers = #tpu.dot_dimension_numbers<[1], [0], [0], [1], [0, 0, 1, 1], [], []>} : vector<8x256xbf16>, vector<256x1024xbf16>, vector<8x1024xf32> -> vector<8x1024xf32>
    %381 = arith.addf %377, %380 : vector<8x1024xf32>
    %382 = vector.extract_strided_slice %381 {offsets = [0, 0], sizes = [8, 256], strides = [1, 1]} : vector<8x1024xf32> to vector<8x256xf32>
    %cst_141 = arith.constant 5.000000e-01 : f32
    %383 = vector.broadcast %cst_141 : f32 to vector<8x256xf32>
    %384 = arith.mulf %383, %382 : vector<8x256xf32>
    %385 = math.tanh %384 : vector<8x256xf32>
    %cst_142 = arith.constant 1.000000e+00 : f32
    %386 = vector.broadcast %cst_142 : f32 to vector<8x256xf32>
    %387 = arith.addf %386, %385 : vector<8x256xf32>
    %cst_143 = arith.constant 5.000000e-01 : f32
    %388 = vector.broadcast %cst_143 : f32 to vector<8x256xf32>
    %389 = arith.mulf %388, %387 : vector<8x256xf32>
    %390 = vector.extract_strided_slice %381 {offsets = [0, 256], sizes = [8, 256], strides = [1, 1]} : vector<8x1024xf32> to vector<8x256xf32>
    %cst_144 = arith.constant 5.000000e-01 : f32
    %391 = vector.broadcast %cst_144 : f32 to vector<8x256xf32>
    %392 = arith.mulf %391, %390 : vector<8x256xf32>
    %393 = math.tanh %392 : vector<8x256xf32>
    %cst_145 = arith.constant 1.000000e+00 : f32
    %394 = vector.broadcast %cst_145 : f32 to vector<8x256xf32>
    %395 = arith.addf %394, %393 : vector<8x256xf32>
    %cst_146 = arith.constant 5.000000e-01 : f32
    %396 = vector.broadcast %cst_146 : f32 to vector<8x256xf32>
    %397 = arith.mulf %396, %395 : vector<8x256xf32>
    %398 = vector.extract_strided_slice %381 {offsets = [0, 512], sizes = [8, 256], strides = [1, 1]} : vector<8x1024xf32> to vector<8x256xf32>
    %399 = math.tanh %398 : vector<8x256xf32>
    %400 = vector.extract_strided_slice %381 {offsets = [0, 768], sizes = [8, 256], strides = [1, 1]} : vector<8x1024xf32> to vector<8x256xf32>
    %cst_147 = arith.constant 5.000000e-01 : f32
    %401 = vector.broadcast %cst_147 : f32 to vector<8x256xf32>
    %402 = arith.mulf %401, %400 : vector<8x256xf32>
    %403 = math.tanh %402 : vector<8x256xf32>
    %cst_148 = arith.constant 1.000000e+00 : f32
    %404 = vector.broadcast %cst_148 : f32 to vector<8x256xf32>
    %405 = arith.addf %404, %403 : vector<8x256xf32>
    %cst_149 = arith.constant 5.000000e-01 : f32
    %406 = vector.broadcast %cst_149 : f32 to vector<8x256xf32>
    %407 = arith.mulf %406, %405 : vector<8x256xf32>
    %408 = arith.mulf %397, %338 : vector<8x256xf32>
    %409 = arith.mulf %389, %399 : vector<8x256xf32>
    %410 = arith.addf %408, %409 : vector<8x256xf32>
    %411 = math.tanh %410 : vector<8x256xf32>
    %412 = arith.mulf %407, %411 : vector<8x256xf32>
    %413 = tpu.concatenate %412, %376 in 1 : vector<8x256xf32>, vector<8x256xf32> -> vector<8x512xf32>
    %414 = arith.truncf %413 : vector<8x512xf32> to vector<8x512xbf16>
    %c0_150 = arith.constant 0 : index
    %c0_151 = arith.constant 0 : index
    %415 = vector.load %arg14[%c0_150, %c0_151] : memref<512x1024xbf16, #tpu.memory_space<vmem>>, vector<512x1024xbf16>
    %cst_152 = arith.constant dense<0.000000e+00> : vector<8x1024xf32>
    %416 = tpu.matmul %414, %415, %cst_152 {dimension_numbers = #tpu.dot_dimension_numbers<[1], [0], [0], [1], [0, 0, 1, 1], [], []>} : vector<8x512xbf16>, vector<512x1024xbf16>, vector<8x1024xf32> -> vector<8x1024xf32>
    %417 = arith.addf %416, %13 : vector<8x1024xf32>
    %418 = vector.extract_strided_slice %417 {offsets = [0, 0], sizes = [8, 256], strides = [1, 1]} : vector<8x1024xf32> to vector<8x256xf32>
    %cst_153 = arith.constant 5.000000e-01 : f32
    %419 = vector.broadcast %cst_153 : f32 to vector<8x256xf32>
    %420 = arith.mulf %419, %418 : vector<8x256xf32>
    %421 = math.tanh %420 : vector<8x256xf32>
    %cst_154 = arith.constant 1.000000e+00 : f32
    %422 = vector.broadcast %cst_154 : f32 to vector<8x256xf32>
    %423 = arith.addf %422, %421 : vector<8x256xf32>
    %cst_155 = arith.constant 5.000000e-01 : f32
    %424 = vector.broadcast %cst_155 : f32 to vector<8x256xf32>
    %425 = arith.mulf %424, %423 : vector<8x256xf32>
    %426 = vector.extract_strided_slice %417 {offsets = [0, 256], sizes = [8, 256], strides = [1, 1]} : vector<8x1024xf32> to vector<8x256xf32>
    %cst_156 = arith.constant 5.000000e-01 : f32
    %427 = vector.broadcast %cst_156 : f32 to vector<8x256xf32>
    %428 = arith.mulf %427, %426 : vector<8x256xf32>
    %429 = math.tanh %428 : vector<8x256xf32>
    %cst_157 = arith.constant 1.000000e+00 : f32
    %430 = vector.broadcast %cst_157 : f32 to vector<8x256xf32>
    %431 = arith.addf %430, %429 : vector<8x256xf32>
    %cst_158 = arith.constant 5.000000e-01 : f32
    %432 = vector.broadcast %cst_158 : f32 to vector<8x256xf32>
    %433 = arith.mulf %432, %431 : vector<8x256xf32>
    %434 = vector.extract_strided_slice %417 {offsets = [0, 512], sizes = [8, 256], strides = [1, 1]} : vector<8x1024xf32> to vector<8x256xf32>
    %435 = math.tanh %434 : vector<8x256xf32>
    %436 = vector.extract_strided_slice %417 {offsets = [0, 768], sizes = [8, 256], strides = [1, 1]} : vector<8x1024xf32> to vector<8x256xf32>
    %cst_159 = arith.constant 5.000000e-01 : f32
    %437 = vector.broadcast %cst_159 : f32 to vector<8x256xf32>
    %438 = arith.mulf %437, %436 : vector<8x256xf32>
    %439 = math.tanh %438 : vector<8x256xf32>
    %cst_160 = arith.constant 1.000000e+00 : f32
    %440 = vector.broadcast %cst_160 : f32 to vector<8x256xf32>
    %441 = arith.addf %440, %439 : vector<8x256xf32>
    %cst_161 = arith.constant 5.000000e-01 : f32
    %442 = vector.broadcast %cst_161 : f32 to vector<8x256xf32>
    %443 = arith.mulf %442, %441 : vector<8x256xf32>
    %444 = arith.mulf %433, %374 : vector<8x256xf32>
    %445 = arith.mulf %425, %435 : vector<8x256xf32>
    %446 = arith.addf %444, %445 : vector<8x256xf32>
    %447 = math.tanh %446 : vector<8x256xf32>
    %448 = arith.mulf %443, %447 : vector<8x256xf32>
    %c48 = arith.constant 48 : index
    %c0_162 = arith.constant 0 : index
    %449 = vector.load %arg12[%c48, %c0_162] : memref<64x1024xf32, #tpu.memory_space<vmem>>, vector<8x1024xf32>
    %450 = arith.truncf %412 : vector<8x256xf32> to vector<8x256xbf16>
    %c0_163 = arith.constant 0 : index
    %c0_164 = arith.constant 0 : index
    %451 = vector.load %arg13[%c0_163, %c0_164] : memref<256x1024xbf16, #tpu.memory_space<vmem>>, vector<256x1024xbf16>
    %cst_165 = arith.constant dense<0.000000e+00> : vector<8x1024xf32>
    %452 = tpu.matmul %450, %451, %cst_165 {dimension_numbers = #tpu.dot_dimension_numbers<[1], [0], [0], [1], [0, 0, 1, 1], [], []>} : vector<8x256xbf16>, vector<256x1024xbf16>, vector<8x1024xf32> -> vector<8x1024xf32>
    %453 = arith.addf %449, %452 : vector<8x1024xf32>
    %454 = vector.extract_strided_slice %453 {offsets = [0, 0], sizes = [8, 256], strides = [1, 1]} : vector<8x1024xf32> to vector<8x256xf32>
    %cst_166 = arith.constant 5.000000e-01 : f32
    %455 = vector.broadcast %cst_166 : f32 to vector<8x256xf32>
    %456 = arith.mulf %455, %454 : vector<8x256xf32>
    %457 = math.tanh %456 : vector<8x256xf32>
    %cst_167 = arith.constant 1.000000e+00 : f32
    %458 = vector.broadcast %cst_167 : f32 to vector<8x256xf32>
    %459 = arith.addf %458, %457 : vector<8x256xf32>
    %cst_168 = arith.constant 5.000000e-01 : f32
    %460 = vector.broadcast %cst_168 : f32 to vector<8x256xf32>
    %461 = arith.mulf %460, %459 : vector<8x256xf32>
    %462 = vector.extract_strided_slice %453 {offsets = [0, 256], sizes = [8, 256], strides = [1, 1]} : vector<8x1024xf32> to vector<8x256xf32>
    %cst_169 = arith.constant 5.000000e-01 : f32
    %463 = vector.broadcast %cst_169 : f32 to vector<8x256xf32>
    %464 = arith.mulf %463, %462 : vector<8x256xf32>
    %465 = math.tanh %464 : vector<8x256xf32>
    %cst_170 = arith.constant 1.000000e+00 : f32
    %466 = vector.broadcast %cst_170 : f32 to vector<8x256xf32>
    %467 = arith.addf %466, %465 : vector<8x256xf32>
    %cst_171 = arith.constant 5.000000e-01 : f32
    %468 = vector.broadcast %cst_171 : f32 to vector<8x256xf32>
    %469 = arith.mulf %468, %467 : vector<8x256xf32>
    %470 = vector.extract_strided_slice %453 {offsets = [0, 512], sizes = [8, 256], strides = [1, 1]} : vector<8x1024xf32> to vector<8x256xf32>
    %471 = math.tanh %470 : vector<8x256xf32>
    %472 = vector.extract_strided_slice %453 {offsets = [0, 768], sizes = [8, 256], strides = [1, 1]} : vector<8x1024xf32> to vector<8x256xf32>
    %cst_172 = arith.constant 5.000000e-01 : f32
    %473 = vector.broadcast %cst_172 : f32 to vector<8x256xf32>
    %474 = arith.mulf %473, %472 : vector<8x256xf32>
    %475 = math.tanh %474 : vector<8x256xf32>
    %cst_173 = arith.constant 1.000000e+00 : f32
    %476 = vector.broadcast %cst_173 : f32 to vector<8x256xf32>
    %477 = arith.addf %476, %475 : vector<8x256xf32>
    %cst_174 = arith.constant 5.000000e-01 : f32
    %478 = vector.broadcast %cst_174 : f32 to vector<8x256xf32>
    %479 = arith.mulf %478, %477 : vector<8x256xf32>
    %480 = arith.mulf %469, %410 : vector<8x256xf32>
    %481 = arith.mulf %461, %471 : vector<8x256xf32>
    %482 = arith.addf %480, %481 : vector<8x256xf32>
    %483 = math.tanh %482 : vector<8x256xf32>
    %484 = arith.mulf %479, %483 : vector<8x256xf32>
    %485 = tpu.concatenate %484, %448 in 1 : vector<8x256xf32>, vector<8x256xf32> -> vector<8x512xf32>
    %486 = arith.truncf %485 : vector<8x512xf32> to vector<8x512xbf16>
    %c0_175 = arith.constant 0 : index
    %c0_176 = arith.constant 0 : index
    %487 = vector.load %arg14[%c0_175, %c0_176] : memref<512x1024xbf16, #tpu.memory_space<vmem>>, vector<512x1024xbf16>
    %cst_177 = arith.constant dense<0.000000e+00> : vector<8x1024xf32>
    %488 = tpu.matmul %486, %487, %cst_177 {dimension_numbers = #tpu.dot_dimension_numbers<[1], [0], [0], [1], [0, 0, 1, 1], [], []>} : vector<8x512xbf16>, vector<512x1024xbf16>, vector<8x1024xf32> -> vector<8x1024xf32>
    %489 = arith.addf %488, %13 : vector<8x1024xf32>
    %490 = vector.extract_strided_slice %489 {offsets = [0, 0], sizes = [8, 256], strides = [1, 1]} : vector<8x1024xf32> to vector<8x256xf32>
    %cst_178 = arith.constant 5.000000e-01 : f32
    %491 = vector.broadcast %cst_178 : f32 to vector<8x256xf32>
    %492 = arith.mulf %491, %490 : vector<8x256xf32>
    %493 = math.tanh %492 : vector<8x256xf32>
    %cst_179 = arith.constant 1.000000e+00 : f32
    %494 = vector.broadcast %cst_179 : f32 to vector<8x256xf32>
    %495 = arith.addf %494, %493 : vector<8x256xf32>
    %cst_180 = arith.constant 5.000000e-01 : f32
    %496 = vector.broadcast %cst_180 : f32 to vector<8x256xf32>
    %497 = arith.mulf %496, %495 : vector<8x256xf32>
    %498 = vector.extract_strided_slice %489 {offsets = [0, 256], sizes = [8, 256], strides = [1, 1]} : vector<8x1024xf32> to vector<8x256xf32>
    %cst_181 = arith.constant 5.000000e-01 : f32
    %499 = vector.broadcast %cst_181 : f32 to vector<8x256xf32>
    %500 = arith.mulf %499, %498 : vector<8x256xf32>
    %501 = math.tanh %500 : vector<8x256xf32>
    %cst_182 = arith.constant 1.000000e+00 : f32
    %502 = vector.broadcast %cst_182 : f32 to vector<8x256xf32>
    %503 = arith.addf %502, %501 : vector<8x256xf32>
    %cst_183 = arith.constant 5.000000e-01 : f32
    %504 = vector.broadcast %cst_183 : f32 to vector<8x256xf32>
    %505 = arith.mulf %504, %503 : vector<8x256xf32>
    %506 = vector.extract_strided_slice %489 {offsets = [0, 512], sizes = [8, 256], strides = [1, 1]} : vector<8x1024xf32> to vector<8x256xf32>
    %507 = math.tanh %506 : vector<8x256xf32>
    %508 = vector.extract_strided_slice %489 {offsets = [0, 768], sizes = [8, 256], strides = [1, 1]} : vector<8x1024xf32> to vector<8x256xf32>
    %cst_184 = arith.constant 5.000000e-01 : f32
    %509 = vector.broadcast %cst_184 : f32 to vector<8x256xf32>
    %510 = arith.mulf %509, %508 : vector<8x256xf32>
    %511 = math.tanh %510 : vector<8x256xf32>
    %cst_185 = arith.constant 1.000000e+00 : f32
    %512 = vector.broadcast %cst_185 : f32 to vector<8x256xf32>
    %513 = arith.addf %512, %511 : vector<8x256xf32>
    %cst_186 = arith.constant 5.000000e-01 : f32
    %514 = vector.broadcast %cst_186 : f32 to vector<8x256xf32>
    %515 = arith.mulf %514, %513 : vector<8x256xf32>
    %516 = arith.mulf %505, %446 : vector<8x256xf32>
    %517 = arith.mulf %497, %507 : vector<8x256xf32>
    %518 = arith.addf %516, %517 : vector<8x256xf32>
    %519 = math.tanh %518 : vector<8x256xf32>
    %520 = arith.mulf %515, %519 : vector<8x256xf32>
    %c56 = arith.constant 56 : index
    %c0_187 = arith.constant 0 : index
    %521 = vector.load %arg12[%c56, %c0_187] : memref<64x1024xf32, #tpu.memory_space<vmem>>, vector<8x1024xf32>
    %522 = arith.truncf %484 : vector<8x256xf32> to vector<8x256xbf16>
    %c0_188 = arith.constant 0 : index
    %c0_189 = arith.constant 0 : index
    %523 = vector.load %arg13[%c0_188, %c0_189] : memref<256x1024xbf16, #tpu.memory_space<vmem>>, vector<256x1024xbf16>
    %cst_190 = arith.constant dense<0.000000e+00> : vector<8x1024xf32>
    %524 = tpu.matmul %522, %523, %cst_190 {dimension_numbers = #tpu.dot_dimension_numbers<[1], [0], [0], [1], [0, 0, 1, 1], [], []>} : vector<8x256xbf16>, vector<256x1024xbf16>, vector<8x1024xf32> -> vector<8x1024xf32>
    %525 = arith.addf %521, %524 : vector<8x1024xf32>
    %526 = vector.extract_strided_slice %525 {offsets = [0, 0], sizes = [8, 256], strides = [1, 1]} : vector<8x1024xf32> to vector<8x256xf32>
    %cst_191 = arith.constant 5.000000e-01 : f32
    %527 = vector.broadcast %cst_191 : f32 to vector<8x256xf32>
    %528 = arith.mulf %527, %526 : vector<8x256xf32>
    %529 = math.tanh %528 : vector<8x256xf32>
    %cst_192 = arith.constant 1.000000e+00 : f32
    %530 = vector.broadcast %cst_192 : f32 to vector<8x256xf32>
    %531 = arith.addf %530, %529 : vector<8x256xf32>
    %cst_193 = arith.constant 5.000000e-01 : f32
    %532 = vector.broadcast %cst_193 : f32 to vector<8x256xf32>
    %533 = arith.mulf %532, %531 : vector<8x256xf32>
    %534 = vector.extract_strided_slice %525 {offsets = [0, 256], sizes = [8, 256], strides = [1, 1]} : vector<8x1024xf32> to vector<8x256xf32>
    %cst_194 = arith.constant 5.000000e-01 : f32
    %535 = vector.broadcast %cst_194 : f32 to vector<8x256xf32>
    %536 = arith.mulf %535, %534 : vector<8x256xf32>
    %537 = math.tanh %536 : vector<8x256xf32>
    %cst_195 = arith.constant 1.000000e+00 : f32
    %538 = vector.broadcast %cst_195 : f32 to vector<8x256xf32>
    %539 = arith.addf %538, %537 : vector<8x256xf32>
    %cst_196 = arith.constant 5.000000e-01 : f32
    %540 = vector.broadcast %cst_196 : f32 to vector<8x256xf32>
    %541 = arith.mulf %540, %539 : vector<8x256xf32>
    %542 = vector.extract_strided_slice %525 {offsets = [0, 512], sizes = [8, 256], strides = [1, 1]} : vector<8x1024xf32> to vector<8x256xf32>
    %543 = math.tanh %542 : vector<8x256xf32>
    %544 = vector.extract_strided_slice %525 {offsets = [0, 768], sizes = [8, 256], strides = [1, 1]} : vector<8x1024xf32> to vector<8x256xf32>
    %cst_197 = arith.constant 5.000000e-01 : f32
    %545 = vector.broadcast %cst_197 : f32 to vector<8x256xf32>
    %546 = arith.mulf %545, %544 : vector<8x256xf32>
    %547 = math.tanh %546 : vector<8x256xf32>
    %cst_198 = arith.constant 1.000000e+00 : f32
    %548 = vector.broadcast %cst_198 : f32 to vector<8x256xf32>
    %549 = arith.addf %548, %547 : vector<8x256xf32>
    %cst_199 = arith.constant 5.000000e-01 : f32
    %550 = vector.broadcast %cst_199 : f32 to vector<8x256xf32>
    %551 = arith.mulf %550, %549 : vector<8x256xf32>
    %552 = arith.mulf %541, %482 : vector<8x256xf32>
    %553 = arith.mulf %533, %543 : vector<8x256xf32>
    %554 = arith.addf %552, %553 : vector<8x256xf32>
    %555 = math.tanh %554 : vector<8x256xf32>
    %556 = arith.mulf %551, %555 : vector<8x256xf32>
    %557 = tpu.concatenate %556, %520 in 1 : vector<8x256xf32>, vector<8x256xf32> -> vector<8x512xf32>
    %558 = arith.truncf %557 : vector<8x512xf32> to vector<8x512xbf16>
    %c0_200 = arith.constant 0 : index
    %c0_201 = arith.constant 0 : index
    %559 = vector.load %arg14[%c0_200, %c0_201] : memref<512x1024xbf16, #tpu.memory_space<vmem>>, vector<512x1024xbf16>
    %cst_202 = arith.constant dense<0.000000e+00> : vector<8x1024xf32>
    %560 = tpu.matmul %558, %559, %cst_202 {dimension_numbers = #tpu.dot_dimension_numbers<[1], [0], [0], [1], [0, 0, 1, 1], [], []>} : vector<8x512xbf16>, vector<512x1024xbf16>, vector<8x1024xf32> -> vector<8x1024xf32>
    %561 = arith.addf %560, %13 : vector<8x1024xf32>
    %562 = vector.extract_strided_slice %561 {offsets = [0, 0], sizes = [8, 256], strides = [1, 1]} : vector<8x1024xf32> to vector<8x256xf32>
    %cst_203 = arith.constant 5.000000e-01 : f32
    %563 = vector.broadcast %cst_203 : f32 to vector<8x256xf32>
    %564 = arith.mulf %563, %562 : vector<8x256xf32>
    %565 = math.tanh %564 : vector<8x256xf32>
    %cst_204 = arith.constant 1.000000e+00 : f32
    %566 = vector.broadcast %cst_204 : f32 to vector<8x256xf32>
    %567 = arith.addf %566, %565 : vector<8x256xf32>
    %cst_205 = arith.constant 5.000000e-01 : f32
    %568 = vector.broadcast %cst_205 : f32 to vector<8x256xf32>
    %569 = arith.mulf %568, %567 : vector<8x256xf32>
    %570 = vector.extract_strided_slice %561 {offsets = [0, 256], sizes = [8, 256], strides = [1, 1]} : vector<8x1024xf32> to vector<8x256xf32>
    %cst_206 = arith.constant 5.000000e-01 : f32
    %571 = vector.broadcast %cst_206 : f32 to vector<8x256xf32>
    %572 = arith.mulf %571, %570 : vector<8x256xf32>
    %573 = math.tanh %572 : vector<8x256xf32>
    %cst_207 = arith.constant 1.000000e+00 : f32
    %574 = vector.broadcast %cst_207 : f32 to vector<8x256xf32>
    %575 = arith.addf %574, %573 : vector<8x256xf32>
    %cst_208 = arith.constant 5.000000e-01 : f32
    %576 = vector.broadcast %cst_208 : f32 to vector<8x256xf32>
    %577 = arith.mulf %576, %575 : vector<8x256xf32>
    %578 = vector.extract_strided_slice %561 {offsets = [0, 512], sizes = [8, 256], strides = [1, 1]} : vector<8x1024xf32> to vector<8x256xf32>
    %579 = math.tanh %578 : vector<8x256xf32>
    %580 = vector.extract_strided_slice %561 {offsets = [0, 768], sizes = [8, 256], strides = [1, 1]} : vector<8x1024xf32> to vector<8x256xf32>
    %cst_209 = arith.constant 5.000000e-01 : f32
    %581 = vector.broadcast %cst_209 : f32 to vector<8x256xf32>
    %582 = arith.mulf %581, %580 : vector<8x256xf32>
    %583 = math.tanh %582 : vector<8x256xf32>
    %cst_210 = arith.constant 1.000000e+00 : f32
    %584 = vector.broadcast %cst_210 : f32 to vector<8x256xf32>
    %585 = arith.addf %584, %583 : vector<8x256xf32>
    %cst_211 = arith.constant 5.000000e-01 : f32
    %586 = vector.broadcast %cst_211 : f32 to vector<8x256xf32>
    %587 = arith.mulf %586, %585 : vector<8x256xf32>
    %588 = arith.mulf %577, %518 : vector<8x256xf32>
    %589 = arith.mulf %569, %579 : vector<8x256xf32>
    %590 = arith.addf %588, %589 : vector<8x256xf32>
    %591 = math.tanh %590 : vector<8x256xf32>
    %592 = arith.mulf %587, %591 : vector<8x256xf32>
    %593 = arith.truncf %592 : vector<8x256xf32> to vector<8x256xbf16>
    %c0_212 = arith.constant 0 : index
    %c0_213 = arith.constant 0 : index
    %594 = vector.load %arg5[%c0_212, %c0_213] : memref<256x5xbf16, #tpu.memory_space<vmem>>, vector<256x5xbf16>
    %cst_214 = arith.constant dense<0.000000e+00> : vector<8x5xf32>
    %595 = tpu.matmul %593, %594, %cst_214 {dimension_numbers = #tpu.dot_dimension_numbers<[1], [0], [0], [1], [0, 0, 1, 1], [], []>} : vector<8x256xbf16>, vector<256x5xbf16>, vector<8x5xf32> -> vector<8x5xf32>
    %c0_215 = arith.constant 0 : index
    %c0_216 = arith.constant 0 : index
    %596 = vector.load %arg6[%c0_215, %c0_216] : memref<1x5xf32, #tpu.memory_space<vmem>>, vector<1x5xf32>
    %597 = vector.broadcast %596 : vector<1x5xf32> to vector<8x5xf32>
    %598 = arith.addf %595, %597 : vector<8x5xf32>
    %c0_217 = arith.constant 0 : index
    %c0_218 = arith.constant 0 : index
    %599 = vector.load %arg9[%c0_217, %c0_218] : memref<8x5xf32, #tpu.memory_space<vmem>>, vector<8x5xf32>
    tpu.vector_store %arg9[%c0_217, %c0_218], %598 {strides = array<i32>} : memref<8x5xf32, #tpu.memory_space<vmem>>, vector<8x5xf32>,
    %c0_219 = arith.constant 0 : index
    %c0_220 = arith.constant 0 : index
    %c0_221 = arith.constant 0 : index
    %600 = vector.load %arg10[%c0_219, %c0_220, %c0_221] : memref<2x8x256xf32, #tpu.memory_space<vmem>>, vector<1x8x256xf32>
    %601 = vector.shape_cast %600 : vector<1x8x256xf32> to vector<8x256xf32>
    %602 = vector.shape_cast %556 : vector<8x256xf32> to vector<1x8x256xf32>
    tpu.vector_store %arg10[%c0_219, %c0_220, %c0_221], %602 {strides = array<i32>} : memref<2x8x256xf32, #tpu.memory_space<vmem>>, vector<1x8x256xf32>,
    %c1 = arith.constant 1 : index
    %c0_222 = arith.constant 0 : index
    %c0_223 = arith.constant 0 : index
    %603 = vector.load %arg10[%c1, %c0_222, %c0_223] : memref<2x8x256xf32, #tpu.memory_space<vmem>>, vector<1x8x256xf32>
    %604 = vector.shape_cast %603 : vector<1x8x256xf32> to vector<8x256xf32>
    %605 = vector.shape_cast %592 : vector<8x256xf32> to vector<1x8x256xf32>
    tpu.vector_store %arg10[%c1, %c0_222, %c0_223], %605 {strides = array<i32>} : memref<2x8x256xf32, #tpu.memory_space<vmem>>, vector<1x8x256xf32>,
    %c0_224 = arith.constant 0 : index
    %c0_225 = arith.constant 0 : index
    %c0_226 = arith.constant 0 : index
    %606 = vector.load %arg11[%c0_224, %c0_225, %c0_226] : memref<2x8x256xf32, #tpu.memory_space<vmem>>, vector<1x8x256xf32>
    %607 = vector.shape_cast %606 : vector<1x8x256xf32> to vector<8x256xf32>
    %608 = vector.shape_cast %554 : vector<8x256xf32> to vector<1x8x256xf32>
    tpu.vector_store %arg11[%c0_224, %c0_225, %c0_226], %608 {strides = array<i32>} : memref<2x8x256xf32, #tpu.memory_space<vmem>>, vector<1x8x256xf32>,
    %c1_227 = arith.constant 1 : index
    %c0_228 = arith.constant 0 : index
    %c0_229 = arith.constant 0 : index
    %609 = vector.load %arg11[%c1_227, %c0_228, %c0_229] : memref<2x8x256xf32, #tpu.memory_space<vmem>>, vector<1x8x256xf32>
    %610 = vector.shape_cast %609 : vector<1x8x256xf32> to vector<8x256xf32>
    %611 = vector.shape_cast %590 : vector<8x256xf32> to vector<1x8x256xf32>
    tpu.vector_store %arg11[%c1_227, %c0_228, %c0_229], %611 {strides = array<i32>} : memref<2x8x256xf32, #tpu.memory_space<vmem>>, vector<1x8x256xf32>,
    return
  }
  func.func @transform_0(%arg0: i32) -> (i32, i32) {
    %c0_i32 = arith.constant 0 : i32
    %c0_i32_0 = arith.constant 0 : i32
    %c0_i32_1 = arith.constant 0 : i32
    return %c0_i32, %c0_i32_0 : i32, i32
  }
  func.func @transform_1(%arg0: i32) -> (i32, i32) {
    %c0_i32 = arith.constant 0 : i32
    %c0_i32_0 = arith.constant 0 : i32
    %c0_i32_1 = arith.constant 0 : i32
    return %c0_i32, %c0_i32_0 : i32, i32
  }
  func.func @transform_2(%arg0: i32) -> (i32, i32) {
    %c0_i32 = arith.constant 0 : i32
    %c0_i32_0 = arith.constant 0 : i32
    %c0_i32_1 = arith.constant 0 : i32
    return %c0_i32, %c0_i32_0 : i32, i32
  }
  func.func @transform_3(%arg0: i32) -> (i32, i32) {
    %c0_i32 = arith.constant 0 : i32
    %c0_i32_0 = arith.constant 0 : i32
    %c0_i32_1 = arith.constant 0 : i32
    return %c0_i32, %c0_i32_0 : i32, i32
  }
  func.func @transform_4(%arg0: i32) -> (i32, i32) {
    %c0_i32 = arith.constant 0 : i32
    %c0_i32_0 = arith.constant 0 : i32
    %c0_i32_1 = arith.constant 0 : i32
    return %c0_i32, %c0_i32_0 : i32, i32
  }
  func.func @transform_5(%arg0: i32) -> (i32, i32) {
    %c0_i32 = arith.constant 0 : i32
    %c0_i32_0 = arith.constant 0 : i32
    %c0_i32_1 = arith.constant 0 : i32
    return %c0_i32, %c0_i32_0 : i32, i32
  }
  func.func @transform_8(%arg0: i32) -> (i32, i32) {
    %c0_i32 = arith.constant 0 : i32
    %c0_i32_0 = arith.constant 0 : i32
    %c0_i32_1 = arith.constant 0 : i32
    return %c0_i32, %c0_i32_0 : i32, i32
  }
  func.func @transform_9(%arg0: i32) -> (i32, i32, i32) {
    %c0_i32 = arith.constant 0 : i32
    %c0_i32_0 = arith.constant 0 : i32
    %c0_i32_1 = arith.constant 0 : i32
    %c0_i32_2 = arith.constant 0 : i32
    return %c0_i32, %c0_i32_0, %c0_i32_1 : i32, i32, i32
  }
  func.func @transform_10(%arg0: i32) -> (i32, i32, i32) {
    %c0_i32 = arith.constant 0 : i32
    %c0_i32_0 = arith.constant 0 : i32
    %c0_i32_1 = arith.constant 0 : i32
    %c0_i32_2 = arith.constant 0 : i32
    return %c0_i32, %c0_i32_0, %c0_i32_1 : i32, i32, i32
  }
}

</mosaic_0001>

<llo_original>
// kernel: lstm_forward.1
$region0: #{lstm_forward.1}
  #allocation0 [shape = 'u32[]', space=smem, size = 0x4, offset = 0x4, fixed_abs, tag = 'smem constant byte address 0x4 - core index']
  #allocation1 [shape = 'u32[144,128]{1,0:T(1,128)}', space=vmem, size = 0x12000, scoped, tag = 'internal scratch']
  #allocation2 [shape = 'f32[64,1024]{1,0:T(8,128)}', space=vmem, size = 0x40000, scoped, tag = 'scratch operand']
  #allocation3 [shape = 'bf16[256,1024]{1,0:T(8,128)(2,1)}', space=vmem, size = 0x80000, scoped, tag = 'scratch operand']
  #allocation4 [shape = 'bf16[512,1024]{1,0:T(8,128)(2,1)}', space=vmem, size = 0x100000, scoped, tag = 'scratch operand']
  #allocation5 [shape = 's32[2]{0}', space=sflag, size = 0x8, scoped, tag = 'scratch operand']
  #allocation6 [shape = 's32[]', space=sflag, size = 0x4, offset = 0, fixed_abs, tag = 'sflag constant byte address 0x0 - dummy sync flag']
  #allocation7 [shape = 's32[]', space=sflag, size = 0x4, offset = 0, fixed_abs, tag = 'sflag constant byte address 0x0 - dummy sync flag']
  %s0 = inlined_call_operand.vmem [shape: bf16[64,256], index: 0, kind: input, shape index: {}]
  %s1 = inlined_call_operand.vmem [shape: bf16[256,1024], index: 1, kind: input, shape index: {}]
  %s2 = inlined_call_operand.vmem [shape: f32[1,1024], index: 2, kind: input, shape index: {}]
  %s3 = inlined_call_operand.vmem [shape: f32[1,1024], index: 3, kind: input, shape index: {}]
  %s4 = inlined_call_operand.vmem [shape: bf16[256,5], index: 4, kind: input, shape index: {}]
  %s5 = inlined_call_operand.vmem [shape: f32[1,5], index: 5, kind: input, shape index: {}]
  %s6 = inlined_call_operand.vmem [shape: bf16[256,1024], index: 6, kind: input, shape index: {}]
  %s7 = inlined_call_operand.vmem [shape: bf16[512,1024], index: 7, kind: input, shape index: {}]
  %s8 = inlined_call_operand.vmem [shape: f32[8,5], index: 8, kind: output, shape index: {0}]
  %s9 = inlined_call_operand.vmem [shape: f32[2,8,256], index: 9, kind: output, shape index: {1}]
  %s10 = inlined_call_operand.vmem [shape: f32[2,8,256], index: 10, kind: output, shape index: {2}]
  %11 = xla_tuple %s8, %s9, %s10
  %s12 = sld [smem:[#allocation0]]
  $region118: #{lstm_forward.1} parent=0
    _
  %s14 = ssub.s32 1, %s12
  %s15 = scalar_select 0, %s14, %s12
  // Predicated region
  $region2: #{lstm_forward.1} parent=0 // pred_check
    _
  $region3: #{lstm_forward.1} parent=0 // pred_check_branch
    %17 = sbr.rel (0) target = $region5
  $region4: #{lstm_forward.1} parent=0 // pred_region
    _
  $region5: #{lstm_forward.1} parent=0 // pred_fallthru
    _
  // Predicated region
  $region6: #{lstm_forward.1} parent=0 // pred_check
    _
  $region7: #{lstm_forward.1} parent=0 // pred_check_branch
    %19 = sbr.rel (0) target = $region9
  $region8: #{lstm_forward.1} parent=0 // pred_region
    _
  $region9: #{lstm_forward.1} parent=0 // pred_fallthru
    _
  // Predicated region
  $region10: #{lstm_forward.1} parent=0 // pred_check
    _
  $region11: #{lstm_forward.1} parent=0 // pred_check_branch
    %21 = sbr.rel (0) target = $region13
  $region12: #{lstm_forward.1} parent=0 // pred_region
    _
  $region13: #{lstm_forward.1} parent=0 // pred_fallthru
    _
  // Predicated region
  $region14: #{lstm_forward.1} parent=0 // pred_check
    _
  $region15: #{lstm_forward.1} parent=0 // pred_check_branch
    %23 = sbr.rel (0) target = $region17
  $region16: #{lstm_forward.1} parent=0 // pred_region
    _
  $region17: #{lstm_forward.1} parent=0 // pred_fallthru
    _
  // Predicated region
  $region18: #{lstm_forward.1} parent=0 // pred_check
    _
  $region19: #{lstm_forward.1} parent=0 // pred_check_branch
    %25 = sbr.rel (0) target = $region21
  $region20: #{lstm_forward.1} parent=0 // pred_region
    _
  $region21: #{lstm_forward.1} parent=0 // pred_fallthru
    _
  // Predicated region
  $region22: #{lstm_forward.1} parent=0 // pred_check
    _
  $region23: #{lstm_forward.1} parent=0 // pred_check_branch
    %27 = sbr.rel (0) target = $region25
  $region24: #{lstm_forward.1} parent=0 // pred_region
    _
  $region25: #{lstm_forward.1} parent=0 // pred_fallthru
    _
  %p30 = scmp.lt.u32.totalorder 2048, 8
  %p31 = pneg %p30
  // Predicated region
  $region26: #{lstm_forward.1} parent=0 // pred_check
    _
  $region27: #{lstm_forward.1} parent=0 // pred_check_branch
    %33 = sbr.rel (%p30) target = $region29
  $region28: #{lstm_forward.1} parent=0 // pred_region
    %s49 = sand.u32 2048, 7
    %p50 = scmp.eq.s32.totalorder %s49, 0
    // Predicated region
    $region41: #{lstm_forward.1} parent=28 // pred_check
      %p51 = pneg %p50
    $region42: #{lstm_forward.1} parent=28 // pred_check_branch
      %53 = sbr.rel (%p51) target = $region44
    $region43: #{lstm_forward.1} parent=28 // pred_region
      loop: start=0, step=1, limit=1
      $region45: #{lstm_forward.1} parent=43 // loop_pre_header
        _
      $region46: #{lstm_forward.1} parent=43 // loop_header
        %s55 = sphi 0, %s59
        %p56 = scmp.ge.s32.totalorder %s55, 1
        %s60 = sphi %s7, %s7
        %s61 = sphi [#allocation4], [#allocation4]
      $region47: #{lstm_forward.1} parent=43 // loop_header_branch
        %58 = sbr.rel (%p56) target = $region51
      $region48: #{lstm_forward.1} parent=43 // loop_body
        %v62 = vld [vmem:[%s60] sm:$0xff]
        %63 = vst [vmem:[%s61] sm:$0xff] %v62
        %v64 = vld [vmem:[%s60 + $0x8] sm:$0xff]
        %65 = vst [vmem:[%s61 + $0x8] sm:$0xff] %v64
        %v66 = vld [vmem:[%s60 + $0x10] sm:$0xff]
        %67 = vst [vmem:[%s61 + $0x10] sm:$0xff] %v66
        %v68 = vld [vmem:[%s60 + $0x18] sm:$0xff]
        %69 = vst [vmem:[%s61 + $0x18] sm:$0xff] %v68
        %v70 = vld [vmem:[%s60 + $0x20] sm:$0xff]
        %71 = vst [vmem:[%s61 + $0x20] sm:$0xff] %v70
        %v72 = vld [vmem:[%s60 + $0x28] sm:$0xff]
        %73 = vst [vmem:[%s61 + $0x28] sm:$0xff] %v72
        %v74 = vld [vmem:[%s60 + $0x30] sm:$0xff]
        %75 = vst [vmem:[%s61 + $0x30] sm:$0xff] %v74
        %v76 = vld [vmem:[%s60 + $0x38] sm:$0xff]
        %77 = vst [vmem:[%s61 + $0x38] sm:$0xff] %v76
        %v78 = vld [vmem:[%s60 + $0x40] sm:$0xff]
        %79 = vst [vmem:[%s61 + $0x40] sm:$0xff] %v78
        %v80 = vld [vmem:[%s60 + $0x48] sm:$0xff]
        %81 = vst [vmem:[%s61 + $0x48] sm:$0xff] %v80
        %v82 = vld [vmem:[%s60 + $0x50] sm:$0xff]
        %83 = vst [vmem:[%s61 + $0x50] sm:$0xff] %v82
        %v84 = vld [vmem:[%s60 + $0x58] sm:$0xff]
        %85 = vst [vmem:[%s61 + $0x58] sm:$0xff] %v84
        %v86 = vld [vmem:[%s60 + $0x60] sm:$0xff]
        %87 = vst [vmem:[%s61 + $0x60] sm:$0xff] %v86
        %v88 = vld [vmem:[%s60 + $0x68] sm:$0xff]
        %89 = vst [vmem:[%s61 + $0x68] sm:$0xff] %v88
        %v90 = vld [vmem:[%s60 + $0x70] sm:$0xff]
        %91 = vst [vmem:[%s61 + $0x70] sm:$0xff] %v90
        %v92 = vld [vmem:[%s60 + $0x78] sm:$0xff]
        %93 = vst [vmem:[%s61 + $0x78] sm:$0xff] %v92
        %v94 = vld [vmem:[%s60 + $0x80] sm:$0xff]
        %95 = vst [vmem:[%s61 + $0x80] sm:$0xff] %v94
        %v96 = vld [vmem:[%s60 + $0x88] sm:$0xff]
        %97 = vst [vmem:[%s61 + $0x88] sm:$0xff] %v96
        %v98 = vld [vmem:[%s60 + $0x90] sm:$0xff]
        %99 = vst [vmem:[%s61 + $0x90] sm:$0xff] %v98
        %v100 = vld [vmem:[%s60 + $0x98] sm:$0xff]
        %101 = vst [vmem:[%s61 + $0x98] sm:$0xff] %v100
        %v102 = vld [vmem:[%s60 + $0xa0] sm:$0xff]
        %103 = vst [vmem:[%s61 + $0xa0] sm:$0xff] %v102
        %v104 = vld [vmem:[%s60 + $0xa8] sm:$0xff]
        %105 = vst [vmem:[%s61 + $0xa8] sm:$0xff] %v104
        %v106 = vld [vmem:[%s60 + $0xb0] sm:$0xff]
        %107 = vst [vmem:[%s61 + $0xb0] sm:$0xff] %v106
        %v108 = vld [vmem:[%s60 + $0xb8] sm:$0xff]
        %109 = vst [vmem:[%s61 + $0xb8] sm:$0xff] %v108
        %v110 = vld [vmem:[%s60 + $0xc0] sm:$0xff]
        %111 = vst [vmem:[%s61 + $0xc0] sm:$0xff] %v110
        %v112 = vld [vmem:[%s60 + $0xc8] sm:$0xff]
        %113 = vst [vmem:[%s61 + $0xc8] sm:$0xff] %v112
        %v114 = vld [vmem:[%s60 + $0xd0] sm:$0xff]
        %115 = vst [vmem:[%s61 + $0xd0] sm:$0xff] %v114
        %v116 = vld [vmem:[%s60 + $0xd8] sm:$0xff]
        %117 = vst [vmem:[%s61 + $0xd8] sm:$0xff] %v116
        %v118 = vld [vmem:[%s60 + $0xe0] sm:$0xff]
        %119 = vst [vmem:[%s61 + $0xe0] sm:$0xff] %v118
        %v120 = vld [vmem:[%s60 + $0xe8] sm:$0xff]
        %121 = vst [vmem:[%s61 + $0xe8] sm:$0xff] %v120
        %v122 = vld [vmem:[%s60 + $0xf0] sm:$0xff]
        %123 = vst [vmem:[%s61 + $0xf0] sm:$0xff] %v122
        %v124 = vld [vmem:[%s60 + $0xf8] sm:$0xff]
        %125 = vst [vmem:[%s61 + $0xf8] sm:$0xff] %v124
        %v126 = vld [vmem:[%s60 + $0x100] sm:$0xff]
        %127 = vst [vmem:[%s61 + $0x100] sm:$0xff] %v126
        %v128 = vld [vmem:[%s60 + $0x108] sm:$0xff]
        %129 = vst [vmem:[%s61 + $0x108] sm:$0xff] %v128
        %v130 = vld [vmem:[%s60 + $0x110] sm:$0xff]
        %131 = vst [vmem:[%s61 + $0x110] sm:$0xff] %v130
        %v132 = vld [vmem:[%s60 + $0x118] sm:$0xff]
        %133 = vst [vmem:[%s61 + $0x118] sm:$0xff] %v132
        %v134 = vld [vmem:[%s60 + $0x120] sm:$0xff]
        %135 = vst [vmem:[%s61 + $0x120] sm:$0xff] %v134
        %v136 = vld [vmem:[%s60 + $0x128] sm:$0xff]
        %137 = vst [vmem:[%s61 + $0x128] sm:$0xff] %v136
        %v138 = vld [vmem:[%s60 + $0x130] sm:$0xff]
        %139 = vst [vmem:[%s61 + $0x130] sm:$0xff] %v138
        %v140 = vld [vmem:[%s60 + $0x138] sm:$0xff]
        %141 = vst [vmem:[%s61 + $0x138] sm:$0xff] %v140
        %v142 = vld [vmem:[%s60 + $0x140] sm:$0xff]
        %143 = vst [vmem:[%s61 + $0x140] sm:$0xff] %v142
        %v144 = vld [vmem:[%s60 + $0x148] sm:$0xff]
        %145 = vst [vmem:[%s61 + $0x148] sm:$0xff] %v144
        %v146 = vld [vmem:[%s60 + $0x150] sm:$0xff]
        %147 = vst [vmem:[%s61 + $0x150] sm:$0xff] %v146
        %v148 = vld [vmem:[%s60 + $0x158] sm:$0xff]
        %149 = vst [vmem:[%s61 + $0x158] sm:$0xff] %v148
        %v150 = vld [vmem:[%s60 + $0x160] sm:$0xff]
        %151 = vst [vmem:[%s61 + $0x160] sm:$0xff] %v150
        %v152 = vld [vmem:[%s60 + $0x168] sm:$0xff]
        %153 = vst [vmem:[%s61 + $0x168] sm:$0xff] %v152
        %v154 = vld [vmem:[%s60 + $0x170] sm:$0xff]
        %155 = vst [vmem:[%s61 + $0x170] sm:$0xff] %v154
        %v156 = vld [vmem:[%s60 + $0x178] sm:$0xff]
        %157 = vst [vmem:[%s61 + $0x178] sm:$0xff] %v156
        %v158 = vld [vmem:[%s60 + $0x180] sm:$0xff]
        %159 = vst [vmem:[%s61 + $0x180] sm:$0xff] %v158
        %v160 = vld [vmem:[%s60 + $0x188] sm:$0xff]
        %161 = vst [vmem:[%s61 + $0x188] sm:$0xff] %v160
        %v162 = vld [vmem:[%s60 + $0x190] sm:$0xff]
        %163 = vst [vmem:[%s61 + $0x190] sm:$0xff] %v162
        %v164 = vld [vmem:[%s60 + $0x198] sm:$0xff]
        %165 = vst [vmem:[%s61 + $0x198] sm:$0xff] %v164
        %v166 = vld [vmem:[%s60 + $0x1a0] sm:$0xff]
        %167 = vst [vmem:[%s61 + $0x1a0] sm:$0xff] %v166
        %v168 = vld [vmem:[%s60 + $0x1a8] sm:$0xff]
        %169 = vst [vmem:[%s61 + $0x1a8] sm:$0xff] %v168
        %v170 = vld [vmem:[%s60 + $0x1b0] sm:$0xff]
        %171 = vst [vmem:[%s61 + $0x1b0] sm:$0xff] %v170
        %v172 = vld [vmem:[%s60 + $0x1b8] sm:$0xff]
        %173 = vst [vmem:[%s61 + $0x1b8] sm:$0xff] %v172
        %v174 = vld [vmem:[%s60 + $0x1c0] sm:$0xff]
        %175 = vst [vmem:[%s61 + $0x1c0] sm:$0xff] %v174
        %v176 = vld [vmem:[%s60 + $0x1c8] sm:$0xff]
        %177 = vst [vmem:[%s61 + $0x1c8] sm:$0xff] %v176
        %v178 = vld [vmem:[%s60 + $0x1d0] sm:$0xff]
        %179 = vst [vmem:[%s61 + $0x1d0] sm:$0xff] %v178
        %v180 = vld [vmem:[%s60 + $0x1d8] sm:$0xff]
        %181 = vst [vmem:[%s61 + $0x1d8] sm:$0xff] %v180
        %v182 = vld [vmem:[%s60 + $0x1e0] sm:$0xff]
        %183 = vst [vmem:[%s61 + $0x1e0] sm:$0xff] %v182
        %v184 = vld [vmem:[%s60 + $0x1e8] sm:$0xff]
        %185 = vst [vmem:[%s61 + $0x1e8] sm:$0xff] %v184
        %v186 = vld [vmem:[%s60 + $0x1f0] sm:$0xff]
        %187 = vst [vmem:[%s61 + $0x1f0] sm:$0xff] %v186
        %v188 = vld [vmem:[%s60 + $0x1f8] sm:$0xff]
        %189 = vst [vmem:[%s61 + $0x1f8] sm:$0xff] %v188
        %v190 = vld [vmem:[%s60 + $0x200] sm:$0xff]
        %191 = vst [vmem:[%s61 + $0x200] sm:$0xff] %v190
        %v192 = vld [vmem:[%s60 + $0x208] sm:$0xff]
        %193 = vst [vmem:[%s61 + $0x208] sm:$0xff] %v192
        %v194 = vld [vmem:[%s60 + $0x210] sm:$0xff]
        %195 = vst [vmem:[%s61 + $0x210] sm:$0xff] %v194
        %v196 = vld [vmem:[%s60 + $0x218] sm:$0xff]
        %197 = vst [vmem:[%s61 + $0x218] sm:$0xff] %v196
        %v198 = vld [vmem:[%s60 + $0x220] sm:$0xff]
        %199 = vst [vmem:[%s61 + $0x220] sm:$0xff] %v198
        %v200 = vld [vmem:[%s60 + $0x228] sm:$0xff]
        %201 = vst [vmem:[%s61 + $0x228] sm:$0xff] %v200
        %v202 = vld [vmem:[%s60 + $0x230] sm:$0xff]
        %203 = vst [vmem:[%s61 + $0x230] sm:$0xff] %v202
        %v204 = vld [vmem:[%s60 + $0x238] sm:$0xff]
        %205 = vst [vmem:[%s61 + $0x238] sm:$0xff] %v204
        %v206 = vld [vmem:[%s60 + $0x240] sm:$0xff]
        %207 = vst [vmem:[%s61 + $0x240] sm:$0xff] %v206
        %v208 = vld [vmem:[%s60 + $0x248] sm:$0xff]
        %209 = vst [vmem:[%s61 + $0x248] sm:$0xff] %v208
        %v210 = vld [vmem:[%s60 + $0x250] sm:$0xff]
        %211 = vst [vmem:[%s61 + $0x250] sm:$0xff] %v210
        %v212 = vld [vmem:[%s60 + $0x258] sm:$0xff]
        %213 = vst [vmem:[%s61 + $0x258] sm:$0xff] %v212
        %v214 = vld [vmem:[%s60 + $0x260] sm:$0xff]
        %215 = vst [vmem:[%s61 + $0x260] sm:$0xff] %v214
        %v216 = vld [vmem:[%s60 + $0x268] sm:$0xff]
        %217 = vst [vmem:[%s61 + $0x268] sm:$0xff] %v216
        %v218 = vld [vmem:[%s60 + $0x270] sm:$0xff]
        %219 = vst [vmem:[%s61 + $0x270] sm:$0xff] %v218
        %v220 = vld [vmem:[%s60 + $0x278] sm:$0xff]
        %221 = vst [vmem:[%s61 + $0x278] sm:$0xff] %v220
        %v222 = vld [vmem:[%s60 + $0x280] sm:$0xff]
        %223 = vst [vmem:[%s61 + $0x280] sm:$0xff] %v222
        %v224 = vld [vmem:[%s60 + $0x288] sm:$0xff]
        %225 = vst [vmem:[%s61 + $0x288] sm:$0xff] %v224
        %v226 = vld [vmem:[%s60 + $0x290] sm:$0xff]
        %227 = vst [vmem:[%s61 + $0x290] sm:$0xff] %v226
        %v228 = vld [vmem:[%s60 + $0x298] sm:$0xff]
        %229 = vst [vmem:[%s61 + $0x298] sm:$0xff] %v228
        %v230 = vld [vmem:[%s60 + $0x2a0] sm:$0xff]
        %231 = vst [vmem:[%s61 + $0x2a0] sm:$0xff] %v230
        %v232 = vld [vmem:[%s60 + $0x2a8] sm:$0xff]
        %233 = vst [vmem:[%s61 + $0x2a8] sm:$0xff] %v232
        %v234 = vld [vmem:[%s60 + $0x2b0] sm:$0xff]
        %235 = vst [vmem:[%s61 + $0x2b0] sm:$0xff] %v234
        %v236 = vld [vmem:[%s60 + $0x2b8] sm:$0xff]
        %237 = vst [vmem:[%s61 + $0x2b8] sm:$0xff] %v236
        %v238 = vld [vmem:[%s60 + $0x2c0] sm:$0xff]
        %239 = vst [vmem:[%s61 + $0x2c0] sm:$0xff] %v238
        %v240 = vld [vmem:[%s60 + $0x2c8] sm:$0xff]
        %241 = vst [vmem:[%s61 + $0x2c8] sm:$0xff] %v240
        %v242 = vld [vmem:[%s60 + $0x2d0] sm:$0xff]
        %243 = vst [vmem:[%s61 + $0x2d0] sm:$0xff] %v242
        %v244 = vld [vmem:[%s60 + $0x2d8] sm:$0xff]
        %245 = vst [vmem:[%s61 + $0x2d8] sm:$0xff] %v244
        %v246 = vld [vmem:[%s60 + $0x2e0] sm:$0xff]
        %247 = vst [vmem:[%s61 + $0x2e0] sm:$0xff] %v246
        %v248 = vld [vmem:[%s60 + $0x2e8] sm:$0xff]
        %249 = vst [vmem:[%s61 + $0x2e8] sm:$0xff] %v248
        %v250 = vld [vmem:[%s60 + $0x2f0] sm:$0xff]
        %251 = vst [vmem:[%s61 + $0x2f0] sm:$0xff] %v250
        %v252 = vld [vmem:[%s60 + $0x2f8] sm:$0xff]
        %253 = vst [vmem:[%s61 + $0x2f8] sm:$0xff] %v252
        %v254 = vld [vmem:[%s60 + $0x300] sm:$0xff]
        %255 = vst [vmem:[%s61 + $0x300] sm:$0xff] %v254
        %v256 = vld [vmem:[%s60 + $0x308] sm:$0xff]
        %257 = vst [vmem:[%s61 + $0x308] sm:$0xff] %v256
        %v258 = vld [vmem:[%s60 + $0x310] sm:$0xff]
        %259 = vst [vmem:[%s61 + $0x310] sm:$0xff] %v258
        %v260 = vld [vmem:[%s60 + $0x318] sm:$0xff]
        %261 = vst [vmem:[%s61 + $0x318] sm:$0xff] %v260
        %v262 = vld [vmem:[%s60 + $0x320] sm:$0xff]
        %263 = vst [vmem:[%s61 + $0x320] sm:$0xff] %v262
        %v264 = vld [vmem:[%s60 + $0x328] sm:$0xff]
        %265 = vst [vmem:[%s61 + $0x328] sm:$0xff] %v264
        %v266 = vld [vmem:[%s60 + $0x330] sm:$0xff]
        %267 = vst [vmem:[%s61 + $0x330] sm:$0xff] %v266
        %v268 = vld [vmem:[%s60 + $0x338] sm:$0xff]
        %269 = vst [vmem:[%s61 + $0x338] sm:$0xff] %v268
        %v270 = vld [vmem:[%s60 + $0x340] sm:$0xff]
        %271 = vst [vmem:[%s61 + $0x340] sm:$0xff] %v270
        %v272 = vld [vmem:[%s60 + $0x348] sm:$0xff]
        %273 = vst [vmem:[%s61 + $0x348] sm:$0xff] %v272
        %v274 = vld [vmem:[%s60 + $0x350] sm:$0xff]
        %275 = vst [vmem:[%s61 + $0x350] sm:$0xff] %v274
        %v276 = vld [vmem:[%s60 + $0x358] sm:$0xff]
        %277 = vst [vmem:[%s61 + $0x358] sm:$0xff] %v276
        %v278 = vld [vmem:[%s60 + $0x360] sm:$0xff]
        %279 = vst [vmem:[%s61 + $0x360] sm:$0xff] %v278
        %v280 = vld [vmem:[%s60 + $0x368] sm:$0xff]
        %281 = vst [vmem:[%s61 + $0x368] sm:$0xff] %v280
        %v282 = vld [vmem:[%s60 + $0x370] sm:$0xff]
        %283 = vst [vmem:[%s61 + $0x370] sm:$0xff] %v282
        %v284 = vld [vmem:[%s60 + $0x378] sm:$0xff]
        %285 = vst [vmem:[%s61 + $0x378] sm:$0xff] %v284
        %v286 = vld [vmem:[%s60 + $0x380] sm:$0xff]
        %287 = vst [vmem:[%s61 + $0x380] sm:$0xff] %v286
        %v288 = vld [vmem:[%s60 + $0x388] sm:$0xff]
        %289 = vst [vmem:[%s61 + $0x388] sm:$0xff] %v288
        %v290 = vld [vmem:[%s60 + $0x390] sm:$0xff]
        %291 = vst [vmem:[%s61 + $0x390] sm:$0xff] %v290
        %v292 = vld [vmem:[%s60 + $0x398] sm:$0xff]
        %293 = vst [vmem:[%s61 + $0x398] sm:$0xff] %v292
        %v294 = vld [vmem:[%s60 + $0x3a0] sm:$0xff]
        %295 = vst [vmem:[%s61 + $0x3a0] sm:$0xff] %v294
        %v296 = vld [vmem:[%s60 + $0x3a8] sm:$0xff]
        %297 = vst [vmem:[%s61 + $0x3a8] sm:$0xff] %v296
        %v298 = vld [vmem:[%s60 + $0x3b0] sm:$0xff]
        %299 = vst [vmem:[%s61 + $0x3b0] sm:$0xff] %v298
        %v300 = vld [vmem:[%s60 + $0x3b8] sm:$0xff]
        %301 = vst [vmem:[%s61 + $0x3b8] sm:$0xff] %v300
        %v302 = vld [vmem:[%s60 + $0x3c0] sm:$0xff]
        %303 = vst [vmem:[%s61 + $0x3c0] sm:$0xff] %v302
        %v304 = vld [vmem:[%s60 + $0x3c8] sm:$0xff]
        %305 = vst [vmem:[%s61 + $0x3c8] sm:$0xff] %v304
        %v306 = vld [vmem:[%s60 + $0x3d0] sm:$0xff]
        %307 = vst [vmem:[%s61 + $0x3d0] sm:$0xff] %v306
        %v308 = vld [vmem:[%s60 + $0x3d8] sm:$0xff]
        %309 = vst [vmem:[%s61 + $0x3d8] sm:$0xff] %v308
        %v310 = vld [vmem:[%s60 + $0x3e0] sm:$0xff]
        %311 = vst [vmem:[%s61 + $0x3e0] sm:$0xff] %v310
        %v312 = vld [vmem:[%s60 + $0x3e8] sm:$0xff]
        %313 = vst [vmem:[%s61 + $0x3e8] sm:$0xff] %v312
        %v314 = vld [vmem:[%s60 + $0x3f0] sm:$0xff]
        %315 = vst [vmem:[%s61 + $0x3f0] sm:$0xff] %v314
        %v316 = vld [vmem:[%s60 + $0x3f8] sm:$0xff]
        %317 = vst [vmem:[%s61 + $0x3f8] sm:$0xff] %v316
        %v318 = vld [vmem:[%s60 + $0x400] sm:$0xff]
        %319 = vst [vmem:[%s61 + $0x400] sm:$0xff] %v318
        %v320 = vld [vmem:[%s60 + $0x408] sm:$0xff]
        %321 = vst [vmem:[%s61 + $0x408] sm:$0xff] %v320
        %v322 = vld [vmem:[%s60 + $0x410] sm:$0xff]
        %323 = vst [vmem:[%s61 + $0x410] sm:$0xff] %v322
        %v324 = vld [vmem:[%s60 + $0x418] sm:$0xff]
        %325 = vst [vmem:[%s61 + $0x418] sm:$0xff] %v324
        %v326 = vld [vmem:[%s60 + $0x420] sm:$0xff]
        %327 = vst [vmem:[%s61 + $0x420] sm:$0xff] %v326
        %v328 = vld [vmem:[%s60 + $0x428] sm:$0xff]
        %329 = vst [vmem:[%s61 + $0x428] sm:$0xff] %v328
        %v330 = vld [vmem:[%s60 + $0x430] sm:$0xff]
        %331 = vst [vmem:[%s61 + $0x430] sm:$0xff] %v330
        %v332 = vld [vmem:[%s60 + $0x438] sm:$0xff]
        %333 = vst [vmem:[%s61 + $0x438] sm:$0xff] %v332
        %v334 = vld [vmem:[%s60 + $0x440] sm:$0xff]
        %335 = vst [vmem:[%s61 + $0x440] sm:$0xff] %v334
        %v336 = vld [vmem:[%s60 + $0x448] sm:$0xff]
        %337 = vst [vmem:[%s61 + $0x448] sm:$0xff] %v336
        %v338 = vld [vmem:[%s60 + $0x450] sm:$0xff]
        %339 = vst [vmem:[%s61 + $0x450] sm:$0xff] %v338
        %v340 = vld [vmem:[%s60 + $0x458] sm:$0xff]
        %341 = vst [vmem:[%s61 + $0x458] sm:$0xff] %v340
        %v342 = vld [vmem:[%s60 + $0x460] sm:$0xff]
        %343 = vst [vmem:[%s61 + $0x460] sm:$0xff] %v342
        %v344 = vld [vmem:[%s60 + $0x468] sm:$0xff]
        %345 = vst [vmem:[%s61 + $0x468] sm:$0xff] %v344
        %v346 = vld [vmem:[%s60 + $0x470] sm:$0xff]
        %347 = vst [vmem:[%s61 + $0x470] sm:$0xff] %v346
        %v348 = vld [vmem:[%s60 + $0x478] sm:$0xff]
        %349 = vst [vmem:[%s61 + $0x478] sm:$0xff] %v348
        %v350 = vld [vmem:[%s60 + $0x480] sm:$0xff]
        %351 = vst [vmem:[%s61 + $0x480] sm:$0xff] %v350
        %v352 = vld [vmem:[%s60 + $0x488] sm:$0xff]
        %353 = vst [vmem:[%s61 + $0x488] sm:$0xff] %v352
        %v354 = vld [vmem:[%s60 + $0x490] sm:$0xff]
        %355 = vst [vmem:[%s61 + $0x490] sm:$0xff] %v354
        %v356 = vld [vmem:[%s60 + $0x498] sm:$0xff]
        %357 = vst [vmem:[%s61 + $0x498] sm:$0xff] %v356
        %v358 = vld [vmem:[%s60 + $0x4a0] sm:$0xff]
        %359 = vst [vmem:[%s61 + $0x4a0] sm:$0xff] %v358
        %v360 = vld [vmem:[%s60 + $0x4a8] sm:$0xff]
        %361 = vst [vmem:[%s61 + $0x4a8] sm:$0xff] %v360
        %v362 = vld [vmem:[%s60 + $0x4b0] sm:$0xff]
        %363 = vst [vmem:[%s61 + $0x4b0] sm:$0xff] %v362
        %v364 = vld [vmem:[%s60 + $0x4b8] sm:$0xff]
        %365 = vst [vmem:[%s61 + $0x4b8] sm:$0xff] %v364
        %v366 = vld [vmem:[%s60 + $0x4c0] sm:$0xff]
        %367 = vst [vmem:[%s61 + $0x4c0] sm:$0xff] %v366
        %v368 = vld [vmem:[%s60 + $0x4c8] sm:$0xff]
        %369 = vst [vmem:[%s61 + $0x4c8] sm:$0xff] %v368
        %v370 = vld [vmem:[%s60 + $0x4d0] sm:$0xff]
        %371 = vst [vmem:[%s61 + $0x4d0] sm:$0xff] %v370
        %v372 = vld [vmem:[%s60 + $0x4d8] sm:$0xff]
        %373 = vst [vmem:[%s61 + $0x4d8] sm:$0xff] %v372
        %v374 = vld [vmem:[%s60 + $0x4e0] sm:$0xff]
        %375 = vst [vmem:[%s61 + $0x4e0] sm:$0xff] %v374
        %v376 = vld [vmem:[%s60 + $0x4e8] sm:$0xff]
        %377 = vst [vmem:[%s61 + $0x4e8] sm:$0xff] %v376
        %v378 = vld [vmem:[%s60 + $0x4f0] sm:$0xff]
        %379 = vst [vmem:[%s61 + $0x4f0] sm:$0xff] %v378
        %v380 = vld [vmem:[%s60 + $0x4f8] sm:$0xff]
        %381 = vst [vmem:[%s61 + $0x4f8] sm:$0xff] %v380
        %v382 = vld [vmem:[%s60 + $0x500] sm:$0xff]
        %383 = vst [vmem:[%s61 + $0x500] sm:$0xff] %v382
        %v384 = vld [vmem:[%s60 + $0x508] sm:$0xff]
        %385 = vst [vmem:[%s61 + $0x508] sm:$0xff] %v384
        %v386 = vld [vmem:[%s60 + $0x510] sm:$0xff]
        %387 = vst [vmem:[%s61 + $0x510] sm:$0xff] %v386
        %v388 = vld [vmem:[%s60 + $0x518] sm:$0xff]
        %389 = vst [vmem:[%s61 + $0x518] sm:$0xff] %v388
        %v390 = vld [vmem:[%s60 + $0x520] sm:$0xff]
        %391 = vst [vmem:[%s61 + $0x520] sm:$0xff] %v390
        %v392 = vld [vmem:[%s60 + $0x528] sm:$0xff]
        %393 = vst [vmem:[%s61 + $0x528] sm:$0xff] %v392
        %v394 = vld [vmem:[%s60 + $0x530] sm:$0xff]
        %395 = vst [vmem:[%s61 + $0x530] sm:$0xff] %v394
        %v396 = vld [vmem:[%s60 + $0x538] sm:$0xff]
        %397 = vst [vmem:[%s61 + $0x538] sm:$0xff] %v396
        %v398 = vld [vmem:[%s60 + $0x540] sm:$0xff]
        %399 = vst [vmem:[%s61 + $0x540] sm:$0xff] %v398
        %v400 = vld [vmem:[%s60 + $0x548] sm:$0xff]
        %401 = vst [vmem:[%s61 + $0x548] sm:$0xff] %v400
        %v402 = vld [vmem:[%s60 + $0x550] sm:$0xff]
        %403 = vst [vmem:[%s61 + $0x550] sm:$0xff] %v402
        %v404 = vld [vmem:[%s60 + $0x558] sm:$0xff]
        %405 = vst [vmem:[%s61 + $0x558] sm:$0xff] %v404
        %v406 = vld [vmem:[%s60 + $0x560] sm:$0xff]
        %407 = vst [vmem:[%s61 + $0x560] sm:$0xff] %v406
        %v408 = vld [vmem:[%s60 + $0x568] sm:$0xff]
        %409 = vst [vmem:[%s61 + $0x568] sm:$0xff] %v408
        %v410 = vld [vmem:[%s60 + $0x570] sm:$0xff]
        %411 = vst [vmem:[%s61 + $0x570] sm:$0xff] %v410
        %v412 = vld [vmem:[%s60 + $0x578] sm:$0xff]
        %413 = vst [vmem:[%s61 + $0x578] sm:$0xff] %v412
        %v414 = vld [vmem:[%s60 + $0x580] sm:$0xff]
        %415 = vst [vmem:[%s61 + $0x580] sm:$0xff] %v414
        %v416 = vld [vmem:[%s60 + $0x588] sm:$0xff]
        %417 = vst [vmem:[%s61 + $0x588] sm:$0xff] %v416
        %v418 = vld [vmem:[%s60 + $0x590] sm:$0xff]
        %419 = vst [vmem:[%s61 + $0x590] sm:$0xff] %v418
        %v420 = vld [vmem:[%s60 + $0x598] sm:$0xff]
        %421 = vst [vmem:[%s61 + $0x598] sm:$0xff] %v420
        %v422 = vld [vmem:[%s60 + $0x5a0] sm:$0xff]
        %423 = vst [vmem:[%s61 + $0x5a0] sm:$0xff] %v422
        %v424 = vld [vmem:[%s60 + $0x5a8] sm:$0xff]
        %425 = vst [vmem:[%s61 + $0x5a8] sm:$0xff] %v424
        %v426 = vld [vmem:[%s60 + $0x5b0] sm:$0xff]
        %427 = vst [vmem:[%s61 + $0x5b0] sm:$0xff] %v426
        %v428 = vld [vmem:[%s60 + $0x5b8] sm:$0xff]
        %429 = vst [vmem:[%s61 + $0x5b8] sm:$0xff] %v428
        %v430 = vld [vmem:[%s60 + $0x5c0] sm:$0xff]
        %431 = vst [vmem:[%s61 + $0x5c0] sm:$0xff] %v430
        %v432 = vld [vmem:[%s60 + $0x5c8] sm:$0xff]
        %433 = vst [vmem:[%s61 + $0x5c8] sm:$0xff] %v432
        %v434 = vld [vmem:[%s60 + $0x5d0] sm:$0xff]
        %435 = vst [vmem:[%s61 + $0x5d0] sm:$0xff] %v434
        %v436 = vld [vmem:[%s60 + $0x5d8] sm:$0xff]
        %437 = vst [vmem:[%s61 + $0x5d8] sm:$0xff] %v436
        %v438 = vld [vmem:[%s60 + $0x5e0] sm:$0xff]
        %439 = vst [vmem:[%s61 + $0x5e0] sm:$0xff] %v438
        %v440 = vld [vmem:[%s60 + $0x5e8] sm:$0xff]
        %441 = vst [vmem:[%s61 + $0x5e8] sm:$0xff] %v440
        %v442 = vld [vmem:[%s60 + $0x5f0] sm:$0xff]
        %443 = vst [vmem:[%s61 + $0x5f0] sm:$0xff] %v442
        %v444 = vld [vmem:[%s60 + $0x5f8] sm:$0xff]
        %445 = vst [vmem:[%s61 + $0x5f8] sm:$0xff] %v444
        %v446 = vld [vmem:[%s60 + $0x600] sm:$0xff]
        %447 = vst [vmem:[%s61 + $0x600] sm:$0xff] %v446
        %v448 = vld [vmem:[%s60 + $0x608] sm:$0xff]
        %449 = vst [vmem:[%s61 + $0x608] sm:$0xff] %v448
        %v450 = vld [vmem:[%s60 + $0x610] sm:$0xff]
        %451 = vst [vmem:[%s61 + $0x610] sm:$0xff] %v450
        %v452 = vld [vmem:[%s60 + $0x618] sm:$0xff]
        %453 = vst [vmem:[%s61 + $0x618] sm:$0xff] %v452
        %v454 = vld [vmem:[%s60 + $0x620] sm:$0xff]
        %455 = vst [vmem:[%s61 + $0x620] sm:$0xff] %v454
        %v456 = vld [vmem:[%s60 + $0x628] sm:$0xff]
        %457 = vst [vmem:[%s61 + $0x628] sm:$0xff] %v456
        %v458 = vld [vmem:[%s60 + $0x630] sm:$0xff]
        %459 = vst [vmem:[%s61 + $0x630] sm:$0xff] %v458
        %v460 = vld [vmem:[%s60 + $0x638] sm:$0xff]
        %461 = vst [vmem:[%s61 + $0x638] sm:$0xff] %v460
        %v462 = vld [vmem:[%s60 + $0x640] sm:$0xff]
        %463 = vst [vmem:[%s61 + $0x640] sm:$0xff] %v462
        %v464 = vld [vmem:[%s60 + $0x648] sm:$0xff]
        %465 = vst [vmem:[%s61 + $0x648] sm:$0xff] %v464
        %v466 = vld [vmem:[%s60 + $0x650] sm:$0xff]
        %467 = vst [vmem:[%s61 + $0x650] sm:$0xff] %v466
        %v468 = vld [vmem:[%s60 + $0x658] sm:$0xff]
        %469 = vst [vmem:[%s61 + $0x658] sm:$0xff] %v468
        %v470 = vld [vmem:[%s60 + $0x660] sm:$0xff]
        %471 = vst [vmem:[%s61 + $0x660] sm:$0xff] %v470
        %v472 = vld [vmem:[%s60 + $0x668] sm:$0xff]
        %473 = vst [vmem:[%s61 + $0x668] sm:$0xff] %v472
        %v474 = vld [vmem:[%s60 + $0x670] sm:$0xff]
        %475 = vst [vmem:[%s61 + $0x670] sm:$0xff] %v474
        %v476 = vld [vmem:[%s60 + $0x678] sm:$0xff]
        %477 = vst [vmem:[%s61 + $0x678] sm:$0xff] %v476
        %v478 = vld [vmem:[%s60 + $0x680] sm:$0xff]
        %479 = vst [vmem:[%s61 + $0x680] sm:$0xff] %v478
        %v480 = vld [vmem:[%s60 + $0x688] sm:$0xff]
        %481 = vst [vmem:[%s61 + $0x688] sm:$0xff] %v480
        %v482 = vld [vmem:[%s60 + $0x690] sm:$0xff]
        %483 = vst [vmem:[%s61 + $0x690] sm:$0xff] %v482
        %v484 = vld [vmem:[%s60 + $0x698] sm:$0xff]
        %485 = vst [vmem:[%s61 + $0x698] sm:$0xff] %v484
        %v486 = vld [vmem:[%s60 + $0x6a0] sm:$0xff]
        %487 = vst [vmem:[%s61 + $0x6a0] sm:$0xff] %v486
        %v488 = vld [vmem:[%s60 + $0x6a8] sm:$0xff]
        %489 = vst [vmem:[%s61 + $0x6a8] sm:$0xff] %v488
        %v490 = vld [vmem:[%s60 + $0x6b0] sm:$0xff]
        %491 = vst [vmem:[%s61 + $0x6b0] sm:$0xff] %v490
        %v492 = vld [vmem:[%s60 + $0x6b8] sm:$0xff]
        %493 = vst [vmem:[%s61 + $0x6b8] sm:$0xff] %v492
        %v494 = vld [vmem:[%s60 + $0x6c0] sm:$0xff]
        %495 = vst [vmem:[%s61 + $0x6c0] sm:$0xff] %v494
        %v496 = vld [vmem:[%s60 + $0x6c8] sm:$0xff]
        %497 = vst [vmem:[%s61 + $0x6c8] sm:$0xff] %v496
        %v498 = vld [vmem:[%s60 + $0x6d0] sm:$0xff]
        %499 = vst [vmem:[%s61 + $0x6d0] sm:$0xff] %v498
        %v500 = vld [vmem:[%s60 + $0x6d8] sm:$0xff]
        %501 = vst [vmem:[%s61 + $0x6d8] sm:$0xff] %v500
        %v502 = vld [vmem:[%s60 + $0x6e0] sm:$0xff]
        %503 = vst [vmem:[%s61 + $0x6e0] sm:$0xff] %v502
        %v504 = vld [vmem:[%s60 + $0x6e8] sm:$0xff]
        %505 = vst [vmem:[%s61 + $0x6e8] sm:$0xff] %v504
        %v506 = vld [vmem:[%s60 + $0x6f0] sm:$0xff]
        %507 = vst [vmem:[%s61 + $0x6f0] sm:$0xff] %v506
        %v508 = vld [vmem:[%s60 + $0x6f8] sm:$0xff]
        %509 = vst [vmem:[%s61 + $0x6f8] sm:$0xff] %v508
        %v510 = vld [vmem:[%s60 + $0x700] sm:$0xff]
        %511 = vst [vmem:[%s61 + $0x700] sm:$0xff] %v510
        %v512 = vld [vmem:[%s60 + $0x708] sm:$0xff]
        %513 = vst [vmem:[%s61 + $0x708] sm:$0xff] %v512
        %v514 = vld [vmem:[%s60 + $0x710] sm:$0xff]
        %515 = vst [vmem:[%s61 + $0x710] sm:$0xff] %v514
        %v516 = vld [vmem:[%s60 + $0x718] sm:$0xff]
        %517 = vst [vmem:[%s61 + $0x718] sm:$0xff] %v516
        %v518 = vld [vmem:[%s60 + $0x720] sm:$0xff]
        %519 = vst [vmem:[%s61 + $0x720] sm:$0xff] %v518
        %v520 = vld [vmem:[%s60 + $0x728] sm:$0xff]
        %521 = vst [vmem:[%s61 + $0x728] sm:$0xff] %v520
        %v522 = vld [vmem:[%s60 + $0x730] sm:$0xff]
        %523 = vst [vmem:[%s61 + $0x730] sm:$0xff] %v522
        %v524 = vld [vmem:[%s60 + $0x738] sm:$0xff]
        %525 = vst [vmem:[%s61 + $0x738] sm:$0xff] %v524
        %v526 = vld [vmem:[%s60 + $0x740] sm:$0xff]
        %527 = vst [vmem:[%s61 + $0x740] sm:$0xff] %v526
        %v528 = vld [vmem:[%s60 + $0x748] sm:$0xff]
        %529 = vst [vmem:[%s61 + $0x748] sm:$0xff] %v528
        %v530 = vld [vmem:[%s60 + $0x750] sm:$0xff]
        %531 = vst [vmem:[%s61 + $0x750] sm:$0xff] %v530
        %v532 = vld [vmem:[%s60 + $0x758] sm:$0xff]
        %533 = vst [vmem:[%s61 + $0x758] sm:$0xff] %v532
        %v534 = vld [vmem:[%s60 + $0x760] sm:$0xff]
        %535 = vst [vmem:[%s61 + $0x760] sm:$0xff] %v534
        %v536 = vld [vmem:[%s60 + $0x768] sm:$0xff]
        %537 = vst [vmem:[%s61 + $0x768] sm:$0xff] %v536
        %v538 = vld [vmem:[%s60 + $0x770] sm:$0xff]
        %539 = vst [vmem:[%s61 + $0x770] sm:$0xff] %v538
        %v540 = vld [vmem:[%s60 + $0x778] sm:$0xff]
        %541 = vst [vmem:[%s61 + $0x778] sm:$0xff] %v540
        %v542 = vld [vmem:[%s60 + $0x780] sm:$0xff]
        %543 = vst [vmem:[%s61 + $0x780] sm:$0xff] %v542
        %v544 = vld [vmem:[%s60 + $0x788] sm:$0xff]
        %545 = vst [vmem:[%s61 + $0x788] sm:$0xff] %v544
        %v546 = vld [vmem:[%s60 + $0x790] sm:$0xff]
        %547 = vst [vmem:[%s61 + $0x790] sm:$0xff] %v546
        %v548 = vld [vmem:[%s60 + $0x798] sm:$0xff]
        %549 = vst [vmem:[%s61 + $0x798] sm:$0xff] %v548
        %v550 = vld [vmem:[%s60 + $0x7a0] sm:$0xff]
        %551 = vst [vmem:[%s61 + $0x7a0] sm:$0xff] %v550
        %v552 = vld [vmem:[%s60 + $0x7a8] sm:$0xff]
        %553 = vst [vmem:[%s61 + $0x7a8] sm:$0xff] %v552
        %v554 = vld [vmem:[%s60 + $0x7b0] sm:$0xff]
        %555 = vst [vmem:[%s61 + $0x7b0] sm:$0xff] %v554
        %v556 = vld [vmem:[%s60 + $0x7b8] sm:$0xff]
        %557 = vst [vmem:[%s61 + $0x7b8] sm:$0xff] %v556
        %v558 = vld [vmem:[%s60 + $0x7c0] sm:$0xff]
        %559 = vst [vmem:[%s61 + $0x7c0] sm:$0xff] %v558
        %v560 = vld [vmem:[%s60 + $0x7c8] sm:$0xff]
        %561 = vst [vmem:[%s61 + $0x7c8] sm:$0xff] %v560
        %v562 = vld [vmem:[%s60 + $0x7d0] sm:$0xff]
        %563 = vst [vmem:[%s61 + $0x7d0] sm:$0xff] %v562
        %v564 = vld [vmem:[%s60 + $0x7d8] sm:$0xff]
        %565 = vst [vmem:[%s61 + $0x7d8] sm:$0xff] %v564
        %v566 = vld [vmem:[%s60 + $0x7e0] sm:$0xff]
        %567 = vst [vmem:[%s61 + $0x7e0] sm:$0xff] %v566
        %v568 = vld [vmem:[%s60 + $0x7e8] sm:$0xff]
        %569 = vst [vmem:[%s61 + $0x7e8] sm:$0xff] %v568
        %v570 = vld [vmem:[%s60 + $0x7f0] sm:$0xff]
        %571 = vst [vmem:[%s61 + $0x7f0] sm:$0xff] %v570
        %v572 = vld [vmem:[%s60 + $0x7f8] sm:$0xff]
        %573 = vst [vmem:[%s61 + $0x7f8] sm:$0xff] %v572
      $region49: #{lstm_forward.1} parent=43 // loop_footer
        %s59 = sadd.s32 1, %s55
      $region50: #{lstm_forward.1} parent=43 // loop_footer_branch
        %54 = sbr.rel target = $region46
      $region51: #{lstm_forward.1} parent=43 // loop_exit
        _
    $region44: #{lstm_forward.1} parent=28 // pred_fallthru
      _
    %p574 = pneg %p50
    // Predicated region
    $region52: #{lstm_forward.1} parent=28 // pred_check
      _
    $region53: #{lstm_forward.1} parent=28 // pred_check_branch
      %576 = sbr.rel (%p50) target = $region55
    $region54: #{lstm_forward.1} parent=28 // pred_region
      %s577 = sand.u32 2048, 7
    $region55: #{lstm_forward.1} parent=28 // pred_fallthru
      _
  $region29: #{lstm_forward.1} parent=0 // pred_fallthru
    _
  // Predicated region
  $region30: #{lstm_forward.1} parent=0 // pred_check
    %p34 = pneg %p30
  $region31: #{lstm_forward.1} parent=0 // pred_check_branch
    %36 = sbr.rel (%p34) target = $region33
  $region32: #{lstm_forward.1} parent=0 // pred_region
    %s37 = sshll.u32 1, 2048
    %s38 = ssub.s32 %s37, 1
    loop: start=0, step=1, limit=1
    $region34: #{lstm_forward.1} parent=32 // loop_pre_header
      _
    $region35: #{lstm_forward.1} parent=32 // loop_header
      %s40 = sphi 0, %s44
      %p41 = scmp.ge.s32.totalorder %s40, 1
      %s45 = sphi %s7, %s7
      %s46 = sphi [#allocation4], [#allocation4]
    $region36: #{lstm_forward.1} parent=32 // loop_header_branch
      %43 = sbr.rel (%p41) target = $region40
    $region37: #{lstm_forward.1} parent=32 // loop_body
      %v47 = vld [vmem:[%s45] sm:%s38]
      %48 = vst [vmem:[%s46] sm:%s38] %v47
    $region38: #{lstm_forward.1} parent=32 // loop_footer
      %s44 = sadd.s32 1, %s40
    $region39: #{lstm_forward.1} parent=32 // loop_footer_branch
      %39 = sbr.rel target = $region35
    $region40: #{lstm_forward.1} parent=32 // loop_exit
      _
  $region33: #{lstm_forward.1} parent=0 // pred_fallthru
    _
  // Predicated region
  $region56: #{lstm_forward.1} parent=0 // pred_check
    _
  $region57: #{lstm_forward.1} parent=0 // pred_check_branch
    %580 = sbr.rel (0) target = $region59
  $region58: #{lstm_forward.1} parent=0 // pred_region
    %581 = vsyncadd [#allocation5], 32768
  $region59: #{lstm_forward.1} parent=0 // pred_fallthru
    _
  %s582 = scalar_lea.sflag [#allocation5], 1
  %p584 = scmp.lt.u32.totalorder 1024, 8
  %p585 = pneg %p584
  // Predicated region
  $region60: #{lstm_forward.1} parent=0 // pred_check
    _
  $region61: #{lstm_forward.1} parent=0 // pred_check_branch
    %587 = sbr.rel (%p584) target = $region63
  $region62: #{lstm_forward.1} parent=0 // pred_region
    %s603 = sand.u32 1024, 7
    %p604 = scmp.eq.s32.totalorder %s603, 0
    // Predicated region
    $region75: #{lstm_forward.1} parent=62 // pred_check
      %p605 = pneg %p604
    $region76: #{lstm_forward.1} parent=62 // pred_check_branch
      %607 = sbr.rel (%p605) target = $region78
    $region77: #{lstm_forward.1} parent=62 // pred_region
      loop: start=0, step=1, limit=1
      $region79: #{lstm_forward.1} parent=77 // loop_pre_header
        _
      $region80: #{lstm_forward.1} parent=77 // loop_header
        %s609 = sphi 0, %s613
        %p610 = scmp.ge.s32.totalorder %s609, 1
        %s614 = sphi %s6, %s6
        %s615 = sphi [#allocation3], [#allocation3]
      $region81: #{lstm_forward.1} parent=77 // loop_header_branch
        %612 = sbr.rel (%p610) target = $region85
      $region82: #{lstm_forward.1} parent=77 // loop_body
        %v616 = vld [vmem:[%s614] sm:$0xff]
        %617 = vst [vmem:[%s615] sm:$0xff] %v616
        %v618 = vld [vmem:[%s614 + $0x8] sm:$0xff]
        %619 = vst [vmem:[%s615 + $0x8] sm:$0xff] %v618
        %v620 = vld [vmem:[%s614 + $0x10] sm:$0xff]
        %621 = vst [vmem:[%s615 + $0x10] sm:$0xff] %v620
        %v622 = vld [vmem:[%s614 + $0x18] sm:$0xff]
        %623 = vst [vmem:[%s615 + $0x18] sm:$0xff] %v622
        %v624 = vld [vmem:[%s614 + $0x20] sm:$0xff]
        %625 = vst [vmem:[%s615 + $0x20] sm:$0xff] %v624
        %v626 = vld [vmem:[%s614 + $0x28] sm:$0xff]
        %627 = vst [vmem:[%s615 + $0x28] sm:$0xff] %v626
        %v628 = vld [vmem:[%s614 + $0x30] sm:$0xff]
        %629 = vst [vmem:[%s615 + $0x30] sm:$0xff] %v628
        %v630 = vld [vmem:[%s614 + $0x38] sm:$0xff]
        %631 = vst [vmem:[%s615 + $0x38] sm:$0xff] %v630
        %v632 = vld [vmem:[%s614 + $0x40] sm:$0xff]
        %633 = vst [vmem:[%s615 + $0x40] sm:$0xff] %v632
        %v634 = vld [vmem:[%s614 + $0x48] sm:$0xff]
        %635 = vst [vmem:[%s615 + $0x48] sm:$0xff] %v634
        %v636 = vld [vmem:[%s614 + $0x50] sm:$0xff]
        %637 = vst [vmem:[%s615 + $0x50] sm:$0xff] %v636
        %v638 = vld [vmem:[%s614 + $0x58] sm:$0xff]
        %639 = vst [vmem:[%s615 + $0x58] sm:$0xff] %v638
        %v640 = vld [vmem:[%s614 + $0x60] sm:$0xff]
        %641 = vst [vmem:[%s615 + $0x60] sm:$0xff] %v640
        %v642 = vld [vmem:[%s614 + $0x68] sm:$0xff]
        %643 = vst [vmem:[%s615 + $0x68] sm:$0xff] %v642
        %v644 = vld [vmem:[%s614 + $0x70] sm:$0xff]
        %645 = vst [vmem:[%s615 + $0x70] sm:$0xff] %v644
        %v646 = vld [vmem:[%s614 + $0x78] sm:$0xff]
        %647 = vst [vmem:[%s615 + $0x78] sm:$0xff] %v646
        %v648 = vld [vmem:[%s614 + $0x80] sm:$0xff]
        %649 = vst [vmem:[%s615 + $0x80] sm:$0xff] %v648
        %v650 = vld [vmem:[%s614 + $0x88] sm:$0xff]
        %651 = vst [vmem:[%s615 + $0x88] sm:$0xff] %v650
        %v652 = vld [vmem:[%s614 + $0x90] sm:$0xff]
        %653 = vst [vmem:[%s615 + $0x90] sm:$0xff] %v652
        %v654 = vld [vmem:[%s614 + $0x98] sm:$0xff]
        %655 = vst [vmem:[%s615 + $0x98] sm:$0xff] %v654
        %v656 = vld [vmem:[%s614 + $0xa0] sm:$0xff]
        %657 = vst [vmem:[%s615 + $0xa0] sm:$0xff] %v656
        %v658 = vld [vmem:[%s614 + $0xa8] sm:$0xff]
        %659 = vst [vmem:[%s615 + $0xa8] sm:$0xff] %v658
        %v660 = vld [vmem:[%s614 + $0xb0] sm:$0xff]
        %661 = vst [vmem:[%s615 + $0xb0] sm:$0xff] %v660
        %v662 = vld [vmem:[%s614 + $0xb8] sm:$0xff]
        %663 = vst [vmem:[%s615 + $0xb8] sm:$0xff] %v662
        %v664 = vld [vmem:[%s614 + $0xc0] sm:$0xff]
        %665 = vst [vmem:[%s615 + $0xc0] sm:$0xff] %v664
        %v666 = vld [vmem:[%s614 + $0xc8] sm:$0xff]
        %667 = vst [vmem:[%s615 + $0xc8] sm:$0xff] %v666
        %v668 = vld [vmem:[%s614 + $0xd0] sm:$0xff]
        %669 = vst [vmem:[%s615 + $0xd0] sm:$0xff] %v668
        %v670 = vld [vmem:[%s614 + $0xd8] sm:$0xff]
        %671 = vst [vmem:[%s615 + $0xd8] sm:$0xff] %v670
        %v672 = vld [vmem:[%s614 + $0xe0] sm:$0xff]
        %673 = vst [vmem:[%s615 + $0xe0] sm:$0xff] %v672
        %v674 = vld [vmem:[%s614 + $0xe8] sm:$0xff]
        %675 = vst [vmem:[%s615 + $0xe8] sm:$0xff] %v674
        %v676 = vld [vmem:[%s614 + $0xf0] sm:$0xff]
        %677 = vst [vmem:[%s615 + $0xf0] sm:$0xff] %v676
        %v678 = vld [vmem:[%s614 + $0xf8] sm:$0xff]
        %679 = vst [vmem:[%s615 + $0xf8] sm:$0xff] %v678
        %v680 = vld [vmem:[%s614 + $0x100] sm:$0xff]
        %681 = vst [vmem:[%s615 + $0x100] sm:$0xff] %v680
        %v682 = vld [vmem:[%s614 + $0x108] sm:$0xff]
        %683 = vst [vmem:[%s615 + $0x108] sm:$0xff] %v682
        %v684 = vld [vmem:[%s614 + $0x110] sm:$0xff]
        %685 = vst [vmem:[%s615 + $0x110] sm:$0xff] %v684
        %v686 = vld [vmem:[%s614 + $0x118] sm:$0xff]
        %687 = vst [vmem:[%s615 + $0x118] sm:$0xff] %v686
        %v688 = vld [vmem:[%s614 + $0x120] sm:$0xff]
        %689 = vst [vmem:[%s615 + $0x120] sm:$0xff] %v688
        %v690 = vld [vmem:[%s614 + $0x128] sm:$0xff]
        %691 = vst [vmem:[%s615 + $0x128] sm:$0xff] %v690
        %v692 = vld [vmem:[%s614 + $0x130] sm:$0xff]
        %693 = vst [vmem:[%s615 + $0x130] sm:$0xff] %v692
        %v694 = vld [vmem:[%s614 + $0x138] sm:$0xff]
        %695 = vst [vmem:[%s615 + $0x138] sm:$0xff] %v694
        %v696 = vld [vmem:[%s614 + $0x140] sm:$0xff]
        %697 = vst [vmem:[%s615 + $0x140] sm:$0xff] %v696
        %v698 = vld [vmem:[%s614 + $0x148] sm:$0xff]
        %699 = vst [vmem:[%s615 + $0x148] sm:$0xff] %v698
        %v700 = vld [vmem:[%s614 + $0x150] sm:$0xff]
        %701 = vst [vmem:[%s615 + $0x150] sm:$0xff] %v700
        %v702 = vld [vmem:[%s614 + $0x158] sm:$0xff]
        %703 = vst [vmem:[%s615 + $0x158] sm:$0xff] %v702
        %v704 = vld [vmem:[%s614 + $0x160] sm:$0xff]
        %705 = vst [vmem:[%s615 + $0x160] sm:$0xff] %v704
        %v706 = vld [vmem:[%s614 + $0x168] sm:$0xff]
        %707 = vst [vmem:[%s615 + $0x168] sm:$0xff] %v706
        %v708 = vld [vmem:[%s614 + $0x170] sm:$0xff]
        %709 = vst [vmem:[%s615 + $0x170] sm:$0xff] %v708
        %v710 = vld [vmem:[%s614 + $0x178] sm:$0xff]
        %711 = vst [vmem:[%s615 + $0x178] sm:$0xff] %v710
        %v712 = vld [vmem:[%s614 + $0x180] sm:$0xff]
        %713 = vst [vmem:[%s615 + $0x180] sm:$0xff] %v712
        %v714 = vld [vmem:[%s614 + $0x188] sm:$0xff]
        %715 = vst [vmem:[%s615 + $0x188] sm:$0xff] %v714
        %v716 = vld [vmem:[%s614 + $0x190] sm:$0xff]
        %717 = vst [vmem:[%s615 + $0x190] sm:$0xff] %v716
        %v718 = vld [vmem:[%s614 + $0x198] sm:$0xff]
        %719 = vst [vmem:[%s615 + $0x198] sm:$0xff] %v718
        %v720 = vld [vmem:[%s614 + $0x1a0] sm:$0xff]
        %721 = vst [vmem:[%s615 + $0x1a0] sm:$0xff] %v720
        %v722 = vld [vmem:[%s614 + $0x1a8] sm:$0xff]
        %723 = vst [vmem:[%s615 + $0x1a8] sm:$0xff] %v722
        %v724 = vld [vmem:[%s614 + $0x1b0] sm:$0xff]
        %725 = vst [vmem:[%s615 + $0x1b0] sm:$0xff] %v724
        %v726 = vld [vmem:[%s614 + $0x1b8] sm:$0xff]
        %727 = vst [vmem:[%s615 + $0x1b8] sm:$0xff] %v726
        %v728 = vld [vmem:[%s614 + $0x1c0] sm:$0xff]
        %729 = vst [vmem:[%s615 + $0x1c0] sm:$0xff] %v728
        %v730 = vld [vmem:[%s614 + $0x1c8] sm:$0xff]
        %731 = vst [vmem:[%s615 + $0x1c8] sm:$0xff] %v730
        %v732 = vld [vmem:[%s614 + $0x1d0] sm:$0xff]
        %733 = vst [vmem:[%s615 + $0x1d0] sm:$0xff] %v732
        %v734 = vld [vmem:[%s614 + $0x1d8] sm:$0xff]
        %735 = vst [vmem:[%s615 + $0x1d8] sm:$0xff] %v734
        %v736 = vld [vmem:[%s614 + $0x1e0] sm:$0xff]
        %737 = vst [vmem:[%s615 + $0x1e0] sm:$0xff] %v736
        %v738 = vld [vmem:[%s614 + $0x1e8] sm:$0xff]
        %739 = vst [vmem:[%s615 + $0x1e8] sm:$0xff] %v738
        %v740 = vld [vmem:[%s614 + $0x1f0] sm:$0xff]
        %741 = vst [vmem:[%s615 + $0x1f0] sm:$0xff] %v740
        %v742 = vld [vmem:[%s614 + $0x1f8] sm:$0xff]
        %743 = vst [vmem:[%s615 + $0x1f8] sm:$0xff] %v742
        %v744 = vld [vmem:[%s614 + $0x200] sm:$0xff]
        %745 = vst [vmem:[%s615 + $0x200] sm:$0xff] %v744
        %v746 = vld [vmem:[%s614 + $0x208] sm:$0xff]
        %747 = vst [vmem:[%s615 + $0x208] sm:$0xff] %v746
        %v748 = vld [vmem:[%s614 + $0x210] sm:$0xff]
        %749 = vst [vmem:[%s615 + $0x210] sm:$0xff] %v748
        %v750 = vld [vmem:[%s614 + $0x218] sm:$0xff]
        %751 = vst [vmem:[%s615 + $0x218] sm:$0xff] %v750
        %v752 = vld [vmem:[%s614 + $0x220] sm:$0xff]
        %753 = vst [vmem:[%s615 + $0x220] sm:$0xff] %v752
        %v754 = vld [vmem:[%s614 + $0x228] sm:$0xff]
        %755 = vst [vmem:[%s615 + $0x228] sm:$0xff] %v754
        %v756 = vld [vmem:[%s614 + $0x230] sm:$0xff]
        %757 = vst [vmem:[%s615 + $0x230] sm:$0xff] %v756
        %v758 = vld [vmem:[%s614 + $0x238] sm:$0xff]
        %759 = vst [vmem:[%s615 + $0x238] sm:$0xff] %v758
        %v760 = vld [vmem:[%s614 + $0x240] sm:$0xff]
        %761 = vst [vmem:[%s615 + $0x240] sm:$0xff] %v760
        %v762 = vld [vmem:[%s614 + $0x248] sm:$0xff]
        %763 = vst [vmem:[%s615 + $0x248] sm:$0xff] %v762
        %v764 = vld [vmem:[%s614 + $0x250] sm:$0xff]
        %765 = vst [vmem:[%s615 + $0x250] sm:$0xff] %v764
        %v766 = vld [vmem:[%s614 + $0x258] sm:$0xff]
        %767 = vst [vmem:[%s615 + $0x258] sm:$0xff] %v766
        %v768 = vld [vmem:[%s614 + $0x260] sm:$0xff]
        %769 = vst [vmem:[%s615 + $0x260] sm:$0xff] %v768
        %v770 = vld [vmem:[%s614 + $0x268] sm:$0xff]
        %771 = vst [vmem:[%s615 + $0x268] sm:$0xff] %v770
        %v772 = vld [vmem:[%s614 + $0x270] sm:$0xff]
        %773 = vst [vmem:[%s615 + $0x270] sm:$0xff] %v772
        %v774 = vld [vmem:[%s614 + $0x278] sm:$0xff]
        %775 = vst [vmem:[%s615 + $0x278] sm:$0xff] %v774
        %v776 = vld [vmem:[%s614 + $0x280] sm:$0xff]
        %777 = vst [vmem:[%s615 + $0x280] sm:$0xff] %v776
        %v778 = vld [vmem:[%s614 + $0x288] sm:$0xff]
        %779 = vst [vmem:[%s615 + $0x288] sm:$0xff] %v778
        %v780 = vld [vmem:[%s614 + $0x290] sm:$0xff]
        %781 = vst [vmem:[%s615 + $0x290] sm:$0xff] %v780
        %v782 = vld [vmem:[%s614 + $0x298] sm:$0xff]
        %783 = vst [vmem:[%s615 + $0x298] sm:$0xff] %v782
        %v784 = vld [vmem:[%s614 + $0x2a0] sm:$0xff]
        %785 = vst [vmem:[%s615 + $0x2a0] sm:$0xff] %v784
        %v786 = vld [vmem:[%s614 + $0x2a8] sm:$0xff]
        %787 = vst [vmem:[%s615 + $0x2a8] sm:$0xff] %v786
        %v788 = vld [vmem:[%s614 + $0x2b0] sm:$0xff]
        %789 = vst [vmem:[%s615 + $0x2b0] sm:$0xff] %v788
        %v790 = vld [vmem:[%s614 + $0x2b8] sm:$0xff]
        %791 = vst [vmem:[%s615 + $0x2b8] sm:$0xff] %v790
        %v792 = vld [vmem:[%s614 + $0x2c0] sm:$0xff]
        %793 = vst [vmem:[%s615 + $0x2c0] sm:$0xff] %v792
        %v794 = vld [vmem:[%s614 + $0x2c8] sm:$0xff]
        %795 = vst [vmem:[%s615 + $0x2c8] sm:$0xff] %v794
        %v796 = vld [vmem:[%s614 + $0x2d0] sm:$0xff]
        %797 = vst [vmem:[%s615 + $0x2d0] sm:$0xff] %v796
        %v798 = vld [vmem:[%s614 + $0x2d8] sm:$0xff]
        %799 = vst [vmem:[%s615 + $0x2d8] sm:$0xff] %v798
        %v800 = vld [vmem:[%s614 + $0x2e0] sm:$0xff]
        %801 = vst [vmem:[%s615 + $0x2e0] sm:$0xff] %v800
        %v802 = vld [vmem:[%s614 + $0x2e8] sm:$0xff]
        %803 = vst [vmem:[%s615 + $0x2e8] sm:$0xff] %v802
        %v804 = vld [vmem:[%s614 + $0x2f0] sm:$0xff]
        %805 = vst [vmem:[%s615 + $0x2f0] sm:$0xff] %v804
        %v806 = vld [vmem:[%s614 + $0x2f8] sm:$0xff]
        %807 = vst [vmem:[%s615 + $0x2f8] sm:$0xff] %v806
        %v808 = vld [vmem:[%s614 + $0x300] sm:$0xff]
        %809 = vst [vmem:[%s615 + $0x300] sm:$0xff] %v808
        %v810 = vld [vmem:[%s614 + $0x308] sm:$0xff]
        %811 = vst [vmem:[%s615 + $0x308] sm:$0xff] %v810
        %v812 = vld [vmem:[%s614 + $0x310] sm:$0xff]
        %813 = vst [vmem:[%s615 + $0x310] sm:$0xff] %v812
        %v814 = vld [vmem:[%s614 + $0x318] sm:$0xff]
        %815 = vst [vmem:[%s615 + $0x318] sm:$0xff] %v814
        %v816 = vld [vmem:[%s614 + $0x320] sm:$0xff]
        %817 = vst [vmem:[%s615 + $0x320] sm:$0xff] %v816
        %v818 = vld [vmem:[%s614 + $0x328] sm:$0xff]
        %819 = vst [vmem:[%s615 + $0x328] sm:$0xff] %v818
        %v820 = vld [vmem:[%s614 + $0x330] sm:$0xff]
        %821 = vst [vmem:[%s615 + $0x330] sm:$0xff] %v820
        %v822 = vld [vmem:[%s614 + $0x338] sm:$0xff]
        %823 = vst [vmem:[%s615 + $0x338] sm:$0xff] %v822
        %v824 = vld [vmem:[%s614 + $0x340] sm:$0xff]
        %825 = vst [vmem:[%s615 + $0x340] sm:$0xff] %v824
        %v826 = vld [vmem:[%s614 + $0x348] sm:$0xff]
        %827 = vst [vmem:[%s615 + $0x348] sm:$0xff] %v826
        %v828 = vld [vmem:[%s614 + $0x350] sm:$0xff]
        %829 = vst [vmem:[%s615 + $0x350] sm:$0xff] %v828
        %v830 = vld [vmem:[%s614 + $0x358] sm:$0xff]
        %831 = vst [vmem:[%s615 + $0x358] sm:$0xff] %v830
        %v832 = vld [vmem:[%s614 + $0x360] sm:$0xff]
        %833 = vst [vmem:[%s615 + $0x360] sm:$0xff] %v832
        %v834 = vld [vmem:[%s614 + $0x368] sm:$0xff]
        %835 = vst [vmem:[%s615 + $0x368] sm:$0xff] %v834
        %v836 = vld [vmem:[%s614 + $0x370] sm:$0xff]
        %837 = vst [vmem:[%s615 + $0x370] sm:$0xff] %v836
        %v838 = vld [vmem:[%s614 + $0x378] sm:$0xff]
        %839 = vst [vmem:[%s615 + $0x378] sm:$0xff] %v838
        %v840 = vld [vmem:[%s614 + $0x380] sm:$0xff]
        %841 = vst [vmem:[%s615 + $0x380] sm:$0xff] %v840
        %v842 = vld [vmem:[%s614 + $0x388] sm:$0xff]
        %843 = vst [vmem:[%s615 + $0x388] sm:$0xff] %v842
        %v844 = vld [vmem:[%s614 + $0x390] sm:$0xff]
        %845 = vst [vmem:[%s615 + $0x390] sm:$0xff] %v844
        %v846 = vld [vmem:[%s614 + $0x398] sm:$0xff]
        %847 = vst [vmem:[%s615 + $0x398] sm:$0xff] %v846
        %v848 = vld [vmem:[%s614 + $0x3a0] sm:$0xff]
        %849 = vst [vmem:[%s615 + $0x3a0] sm:$0xff] %v848
        %v850 = vld [vmem:[%s614 + $0x3a8] sm:$0xff]
        %851 = vst [vmem:[%s615 + $0x3a8] sm:$0xff] %v850
        %v852 = vld [vmem:[%s614 + $0x3b0] sm:$0xff]
        %853 = vst [vmem:[%s615 + $0x3b0] sm:$0xff] %v852
        %v854 = vld [vmem:[%s614 + $0x3b8] sm:$0xff]
        %855 = vst [vmem:[%s615 + $0x3b8] sm:$0xff] %v854
        %v856 = vld [vmem:[%s614 + $0x3c0] sm:$0xff]
        %857 = vst [vmem:[%s615 + $0x3c0] sm:$0xff] %v856
        %v858 = vld [vmem:[%s614 + $0x3c8] sm:$0xff]
        %859 = vst [vmem:[%s615 + $0x3c8] sm:$0xff] %v858
        %v860 = vld [vmem:[%s614 + $0x3d0] sm:$0xff]
        %861 = vst [vmem:[%s615 + $0x3d0] sm:$0xff] %v860
        %v862 = vld [vmem:[%s614 + $0x3d8] sm:$0xff]
        %863 = vst [vmem:[%s615 + $0x3d8] sm:$0xff] %v862
        %v864 = vld [vmem:[%s614 + $0x3e0] sm:$0xff]
        %865 = vst [vmem:[%s615 + $0x3e0] sm:$0xff] %v864
        %v866 = vld [vmem:[%s614 + $0x3e8] sm:$0xff]
        %867 = vst [vmem:[%s615 + $0x3e8] sm:$0xff] %v866
        %v868 = vld [vmem:[%s614 + $0x3f0] sm:$0xff]
        %869 = vst [vmem:[%s615 + $0x3f0] sm:$0xff] %v868
        %v870 = vld [vmem:[%s614 + $0x3f8] sm:$0xff]
        %871 = vst [vmem:[%s615 + $0x3f8] sm:$0xff] %v870
      $region83: #{lstm_forward.1} parent=77 // loop_footer
        %s613 = sadd.s32 1, %s609
      $region84: #{lstm_forward.1} parent=77 // loop_footer_branch
        %608 = sbr.rel target = $region80
      $region85: #{lstm_forward.1} parent=77 // loop_exit
        _
    $region78: #{lstm_forward.1} parent=62 // pred_fallthru
      _
    %p872 = pneg %p604
    // Predicated region
    $region86: #{lstm_forward.1} parent=62 // pred_check
      _
    $region87: #{lstm_forward.1} parent=62 // pred_check_branch
      %874 = sbr.rel (%p604) target = $region89
    $region88: #{lstm_forward.1} parent=62 // pred_region
      %s875 = sand.u32 1024, 7
    $region89: #{lstm_forward.1} parent=62 // pred_fallthru
      _
  $region63: #{lstm_forward.1} parent=0 // pred_fallthru
    _
  // Predicated region
  $region64: #{lstm_forward.1} parent=0 // pred_check
    %p588 = pneg %p584
  $region65: #{lstm_forward.1} parent=0 // pred_check_branch
    %590 = sbr.rel (%p588) target = $region67
  $region66: #{lstm_forward.1} parent=0 // pred_region
    %s591 = sshll.u32 1, 1024
    %s592 = ssub.s32 %s591, 1
    loop: start=0, step=1, limit=1
    $region68: #{lstm_forward.1} parent=66 // loop_pre_header
      _
    $region69: #{lstm_forward.1} parent=66 // loop_header
      %s594 = sphi 0, %s598
      %p595 = scmp.ge.s32.totalorder %s594, 1
      %s599 = sphi %s6, %s6
      %s600 = sphi [#allocation3], [#allocation3]
    $region70: #{lstm_forward.1} parent=66 // loop_header_branch
      %597 = sbr.rel (%p595) target = $region74
    $region71: #{lstm_forward.1} parent=66 // loop_body
      %v601 = vld [vmem:[%s599] sm:%s592]
      %602 = vst [vmem:[%s600] sm:%s592] %v601
    $region72: #{lstm_forward.1} parent=66 // loop_footer
      %s598 = sadd.s32 1, %s594
    $region73: #{lstm_forward.1} parent=66 // loop_footer_branch
      %593 = sbr.rel target = $region69
    $region74: #{lstm_forward.1} parent=66 // loop_exit
      _
  $region67: #{lstm_forward.1} parent=0 // pred_fallthru
    _
  // Predicated region
  $region90: #{lstm_forward.1} parent=0 // pred_check
    _
  $region91: #{lstm_forward.1} parent=0 // pred_check_branch
    %878 = sbr.rel (0) target = $region93
  $region92: #{lstm_forward.1} parent=0 // pred_region
    %879 = vsyncadd %s582, 16384
  $region93: #{lstm_forward.1} parent=0 // pred_fallthru
    _
  %v880 = vld [vmem:[%s0] sm:$0xff]
  %v881 = vld [vmem:[%s0 + $0x8] sm:$0xff]
  %v882 = vld [vmem:[%s0 + $0x10] sm:$0xff]
  %v883 = vld [vmem:[%s0 + $0x18] sm:$0xff]
  %v884 = vld [vmem:[%s0 + $0x20] sm:$0xff]
  %v885 = vld [vmem:[%s0 + $0x28] sm:$0xff]
  %v886 = vld [vmem:[%s0 + $0x30] sm:$0xff]
  %v887 = vld [vmem:[%s0 + $0x38] sm:$0xff]
  %v888 = vld [vmem:[%s1] sm:$0xff]
  %v889 = vld [vmem:[%s1 + $0x8] sm:$0xff]
  %v890 = vld [vmem:[%s1 + $0x10] sm:$0xff]
  %v891 = vld [vmem:[%s1 + $0x18] sm:$0xff]
  %v892 = vld [vmem:[%s1 + $0x20] sm:$0xff]
  %v893 = vld [vmem:[%s1 + $0x28] sm:$0xff]
  %v894 = vld [vmem:[%s1 + $0x30] sm:$0xff]
  %v895 = vld [vmem:[%s1 + $0x38] sm:$0xff]
  %v896 = vld [vmem:[%s1 + $0x40] sm:$0xff]
  %v897 = vld [vmem:[%s1 + $0x48] sm:$0xff]
  %v898 = vld [vmem:[%s1 + $0x50] sm:$0xff]
  %v899 = vld [vmem:[%s1 + $0x58] sm:$0xff]
  %v900 = vld [vmem:[%s1 + $0x60] sm:$0xff]
  %v901 = vld [vmem:[%s1 + $0x68] sm:$0xff]
  %v902 = vld [vmem:[%s1 + $0x70] sm:$0xff]
  %v903 = vld [vmem:[%s1 + $0x78] sm:$0xff]
  %v904 = vld [vmem:[%s1 + $0x80] sm:$0xff]
  %v905 = vld [vmem:[%s1 + $0x88] sm:$0xff]
  %v906 = vld [vmem:[%s1 + $0x90] sm:$0xff]
  %v907 = vld [vmem:[%s1 + $0x98] sm:$0xff]
  %v908 = vld [vmem:[%s1 + $0xa0] sm:$0xff]
  %v909 = vld [vmem:[%s1 + $0xa8] sm:$0xff]
  %v910 = vld [vmem:[%s1 + $0xb0] sm:$0xff]
  %v911 = vld [vmem:[%s1 + $0xb8] sm:$0xff]
  %v912 = vld [vmem:[%s1 + $0xc0] sm:$0xff]
  %v913 = vld [vmem:[%s1 + $0xc8] sm:$0xff]
  %v914 = vld [vmem:[%s1 + $0xd0] sm:$0xff]
  %v915 = vld [vmem:[%s1 + $0xd8] sm:$0xff]
  %v916 = vld [vmem:[%s1 + $0xe0] sm:$0xff]
  %v917 = vld [vmem:[%s1 + $0xe8] sm:$0xff]
  %v918 = vld [vmem:[%s1 + $0xf0] sm:$0xff]
  %v919 = vld [vmem:[%s1 + $0xf8] sm:$0xff]
  %v920 = vld [vmem:[%s1 + $0x100] sm:$0xff]
  %v921 = vld [vmem:[%s1 + $0x108] sm:$0xff]
  %v922 = vld [vmem:[%s1 + $0x110] sm:$0xff]
  %v923 = vld [vmem:[%s1 + $0x118] sm:$0xff]
  %v924 = vld [vmem:[%s1 + $0x120] sm:$0xff]
  %v925 = vld [vmem:[%s1 + $0x128] sm:$0xff]
  %v926 = vld [vmem:[%s1 + $0x130] sm:$0xff]
  %v927 = vld [vmem:[%s1 + $0x138] sm:$0xff]
  %v928 = vld [vmem:[%s1 + $0x140] sm:$0xff]
  %v929 = vld [vmem:[%s1 + $0x148] sm:$0xff]
  %v930 = vld [vmem:[%s1 + $0x150] sm:$0xff]
  %v931 = vld [vmem:[%s1 + $0x158] sm:$0xff]
  %v932 = vld [vmem:[%s1 + $0x160] sm:$0xff]
  %v933 = vld [vmem:[%s1 + $0x168] sm:$0xff]
  %v934 = vld [vmem:[%s1 + $0x170] sm:$0xff]
  %v935 = vld [vmem:[%s1 + $0x178] sm:$0xff]
  %v936 = vld [vmem:[%s1 + $0x180] sm:$0xff]
  %v937 = vld [vmem:[%s1 + $0x188] sm:$0xff]
  %v938 = vld [vmem:[%s1 + $0x190] sm:$0xff]
  %v939 = vld [vmem:[%s1 + $0x198] sm:$0xff]
  %v940 = vld [vmem:[%s1 + $0x1a0] sm:$0xff]
  %v941 = vld [vmem:[%s1 + $0x1a8] sm:$0xff]
  %v942 = vld [vmem:[%s1 + $0x1b0] sm:$0xff]
  %v943 = vld [vmem:[%s1 + $0x1b8] sm:$0xff]
  %v944 = vld [vmem:[%s1 + $0x1c0] sm:$0xff]
  %v945 = vld [vmem:[%s1 + $0x1c8] sm:$0xff]
  %v946 = vld [vmem:[%s1 + $0x1d0] sm:$0xff]
  %v947 = vld [vmem:[%s1 + $0x1d8] sm:$0xff]
  %v948 = vld [vmem:[%s1 + $0x1e0] sm:$0xff]
  %v949 = vld [vmem:[%s1 + $0x1e8] sm:$0xff]
  %v950 = vld [vmem:[%s1 + $0x1f0] sm:$0xff]
  %v951 = vld [vmem:[%s1 + $0x1f8] sm:$0xff]
  %v952 = vld [vmem:[%s1 + $0x200] sm:$0xff]
  %v953 = vld [vmem:[%s1 + $0x208] sm:$0xff]
  %v954 = vld [vmem:[%s1 + $0x210] sm:$0xff]
  %v955 = vld [vmem:[%s1 + $0x218] sm:$0xff]
  %v956 = vld [vmem:[%s1 + $0x220] sm:$0xff]
  %v957 = vld [vmem:[%s1 + $0x228] sm:$0xff]
  %v958 = vld [vmem:[%s1 + $0x230] sm:$0xff]
  %v959 = vld [vmem:[%s1 + $0x238] sm:$0xff]
  %v960 = vld [vmem:[%s1 + $0x240] sm:$0xff]
  %v961 = vld [vmem:[%s1 + $0x248] sm:$0xff]
  %v962 = vld [vmem:[%s1 + $0x250] sm:$0xff]
  %v963 = vld [vmem:[%s1 + $0x258] sm:$0xff]
  %v964 = vld [vmem:[%s1 + $0x260] sm:$0xff]
  %v965 = vld [vmem:[%s1 + $0x268] sm:$0xff]
  %v966 = vld [vmem:[%s1 + $0x270] sm:$0xff]
  %v967 = vld [vmem:[%s1 + $0x278] sm:$0xff]
  %v968 = vld [vmem:[%s1 + $0x280] sm:$0xff]
  %v969 = vld [vmem:[%s1 + $0x288] sm:$0xff]
  %v970 = vld [vmem:[%s1 + $0x290] sm:$0xff]
  %v971 = vld [vmem:[%s1 + $0x298] sm:$0xff]
  %v972 = vld [vmem:[%s1 + $0x2a0] sm:$0xff]
  %v973 = vld [vmem:[%s1 + $0x2a8] sm:$0xff]
  %v974 = vld [vmem:[%s1 + $0x2b0] sm:$0xff]
  %v975 = vld [vmem:[%s1 + $0x2b8] sm:$0xff]
  %v976 = vld [vmem:[%s1 + $0x2c0] sm:$0xff]
  %v977 = vld [vmem:[%s1 + $0x2c8] sm:$0xff]
  %v978 = vld [vmem:[%s1 + $0x2d0] sm:$0xff]
  %v979 = vld [vmem:[%s1 + $0x2d8] sm:$0xff]
  %v980 = vld [vmem:[%s1 + $0x2e0] sm:$0xff]
  %v981 = vld [vmem:[%s1 + $0x2e8] sm:$0xff]
  %v982 = vld [vmem:[%s1 + $0x2f0] sm:$0xff]
  %v983 = vld [vmem:[%s1 + $0x2f8] sm:$0xff]
  %v984 = vld [vmem:[%s1 + $0x300] sm:$0xff]
  %v985 = vld [vmem:[%s1 + $0x308] sm:$0xff]
  %v986 = vld [vmem:[%s1 + $0x310] sm:$0xff]
  %v987 = vld [vmem:[%s1 + $0x318] sm:$0xff]
  %v988 = vld [vmem:[%s1 + $0x320] sm:$0xff]
  %v989 = vld [vmem:[%s1 + $0x328] sm:$0xff]
  %v990 = vld [vmem:[%s1 + $0x330] sm:$0xff]
  %v991 = vld [vmem:[%s1 + $0x338] sm:$0xff]
  %v992 = vld [vmem:[%s1 + $0x340] sm:$0xff]
  %v993 = vld [vmem:[%s1 + $0x348] sm:$0xff]
  %v994 = vld [vmem:[%s1 + $0x350] sm:$0xff]
  %v995 = vld [vmem:[%s1 + $0x358] sm:$0xff]
  %v996 = vld [vmem:[%s1 + $0x360] sm:$0xff]
  %v997 = vld [vmem:[%s1 + $0x368] sm:$0xff]
  %v998 = vld [vmem:[%s1 + $0x370] sm:$0xff]
  %v999 = vld [vmem:[%s1 + $0x378] sm:$0xff]
  %v1000 = vld [vmem:[%s1 + $0x380] sm:$0xff]
  %v1001 = vld [vmem:[%s1 + $0x388] sm:$0xff]
  %v1002 = vld [vmem:[%s1 + $0x390] sm:$0xff]
  %v1003 = vld [vmem:[%s1 + $0x398] sm:$0xff]
  %v1004 = vld [vmem:[%s1 + $0x3a0] sm:$0xff]
  %v1005 = vld [vmem:[%s1 + $0x3a8] sm:$0xff]
  %v1006 = vld [vmem:[%s1 + $0x3b0] sm:$0xff]
  %v1007 = vld [vmem:[%s1 + $0x3b8] sm:$0xff]
  %v1008 = vld [vmem:[%s1 + $0x3c0] sm:$0xff]
  %v1009 = vld [vmem:[%s1 + $0x3c8] sm:$0xff]
  %v1010 = vld [vmem:[%s1 + $0x3d0] sm:$0xff]
  %v1011 = vld [vmem:[%s1 + $0x3d8] sm:$0xff]
  %v1012 = vld [vmem:[%s1 + $0x3e0] sm:$0xff]
  %v1013 = vld [vmem:[%s1 + $0x3e8] sm:$0xff]
  %v1014 = vld [vmem:[%s1 + $0x3f0] sm:$0xff]
  %v1015 = vld [vmem:[%s1 + $0x3f8] sm:$0xff]
  %v1016 = vld [vmem:[%s2] sm:$0xff]
  %v1018 = vlaneseq
  %v1019 = vshrl.u32 %v1018, 7
  %v1020 = vsub.s32 0, %v1019
  %v1021 = vrot.slane %v1016, %v1020
  %v1022 = vlaneseq
  %v1023 = vshrl.u32 %v1022, 7
  %v1024 = vsub.s32 1, %v1023
  %v1025 = vrot.slane %v1016, %v1024
  %v1026 = vlaneseq
  %v1027 = vshrl.u32 %v1026, 7
  %v1028 = vsub.s32 2, %v1027
  %v1029 = vrot.slane %v1016, %v1028
  %v1030 = vlaneseq
  %v1031 = vshrl.u32 %v1030, 7
  %v1032 = vsub.s32 3, %v1031
  %v1033 = vrot.slane %v1016, %v1032
  %v1034 = vlaneseq
  %v1035 = vshrl.u32 %v1034, 7
  %v1036 = vsub.s32 4, %v1035
  %v1037 = vrot.slane %v1016, %v1036
  %v1038 = vlaneseq
  %v1039 = vshrl.u32 %v1038, 7
  %v1040 = vsub.s32 5, %v1039
  %v1041 = vrot.slane %v1016, %v1040
  %v1042 = vlaneseq
  %v1043 = vshrl.u32 %v1042, 7
  %v1044 = vsub.s32 6, %v1043
  %v1045 = vrot.slane %v1016, %v1044
  %v1046 = vlaneseq
  %v1047 = vshrl.u32 %v1046, 7
  %v1048 = vsub.s32 7, %v1047
  %v1049 = vrot.slane %v1016, %v1048
  %v1066 = vunpack.c.l.b16 %v880
  %v1067 = vunpack.c.h.b16 %v880
  %v1068 = vunpack.c.l.b16 %v881
  %v1069 = vunpack.c.h.b16 %v881
  %v1070 = vunpack.c.l.b16 %v882
  %v1071 = vunpack.c.h.b16 %v882
  %v1072 = vunpack.c.l.b16 %v883
  %v1073 = vunpack.c.h.b16 %v883
  %v1074 = vunpack.c.l.b16 %v884
  %v1075 = vunpack.c.h.b16 %v884
  %v1076 = vunpack.c.l.b16 %v885
  %v1077 = vunpack.c.h.b16 %v885
  %v1078 = vunpack.c.l.b16 %v886
  %v1079 = vunpack.c.h.b16 %v886
  %v1080 = vunpack.c.l.b16 %v887
  %v1081 = vunpack.c.h.b16 %v887
  %v1082 = vpack.c.b16 %v1068, %v1066
  %v1083 = vpack.c.b16 %v1069, %v1067
  %v1084 = vpack.c.b16 %v1072, %v1070
  %v1085 = vpack.c.b16 %v1073, %v1071
  %v1086 = vpack.c.b16 %v1076, %v1074
  %v1087 = vpack.c.b16 %v1077, %v1075
  %v1088 = vpack.c.b16 %v1080, %v1078
  %v1089 = vpack.c.b16 %v1081, %v1079
  %v1226 = vunpack.c.l.b16 %v888
  %v1227 = vunpack.c.h.b16 %v888
  %v1228 = vunpack.c.l.b16 %v889
  %v1229 = vunpack.c.h.b16 %v889
  %v1230 = vunpack.c.l.b16 %v890
  %v1231 = vunpack.c.h.b16 %v890
  %v1232 = vunpack.c.l.b16 %v891
  %v1233 = vunpack.c.h.b16 %v891
  %v1234 = vunpack.c.l.b16 %v892
  %v1235 = vunpack.c.h.b16 %v892
  %v1236 = vunpack.c.l.b16 %v893
  %v1237 = vunpack.c.h.b16 %v893
  %v1238 = vunpack.c.l.b16 %v894
  %v1239 = vunpack.c.h.b16 %v894
  %v1240 = vunpack.c.l.b16 %v895
  %v1241 = vunpack.c.h.b16 %v895
  %v1242 = vunpack.c.l.b16 %v896
  %v1243 = vunpack.c.h.b16 %v896
  %v1244 = vunpack.c.l.b16 %v897
  %v1245 = vunpack.c.h.b16 %v897
  %v1246 = vunpack.c.l.b16 %v898
  %v1247 = vunpack.c.h.b16 %v898
  %v1248 = vunpack.c.l.b16 %v899
  %v1249 = vunpack.c.h.b16 %v899
  %v1250 = vunpack.c.l.b16 %v900
  %v1251 = vunpack.c.h.b16 %v900
  %v1252 = vunpack.c.l.b16 %v901
  %v1253 = vunpack.c.h.b16 %v901
  %v1254 = vunpack.c.l.b16 %v902
  %v1255 = vunpack.c.h.b16 %v902
  %v1256 = vunpack.c.l.b16 %v903
  %v1257 = vunpack.c.h.b16 %v903
  %v1258 = vunpack.c.l.b16 %v904
  %v1259 = vunpack.c.h.b16 %v904
  %v1260 = vunpack.c.l.b16 %v905
  %v1261 = vunpack.c.h.b16 %v905
  %v1262 = vunpack.c.l.b16 %v906
  %v1263 = vunpack.c.h.b16 %v906
  %v1264 = vunpack.c.l.b16 %v907
  %v1265 = vunpack.c.h.b16 %v907
  %v1266 = vunpack.c.l.b16 %v908
  %v1267 = vunpack.c.h.b16 %v908
  %v1268 = vunpack.c.l.b16 %v909
  %v1269 = vunpack.c.h.b16 %v909
  %v1270 = vunpack.c.l.b16 %v910
  %v1271 = vunpack.c.h.b16 %v910
  %v1272 = vunpack.c.l.b16 %v911
  %v1273 = vunpack.c.h.b16 %v911
  %v1274 = vunpack.c.l.b16 %v912
  %v1275 = vunpack.c.h.b16 %v912
  %v1276 = vunpack.c.l.b16 %v913
  %v1277 = vunpack.c.h.b16 %v913
  %v1278 = vunpack.c.l.b16 %v914
  %v1279 = vunpack.c.h.b16 %v914
  %v1280 = vunpack.c.l.b16 %v915
  %v1281 = vunpack.c.h.b16 %v915
  %v1282 = vunpack.c.l.b16 %v916
  %v1283 = vunpack.c.h.b16 %v916
  %v1284 = vunpack.c.l.b16 %v917
  %v1285 = vunpack.c.h.b16 %v917
  %v1286 = vunpack.c.l.b16 %v918
  %v1287 = vunpack.c.h.b16 %v918
  %v1288 = vunpack.c.l.b16 %v919
  %v1289 = vunpack.c.h.b16 %v919
  %v1290 = vunpack.c.l.b16 %v920
  %v1291 = vunpack.c.h.b16 %v920
  %v1292 = vunpack.c.l.b16 %v921
  %v1293 = vunpack.c.h.b16 %v921
  %v1294 = vunpack.c.l.b16 %v922
  %v1295 = vunpack.c.h.b16 %v922
  %v1296 = vunpack.c.l.b16 %v923
  %v1297 = vunpack.c.h.b16 %v923
  %v1298 = vunpack.c.l.b16 %v924
  %v1299 = vunpack.c.h.b16 %v924
  %v1300 = vunpack.c.l.b16 %v925
  %v1301 = vunpack.c.h.b16 %v925
  %v1302 = vunpack.c.l.b16 %v926
  %v1303 = vunpack.c.h.b16 %v926
  %v1304 = vunpack.c.l.b16 %v927
  %v1305 = vunpack.c.h.b16 %v927
  %v1306 = vunpack.c.l.b16 %v928
  %v1307 = vunpack.c.h.b16 %v928
  %v1308 = vunpack.c.l.b16 %v929
  %v1309 = vunpack.c.h.b16 %v929
  %v1310 = vunpack.c.l.b16 %v930
  %v1311 = vunpack.c.h.b16 %v930
  %v1312 = vunpack.c.l.b16 %v931
  %v1313 = vunpack.c.h.b16 %v931
  %v1314 = vunpack.c.l.b16 %v932
  %v1315 = vunpack.c.h.b16 %v932
  %v1316 = vunpack.c.l.b16 %v933
  %v1317 = vunpack.c.h.b16 %v933
  %v1318 = vunpack.c.l.b16 %v934
  %v1319 = vunpack.c.h.b16 %v934
  %v1320 = vunpack.c.l.b16 %v935
  %v1321 = vunpack.c.h.b16 %v935
  %v1322 = vunpack.c.l.b16 %v936
  %v1323 = vunpack.c.h.b16 %v936
  %v1324 = vunpack.c.l.b16 %v937
  %v1325 = vunpack.c.h.b16 %v937
  %v1326 = vunpack.c.l.b16 %v938
  %v1327 = vunpack.c.h.b16 %v938
  %v1328 = vunpack.c.l.b16 %v939
  %v1329 = vunpack.c.h.b16 %v939
  %v1330 = vunpack.c.l.b16 %v940
  %v1331 = vunpack.c.h.b16 %v940
  %v1332 = vunpack.c.l.b16 %v941
  %v1333 = vunpack.c.h.b16 %v941
  %v1334 = vunpack.c.l.b16 %v942
  %v1335 = vunpack.c.h.b16 %v942
  %v1336 = vunpack.c.l.b16 %v943
  %v1337 = vunpack.c.h.b16 %v943
  %v1338 = vunpack.c.l.b16 %v944
  %v1339 = vunpack.c.h.b16 %v944
  %v1340 = vunpack.c.l.b16 %v945
  %v1341 = vunpack.c.h.b16 %v945
  %v1342 = vunpack.c.l.b16 %v946
  %v1343 = vunpack.c.h.b16 %v946
  %v1344 = vunpack.c.l.b16 %v947
  %v1345 = vunpack.c.h.b16 %v947
  %v1346 = vunpack.c.l.b16 %v948
  %v1347 = vunpack.c.h.b16 %v948
  %v1348 = vunpack.c.l.b16 %v949
  %v1349 = vunpack.c.h.b16 %v949
  %v1350 = vunpack.c.l.b16 %v950
  %v1351 = vunpack.c.h.b16 %v950
  %v1352 = vunpack.c.l.b16 %v951
  %v1353 = vunpack.c.h.b16 %v951
  %v1354 = vunpack.c.l.b16 %v952
  %v1355 = vunpack.c.h.b16 %v952
  %v1356 = vunpack.c.l.b16 %v953
  %v1357 = vunpack.c.h.b16 %v953
  %v1358 = vunpack.c.l.b16 %v954
  %v1359 = vunpack.c.h.b16 %v954
  %v1360 = vunpack.c.l.b16 %v955
  %v1361 = vunpack.c.h.b16 %v955
  %v1362 = vunpack.c.l.b16 %v956
  %v1363 = vunpack.c.h.b16 %v956
  %v1364 = vunpack.c.l.b16 %v957
  %v1365 = vunpack.c.h.b16 %v957
  %v1366 = vunpack.c.l.b16 %v958
  %v1367 = vunpack.c.h.b16 %v958
  %v1368 = vunpack.c.l.b16 %v959
  %v1369 = vunpack.c.h.b16 %v959
  %v1370 = vunpack.c.l.b16 %v960
  %v1371 = vunpack.c.h.b16 %v960
  %v1372 = vunpack.c.l.b16 %v961
  %v1373 = vunpack.c.h.b16 %v961
  %v1374 = vunpack.c.l.b16 %v962
  %v1375 = vunpack.c.h.b16 %v962
  %v1376 = vunpack.c.l.b16 %v963
  %v1377 = vunpack.c.h.b16 %v963
  %v1378 = vunpack.c.l.b16 %v964
  %v1379 = vunpack.c.h.b16 %v964
  %v1380 = vunpack.c.l.b16 %v965
  %v1381 = vunpack.c.h.b16 %v965
  %v1382 = vunpack.c.l.b16 %v966
  %v1383 = vunpack.c.h.b16 %v966
  %v1384 = vunpack.c.l.b16 %v967
  %v1385 = vunpack.c.h.b16 %v967
  %v1386 = vunpack.c.l.b16 %v968
  %v1387 = vunpack.c.h.b16 %v968
  %v1388 = vunpack.c.l.b16 %v969
  %v1389 = vunpack.c.h.b16 %v969
  %v1390 = vunpack.c.l.b16 %v970
  %v1391 = vunpack.c.h.b16 %v970
  %v1392 = vunpack.c.l.b16 %v971
  %v1393 = vunpack.c.h.b16 %v971
  %v1394 = vunpack.c.l.b16 %v972
  %v1395 = vunpack.c.h.b16 %v972
  %v1396 = vunpack.c.l.b16 %v973
  %v1397 = vunpack.c.h.b16 %v973
  %v1398 = vunpack.c.l.b16 %v974
  %v1399 = vunpack.c.h.b16 %v974
  %v1400 = vunpack.c.l.b16 %v975
  %v1401 = vunpack.c.h.b16 %v975
  %v1402 = vunpack.c.l.b16 %v976
  %v1403 = vunpack.c.h.b16 %v976
  %v1404 = vunpack.c.l.b16 %v977
  %v1405 = vunpack.c.h.b16 %v977
  %v1406 = vunpack.c.l.b16 %v978
  %v1407 = vunpack.c.h.b16 %v978
  %v1408 = vunpack.c.l.b16 %v979
  %v1409 = vunpack.c.h.b16 %v979
  %v1410 = vunpack.c.l.b16 %v980
  %v1411 = vunpack.c.h.b16 %v980
  %v1412 = vunpack.c.l.b16 %v981
  %v1413 = vunpack.c.h.b16 %v981
  %v1414 = vunpack.c.l.b16 %v982
  %v1415 = vunpack.c.h.b16 %v982
  %v1416 = vunpack.c.l.b16 %v983
  %v1417 = vunpack.c.h.b16 %v983
  %v1418 = vunpack.c.l.b16 %v984
  %v1419 = vunpack.c.h.b16 %v984
  %v1420 = vunpack.c.l.b16 %v985
  %v1421 = vunpack.c.h.b16 %v985
  %v1422 = vunpack.c.l.b16 %v986
  %v1423 = vunpack.c.h.b16 %v986
  %v1424 = vunpack.c.l.b16 %v987
  %v1425 = vunpack.c.h.b16 %v987
  %v1426 = vunpack.c.l.b16 %v988
  %v1427 = vunpack.c.h.b16 %v988
  %v1428 = vunpack.c.l.b16 %v989
  %v1429 = vunpack.c.h.b16 %v989
  %v1430 = vunpack.c.l.b16 %v990
  %v1431 = vunpack.c.h.b16 %v990
  %v1432 = vunpack.c.l.b16 %v991
  %v1433 = vunpack.c.h.b16 %v991
  %v1434 = vunpack.c.l.b16 %v992
  %v1435 = vunpack.c.h.b16 %v992
  %v1436 = vunpack.c.l.b16 %v993
  %v1437 = vunpack.c.h.b16 %v993
  %v1438 = vunpack.c.l.b16 %v994
  %v1439 = vunpack.c.h.b16 %v994
  %v1440 = vunpack.c.l.b16 %v995
  %v1441 = vunpack.c.h.b16 %v995
  %v1442 = vunpack.c.l.b16 %v996
  %v1443 = vunpack.c.h.b16 %v996
  %v1444 = vunpack.c.l.b16 %v997
  %v1445 = vunpack.c.h.b16 %v997
  %v1446 = vunpack.c.l.b16 %v998
  %v1447 = vunpack.c.h.b16 %v998
  %v1448 = vunpack.c.l.b16 %v999
  %v1449 = vunpack.c.h.b16 %v999
  %v1450 = vunpack.c.l.b16 %v1000
  %v1451 = vunpack.c.h.b16 %v1000
  %v1452 = vunpack.c.l.b16 %v1001
  %v1453 = vunpack.c.h.b16 %v1001
  %v1454 = vunpack.c.l.b16 %v1002
  %v1455 = vunpack.c.h.b16 %v1002
  %v1456 = vunpack.c.l.b16 %v1003
  %v1457 = vunpack.c.h.b16 %v1003
  %v1458 = vunpack.c.l.b16 %v1004
  %v1459 = vunpack.c.h.b16 %v1004
  %v1460 = vunpack.c.l.b16 %v1005
  %v1461 = vunpack.c.h.b16 %v1005
  %v1462 = vunpack.c.l.b16 %v1006
  %v1463 = vunpack.c.h.b16 %v1006
  %v1464 = vunpack.c.l.b16 %v1007
  %v1465 = vunpack.c.h.b16 %v1007
  %v1466 = vunpack.c.l.b16 %v1008
  %v1467 = vunpack.c.h.b16 %v1008
  %v1468 = vunpack.c.l.b16 %v1009
  %v1469 = vunpack.c.h.b16 %v1009
  %v1470 = vunpack.c.l.b16 %v1010
  %v1471 = vunpack.c.h.b16 %v1010
  %v1472 = vunpack.c.l.b16 %v1011
  %v1473 = vunpack.c.h.b16 %v1011
  %v1474 = vunpack.c.l.b16 %v1012
  %v1475 = vunpack.c.h.b16 %v1012
  %v1476 = vunpack.c.l.b16 %v1013
  %v1477 = vunpack.c.h.b16 %v1013
  %v1478 = vunpack.c.l.b16 %v1014
  %v1479 = vunpack.c.h.b16 %v1014
  %v1480 = vunpack.c.l.b16 %v1015
  %v1481 = vunpack.c.h.b16 %v1015
  %v1482 = vpack.c.b16 %v1234, %v1226
  %v1483 = vpack.c.b16 %v1235, %v1227
  %v1484 = vpack.c.b16 %v1236, %v1228
  %v1485 = vpack.c.b16 %v1237, %v1229
  %v1486 = vpack.c.b16 %v1238, %v1230
  %v1487 = vpack.c.b16 %v1239, %v1231
  %v1488 = vpack.c.b16 %v1240, %v1232
  %v1489 = vpack.c.b16 %v1241, %v1233
  %v1490 = vpack.c.b16 %v1250, %v1242
  %v1491 = vpack.c.b16 %v1251, %v1243
  %v1492 = vpack.c.b16 %v1252, %v1244
  %v1493 = vpack.c.b16 %v1253, %v1245
  %v1494 = vpack.c.b16 %v1254, %v1246
  %v1495 = vpack.c.b16 %v1255, %v1247
  %v1496 = vpack.c.b16 %v1256, %v1248
  %v1497 = vpack.c.b16 %v1257, %v1249
  %v1498 = vpack.c.b16 %v1266, %v1258
  %v1499 = vpack.c.b16 %v1267, %v1259
  %v1500 = vpack.c.b16 %v1268, %v1260
  %v1501 = vpack.c.b16 %v1269, %v1261
  %v1502 = vpack.c.b16 %v1270, %v1262
  %v1503 = vpack.c.b16 %v1271, %v1263
  %v1504 = vpack.c.b16 %v1272, %v1264
  %v1505 = vpack.c.b16 %v1273, %v1265
  %v1506 = vpack.c.b16 %v1282, %v1274
  %v1507 = vpack.c.b16 %v1283, %v1275
  %v1508 = vpack.c.b16 %v1284, %v1276
  %v1509 = vpack.c.b16 %v1285, %v1277
  %v1510 = vpack.c.b16 %v1286, %v1278
  %v1511 = vpack.c.b16 %v1287, %v1279
  %v1512 = vpack.c.b16 %v1288, %v1280
  %v1513 = vpack.c.b16 %v1289, %v1281
  %v1514 = vpack.c.b16 %v1298, %v1290
  %v1515 = vpack.c.b16 %v1299, %v1291
  %v1516 = vpack.c.b16 %v1300, %v1292
  %v1517 = vpack.c.b16 %v1301, %v1293
  %v1518 = vpack.c.b16 %v1302, %v1294
  %v1519 = vpack.c.b16 %v1303, %v1295
  %v1520 = vpack.c.b16 %v1304, %v1296
  %v1521 = vpack.c.b16 %v1305, %v1297
  %v1522 = vpack.c.b16 %v1314, %v1306
  %v1523 = vpack.c.b16 %v1315, %v1307
  %v1524 = vpack.c.b16 %v1316, %v1308
  %v1525 = vpack.c.b16 %v1317, %v1309
  %v1526 = vpack.c.b16 %v1318, %v1310
  %v1527 = vpack.c.b16 %v1319, %v1311
  %v1528 = vpack.c.b16 %v1320, %v1312
  %v1529 = vpack.c.b16 %v1321, %v1313
  %v1530 = vpack.c.b16 %v1330, %v1322
  %v1531 = vpack.c.b16 %v1331, %v1323
  %v1532 = vpack.c.b16 %v1332, %v1324
  %v1533 = vpack.c.b16 %v1333, %v1325
  %v1534 = vpack.c.b16 %v1334, %v1326
  %v1535 = vpack.c.b16 %v1335, %v1327
  %v1536 = vpack.c.b16 %v1336, %v1328
  %v1537 = vpack.c.b16 %v1337, %v1329
  %v1538 = vpack.c.b16 %v1346, %v1338
  %v1539 = vpack.c.b16 %v1347, %v1339
  %v1540 = vpack.c.b16 %v1348, %v1340
  %v1541 = vpack.c.b16 %v1349, %v1341
  %v1542 = vpack.c.b16 %v1350, %v1342
  %v1543 = vpack.c.b16 %v1351, %v1343
  %v1544 = vpack.c.b16 %v1352, %v1344
  %v1545 = vpack.c.b16 %v1353, %v1345
  %v1546 = vpack.c.b16 %v1362, %v1354
  %v1547 = vpack.c.b16 %v1363, %v1355
  %v1548 = vpack.c.b16 %v1364, %v1356
  %v1549 = vpack.c.b16 %v1365, %v1357
  %v1550 = vpack.c.b16 %v1366, %v1358
  %v1551 = vpack.c.b16 %v1367, %v1359
  %v1552 = vpack.c.b16 %v1368, %v1360
  %v1553 = vpack.c.b16 %v1369, %v1361
  %v1554 = vpack.c.b16 %v1378, %v1370
  %v1555 = vpack.c.b16 %v1379, %v1371
  %v1556 = vpack.c.b16 %v1380, %v1372
  %v1557 = vpack.c.b16 %v1381, %v1373
  %v1558 = vpack.c.b16 %v1382, %v1374
  %v1559 = vpack.c.b16 %v1383, %v1375
  %v1560 = vpack.c.b16 %v1384, %v1376
  %v1561 = vpack.c.b16 %v1385, %v1377
  %v1562 = vpack.c.b16 %v1394, %v1386
  %v1563 = vpack.c.b16 %v1395, %v1387
  %v1564 = vpack.c.b16 %v1396, %v1388
  %v1565 = vpack.c.b16 %v1397, %v1389
  %v1566 = vpack.c.b16 %v1398, %v1390
  %v1567 = vpack.c.b16 %v1399, %v1391
  %v1568 = vpack.c.b16 %v1400, %v1392
  %v1569 = vpack.c.b16 %v1401, %v1393
  %v1570 = vpack.c.b16 %v1410, %v1402
  %v1571 = vpack.c.b16 %v1411, %v1403
  %v1572 = vpack.c.b16 %v1412, %v1404
  %v1573 = vpack.c.b16 %v1413, %v1405
  %v1574 = vpack.c.b16 %v1414, %v1406
  %v1575 = vpack.c.b16 %v1415, %v1407
  %v1576 = vpack.c.b16 %v1416, %v1408
  %v1577 = vpack.c.b16 %v1417, %v1409
  %v1578 = vpack.c.b16 %v1426, %v1418
  %v1579 = vpack.c.b16 %v1427, %v1419
  %v1580 = vpack.c.b16 %v1428, %v1420
  %v1581 = vpack.c.b16 %v1429, %v1421
  %v1582 = vpack.c.b16 %v1430, %v1422
  %v1583 = vpack.c.b16 %v1431, %v1423
  %v1584 = vpack.c.b16 %v1432, %v1424
  %v1585 = vpack.c.b16 %v1433, %v1425
  %v1586 = vpack.c.b16 %v1442, %v1434
  %v1587 = vpack.c.b16 %v1443, %v1435
  %v1588 = vpack.c.b16 %v1444, %v1436
  %v1589 = vpack.c.b16 %v1445, %v1437
  %v1590 = vpack.c.b16 %v1446, %v1438
  %v1591 = vpack.c.b16 %v1447, %v1439
  %v1592 = vpack.c.b16 %v1448, %v1440
  %v1593 = vpack.c.b16 %v1449, %v1441
  %v1594 = vpack.c.b16 %v1458, %v1450
  %v1595 = vpack.c.b16 %v1459, %v1451
  %v1596 = vpack.c.b16 %v1460, %v1452
  %v1597 = vpack.c.b16 %v1461, %v1453
  %v1598 = vpack.c.b16 %v1462, %v1454
  %v1599 = vpack.c.b16 %v1463, %v1455
  %v1600 = vpack.c.b16 %v1464, %v1456
  %v1601 = vpack.c.b16 %v1465, %v1457
  %v1602 = vpack.c.b16 %v1474, %v1466
  %v1603 = vpack.c.b16 %v1475, %v1467
  %v1604 = vpack.c.b16 %v1476, %v1468
  %v1605 = vpack.c.b16 %v1477, %v1469
  %v1606 = vpack.c.b16 %v1478, %v1470
  %v1607 = vpack.c.b16 %v1479, %v1471
  %v1608 = vpack.c.b16 %v1480, %v1472
  %v1609 = vpack.c.b16 %v1481, %v1473
  %1738 = vmatprep.subr.bf16.mxu0 %v1539
  %1739 = vmatpush1.bf16.msra.mxu0 %v1538
  %1740 = vmatprep.subr.bf16.mxu0 %v1531
  %1741 = vmatpush1.bf16.msra.mxu0 %v1530
  %1742 = vmatprep.subr.bf16.mxu0 %v1523
  %1743 = vmatpush1.bf16.msra.mxu0 %v1522
  %1744 = vmatprep.subr.bf16.mxu0 %v1515
  %1745 = vmatpush1.bf16.msra.mxu0 %v1514
  %1746 = vmatprep.subr.bf16.mxu0 %v1507
  %1747 = vmatpush1.bf16.msra.mxu0 %v1506
  %1748 = vmatprep.subr.bf16.mxu0 %v1499
  %1749 = vmatpush1.bf16.msra.mxu0 %v1498
  %1750 = vmatprep.subr.bf16.mxu0 %v1491
  %1751 = vmatpush1.bf16.msra.mxu0 %v1490
  %1752 = vmatprep.subr.bf16.mxu0 %v1483
  %1753 = vmatpush1.bf16.msra.mxu0 %v1482
  %1754 = vmatprep.subr.bf16.mxu0 %v1603
  %1755 = vmatpush2.bf16.msra.mxu0 %v1602
  %1756 = vmatprep.subr.bf16.mxu0 %v1595
  %1757 = vmatpush2.bf16.msra.mxu0 %v1594
  %1758 = vmatprep.subr.bf16.mxu0 %v1587
  %1759 = vmatpush2.bf16.msra.mxu0 %v1586
  %1760 = vmatprep.subr.bf16.mxu0 %v1579
  %1761 = vmatpush2.bf16.msra.mxu0 %v1578
  %1762 = vmatprep.subr.bf16.mxu0 %v1571
  %1763 = vmatpush2.bf16.msra.mxu0 %v1570
  %1764 = vmatprep.subr.bf16.mxu0 %v1563
  %1765 = vmatpush2.bf16.msra.mxu0 %v1562
  %1766 = vmatprep.subr.bf16.mxu0 %v1555
  %1767 = vmatpush2.bf16.msra.mxu0 %v1554
  %1768 = vmatprep.subr.bf16.mxu0 %v1547
  %1769 = vmatpush2.bf16.msra.mxu0 %v1546
  %1770 = vmatprep.mubr.bf16.mxu0 %v1083
  %1771 = vmatmul.mubr.bf16.gmra.mxu0 %v1082
  %v1772 = vpop.f32.mrf.mxu0
  %v1773 = vadd.f32 %v1021, %v1772
  %v1774 = vpop.f32.mrf.mxu0
  %v1775 = vadd.f32 %v1025, %v1774
  %v1776 = vpop.f32.mrf.mxu0
  %v1777 = vadd.f32 %v1021, %v1776
  %v1778 = vpop.f32.mrf.mxu0
  %v1779 = vadd.f32 %v1025, %v1778
  %1780 = vmatprep.mubr.bf16.mxu0 %v1085
  %1781 = vmatmul.mubr.bf16.gmra.mxu0 %v1084
  %v1782 = vpop.f32.mrf.mxu0
  %v1783 = vadd.f32 %v1021, %v1782
  %v1784 = vpop.f32.mrf.mxu0
  %v1785 = vadd.f32 %v1025, %v1784
  %v1786 = vpop.f32.mrf.mxu0
  %v1787 = vadd.f32 %v1021, %v1786
  %v1788 = vpop.f32.mrf.mxu0
  %v1789 = vadd.f32 %v1025, %v1788
  %1790 = vmatprep.mubr.bf16.mxu0 %v1087
  %1791 = vmatmul.mubr.bf16.gmra.mxu0 %v1086
  %v1792 = vpop.f32.mrf.mxu0
  %v1793 = vadd.f32 %v1021, %v1792
  %v1794 = vpop.f32.mrf.mxu0
  %v1795 = vadd.f32 %v1025, %v1794
  %v1796 = vpop.f32.mrf.mxu0
  %v1797 = vadd.f32 %v1021, %v1796
  %v1798 = vpop.f32.mrf.mxu0
  %v1799 = vadd.f32 %v1025, %v1798
  %1800 = vmatprep.mubr.bf16.mxu0 %v1089
  %1801 = vmatmul.mubr.bf16.gmra.mxu0 %v1088
  %v1802 = vpop.f32.mrf.mxu0
  %v1803 = vadd.f32 %v1021, %v1802
  %v1804 = vpop.f32.mrf.mxu0
  %v1805 = vadd.f32 %v1025, %v1804
  %v1806 = vpop.f32.mrf.mxu0
  %v1807 = vadd.f32 %v1021, %v1806
  %v1808 = vpop.f32.mrf.mxu0
  %v1809 = vadd.f32 %v1025, %v1808
  %1810 = vdwg.mxu0
  %1811 = vmatprep.subr.bf16.mxu0 %v1541
  %1812 = vmatpush1.bf16.msra.mxu0 %v1540
  %1813 = vmatprep.subr.bf16.mxu0 %v1533
  %1814 = vmatpush1.bf16.msra.mxu0 %v1532
  %1815 = vmatprep.subr.bf16.mxu0 %v1525
  %1816 = vmatpush1.bf16.msra.mxu0 %v1524
  %1817 = vmatprep.subr.bf16.mxu0 %v1517
  %1818 = vmatpush1.bf16.msra.mxu0 %v1516
  %1819 = vmatprep.subr.bf16.mxu0 %v1509
  %1820 = vmatpush1.bf16.msra.mxu0 %v1508
  %1821 = vmatprep.subr.bf16.mxu0 %v1501
  %1822 = vmatpush1.bf16.msra.mxu0 %v1500
  %1823 = vmatprep.subr.bf16.mxu0 %v1493
  %1824 = vmatpush1.bf16.msra.mxu0 %v1492
  %1825 = vmatprep.subr.bf16.mxu0 %v1485
  %1826 = vmatpush1.bf16.msra.mxu0 %v1484
  %1827 = vmatprep.subr.bf16.mxu0 %v1605
  %1828 = vmatpush2.bf16.msra.mxu0 %v1604
  %1829 = vmatprep.subr.bf16.mxu0 %v1597
  %1830 = vmatpush2.bf16.msra.mxu0 %v1596
  %1831 = vmatprep.subr.bf16.mxu0 %v1589
  %1832 = vmatpush2.bf16.msra.mxu0 %v1588
  %1833 = vmatprep.subr.bf16.mxu0 %v1581
  %1834 = vmatpush2.bf16.msra.mxu0 %v1580
  %1835 = vmatprep.subr.bf16.mxu0 %v1573
  %1836 = vmatpush2.bf16.msra.mxu0 %v1572
  %1837 = vmatprep.subr.bf16.mxu0 %v1565
  %1838 = vmatpush2.bf16.msra.mxu0 %v1564
  %1839 = vmatprep.subr.bf16.mxu0 %v1557
  %1840 = vmatpush2.bf16.msra.mxu0 %v1556
  %1841 = vmatprep.subr.bf16.mxu0 %v1549
  %1842 = vmatpush2.bf16.msra.mxu0 %v1548
  %1843 = vmatprep.mubr.bf16.mxu0 %v1083
  %1844 = vmatmul.mubr.bf16.gmra.mxu0 %v1082
  %v1845 = vpop.f32.mrf.mxu0
  %v1846 = vadd.f32 %v1029, %v1845
  %v1847 = vpop.f32.mrf.mxu0
  %v1848 = vadd.f32 %v1033, %v1847
  %v1849 = vpop.f32.mrf.mxu0
  %v1850 = vadd.f32 %v1029, %v1849
  %v1851 = vpop.f32.mrf.mxu0
  %v1852 = vadd.f32 %v1033, %v1851
  %1853 = vmatprep.mubr.bf16.mxu0 %v1085
  %1854 = vmatmul.mubr.bf16.gmra.mxu0 %v1084
  %v1855 = vpop.f32.mrf.mxu0
  %v1856 = vadd.f32 %v1029, %v1855
  %v1857 = vpop.f32.mrf.mxu0
  %v1858 = vadd.f32 %v1033, %v1857
  %v1859 = vpop.f32.mrf.mxu0
  %v1860 = vadd.f32 %v1029, %v1859
  %v1861 = vpop.f32.mrf.mxu0
  %v1862 = vadd.f32 %v1033, %v1861
  %1863 = vmatprep.mubr.bf16.mxu0 %v1087
  %1864 = vmatmul.mubr.bf16.gmra.mxu0 %v1086
  %v1865 = vpop.f32.mrf.mxu0
  %v1866 = vadd.f32 %v1029, %v1865
  %v1867 = vpop.f32.mrf.mxu0
  %v1868 = vadd.f32 %v1033, %v1867
  %v1869 = vpop.f32.mrf.mxu0
  %v1870 = vadd.f32 %v1029, %v1869
  %v1871 = vpop.f32.mrf.mxu0
  %v1872 = vadd.f32 %v1033, %v1871
  %1873 = vmatprep.mubr.bf16.mxu0 %v1089
  %1874 = vmatmul.mubr.bf16.gmra.mxu0 %v1088
  %v1875 = vpop.f32.mrf.mxu0
  %v1876 = vadd.f32 %v1029, %v1875
  %v1877 = vpop.f32.mrf.mxu0
  %v1878 = vadd.f32 %v1033, %v1877
  %v1879 = vpop.f32.mrf.mxu0
  %v1880 = vadd.f32 %v1029, %v1879
  %v1881 = vpop.f32.mrf.mxu0
  %v1882 = vadd.f32 %v1033, %v1881
  %1883 = vdwg.mxu0
  %1884 = vmatprep.subr.bf16.mxu0 %v1543
  %1885 = vmatpush1.bf16.msra.mxu0 %v1542
  %1886 = vmatprep.subr.bf16.mxu0 %v1535
  %1887 = vmatpush1.bf16.msra.mxu0 %v1534
  %1888 = vmatprep.subr.bf16.mxu0 %v1527
  %1889 = vmatpush1.bf16.msra.mxu0 %v1526
  %1890 = vmatprep.subr.bf16.mxu0 %v1519
  %1891 = vmatpush1.bf16.msra.mxu0 %v1518
  %1892 = vmatprep.subr.bf16.mxu0 %v1511
  %1893 = vmatpush1.bf16.msra.mxu0 %v1510
  %1894 = vmatprep.subr.bf16.mxu0 %v1503
  %1895 = vmatpush1.bf16.msra.mxu0 %v1502
  %1896 = vmatprep.subr.bf16.mxu0 %v1495
  %1897 = vmatpush1.bf16.msra.mxu0 %v1494
  %1898 = vmatprep.subr.bf16.mxu0 %v1487
  %1899 = vmatpush1.bf16.msra.mxu0 %v1486
  %1900 = vmatprep.subr.bf16.mxu0 %v1607
  %1901 = vmatpush2.bf16.msra.mxu0 %v1606
  %1902 = vmatprep.subr.bf16.mxu0 %v1599
  %1903 = vmatpush2.bf16.msra.mxu0 %v1598
  %1904 = vmatprep.subr.bf16.mxu0 %v1591
  %1905 = vmatpush2.bf16.msra.mxu0 %v1590
  %1906 = vmatprep.subr.bf16.mxu0 %v1583
  %1907 = vmatpush2.bf16.msra.mxu0 %v1582
  %1908 = vmatprep.subr.bf16.mxu0 %v1575
  %1909 = vmatpush2.bf16.msra.mxu0 %v1574
  %1910 = vmatprep.subr.bf16.mxu0 %v1567
  %1911 = vmatpush2.bf16.msra.mxu0 %v1566
  %1912 = vmatprep.subr.bf16.mxu0 %v1559
  %1913 = vmatpush2.bf16.msra.mxu0 %v1558
  %1914 = vmatprep.subr.bf16.mxu0 %v1551
  %1915 = vmatpush2.bf16.msra.mxu0 %v1550
  %1916 = vmatprep.mubr.bf16.mxu0 %v1083
  %1917 = vmatmul.mubr.bf16.gmra.mxu0 %v1082
  %v1918 = vpop.f32.mrf.mxu0
  %v1919 = vadd.f32 %v1037, %v1918
  %v1920 = vpop.f32.mrf.mxu0
  %v1921 = vadd.f32 %v1041, %v1920
  %v1922 = vpop.f32.mrf.mxu0
  %v1923 = vadd.f32 %v1037, %v1922
  %v1924 = vpop.f32.mrf.mxu0
  %v1925 = vadd.f32 %v1041, %v1924
  %1926 = vmatprep.mubr.bf16.mxu0 %v1085
  %1927 = vmatmul.mubr.bf16.gmra.mxu0 %v1084
  %v1928 = vpop.f32.mrf.mxu0
  %v1929 = vadd.f32 %v1037, %v1928
  %v1930 = vpop.f32.mrf.mxu0
  %v1931 = vadd.f32 %v1041, %v1930
  %v1932 = vpop.f32.mrf.mxu0
  %v1933 = vadd.f32 %v1037, %v1932
  %v1934 = vpop.f32.mrf.mxu0
  %v1935 = vadd.f32 %v1041, %v1934
  %1936 = vmatprep.mubr.bf16.mxu0 %v1087
  %1937 = vmatmul.mubr.bf16.gmra.mxu0 %v1086
  %v1938 = vpop.f32.mrf.mxu0
  %v1939 = vadd.f32 %v1037, %v1938
  %v1940 = vpop.f32.mrf.mxu0
  %v1941 = vadd.f32 %v1041, %v1940
  %v1942 = vpop.f32.mrf.mxu0
  %v1943 = vadd.f32 %v1037, %v1942
  %v1944 = vpop.f32.mrf.mxu0
  %v1945 = vadd.f32 %v1041, %v1944
  %1946 = vmatprep.mubr.bf16.mxu0 %v1089
  %1947 = vmatmul.mubr.bf16.gmra.mxu0 %v1088
  %v1948 = vpop.f32.mrf.mxu0
  %v1949 = vadd.f32 %v1037, %v1948
  %v1950 = vpop.f32.mrf.mxu0
  %v1951 = vadd.f32 %v1041, %v1950
  %v1952 = vpop.f32.mrf.mxu0
  %v1953 = vadd.f32 %v1037, %v1952
  %v1954 = vpop.f32.mrf.mxu0
  %v1955 = vadd.f32 %v1041, %v1954
  %1956 = vdwg.mxu0
  %1957 = vmatprep.subr.bf16.mxu0 %v1545
  %1958 = vmatpush1.bf16.msra.mxu0 %v1544
  %1959 = vmatprep.subr.bf16.mxu0 %v1537
  %1960 = vmatpush1.bf16.msra.mxu0 %v1536
  %1961 = vmatprep.subr.bf16.mxu0 %v1529
  %1962 = vmatpush1.bf16.msra.mxu0 %v1528
  %1963 = vmatprep.subr.bf16.mxu0 %v1521
  %1964 = vmatpush1.bf16.msra.mxu0 %v1520
  %1965 = vmatprep.subr.bf16.mxu0 %v1513
  %1966 = vmatpush1.bf16.msra.mxu0 %v1512
  %1967 = vmatprep.subr.bf16.mxu0 %v1505
  %1968 = vmatpush1.bf16.msra.mxu0 %v1504
  %1969 = vmatprep.subr.bf16.mxu0 %v1497
  %1970 = vmatpush1.bf16.msra.mxu0 %v1496
  %1971 = vmatprep.subr.bf16.mxu0 %v1489
  %1972 = vmatpush1.bf16.msra.mxu0 %v1488
  %1973 = vmatprep.subr.bf16.mxu0 %v1609
  %1974 = vmatpush2.bf16.msra.mxu0 %v1608
  %1975 = vmatprep.subr.bf16.mxu0 %v1601
  %1976 = vmatpush2.bf16.msra.mxu0 %v1600
  %1977 = vmatprep.subr.bf16.mxu0 %v1593
  %1978 = vmatpush2.bf16.msra.mxu0 %v1592
  %1979 = vmatprep.subr.bf16.mxu0 %v1585
  %1980 = vmatpush2.bf16.msra.mxu0 %v1584
  %1981 = vmatprep.subr.bf16.mxu0 %v1577
  %1982 = vmatpush2.bf16.msra.mxu0 %v1576
  %1983 = vmatprep.subr.bf16.mxu0 %v1569
  %1984 = vmatpush2.bf16.msra.mxu0 %v1568
  %1985 = vmatprep.subr.bf16.mxu0 %v1561
  %1986 = vmatpush2.bf16.msra.mxu0 %v1560
  %1987 = vmatprep.subr.bf16.mxu0 %v1553
  %1988 = vmatpush2.bf16.msra.mxu0 %v1552
  %1989 = vmatprep.mubr.bf16.mxu0 %v1083
  %1990 = vmatmul.mubr.bf16.gmra.mxu0 %v1082
  %v1991 = vpop.f32.mrf.mxu0
  %v1992 = vadd.f32 %v1045, %v1991
  %v1993 = vpop.f32.mrf.mxu0
  %v1994 = vadd.f32 %v1049, %v1993
  %v1995 = vpop.f32.mrf.mxu0
  %v1996 = vadd.f32 %v1045, %v1995
  %v1997 = vpop.f32.mrf.mxu0
  %v1998 = vadd.f32 %v1049, %v1997
  %1999 = vmatprep.mubr.bf16.mxu0 %v1085
  %2000 = vmatmul.mubr.bf16.gmra.mxu0 %v1084
  %v2001 = vpop.f32.mrf.mxu0
  %v2002 = vadd.f32 %v1045, %v2001
  %v2003 = vpop.f32.mrf.mxu0
  %v2004 = vadd.f32 %v1049, %v2003
  %v2005 = vpop.f32.mrf.mxu0
  %v2006 = vadd.f32 %v1045, %v2005
  %v2007 = vpop.f32.mrf.mxu0
  %v2008 = vadd.f32 %v1049, %v2007
  %2009 = vmatprep.mubr.bf16.mxu0 %v1087
  %2010 = vmatmul.mubr.bf16.gmra.mxu0 %v1086
  %v2011 = vpop.f32.mrf.mxu0
  %v2012 = vadd.f32 %v1045, %v2011
  %v2013 = vpop.f32.mrf.mxu0
  %v2014 = vadd.f32 %v1049, %v2013
  %v2015 = vpop.f32.mrf.mxu0
  %v2016 = vadd.f32 %v1045, %v2015
  %v2017 = vpop.f32.mrf.mxu0
  %v2018 = vadd.f32 %v1049, %v2017
  %2019 = vmatprep.mubr.bf16.mxu0 %v1089
  %2020 = vmatmul.mubr.bf16.gmra.mxu0 %v1088
  %v2021 = vpop.f32.mrf.mxu0
  %v2022 = vadd.f32 %v1045, %v2021
  %v2023 = vpop.f32.mrf.mxu0
  %v2024 = vadd.f32 %v1049, %v2023
  %v2025 = vpop.f32.mrf.mxu0
  %v2026 = vadd.f32 %v1045, %v2025
  %v2027 = vpop.f32.mrf.mxu0
  %v2028 = vadd.f32 %v1049, %v2027
  %2029 = vdwg.mxu0
  %2030 = vst [vmem:[#allocation2] sm:$0xff] %v1773
  %2031 = vst [vmem:[#allocation2 + $0x8] sm:$0xff] %v1775
  %2032 = vst [vmem:[#allocation2 + $0x10] sm:$0xff] %v1846
  %2033 = vst [vmem:[#allocation2 + $0x18] sm:$0xff] %v1848
  %2034 = vst [vmem:[#allocation2 + $0x20] sm:$0xff] %v1919
  %2035 = vst [vmem:[#allocation2 + $0x28] sm:$0xff] %v1921
  %2036 = vst [vmem:[#allocation2 + $0x30] sm:$0xff] %v1992
  %2037 = vst [vmem:[#allocation2 + $0x38] sm:$0xff] %v1994
  %2038 = vst [vmem:[#allocation2 + $0x40] sm:$0xff] %v1777
  %2039 = vst [vmem:[#allocation2 + $0x48] sm:$0xff] %v1779
  %2040 = vst [vmem:[#allocation2 + $0x50] sm:$0xff] %v1850
  %2041 = vst [vmem:[#allocation2 + $0x58] sm:$0xff] %v1852
  %2042 = vst [vmem:[#allocation2 + $0x60] sm:$0xff] %v1923
  %2043 = vst [vmem:[#allocation2 + $0x68] sm:$0xff] %v1925
  %2044 = vst [vmem:[#allocation2 + $0x70] sm:$0xff] %v1996
  %2045 = vst [vmem:[#allocation2 + $0x78] sm:$0xff] %v1998
  %2046 = vst [vmem:[#allocation2 + $0x80] sm:$0xff] %v1783
  %2047 = vst [vmem:[#allocation2 + $0x88] sm:$0xff] %v1785
  %2048 = vst [vmem:[#allocation2 + $0x90] sm:$0xff] %v1856
  %2049 = vst [vmem:[#allocation2 + $0x98] sm:$0xff] %v1858
  %2050 = vst [vmem:[#allocation2 + $0xa0] sm:$0xff] %v1929
  %2051 = vst [vmem:[#allocation2 + $0xa8] sm:$0xff] %v1931
  %2052 = vst [vmem:[#allocation2 + $0xb0] sm:$0xff] %v2002
  %2053 = vst [vmem:[#allocation2 + $0xb8] sm:$0xff] %v2004
  %2054 = vst [vmem:[#allocation2 + $0xc0] sm:$0xff] %v1787
  %2055 = vst [vmem:[#allocation2 + $0xc8] sm:$0xff] %v1789
  %2056 = vst [vmem:[#allocation2 + $0xd0] sm:$0xff] %v1860
  %2057 = vst [vmem:[#allocation2 + $0xd8] sm:$0xff] %v1862
  %2058 = vst [vmem:[#allocation2 + $0xe0] sm:$0xff] %v1933
  %2059 = vst [vmem:[#allocation2 + $0xe8] sm:$0xff] %v1935
  %2060 = vst [vmem:[#allocation2 + $0xf0] sm:$0xff] %v2006
  %2061 = vst [vmem:[#allocation2 + $0xf8] sm:$0xff] %v2008
  %2062 = vst [vmem:[#allocation2 + $0x100] sm:$0xff] %v1793
  %2063 = vst [vmem:[#allocation2 + $0x108] sm:$0xff] %v1795
  %2064 = vst [vmem:[#allocation2 + $0x110] sm:$0xff] %v1866
  %2065 = vst [vmem:[#allocation2 + $0x118] sm:$0xff] %v1868
  %2066 = vst [vmem:[#allocation2 + $0x120] sm:$0xff] %v1939
  %2067 = vst [vmem:[#allocation2 + $0x128] sm:$0xff] %v1941
  %2068 = vst [vmem:[#allocation2 + $0x130] sm:$0xff] %v2012
  %2069 = vst [vmem:[#allocation2 + $0x138] sm:$0xff] %v2014
  %2070 = vst [vmem:[#allocation2 + $0x140] sm:$0xff] %v1797
  %2071 = vst [vmem:[#allocation2 + $0x148] sm:$0xff] %v1799
  %2072 = vst [vmem:[#allocation2 + $0x150] sm:$0xff] %v1870
  %2073 = vst [vmem:[#allocation2 + $0x158] sm:$0xff] %v1872
  %2074 = vst [vmem:[#allocation2 + $0x160] sm:$0xff] %v1943
  %2075 = vst [vmem:[#allocation2 + $0x168] sm:$0xff] %v1945
  %2076 = vst [vmem:[#allocation2 + $0x170] sm:$0xff] %v2016
  %2077 = vst [vmem:[#allocation2 + $0x178] sm:$0xff] %v2018
  %2078 = vst [vmem:[#allocation2 + $0x180] sm:$0xff] %v1803
  %2079 = vst [vmem:[#allocation2 + $0x188] sm:$0xff] %v1805
  %2080 = vst [vmem:[#allocation2 + $0x190] sm:$0xff] %v1876
  %2081 = vst [vmem:[#allocation2 + $0x198] sm:$0xff] %v1878
  %2082 = vst [vmem:[#allocation2 + $0x1a0] sm:$0xff] %v1949
  %2083 = vst [vmem:[#allocation2 + $0x1a8] sm:$0xff] %v1951
  %2084 = vst [vmem:[#allocation2 + $0x1b0] sm:$0xff] %v2022
  %2085 = vst [vmem:[#allocation2 + $0x1b8] sm:$0xff] %v2024
  %2086 = vst [vmem:[#allocation2 + $0x1c0] sm:$0xff] %v1807
  %2087 = vst [vmem:[#allocation2 + $0x1c8] sm:$0xff] %v1809
  %2088 = vst [vmem:[#allocation2 + $0x1d0] sm:$0xff] %v1880
  %2089 = vst [vmem:[#allocation2 + $0x1d8] sm:$0xff] %v1882
  %2090 = vst [vmem:[#allocation2 + $0x1e0] sm:$0xff] %v1953
  %2091 = vst [vmem:[#allocation2 + $0x1e8] sm:$0xff] %v1955
  %2092 = vst [vmem:[#allocation2 + $0x1f0] sm:$0xff] %v2026
  %2093 = vst [vmem:[#allocation2 + $0x1f8] sm:$0xff] %v2028
  %v2094 = vld [vmem:[%s3] sm:$0xff]
  %v2096 = vlaneseq
  %v2097 = vshrl.u32 %v2096, 7
  %v2098 = vsub.s32 0, %v2097
  %v2099 = vrot.slane %v2094, %v2098
  %v2100 = vlaneseq
  %v2101 = vshrl.u32 %v2100, 7
  %v2102 = vsub.s32 1, %v2101
  %v2103 = vrot.slane %v2094, %v2102
  %v2104 = vlaneseq
  %v2105 = vshrl.u32 %v2104, 7
  %v2106 = vsub.s32 2, %v2105
  %v2107 = vrot.slane %v2094, %v2106
  %v2108 = vlaneseq
  %v2109 = vshrl.u32 %v2108, 7
  %v2110 = vsub.s32 3, %v2109
  %v2111 = vrot.slane %v2094, %v2110
  %v2112 = vlaneseq
  %v2113 = vshrl.u32 %v2112, 7
  %v2114 = vsub.s32 4, %v2113
  %v2115 = vrot.slane %v2094, %v2114
  %v2116 = vlaneseq
  %v2117 = vshrl.u32 %v2116, 7
  %v2118 = vsub.s32 5, %v2117
  %v2119 = vrot.slane %v2094, %v2118
  %v2120 = vlaneseq
  %v2121 = vshrl.u32 %v2120, 7
  %v2122 = vsub.s32 6, %v2121
  %v2123 = vrot.slane %v2094, %v2122
  %v2124 = vlaneseq
  %v2125 = vshrl.u32 %v2124, 7
  %v2126 = vsub.s32 7, %v2125
  %v2127 = vrot.slane %v2094, %v2126
  %v2136 = vld [vmem:[#allocation2] sm:$0xff]
  %v2137 = vld [vmem:[#allocation2 + $0x8] sm:$0xff]
  %v2138 = vld [vmem:[#allocation2 + $0x10] sm:$0xff]
  %v2139 = vld [vmem:[#allocation2 + $0x18] sm:$0xff]
  %v2140 = vld [vmem:[#allocation2 + $0x20] sm:$0xff]
  %v2141 = vld [vmem:[#allocation2 + $0x28] sm:$0xff]
  %v2142 = vld [vmem:[#allocation2 + $0x30] sm:$0xff]
  %v2143 = vld [vmem:[#allocation2 + $0x38] sm:$0xff]
  %v2144 = vmul.f32 %v2136, 0.5
  %v2145 = vmul.f32 %v2137, 0.5
  %v2146 = vtanh.pop %v2144
  %v2147 = vtanh.pop %v2145
  %v2148 = vadd.f32 %v2146, 1.0
  %v2149 = vadd.f32 %v2147, 1.0
  %v2150 = vmul.f32 %v2148, 0.5
  %v2151 = vmul.f32 %v2149, 0.5
  %v2152 = vmul.f32 %v2138, 0.5
  %v2153 = vmul.f32 %v2139, 0.5
  %v2154 = vtanh.pop %v2152
  %v2155 = vtanh.pop %v2153
  %v2156 = vadd.f32 %v2154, 1.0
  %v2157 = vadd.f32 %v2155, 1.0
  %v2158 = vmul.f32 %v2156, 0.5
  %v2159 = vmul.f32 %v2157, 0.5
  %v2160 = vtanh.pop %v2140
  %v2161 = vtanh.pop %v2141
  %v2162 = vmul.f32 %v2142, 0.5
  %v2163 = vmul.f32 %v2143, 0.5
  %v2164 = vtanh.pop %v2162
  %v2165 = vtanh.pop %v2163
  %v2166 = vadd.f32 %v2164, 1.0
  %v2167 = vadd.f32 %v2165, 1.0
  %v2168 = vmul.f32 %v2166, 0.5
  %v2169 = vmul.f32 %v2167, 0.5
  %v2170 = vmul.f32 %v2158, 0.0
  %v2171 = vmul.f32 %v2159, 0.0
  %v2172 = vmul.f32 %v2150, %v2160
  %v2173 = vmul.f32 %v2151, %v2161
  %v2174 = vadd.f32 %v2170, %v2172
  %v2175 = vadd.f32 %v2171, %v2173
  %v2176 = vtanh.pop %v2174
  %v2177 = vtanh.pop %v2175
  %v2178 = vmul.f32 %v2168, %v2176
  %v2179 = vmul.f32 %v2169, %v2177
  %s2180 = smul.u32 4, 64
  %s2181 = smul.u32 %s2180, 8
  %s2182 = sshll.u32 %s2181, 4
  %2183 = dma.done [#allocation5], %s2182
  %v2184 = vpack.c.bf16 %v2178, %v2178
  %v2185 = vpack.c.bf16 %v2179, %v2179
  %v2186 = vpack.c.bf16 0.0, 0.0
  %v2187 = vld [vmem:[#allocation4] sm:$0xff]
  %v2188 = vld [vmem:[#allocation4 + $0x8] sm:$0xff]
  %v2189 = vld [vmem:[#allocation4 + $0x10] sm:$0xff]
  %v2190 = vld [vmem:[#allocation4 + $0x18] sm:$0xff]
  %v2191 = vld [vmem:[#allocation4 + $0x20] sm:$0xff]
  %v2192 = vld [vmem:[#allocation4 + $0x28] sm:$0xff]
  %v2193 = vld [vmem:[#allocation4 + $0x30] sm:$0xff]
  %v2194 = vld [vmem:[#allocation4 + $0x38] sm:$0xff]
  %v2195 = vld [vmem:[#allocation4 + $0x40] sm:$0xff]
  %v2196 = vld [vmem:[#allocation4 + $0x48] sm:$0xff]
  %v2197 = vld [vmem:[#allocation4 + $0x50] sm:$0xff]
  %v2198 = vld [vmem:[#allocation4 + $0x58] sm:$0xff]
  %v2199 = vld [vmem:[#allocation4 + $0x60] sm:$0xff]
  %v2200 = vld [vmem:[#allocation4 + $0x68] sm:$0xff]
  %v2201 = vld [vmem:[#allocation4 + $0x70] sm:$0xff]
  %v2202 = vld [vmem:[#allocation4 + $0x78] sm:$0xff]
  %v2203 = vld [vmem:[#allocation4 + $0x80] sm:$0xff]
  %v2204 = vld [vmem:[#allocation4 + $0x88] sm:$0xff]
  %v2205 = vld [vmem:[#allocation4 + $0x90] sm:$0xff]
  %v2206 = vld [vmem:[#allocation4 + $0x98] sm:$0xff]
  %v2207 = vld [vmem:[#allocation4 + $0xa0] sm:$0xff]
  %v2208 = vld [vmem:[#allocation4 + $0xa8] sm:$0xff]
  %v2209 = vld [vmem:[#allocation4 + $0xb0] sm:$0xff]
  %v2210 = vld [vmem:[#allocation4 + $0xb8] sm:$0xff]
  %v2211 = vld [vmem:[#allocation4 + $0xc0] sm:$0xff]
  %v2212 = vld [vmem:[#allocation4 + $0xc8] sm:$0xff]
  %v2213 = vld [vmem:[#allocation4 + $0xd0] sm:$0xff]
  %v2214 = vld [vmem:[#allocation4 + $0xd8] sm:$0xff]
  %v2215 = vld [vmem:[#allocation4 + $0xe0] sm:$0xff]
  %v2216 = vld [vmem:[#allocation4 + $0xe8] sm:$0xff]
  %v2217 = vld [vmem:[#allocation4 + $0xf0] sm:$0xff]
  %v2218 = vld [vmem:[#allocation4 + $0xf8] sm:$0xff]
  %v2219 = vld [vmem:[#allocation4 + $0x100] sm:$0xff]
  %v2220 = vld [vmem:[#allocation4 + $0x108] sm:$0xff]
  %v2221 = vld [vmem:[#allocation4 + $0x110] sm:$0xff]
  %v2222 = vld [vmem:[#allocation4 + $0x118] sm:$0xff]
  %v2223 = vld [vmem:[#allocation4 + $0x120] sm:$0xff]
  %v2224 = vld [vmem:[#allocation4 + $0x128] sm:$0xff]
  %v2225 = vld [vmem:[#allocation4 + $0x130] sm:$0xff]
  %v2226 = vld [vmem:[#allocation4 + $0x138] sm:$0xff]
  %v2227 = vld [vmem:[#allocation4 + $0x140] sm:$0xff]
  %v2228 = vld [vmem:[#allocation4 + $0x148] sm:$0xff]
  %v2229 = vld [vmem:[#allocation4 + $0x150] sm:$0xff]
  %v2230 = vld [vmem:[#allocation4 + $0x158] sm:$0xff]
  %v2231 = vld [vmem:[#allocation4 + $0x160] sm:$0xff]
  %v2232 = vld [vmem:[#allocation4 + $0x168] sm:$0xff]
  %v2233 = vld [vmem:[#allocation4 + $0x170] sm:$0xff]
  %v2234 = vld [vmem:[#allocation4 + $0x178] sm:$0xff]
  %v2235 = vld [vmem:[#allocation4 + $0x180] sm:$0xff]
  %v2236 = vld [vmem:[#allocation4 + $0x188] sm:$0xff]
  %v2237 = vld [vmem:[#allocation4 + $0x190] sm:$0xff]
  %v2238 = vld [vmem:[#allocation4 + $0x198] sm:$0xff]
  %v2239 = vld [vmem:[#allocation4 + $0x1a0] sm:$0xff]
  %v2240 = vld [vmem:[#allocation4 + $0x1a8] sm:$0xff]
  %v2241 = vld [vmem:[#allocation4 + $0x1b0] sm:$0xff]
  %v2242 = vld [vmem:[#allocation4 + $0x1b8] sm:$0xff]
  %v2243 = vld [vmem:[#allocation4 + $0x1c0] sm:$0xff]
  %v2244 = vld [vmem:[#allocation4 + $0x1c8] sm:$0xff]
  %v2245 = vld [vmem:[#allocation4 + $0x1d0] sm:$0xff]
  %v2246 = vld [vmem:[#allocation4 + $0x1d8] sm:$0xff]
  %v2247 = vld [vmem:[#allocation4 + $0x1e0] sm:$0xff]
  %v2248 = vld [vmem:[#allocation4 + $0x1e8] sm:$0xff]
  %v2249 = vld [vmem:[#allocation4 + $0x1f0] sm:$0xff]
  %v2250 = vld [vmem:[#allocation4 + $0x1f8] sm:$0xff]
  %v2251 = vld [vmem:[#allocation4 + $0x200] sm:$0xff]
  %v2252 = vld [vmem:[#allocation4 + $0x208] sm:$0xff]
  %v2253 = vld [vmem:[#allocation4 + $0x210] sm:$0xff]
  %v2254 = vld [vmem:[#allocation4 + $0x218] sm:$0xff]
  %v2255 = vld [vmem:[#allocation4 + $0x220] sm:$0xff]
  %v2256 = vld [vmem:[#allocation4 + $0x228] sm:$0xff]
  %v2257 = vld [vmem:[#allocation4 + $0x230] sm:$0xff]
  %v2258 = vld [vmem:[#allocation4 + $0x238] sm:$0xff]
  %v2259 = vld [vmem:[#allocation4 + $0x240] sm:$0xff]
  %v2260 = vld [vmem:[#allocation4 + $0x248] sm:$0xff]
  %v2261 = vld [vmem:[#allocation4 + $0x250] sm:$0xff]
  %v2262 = vld [vmem:[#allocation4 + $0x258] sm:$0xff]
  %v2263 = vld [vmem:[#allocation4 + $0x260] sm:$0xff]
  %v2264 = vld [vmem:[#allocation4 + $0x268] sm:$0xff]
  %v2265 = vld [vmem:[#allocation4 + $0x270] sm:$0xff]
  %v2266 = vld [vmem:[#allocation4 + $0x278] sm:$0xff]
  %v2267 = vld [vmem:[#allocation4 + $0x280] sm:$0xff]
  %v2268 = vld [vmem:[#allocation4 + $0x288] sm:$0xff]
  %v2269 = vld [vmem:[#allocation4 + $0x290] sm:$0xff]
  %v2270 = vld [vmem:[#allocation4 + $0x298] sm:$0xff]
  %v2271 = vld [vmem:[#allocation4 + $0x2a0] sm:$0xff]
  %v2272 = vld [vmem:[#allocation4 + $0x2a8] sm:$0xff]
  %v2273 = vld [vmem:[#allocation4 + $0x2b0] sm:$0xff]
  %v2274 = vld [vmem:[#allocation4 + $0x2b8] sm:$0xff]
  %v2275 = vld [vmem:[#allocation4 + $0x2c0] sm:$0xff]
  %v2276 = vld [vmem:[#allocation4 + $0x2c8] sm:$0xff]
  %v2277 = vld [vmem:[#allocation4 + $0x2d0] sm:$0xff]
  %v2278 = vld [vmem:[#allocation4 + $0x2d8] sm:$0xff]
  %v2279 = vld [vmem:[#allocation4 + $0x2e0] sm:$0xff]
  %v2280 = vld [vmem:[#allocation4 + $0x2e8] sm:$0xff]
  %v2281 = vld [vmem:[#allocation4 + $0x2f0] sm:$0xff]
  %v2282 = vld [vmem:[#allocation4 + $0x2f8] sm:$0xff]
  %v2283 = vld [vmem:[#allocation4 + $0x300] sm:$0xff]
  %v2284 = vld [vmem:[#allocation4 + $0x308] sm:$0xff]
  %v2285 = vld [vmem:[#allocation4 + $0x310] sm:$0xff]
  %v2286 = vld [vmem:[#allocation4 + $0x318] sm:$0xff]
  %v2287 = vld [vmem:[#allocation4 + $0x320] sm:$0xff]
  %v2288 = vld [vmem:[#allocation4 + $0x328] sm:$0xff]
  %v2289 = vld [vmem:[#allocation4 + $0x330] sm:$0xff]
  %v2290 = vld [vmem:[#allocation4 + $0x338] sm:$0xff]
  %v2291 = vld [vmem:[#allocation4 + $0x340] sm:$0xff]
  %v2292 = vld [vmem:[#allocation4 + $0x348] sm:$0xff]
  %v2293 = vld [vmem:[#allocation4 + $0x350] sm:$0xff]
  %v2294 = vld [vmem:[#allocation4 + $0x358] sm:$0xff]
  %v2295 = vld [vmem:[#allocation4 + $0x360] sm:$0xff]
  %v2296 = vld [vmem:[#allocation4 + $0x368] sm:$0xff]
  %v2297 = vld [vmem:[#allocation4 + $0x370] sm:$0xff]
  %v2298 = vld [vmem:[#allocation4 + $0x378] sm:$0xff]
  %v2299 = vld [vmem:[#allocation4 + $0x380] sm:$0xff]
  %v2300 = vld [vmem:[#allocation4 + $0x388] sm:$0xff]
  %v2301 = vld [vmem:[#allocation4 + $0x390] sm:$0xff]
  %v2302 = vld [vmem:[#allocation4 + $0x398] sm:$0xff]
  %v2303 = vld [vmem:[#allocation4 + $0x3a0] sm:$0xff]
  %v2304 = vld [vmem:[#allocation4 + $0x3a8] sm:$0xff]
  %v2305 = vld [vmem:[#allocation4 + $0x3b0] sm:$0xff]
  %v2306 = vld [vmem:[#allocation4 + $0x3b8] sm:$0xff]
  %v2307 = vld [vmem:[#allocation4 + $0x3c0] sm:$0xff]
  %v2308 = vld [vmem:[#allocation4 + $0x3c8] sm:$0xff]
  %v2309 = vld [vmem:[#allocation4 + $0x3d0] sm:$0xff]
  %v2310 = vld [vmem:[#allocation4 + $0x3d8] sm:$0xff]
  %v2311 = vld [vmem:[#allocation4 + $0x3e0] sm:$0xff]
  %v2312 = vld [vmem:[#allocation4 + $0x3e8] sm:$0xff]
  %v2313 = vld [vmem:[#allocation4 + $0x3f0] sm:$0xff]
  %v2314 = vld [vmem:[#allocation4 + $0x3f8] sm:$0xff]
  %v2315 = vld [vmem:[#allocation4 + $0x400] sm:$0xff]
  %v2316 = vld [vmem:[#allocation4 + $0x408] sm:$0xff]
  %v2317 = vld [vmem:[#allocation4 + $0x410] sm:$0xff]
  %v2318 = vld [vmem:[#allocation4 + $0x418] sm:$0xff]
  %v2319 = vld [vmem:[#allocation4 + $0x420] sm:$0xff]
  %v2320 = vld [vmem:[#allocation4 + $0x428] sm:$0xff]
  %v2321 = vld [vmem:[#allocation4 + $0x430] sm:$0xff]
  %v2322 = vld [vmem:[#allocation4 + $0x438] sm:$0xff]
  %v2323 = vld [vmem:[#allocation4 + $0x440] sm:$0xff]
  %v2324 = vld [vmem:[#allocation4 + $0x448] sm:$0xff]
  %v2325 = vld [vmem:[#allocation4 + $0x450] sm:$0xff]
  %v2326 = vld [vmem:[#allocation4 + $0x458] sm:$0xff]
  %v2327 = vld [vmem:[#allocation4 + $0x460] sm:$0xff]
  %v2328 = vld [vmem:[#allocation4 + $0x468] sm:$0xff]
  %v2329 = vld [vmem:[#allocation4 + $0x470] sm:$0xff]
  %v2330 = vld [vmem:[#allocation4 + $0x478] sm:$0xff]
  %v2331 = vld [vmem:[#allocation4 + $0x480] sm:$0xff]
  %v2332 = vld [vmem:[#allocation4 + $0x488] sm:$0xff]
  %v2333 = vld [vmem:[#allocation4 + $0x490] sm:$0xff]
  %v2334 = vld [vmem:[#allocation4 + $0x498] sm:$0xff]
  %v2335 = vld [vmem:[#allocation4 + $0x4a0] sm:$0xff]
  %v2336 = vld [vmem:[#allocation4 + $0x4a8] sm:$0xff]
  %v2337 = vld [vmem:[#allocation4 + $0x4b0] sm:$0xff]
  %v2338 = vld [vmem:[#allocation4 + $0x4b8] sm:$0xff]
  %v2339 = vld [vmem:[#allocation4 + $0x4c0] sm:$0xff]
  %v2340 = vld [vmem:[#allocation4 + $0x4c8] sm:$0xff]
  %v2341 = vld [vmem:[#allocation4 + $0x4d0] sm:$0xff]
  %v2342 = vld [vmem:[#allocation4 + $0x4d8] sm:$0xff]
  %v2343 = vld [vmem:[#allocation4 + $0x4e0] sm:$0xff]
  %v2344 = vld [vmem:[#allocation4 + $0x4e8] sm:$0xff]
  %v2345 = vld [vmem:[#allocation4 + $0x4f0] sm:$0xff]
  %v2346 = vld [vmem:[#allocation4 + $0x4f8] sm:$0xff]
  %v2347 = vld [vmem:[#allocation4 + $0x500] sm:$0xff]
  %v2348 = vld [vmem:[#allocation4 + $0x508] sm:$0xff]
  %v2349 = vld [vmem:[#allocation4 + $0x510] sm:$0xff]
  %v2350 = vld [vmem:[#allocation4 + $0x518] sm:$0xff]
  %v2351 = vld [vmem:[#allocation4 + $0x520] sm:$0xff]
  %v2352 = vld [vmem:[#allocation4 + $0x528] sm:$0xff]
  %v2353 = vld [vmem:[#allocation4 + $0x530] sm:$0xff]
  %v2354 = vld [vmem:[#allocation4 + $0x538] sm:$0xff]
  %v2355 = vld [vmem:[#allocation4 + $0x540] sm:$0xff]
  %v2356 = vld [vmem:[#allocation4 + $0x548] sm:$0xff]
  %v2357 = vld [vmem:[#allocation4 + $0x550] sm:$0xff]
  %v2358 = vld [vmem:[#allocation4 + $0x558] sm:$0xff]
  %v2359 = vld [vmem:[#allocation4 + $0x560] sm:$0xff]
  %v2360 = vld [vmem:[#allocation4 + $0x568] sm:$0xff]
  %v2361 = vld [vmem:[#allocation4 + $0x570] sm:$0xff]
  %v2362 = vld [vmem:[#allocation4 + $0x578] sm:$0xff]
  %v2363 = vld [vmem:[#allocation4 + $0x580] sm:$0xff]
  %v2364 = vld [vmem:[#allocation4 + $0x588] sm:$0xff]
  %v2365 = vld [vmem:[#allocation4 + $0x590] sm:$0xff]
  %v2366 = vld [vmem:[#allocation4 + $0x598] sm:$0xff]
  %v2367 = vld [vmem:[#allocation4 + $0x5a0] sm:$0xff]
  %v2368 = vld [vmem:[#allocation4 + $0x5a8] sm:$0xff]
  %v2369 = vld [vmem:[#allocation4 + $0x5b0] sm:$0xff]
  %v2370 = vld [vmem:[#allocation4 + $0x5b8] sm:$0xff]
  %v2371 = vld [vmem:[#allocation4 + $0x5c0] sm:$0xff]
  %v2372 = vld [vmem:[#allocation4 + $0x5c8] sm:$0xff]
  %v2373 = vld [vmem:[#allocation4 + $0x5d0] sm:$0xff]
  %v2374 = vld [vmem:[#allocation4 + $0x5d8] sm:$0xff]
  %v2375 = vld [vmem:[#allocation4 + $0x5e0] sm:$0xff]
  %v2376 = vld [vmem:[#allocation4 + $0x5e8] sm:$0xff]
  %v2377 = vld [vmem:[#allocation4 + $0x5f0] sm:$0xff]
  %v2378 = vld [vmem:[#allocation4 + $0x5f8] sm:$0xff]
  %v2379 = vld [vmem:[#allocation4 + $0x600] sm:$0xff]
  %v2380 = vld [vmem:[#allocation4 + $0x608] sm:$0xff]
  %v2381 = vld [vmem:[#allocation4 + $0x610] sm:$0xff]
  %v2382 = vld [vmem:[#allocation4 + $0x618] sm:$0xff]
  %v2383 = vld [vmem:[#allocation4 + $0x620] sm:$0xff]
  %v2384 = vld [vmem:[#allocation4 + $0x628] sm:$0xff]
  %v2385 = vld [vmem:[#allocation4 + $0x630] sm:$0xff]
  %v2386 = vld [vmem:[#allocation4 + $0x638] sm:$0xff]
  %v2387 = vld [vmem:[#allocation4 + $0x640] sm:$0xff]
  %v2388 = vld [vmem:[#allocation4 + $0x648] sm:$0xff]
  %v2389 = vld [vmem:[#allocation4 + $0x650] sm:$0xff]
  %v2390 = vld [vmem:[#allocation4 + $0x658] sm:$0xff]
  %v2391 = vld [vmem:[#allocation4 + $0x660] sm:$0xff]
  %v2392 = vld [vmem:[#allocation4 + $0x668] sm:$0xff]
  %v2393 = vld [vmem:[#allocation4 + $0x670] sm:$0xff]
  %v2394 = vld [vmem:[#allocation4 + $0x678] sm:$0xff]
  %v2395 = vld [vmem:[#allocation4 + $0x680] sm:$0xff]
  %v2396 = vld [vmem:[#allocation4 + $0x688] sm:$0xff]
  %v2397 = vld [vmem:[#allocation4 + $0x690] sm:$0xff]
  %v2398 = vld [vmem:[#allocation4 + $0x698] sm:$0xff]
  %v2399 = vld [vmem:[#allocation4 + $0x6a0] sm:$0xff]
  %v2400 = vld [vmem:[#allocation4 + $0x6a8] sm:$0xff]
  %v2401 = vld [vmem:[#allocation4 + $0x6b0] sm:$0xff]
  %v2402 = vld [vmem:[#allocation4 + $0x6b8] sm:$0xff]
  %v2403 = vld [vmem:[#allocation4 + $0x6c0] sm:$0xff]
  %v2404 = vld [vmem:[#allocation4 + $0x6c8] sm:$0xff]
  %v2405 = vld [vmem:[#allocation4 + $0x6d0] sm:$0xff]
  %v2406 = vld [vmem:[#allocation4 + $0x6d8] sm:$0xff]
  %v2407 = vld [vmem:[#allocation4 + $0x6e0] sm:$0xff]
  %v2408 = vld [vmem:[#allocation4 + $0x6e8] sm:$0xff]
  %v2409 = vld [vmem:[#allocation4 + $0x6f0] sm:$0xff]
  %v2410 = vld [vmem:[#allocation4 + $0x6f8] sm:$0xff]
  %v2411 = vld [vmem:[#allocation4 + $0x700] sm:$0xff]
  %v2412 = vld [vmem:[#allocation4 + $0x708] sm:$0xff]
  %v2413 = vld [vmem:[#allocation4 + $0x710] sm:$0xff]
  %v2414 = vld [vmem:[#allocation4 + $0x718] sm:$0xff]
  %v2415 = vld [vmem:[#allocation4 + $0x720] sm:$0xff]
  %v2416 = vld [vmem:[#allocation4 + $0x728] sm:$0xff]
  %v2417 = vld [vmem:[#allocation4 + $0x730] sm:$0xff]
  %v2418 = vld [vmem:[#allocation4 + $0x738] sm:$0xff]
  %v2419 = vld [vmem:[#allocation4 + $0x740] sm:$0xff]
  %v2420 = vld [vmem:[#allocation4 + $0x748] sm:$0xff]
  %v2421 = vld [vmem:[#allocation4 + $0x750] sm:$0xff]
  %v2422 = vld [vmem:[#allocation4 + $0x758] sm:$0xff]
  %v2423 = vld [vmem:[#allocation4 + $0x760] sm:$0xff]
  %v2424 = vld [vmem:[#allocation4 + $0x768] sm:$0xff]
  %v2425 = vld [vmem:[#allocation4 + $0x770] sm:$0xff]
  %v2426 = vld [vmem:[#allocation4 + $0x778] sm:$0xff]
  %v2427 = vld [vmem:[#allocation4 + $0x780] sm:$0xff]
  %v2428 = vld [vmem:[#allocation4 + $0x788] sm:$0xff]
  %v2429 = vld [vmem:[#allocation4 + $0x790] sm:$0xff]
  %v2430 = vld [vmem:[#allocation4 + $0x798] sm:$0xff]
  %v2431 = vld [vmem:[#allocation4 + $0x7a0] sm:$0xff]
  %v2432 = vld [vmem:[#allocation4 + $0x7a8] sm:$0xff]
  %v2433 = vld [vmem:[#allocation4 + $0x7b0] sm:$0xff]
  %v2434 = vld [vmem:[#allocation4 + $0x7b8] sm:$0xff]
  %v2435 = vld [vmem:[#allocation4 + $0x7c0] sm:$0xff]
  %v2436 = vld [vmem:[#allocation4 + $0x7c8] sm:$0xff]
  %v2437 = vld [vmem:[#allocation4 + $0x7d0] sm:$0xff]
  %v2438 = vld [vmem:[#allocation4 + $0x7d8] sm:$0xff]
  %v2439 = vld [vmem:[#allocation4 + $0x7e0] sm:$0xff]
  %v2440 = vld [vmem:[#allocation4 + $0x7e8] sm:$0xff]
  %v2441 = vld [vmem:[#allocation4 + $0x7f0] sm:$0xff]
  %v2442 = vld [vmem:[#allocation4 + $0x7f8] sm:$0xff]
  %v2699 = vunpack.c.l.b16 %v2187
  %v2700 = vunpack.c.h.b16 %v2187
  %v2701 = vunpack.c.l.b16 %v2188
  %v2702 = vunpack.c.h.b16 %v2188
  %v2703 = vunpack.c.l.b16 %v2189
  %v2704 = vunpack.c.h.b16 %v2189
  %v2705 = vunpack.c.l.b16 %v2190
  %v2706 = vunpack.c.h.b16 %v2190
  %v2707 = vunpack.c.l.b16 %v2191
  %v2708 = vunpack.c.h.b16 %v2191
  %v2709 = vunpack.c.l.b16 %v2192
  %v2710 = vunpack.c.h.b16 %v2192
  %v2711 = vunpack.c.l.b16 %v2193
  %v2712 = vunpack.c.h.b16 %v2193
  %v2713 = vunpack.c.l.b16 %v2194
  %v2714 = vunpack.c.h.b16 %v2194
  %v2715 = vunpack.c.l.b16 %v2195
  %v2716 = vunpack.c.h.b16 %v2195
  %v2717 = vunpack.c.l.b16 %v2196
  %v2718 = vunpack.c.h.b16 %v2196
  %v2719 = vunpack.c.l.b16 %v2197
  %v2720 = vunpack.c.h.b16 %v2197
  %v2721 = vunpack.c.l.b16 %v2198
  %v2722 = vunpack.c.h.b16 %v2198
  %v2723 = vunpack.c.l.b16 %v2199
  %v2724 = vunpack.c.h.b16 %v2199
  %v2725 = vunpack.c.l.b16 %v2200
  %v2726 = vunpack.c.h.b16 %v2200
  %v2727 = vunpack.c.l.b16 %v2201
  %v2728 = vunpack.c.h.b16 %v2201
  %v2729 = vunpack.c.l.b16 %v2202
  %v2730 = vunpack.c.h.b16 %v2202
  %v2731 = vunpack.c.l.b16 %v2203
  %v2732 = vunpack.c.h.b16 %v2203
  %v2733 = vunpack.c.l.b16 %v2204
  %v2734 = vunpack.c.h.b16 %v2204
  %v2735 = vunpack.c.l.b16 %v2205
  %v2736 = vunpack.c.h.b16 %v2205
  %v2737 = vunpack.c.l.b16 %v2206
  %v2738 = vunpack.c.h.b16 %v2206
  %v2739 = vunpack.c.l.b16 %v2207
  %v2740 = vunpack.c.h.b16 %v2207
  %v2741 = vunpack.c.l.b16 %v2208
  %v2742 = vunpack.c.h.b16 %v2208
  %v2743 = vunpack.c.l.b16 %v2209
  %v2744 = vunpack.c.h.b16 %v2209
  %v2745 = vunpack.c.l.b16 %v2210
  %v2746 = vunpack.c.h.b16 %v2210
  %v2747 = vunpack.c.l.b16 %v2211
  %v2748 = vunpack.c.h.b16 %v2211
  %v2749 = vunpack.c.l.b16 %v2212
  %v2750 = vunpack.c.h.b16 %v2212
  %v2751 = vunpack.c.l.b16 %v2213
  %v2752 = vunpack.c.h.b16 %v2213
  %v2753 = vunpack.c.l.b16 %v2214
  %v2754 = vunpack.c.h.b16 %v2214
  %v2755 = vunpack.c.l.b16 %v2215
  %v2756 = vunpack.c.h.b16 %v2215
  %v2757 = vunpack.c.l.b16 %v2216
  %v2758 = vunpack.c.h.b16 %v2216
  %v2759 = vunpack.c.l.b16 %v2217
  %v2760 = vunpack.c.h.b16 %v2217
  %v2761 = vunpack.c.l.b16 %v2218
  %v2762 = vunpack.c.h.b16 %v2218
  %v2763 = vunpack.c.l.b16 %v2219
  %v2764 = vunpack.c.h.b16 %v2219
  %v2765 = vunpack.c.l.b16 %v2220
  %v2766 = vunpack.c.h.b16 %v2220
  %v2767 = vunpack.c.l.b16 %v2221
  %v2768 = vunpack.c.h.b16 %v2221
  %v2769 = vunpack.c.l.b16 %v2222
  %v2770 = vunpack.c.h.b16 %v2222
  %v2771 = vunpack.c.l.b16 %v2223
  %v2772 = vunpack.c.h.b16 %v2223
  %v2773 = vunpack.c.l.b16 %v2224
  %v2774 = vunpack.c.h.b16 %v2224
  %v2775 = vunpack.c.l.b16 %v2225
  %v2776 = vunpack.c.h.b16 %v2225
  %v2777 = vunpack.c.l.b16 %v2226
  %v2778 = vunpack.c.h.b16 %v2226
  %v2779 = vunpack.c.l.b16 %v2227
  %v2780 = vunpack.c.h.b16 %v2227
  %v2781 = vunpack.c.l.b16 %v2228
  %v2782 = vunpack.c.h.b16 %v2228
  %v2783 = vunpack.c.l.b16 %v2229
  %v2784 = vunpack.c.h.b16 %v2229
  %v2785 = vunpack.c.l.b16 %v2230
  %v2786 = vunpack.c.h.b16 %v2230
  %v2787 = vunpack.c.l.b16 %v2231
  %v2788 = vunpack.c.h.b16 %v2231
  %v2789 = vunpack.c.l.b16 %v2232
  %v2790 = vunpack.c.h.b16 %v2232
  %v2791 = vunpack.c.l.b16 %v2233
  %v2792 = vunpack.c.h.b16 %v2233
  %v2793 = vunpack.c.l.b16 %v2234
  %v2794 = vunpack.c.h.b16 %v2234
  %v2795 = vunpack.c.l.b16 %v2235
  %v2796 = vunpack.c.h.b16 %v2235
  %v2797 = vunpack.c.l.b16 %v2236
  %v2798 = vunpack.c.h.b16 %v2236
  %v2799 = vunpack.c.l.b16 %v2237
  %v2800 = vunpack.c.h.b16 %v2237
  %v2801 = vunpack.c.l.b16 %v2238
  %v2802 = vunpack.c.h.b16 %v2238
  %v2803 = vunpack.c.l.b16 %v2239
  %v2804 = vunpack.c.h.b16 %v2239
  %v2805 = vunpack.c.l.b16 %v2240
  %v2806 = vunpack.c.h.b16 %v2240
  %v2807 = vunpack.c.l.b16 %v2241
  %v2808 = vunpack.c.h.b16 %v2241
  %v2809 = vunpack.c.l.b16 %v2242
  %v2810 = vunpack.c.h.b16 %v2242
  %v2811 = vunpack.c.l.b16 %v2243
  %v2812 = vunpack.c.h.b16 %v2243
  %v2813 = vunpack.c.l.b16 %v2244
  %v2814 = vunpack.c.h.b16 %v2244
  %v2815 = vunpack.c.l.b16 %v2245
  %v2816 = vunpack.c.h.b16 %v2245
  %v2817 = vunpack.c.l.b16 %v2246
  %v2818 = vunpack.c.h.b16 %v2246
  %v2819 = vunpack.c.l.b16 %v2247
  %v2820 = vunpack.c.h.b16 %v2247
  %v2821 = vunpack.c.l.b16 %v2248
  %v2822 = vunpack.c.h.b16 %v2248
  %v2823 = vunpack.c.l.b16 %v2249
  %v2824 = vunpack.c.h.b16 %v2249
  %v2825 = vunpack.c.l.b16 %v2250
  %v2826 = vunpack.c.h.b16 %v2250
  %v2827 = vunpack.c.l.b16 %v2251
  %v2828 = vunpack.c.h.b16 %v2251
  %v2829 = vunpack.c.l.b16 %v2252
  %v2830 = vunpack.c.h.b16 %v2252
  %v2831 = vunpack.c.l.b16 %v2253
  %v2832 = vunpack.c.h.b16 %v2253
  %v2833 = vunpack.c.l.b16 %v2254
  %v2834 = vunpack.c.h.b16 %v2254
  %v2835 = vunpack.c.l.b16 %v2255
  %v2836 = vunpack.c.h.b16 %v2255
  %v2837 = vunpack.c.l.b16 %v2256
  %v2838 = vunpack.c.h.b16 %v2256
  %v2839 = vunpack.c.l.b16 %v2257
  %v2840 = vunpack.c.h.b16 %v2257
  %v2841 = vunpack.c.l.b16 %v2258
  %v2842 = vunpack.c.h.b16 %v2258
  %v2843 = vunpack.c.l.b16 %v2259
  %v2844 = vunpack.c.h.b16 %v2259
  %v2845 = vunpack.c.l.b16 %v2260
  %v2846 = vunpack.c.h.b16 %v2260
  %v2847 = vunpack.c.l.b16 %v2261
  %v2848 = vunpack.c.h.b16 %v2261
  %v2849 = vunpack.c.l.b16 %v2262
  %v2850 = vunpack.c.h.b16 %v2262
  %v2851 = vunpack.c.l.b16 %v2263
  %v2852 = vunpack.c.h.b16 %v2263
  %v2853 = vunpack.c.l.b16 %v2264
  %v2854 = vunpack.c.h.b16 %v2264
  %v2855 = vunpack.c.l.b16 %v2265
  %v2856 = vunpack.c.h.b16 %v2265
  %v2857 = vunpack.c.l.b16 %v2266
  %v2858 = vunpack.c.h.b16 %v2266
  %v2859 = vunpack.c.l.b16 %v2267
  %v2860 = vunpack.c.h.b16 %v2267
  %v2861 = vunpack.c.l.b16 %v2268
  %v2862 = vunpack.c.h.b16 %v2268
  %v2863 = vunpack.c.l.b16 %v2269
  %v2864 = vunpack.c.h.b16 %v2269
  %v2865 = vunpack.c.l.b16 %v2270
  %v2866 = vunpack.c.h.b16 %v2270
  %v2867 = vunpack.c.l.b16 %v2271
  %v2868 = vunpack.c.h.b16 %v2271
  %v2869 = vunpack.c.l.b16 %v2272
  %v2870 = vunpack.c.h.b16 %v2272
  %v2871 = vunpack.c.l.b16 %v2273
  %v2872 = vunpack.c.h.b16 %v2273
  %v2873 = vunpack.c.l.b16 %v2274
  %v2874 = vunpack.c.h.b16 %v2274
  %v2875 = vunpack.c.l.b16 %v2275
  %v2876 = vunpack.c.h.b16 %v2275
  %v2877 = vunpack.c.l.b16 %v2276
  %v2878 = vunpack.c.h.b16 %v2276
  %v2879 = vunpack.c.l.b16 %v2277
  %v2880 = vunpack.c.h.b16 %v2277
  %v2881 = vunpack.c.l.b16 %v2278
  %v2882 = vunpack.c.h.b16 %v2278
  %v2883 = vunpack.c.l.b16 %v2279
  %v2884 = vunpack.c.h.b16 %v2279
  %v2885 = vunpack.c.l.b16 %v2280
  %v2886 = vunpack.c.h.b16 %v2280
  %v2887 = vunpack.c.l.b16 %v2281
  %v2888 = vunpack.c.h.b16 %v2281
  %v2889 = vunpack.c.l.b16 %v2282
  %v2890 = vunpack.c.h.b16 %v2282
  %v2891 = vunpack.c.l.b16 %v2283
  %v2892 = vunpack.c.h.b16 %v2283
  %v2893 = vunpack.c.l.b16 %v2284
  %v2894 = vunpack.c.h.b16 %v2284
  %v2895 = vunpack.c.l.b16 %v2285
  %v2896 = vunpack.c.h.b16 %v2285
  %v2897 = vunpack.c.l.b16 %v2286
  %v2898 = vunpack.c.h.b16 %v2286
  %v2899 = vunpack.c.l.b16 %v2287
  %v2900 = vunpack.c.h.b16 %v2287
  %v2901 = vunpack.c.l.b16 %v2288
  %v2902 = vunpack.c.h.b16 %v2288
  %v2903 = vunpack.c.l.b16 %v2289
  %v2904 = vunpack.c.h.b16 %v2289
  %v2905 = vunpack.c.l.b16 %v2290
  %v2906 = vunpack.c.h.b16 %v2290
  %v2907 = vunpack.c.l.b16 %v2291
  %v2908 = vunpack.c.h.b16 %v2291
  %v2909 = vunpack.c.l.b16 %v2292
  %v2910 = vunpack.c.h.b16 %v2292
  %v2911 = vunpack.c.l.b16 %v2293
  %v2912 = vunpack.c.h.b16 %v2293
  %v2913 = vunpack.c.l.b16 %v2294
  %v2914 = vunpack.c.h.b16 %v2294
  %v2915 = vunpack.c.l.b16 %v2295
  %v2916 = vunpack.c.h.b16 %v2295
  %v2917 = vunpack.c.l.b16 %v2296
  %v2918 = vunpack.c.h.b16 %v2296
  %v2919 = vunpack.c.l.b16 %v2297
  %v2920 = vunpack.c.h.b16 %v2297
  %v2921 = vunpack.c.l.b16 %v2298
  %v2922 = vunpack.c.h.b16 %v2298
  %v2923 = vunpack.c.l.b16 %v2299
  %v2924 = vunpack.c.h.b16 %v2299
  %v2925 = vunpack.c.l.b16 %v2300
  %v2926 = vunpack.c.h.b16 %v2300
  %v2927 = vunpack.c.l.b16 %v2301
  %v2928 = vunpack.c.h.b16 %v2301
  %v2929 = vunpack.c.l.b16 %v2302
  %v2930 = vunpack.c.h.b16 %v2302
  %v2931 = vunpack.c.l.b16 %v2303
  %v2932 = vunpack.c.h.b16 %v2303
  %v2933 = vunpack.c.l.b16 %v2304
  %v2934 = vunpack.c.h.b16 %v2304
  %v2935 = vunpack.c.l.b16 %v2305
  %v2936 = vunpack.c.h.b16 %v2305
  %v2937 = vunpack.c.l.b16 %v2306
  %v2938 = vunpack.c.h.b16 %v2306
  %v2939 = vunpack.c.l.b16 %v2307
  %v2940 = vunpack.c.h.b16 %v2307
  %v2941 = vunpack.c.l.b16 %v2308
  %v2942 = vunpack.c.h.b16 %v2308
  %v2943 = vunpack.c.l.b16 %v2309
  %v2944 = vunpack.c.h.b16 %v2309
  %v2945 = vunpack.c.l.b16 %v2310
  %v2946 = vunpack.c.h.b16 %v2310
  %v2947 = vunpack.c.l.b16 %v2311
  %v2948 = vunpack.c.h.b16 %v2311
  %v2949 = vunpack.c.l.b16 %v2312
  %v2950 = vunpack.c.h.b16 %v2312
  %v2951 = vunpack.c.l.b16 %v2313
  %v2952 = vunpack.c.h.b16 %v2313
  %v2953 = vunpack.c.l.b16 %v2314
  %v2954 = vunpack.c.h.b16 %v2314
  %v2955 = vunpack.c.l.b16 %v2315
  %v2956 = vunpack.c.h.b16 %v2315
  %v2957 = vunpack.c.l.b16 %v2316
  %v2958 = vunpack.c.h.b16 %v2316
  %v2959 = vunpack.c.l.b16 %v2317
  %v2960 = vunpack.c.h.b16 %v2317
  %v2961 = vunpack.c.l.b16 %v2318
  %v2962 = vunpack.c.h.b16 %v2318
  %v2963 = vunpack.c.l.b16 %v2319
  %v2964 = vunpack.c.h.b16 %v2319
  %v2965 = vunpack.c.l.b16 %v2320
  %v2966 = vunpack.c.h.b16 %v2320
  %v2967 = vunpack.c.l.b16 %v2321
  %v2968 = vunpack.c.h.b16 %v2321
  %v2969 = vunpack.c.l.b16 %v2322
  %v2970 = vunpack.c.h.b16 %v2322
  %v2971 = vunpack.c.l.b16 %v2323
  %v2972 = vunpack.c.h.b16 %v2323
  %v2973 = vunpack.c.l.b16 %v2324
  %v2974 = vunpack.c.h.b16 %v2324
  %v2975 = vunpack.c.l.b16 %v2325
  %v2976 = vunpack.c.h.b16 %v2325
  %v2977 = vunpack.c.l.b16 %v2326
  %v2978 = vunpack.c.h.b16 %v2326
  %v2979 = vunpack.c.l.b16 %v2327
  %v2980 = vunpack.c.h.b16 %v2327
  %v2981 = vunpack.c.l.b16 %v2328
  %v2982 = vunpack.c.h.b16 %v2328
  %v2983 = vunpack.c.l.b16 %v2329
  %v2984 = vunpack.c.h.b16 %v2329
  %v2985 = vunpack.c.l.b16 %v2330
  %v2986 = vunpack.c.h.b16 %v2330
  %v2987 = vunpack.c.l.b16 %v2331
  %v2988 = vunpack.c.h.b16 %v2331
  %v2989 = vunpack.c.l.b16 %v2332
  %v2990 = vunpack.c.h.b16 %v2332
  %v2991 = vunpack.c.l.b16 %v2333
  %v2992 = vunpack.c.h.b16 %v2333
  %v2993 = vunpack.c.l.b16 %v2334
  %v2994 = vunpack.c.h.b16 %v2334
  %v2995 = vunpack.c.l.b16 %v2335
  %v2996 = vunpack.c.h.b16 %v2335
  %v2997 = vunpack.c.l.b16 %v2336
  %v2998 = vunpack.c.h.b16 %v2336
  %v2999 = vunpack.c.l.b16 %v2337
  %v3000 = vunpack.c.h.b16 %v2337
  %v3001 = vunpack.c.l.b16 %v2338
  %v3002 = vunpack.c.h.b16 %v2338
  %v3003 = vunpack.c.l.b16 %v2339
  %v3004 = vunpack.c.h.b16 %v2339
  %v3005 = vunpack.c.l.b16 %v2340
  %v3006 = vunpack.c.h.b16 %v2340
  %v3007 = vunpack.c.l.b16 %v2341
  %v3008 = vunpack.c.h.b16 %v2341
  %v3009 = vunpack.c.l.b16 %v2342
  %v3010 = vunpack.c.h.b16 %v2342
  %v3011 = vunpack.c.l.b16 %v2343
  %v3012 = vunpack.c.h.b16 %v2343
  %v3013 = vunpack.c.l.b16 %v2344
  %v3014 = vunpack.c.h.b16 %v2344
  %v3015 = vunpack.c.l.b16 %v2345
  %v3016 = vunpack.c.h.b16 %v2345
  %v3017 = vunpack.c.l.b16 %v2346
  %v3018 = vunpack.c.h.b16 %v2346
  %v3019 = vunpack.c.l.b16 %v2347
  %v3020 = vunpack.c.h.b16 %v2347
  %v3021 = vunpack.c.l.b16 %v2348
  %v3022 = vunpack.c.h.b16 %v2348
  %v3023 = vunpack.c.l.b16 %v2349
  %v3024 = vunpack.c.h.b16 %v2349
  %v3025 = vunpack.c.l.b16 %v2350
  %v3026 = vunpack.c.h.b16 %v2350
  %v3027 = vunpack.c.l.b16 %v2351
  %v3028 = vunpack.c.h.b16 %v2351
  %v3029 = vunpack.c.l.b16 %v2352
  %v3030 = vunpack.c.h.b16 %v2352
  %v3031 = vunpack.c.l.b16 %v2353
  %v3032 = vunpack.c.h.b16 %v2353
  %v3033 = vunpack.c.l.b16 %v2354
  %v3034 = vunpack.c.h.b16 %v2354
  %v3035 = vunpack.c.l.b16 %v2355
  %v3036 = vunpack.c.h.b16 %v2355
  %v3037 = vunpack.c.l.b16 %v2356
  %v3038 = vunpack.c.h.b16 %v2356
  %v3039 = vunpack.c.l.b16 %v2357
  %v3040 = vunpack.c.h.b16 %v2357
  %v3041 = vunpack.c.l.b16 %v2358
  %v3042 = vunpack.c.h.b16 %v2358
  %v3043 = vunpack.c.l.b16 %v2359
  %v3044 = vunpack.c.h.b16 %v2359
  %v3045 = vunpack.c.l.b16 %v2360
  %v3046 = vunpack.c.h.b16 %v2360
  %v3047 = vunpack.c.l.b16 %v2361
  %v3048 = vunpack.c.h.b16 %v2361
  %v3049 = vunpack.c.l.b16 %v2362
  %v3050 = vunpack.c.h.b16 %v2362
  %v3051 = vunpack.c.l.b16 %v2363
  %v3052 = vunpack.c.h.b16 %v2363
  %v3053 = vunpack.c.l.b16 %v2364
  %v3054 = vunpack.c.h.b16 %v2364
  %v3055 = vunpack.c.l.b16 %v2365
  %v3056 = vunpack.c.h.b16 %v2365
  %v3057 = vunpack.c.l.b16 %v2366
  %v3058 = vunpack.c.h.b16 %v2366
  %v3059 = vunpack.c.l.b16 %v2367
  %v3060 = vunpack.c.h.b16 %v2367
  %v3061 = vunpack.c.l.b16 %v2368
  %v3062 = vunpack.c.h.b16 %v2368
  %v3063 = vunpack.c.l.b16 %v2369
  %v3064 = vunpack.c.h.b16 %v2369
  %v3065 = vunpack.c.l.b16 %v2370
  %v3066 = vunpack.c.h.b16 %v2370
  %v3067 = vunpack.c.l.b16 %v2371
  %v3068 = vunpack.c.h.b16 %v2371
  %v3069 = vunpack.c.l.b16 %v2372
  %v3070 = vunpack.c.h.b16 %v2372
  %v3071 = vunpack.c.l.b16 %v2373
  %v3072 = vunpack.c.h.b16 %v2373
  %v3073 = vunpack.c.l.b16 %v2374
  %v3074 = vunpack.c.h.b16 %v2374
  %v3075 = vunpack.c.l.b16 %v2375
  %v3076 = vunpack.c.h.b16 %v2375
  %v3077 = vunpack.c.l.b16 %v2376
  %v3078 = vunpack.c.h.b16 %v2376
  %v3079 = vunpack.c.l.b16 %v2377
  %v3080 = vunpack.c.h.b16 %v2377
  %v3081 = vunpack.c.l.b16 %v2378
  %v3082 = vunpack.c.h.b16 %v2378
  %v3083 = vunpack.c.l.b16 %v2379
  %v3084 = vunpack.c.h.b16 %v2379
  %v3085 = vunpack.c.l.b16 %v2380
  %v3086 = vunpack.c.h.b16 %v2380
  %v3087 = vunpack.c.l.b16 %v2381
  %v3088 = vunpack.c.h.b16 %v2381
  %v3089 = vunpack.c.l.b16 %v2382
  %v3090 = vunpack.c.h.b16 %v2382
  %v3091 = vunpack.c.l.b16 %v2383
  %v3092 = vunpack.c.h.b16 %v2383
  %v3093 = vunpack.c.l.b16 %v2384
  %v3094 = vunpack.c.h.b16 %v2384
  %v3095 = vunpack.c.l.b16 %v2385
  %v3096 = vunpack.c.h.b16 %v2385
  %v3097 = vunpack.c.l.b16 %v2386
  %v3098 = vunpack.c.h.b16 %v2386
  %v3099 = vunpack.c.l.b16 %v2387
  %v3100 = vunpack.c.h.b16 %v2387
  %v3101 = vunpack.c.l.b16 %v2388
  %v3102 = vunpack.c.h.b16 %v2388
  %v3103 = vunpack.c.l.b16 %v2389
  %v3104 = vunpack.c.h.b16 %v2389
  %v3105 = vunpack.c.l.b16 %v2390
  %v3106 = vunpack.c.h.b16 %v2390
  %v3107 = vunpack.c.l.b16 %v2391
  %v3108 = vunpack.c.h.b16 %v2391
  %v3109 = vunpack.c.l.b16 %v2392
  %v3110 = vunpack.c.h.b16 %v2392
  %v3111 = vunpack.c.l.b16 %v2393
  %v3112 = vunpack.c.h.b16 %v2393
  %v3113 = vunpack.c.l.b16 %v2394
  %v3114 = vunpack.c.h.b16 %v2394
  %v3115 = vunpack.c.l.b16 %v2395
  %v3116 = vunpack.c.h.b16 %v2395
  %v3117 = vunpack.c.l.b16 %v2396
  %v3118 = vunpack.c.h.b16 %v2396
  %v3119 = vunpack.c.l.b16 %v2397
  %v3120 = vunpack.c.h.b16 %v2397
  %v3121 = vunpack.c.l.b16 %v2398
  %v3122 = vunpack.c.h.b16 %v2398
  %v3123 = vunpack.c.l.b16 %v2399
  %v3124 = vunpack.c.h.b16 %v2399
  %v3125 = vunpack.c.l.b16 %v2400
  %v3126 = vunpack.c.h.b16 %v2400
  %v3127 = vunpack.c.l.b16 %v2401
  %v3128 = vunpack.c.h.b16 %v2401
  %v3129 = vunpack.c.l.b16 %v2402
  %v3130 = vunpack.c.h.b16 %v2402
  %v3131 = vunpack.c.l.b16 %v2403
  %v3132 = vunpack.c.h.b16 %v2403
  %v3133 = vunpack.c.l.b16 %v2404
  %v3134 = vunpack.c.h.b16 %v2404
  %v3135 = vunpack.c.l.b16 %v2405
  %v3136 = vunpack.c.h.b16 %v2405
  %v3137 = vunpack.c.l.b16 %v2406
  %v3138 = vunpack.c.h.b16 %v2406
  %v3139 = vunpack.c.l.b16 %v2407
  %v3140 = vunpack.c.h.b16 %v2407
  %v3141 = vunpack.c.l.b16 %v2408
  %v3142 = vunpack.c.h.b16 %v2408
  %v3143 = vunpack.c.l.b16 %v2409
  %v3144 = vunpack.c.h.b16 %v2409
  %v3145 = vunpack.c.l.b16 %v2410
  %v3146 = vunpack.c.h.b16 %v2410
  %v3147 = vunpack.c.l.b16 %v2411
  %v3148 = vunpack.c.h.b16 %v2411
  %v3149 = vunpack.c.l.b16 %v2412
  %v3150 = vunpack.c.h.b16 %v2412
  %v3151 = vunpack.c.l.b16 %v2413
  %v3152 = vunpack.c.h.b16 %v2413
  %v3153 = vunpack.c.l.b16 %v2414
  %v3154 = vunpack.c.h.b16 %v2414
  %v3155 = vunpack.c.l.b16 %v2415
  %v3156 = vunpack.c.h.b16 %v2415
  %v3157 = vunpack.c.l.b16 %v2416
  %v3158 = vunpack.c.h.b16 %v2416
  %v3159 = vunpack.c.l.b16 %v2417
  %v3160 = vunpack.c.h.b16 %v2417
  %v3161 = vunpack.c.l.b16 %v2418
  %v3162 = vunpack.c.h.b16 %v2418
  %v3163 = vunpack.c.l.b16 %v2419
  %v3164 = vunpack.c.h.b16 %v2419
  %v3165 = vunpack.c.l.b16 %v2420
  %v3166 = vunpack.c.h.b16 %v2420
  %v3167 = vunpack.c.l.b16 %v2421
  %v3168 = vunpack.c.h.b16 %v2421
  %v3169 = vunpack.c.l.b16 %v2422
  %v3170 = vunpack.c.h.b16 %v2422
  %v3171 = vunpack.c.l.b16 %v2423
  %v3172 = vunpack.c.h.b16 %v2423
  %v3173 = vunpack.c.l.b16 %v2424
  %v3174 = vunpack.c.h.b16 %v2424
  %v3175 = vunpack.c.l.b16 %v2425
  %v3176 = vunpack.c.h.b16 %v2425
  %v3177 = vunpack.c.l.b16 %v2426
  %v3178 = vunpack.c.h.b16 %v2426
  %v3179 = vunpack.c.l.b16 %v2427
  %v3180 = vunpack.c.h.b16 %v2427
  %v3181 = vunpack.c.l.b16 %v2428
  %v3182 = vunpack.c.h.b16 %v2428
  %v3183 = vunpack.c.l.b16 %v2429
  %v3184 = vunpack.c.h.b16 %v2429
  %v3185 = vunpack.c.l.b16 %v2430
  %v3186 = vunpack.c.h.b16 %v2430
  %v3187 = vunpack.c.l.b16 %v2431
  %v3188 = vunpack.c.h.b16 %v2431
  %v3189 = vunpack.c.l.b16 %v2432
  %v3190 = vunpack.c.h.b16 %v2432
  %v3191 = vunpack.c.l.b16 %v2433
  %v3192 = vunpack.c.h.b16 %v2433
  %v3193 = vunpack.c.l.b16 %v2434
  %v3194 = vunpack.c.h.b16 %v2434
  %v3195 = vunpack.c.l.b16 %v2435
  %v3196 = vunpack.c.h.b16 %v2435
  %v3197 = vunpack.c.l.b16 %v2436
  %v3198 = vunpack.c.h.b16 %v2436
  %v3199 = vunpack.c.l.b16 %v2437
  %v3200 = vunpack.c.h.b16 %v2437
  %v3201 = vunpack.c.l.b16 %v2438
  %v3202 = vunpack.c.h.b16 %v2438
  %v3203 = vunpack.c.l.b16 %v2439
  %v3204 = vunpack.c.h.b16 %v2439
  %v3205 = vunpack.c.l.b16 %v2440
  %v3206 = vunpack.c.h.b16 %v2440
  %v3207 = vunpack.c.l.b16 %v2441
  %v3208 = vunpack.c.h.b16 %v2441
  %v3209 = vunpack.c.l.b16 %v2442
  %v3210 = vunpack.c.h.b16 %v2442
  %v3211 = vpack.c.b16 %v2707, %v2699
  %v3212 = vpack.c.b16 %v2708, %v2700
  %v3213 = vpack.c.b16 %v2709, %v2701
  %v3214 = vpack.c.b16 %v2710, %v2702
  %v3215 = vpack.c.b16 %v2711, %v2703
  %v3216 = vpack.c.b16 %v2712, %v2704
  %v3217 = vpack.c.b16 %v2713, %v2705
  %v3218 = vpack.c.b16 %v2714, %v2706
  %v3219 = vpack.c.b16 %v2723, %v2715
  %v3220 = vpack.c.b16 %v2724, %v2716
  %v3221 = vpack.c.b16 %v2725, %v2717
  %v3222 = vpack.c.b16 %v2726, %v2718
  %v3223 = vpack.c.b16 %v2727, %v2719
  %v3224 = vpack.c.b16 %v2728, %v2720
  %v3225 = vpack.c.b16 %v2729, %v2721
  %v3226 = vpack.c.b16 %v2730, %v2722
  %v3227 = vpack.c.b16 %v2739, %v2731
  %v3228 = vpack.c.b16 %v2740, %v2732
  %v3229 = vpack.c.b16 %v2741, %v2733
  %v3230 = vpack.c.b16 %v2742, %v2734
  %v3231 = vpack.c.b16 %v2743, %v2735
  %v3232 = vpack.c.b16 %v2744, %v2736
  %v3233 = vpack.c.b16 %v2745, %v2737
  %v3234 = vpack.c.b16 %v2746, %v2738
  %v3235 = vpack.c.b16 %v2755, %v2747
  %v3236 = vpack.c.b16 %v2756, %v2748
  %v3237 = vpack.c.b16 %v2757, %v2749
  %v3238 = vpack.c.b16 %v2758, %v2750
  %v3239 = vpack.c.b16 %v2759, %v2751
  %v3240 = vpack.c.b16 %v2760, %v2752
  %v3241 = vpack.c.b16 %v2761, %v2753
  %v3242 = vpack.c.b16 %v2762, %v2754
  %v3243 = vpack.c.b16 %v2771, %v2763
  %v3244 = vpack.c.b16 %v2772, %v2764
  %v3245 = vpack.c.b16 %v2773, %v2765
  %v3246 = vpack.c.b16 %v2774, %v2766
  %v3247 = vpack.c.b16 %v2775, %v2767
  %v3248 = vpack.c.b16 %v2776, %v2768
  %v3249 = vpack.c.b16 %v2777, %v2769
  %v3250 = vpack.c.b16 %v2778, %v2770
  %v3251 = vpack.c.b16 %v2787, %v2779
  %v3252 = vpack.c.b16 %v2788, %v2780
  %v3253 = vpack.c.b16 %v2789, %v2781
  %v3254 = vpack.c.b16 %v2790, %v2782
  %v3255 = vpack.c.b16 %v2791, %v2783
  %v3256 = vpack.c.b16 %v2792, %v2784
  %v3257 = vpack.c.b16 %v2793, %v2785
  %v3258 = vpack.c.b16 %v2794, %v2786
  %v3259 = vpack.c.b16 %v2803, %v2795
  %v3260 = vpack.c.b16 %v2804, %v2796
  %v3261 = vpack.c.b16 %v2805, %v2797
  %v3262 = vpack.c.b16 %v2806, %v2798
  %v3263 = vpack.c.b16 %v2807, %v2799
  %v3264 = vpack.c.b16 %v2808, %v2800
  %v3265 = vpack.c.b16 %v2809, %v2801
  %v3266 = vpack.c.b16 %v2810, %v2802
  %v3267 = vpack.c.b16 %v2819, %v2811
  %v3268 = vpack.c.b16 %v2820, %v2812
  %v3269 = vpack.c.b16 %v2821, %v2813
  %v3270 = vpack.c.b16 %v2822, %v2814
  %v3271 = vpack.c.b16 %v2823, %v2815
  %v3272 = vpack.c.b16 %v2824, %v2816
  %v3273 = vpack.c.b16 %v2825, %v2817
  %v3274 = vpack.c.b16 %v2826, %v2818
  %v3275 = vpack.c.b16 %v2835, %v2827
  %v3276 = vpack.c.b16 %v2836, %v2828
  %v3277 = vpack.c.b16 %v2837, %v2829
  %v3278 = vpack.c.b16 %v2838, %v2830
  %v3279 = vpack.c.b16 %v2839, %v2831
  %v3280 = vpack.c.b16 %v2840, %v2832
  %v3281 = vpack.c.b16 %v2841, %v2833
  %v3282 = vpack.c.b16 %v2842, %v2834
  %v3283 = vpack.c.b16 %v2851, %v2843
  %v3284 = vpack.c.b16 %v2852, %v2844
  %v3285 = vpack.c.b16 %v2853, %v2845
  %v3286 = vpack.c.b16 %v2854, %v2846
  %v3287 = vpack.c.b16 %v2855, %v2847
  %v3288 = vpack.c.b16 %v2856, %v2848
  %v3289 = vpack.c.b16 %v2857, %v2849
  %v3290 = vpack.c.b16 %v2858, %v2850
  %v3291 = vpack.c.b16 %v2867, %v2859
  %v3292 = vpack.c.b16 %v2868, %v2860
  %v3293 = vpack.c.b16 %v2869, %v2861
  %v3294 = vpack.c.b16 %v2870, %v2862
  %v3295 = vpack.c.b16 %v2871, %v2863
  %v3296 = vpack.c.b16 %v2872, %v2864
  %v3297 = vpack.c.b16 %v2873, %v2865
  %v3298 = vpack.c.b16 %v2874, %v2866
  %v3299 = vpack.c.b16 %v2883, %v2875
  %v3300 = vpack.c.b16 %v2884, %v2876
  %v3301 = vpack.c.b16 %v2885, %v2877
  %v3302 = vpack.c.b16 %v2886, %v2878
  %v3303 = vpack.c.b16 %v2887, %v2879
  %v3304 = vpack.c.b16 %v2888, %v2880
  %v3305 = vpack.c.b16 %v2889, %v2881
  %v3306 = vpack.c.b16 %v2890, %v2882
  %v3307 = vpack.c.b16 %v2899, %v2891
  %v3308 = vpack.c.b16 %v2900, %v2892
  %v3309 = vpack.c.b16 %v2901, %v2893
  %v3310 = vpack.c.b16 %v2902, %v2894
  %v3311 = vpack.c.b16 %v2903, %v2895
  %v3312 = vpack.c.b16 %v2904, %v2896
  %v3313 = vpack.c.b16 %v2905, %v2897
  %v3314 = vpack.c.b16 %v2906, %v2898
  %v3315 = vpack.c.b16 %v2915, %v2907
  %v3316 = vpack.c.b16 %v2916, %v2908
  %v3317 = vpack.c.b16 %v2917, %v2909
  %v3318 = vpack.c.b16 %v2918, %v2910
  %v3319 = vpack.c.b16 %v2919, %v2911
  %v3320 = vpack.c.b16 %v2920, %v2912
  %v3321 = vpack.c.b16 %v2921, %v2913
  %v3322 = vpack.c.b16 %v2922, %v2914
  %v3323 = vpack.c.b16 %v2931, %v2923
  %v3324 = vpack.c.b16 %v2932, %v2924
  %v3325 = vpack.c.b16 %v2933, %v2925
  %v3326 = vpack.c.b16 %v2934, %v2926
  %v3327 = vpack.c.b16 %v2935, %v2927
  %v3328 = vpack.c.b16 %v2936, %v2928
  %v3329 = vpack.c.b16 %v2937, %v2929
  %v3330 = vpack.c.b16 %v2938, %v2930
  %v3331 = vpack.c.b16 %v2947, %v2939
  %v3332 = vpack.c.b16 %v2948, %v2940
  %v3333 = vpack.c.b16 %v2949, %v2941
  %v3334 = vpack.c.b16 %v2950, %v2942
  %v3335 = vpack.c.b16 %v2951, %v2943
  %v3336 = vpack.c.b16 %v2952, %v2944
  %v3337 = vpack.c.b16 %v2953, %v2945
  %v3338 = vpack.c.b16 %v2954, %v2946
  %v3339 = vpack.c.b16 %v2963, %v2955
  %v3340 = vpack.c.b16 %v2964, %v2956
  %v3341 = vpack.c.b16 %v2965, %v2957
  %v3342 = vpack.c.b16 %v2966, %v2958
  %v3343 = vpack.c.b16 %v2967, %v2959
  %v3344 = vpack.c.b16 %v2968, %v2960
  %v3345 = vpack.c.b16 %v2969, %v2961
  %v3346 = vpack.c.b16 %v2970, %v2962
  %v3347 = vpack.c.b16 %v2979, %v2971
  %v3348 = vpack.c.b16 %v2980, %v2972
  %v3349 = vpack.c.b16 %v2981, %v2973
  %v3350 = vpack.c.b16 %v2982, %v2974
  %v3351 = vpack.c.b16 %v2983, %v2975
  %v3352 = vpack.c.b16 %v2984, %v2976
  %v3353 = vpack.c.b16 %v2985, %v2977
  %v3354 = vpack.c.b16 %v2986, %v2978
  %v3355 = vpack.c.b16 %v2995, %v2987
  %v3356 = vpack.c.b16 %v2996, %v2988
  %v3357 = vpack.c.b16 %v2997, %v2989
  %v3358 = vpack.c.b16 %v2998, %v2990
  %v3359 = vpack.c.b16 %v2999, %v2991
  %v3360 = vpack.c.b16 %v3000, %v2992
  %v3361 = vpack.c.b16 %v3001, %v2993
  %v3362 = vpack.c.b16 %v3002, %v2994
  %v3363 = vpack.c.b16 %v3011, %v3003
  %v3364 = vpack.c.b16 %v3012, %v3004
  %v3365 = vpack.c.b16 %v3013, %v3005
  %v3366 = vpack.c.b16 %v3014, %v3006
  %v3367 = vpack.c.b16 %v3015, %v3007
  %v3368 = vpack.c.b16 %v3016, %v3008
  %v3369 = vpack.c.b16 %v3017, %v3009
  %v3370 = vpack.c.b16 %v3018, %v3010
  %v3371 = vpack.c.b16 %v3027, %v3019
  %v3372 = vpack.c.b16 %v3028, %v3020
  %v3373 = vpack.c.b16 %v3029, %v3021
  %v3374 = vpack.c.b16 %v3030, %v3022
  %v3375 = vpack.c.b16 %v3031, %v3023
  %v3376 = vpack.c.b16 %v3032, %v3024
  %v3377 = vpack.c.b16 %v3033, %v3025
  %v3378 = vpack.c.b16 %v3034, %v3026
  %v3379 = vpack.c.b16 %v3043, %v3035
  %v3380 = vpack.c.b16 %v3044, %v3036
  %v3381 = vpack.c.b16 %v3045, %v3037
  %v3382 = vpack.c.b16 %v3046, %v3038
  %v3383 = vpack.c.b16 %v3047, %v3039
  %v3384 = vpack.c.b16 %v3048, %v3040
  %v3385 = vpack.c.b16 %v3049, %v3041
  %v3386 = vpack.c.b16 %v3050, %v3042
  %v3387 = vpack.c.b16 %v3059, %v3051
  %v3388 = vpack.c.b16 %v3060, %v3052
  %v3389 = vpack.c.b16 %v3061, %v3053
  %v3390 = vpack.c.b16 %v3062, %v3054
  %v3391 = vpack.c.b16 %v3063, %v3055
  %v3392 = vpack.c.b16 %v3064, %v3056
  %v3393 = vpack.c.b16 %v3065, %v3057
  %v3394 = vpack.c.b16 %v3066, %v3058
  %v3395 = vpack.c.b16 %v3075, %v3067
  %v3396 = vpack.c.b16 %v3076, %v3068
  %v3397 = vpack.c.b16 %v3077, %v3069
  %v3398 = vpack.c.b16 %v3078, %v3070
  %v3399 = vpack.c.b16 %v3079, %v3071
  %v3400 = vpack.c.b16 %v3080, %v3072
  %v3401 = vpack.c.b16 %v3081, %v3073
  %v3402 = vpack.c.b16 %v3082, %v3074
  %v3403 = vpack.c.b16 %v3091, %v3083
  %v3404 = vpack.c.b16 %v3092, %v3084
  %v3405 = vpack.c.b16 %v3093, %v3085
  %v3406 = vpack.c.b16 %v3094, %v3086
  %v3407 = vpack.c.b16 %v3095, %v3087
  %v3408 = vpack.c.b16 %v3096, %v3088
  %v3409 = vpack.c.b16 %v3097, %v3089
  %v3410 = vpack.c.b16 %v3098, %v3090
  %v3411 = vpack.c.b16 %v3107, %v3099
  %v3412 = vpack.c.b16 %v3108, %v3100
  %v3413 = vpack.c.b16 %v3109, %v3101
  %v3414 = vpack.c.b16 %v3110, %v3102
  %v3415 = vpack.c.b16 %v3111, %v3103
  %v3416 = vpack.c.b16 %v3112, %v3104
  %v3417 = vpack.c.b16 %v3113, %v3105
  %v3418 = vpack.c.b16 %v3114, %v3106
  %v3419 = vpack.c.b16 %v3123, %v3115
  %v3420 = vpack.c.b16 %v3124, %v3116
  %v3421 = vpack.c.b16 %v3125, %v3117
  %v3422 = vpack.c.b16 %v3126, %v3118
  %v3423 = vpack.c.b16 %v3127, %v3119
  %v3424 = vpack.c.b16 %v3128, %v3120
  %v3425 = vpack.c.b16 %v3129, %v3121
  %v3426 = vpack.c.b16 %v3130, %v3122
  %v3427 = vpack.c.b16 %v3139, %v3131
  %v3428 = vpack.c.b16 %v3140, %v3132
  %v3429 = vpack.c.b16 %v3141, %v3133
  %v3430 = vpack.c.b16 %v3142, %v3134
  %v3431 = vpack.c.b16 %v3143, %v3135
  %v3432 = vpack.c.b16 %v3144, %v3136
  %v3433 = vpack.c.b16 %v3145, %v3137
  %v3434 = vpack.c.b16 %v3146, %v3138
  %v3435 = vpack.c.b16 %v3155, %v3147
  %v3436 = vpack.c.b16 %v3156, %v3148
  %v3437 = vpack.c.b16 %v3157, %v3149
  %v3438 = vpack.c.b16 %v3158, %v3150
  %v3439 = vpack.c.b16 %v3159, %v3151
  %v3440 = vpack.c.b16 %v3160, %v3152
  %v3441 = vpack.c.b16 %v3161, %v3153
  %v3442 = vpack.c.b16 %v3162, %v3154
  %v3443 = vpack.c.b16 %v3171, %v3163
  %v3444 = vpack.c.b16 %v3172, %v3164
  %v3445 = vpack.c.b16 %v3173, %v3165
  %v3446 = vpack.c.b16 %v3174, %v3166
  %v3447 = vpack.c.b16 %v3175, %v3167
  %v3448 = vpack.c.b16 %v3176, %v3168
  %v3449 = vpack.c.b16 %v3177, %v3169
  %v3450 = vpack.c.b16 %v3178, %v3170
  %v3451 = vpack.c.b16 %v3187, %v3179
  %v3452 = vpack.c.b16 %v3188, %v3180
  %v3453 = vpack.c.b16 %v3189, %v3181
  %v3454 = vpack.c.b16 %v3190, %v3182
  %v3455 = vpack.c.b16 %v3191, %v3183
  %v3456 = vpack.c.b16 %v3192, %v3184
  %v3457 = vpack.c.b16 %v3193, %v3185
  %v3458 = vpack.c.b16 %v3194, %v3186
  %v3459 = vpack.c.b16 %v3203, %v3195
  %v3460 = vpack.c.b16 %v3204, %v3196
  %v3461 = vpack.c.b16 %v3205, %v3197
  %v3462 = vpack.c.b16 %v3206, %v3198
  %v3463 = vpack.c.b16 %v3207, %v3199
  %v3464 = vpack.c.b16 %v3208, %v3200
  %v3465 = vpack.c.b16 %v3209, %v3201
  %v3466 = vpack.c.b16 %v3210, %v3202
  %3723 = vmatprep.subr.bf16.mxu0 %v3268
  %3724 = vmatpush1.bf16.msra.mxu0 %v3267
  %3725 = vmatprep.subr.bf16.mxu0 %v3260
  %3726 = vmatpush1.bf16.msra.mxu0 %v3259
  %3727 = vmatprep.subr.bf16.mxu0 %v3252
  %3728 = vmatpush1.bf16.msra.mxu0 %v3251
  %3729 = vmatprep.subr.bf16.mxu0 %v3244
  %3730 = vmatpush1.bf16.msra.mxu0 %v3243
  %3731 = vmatprep.subr.bf16.mxu0 %v3236
  %3732 = vmatpush1.bf16.msra.mxu0 %v3235
  %3733 = vmatprep.subr.bf16.mxu0 %v3228
  %3734 = vmatpush1.bf16.msra.mxu0 %v3227
  %3735 = vmatprep.subr.bf16.mxu0 %v3220
  %3736 = vmatpush1.bf16.msra.mxu0 %v3219
  %3737 = vmatprep.subr.bf16.mxu0 %v3212
  %3738 = vmatpush1.bf16.msra.mxu0 %v3211
  %3739 = vmatprep.subr.bf16.mxu0 %v3332
  %3740 = vmatpush2.bf16.msra.mxu0 %v3331
  %3741 = vmatprep.subr.bf16.mxu0 %v3324
  %3742 = vmatpush2.bf16.msra.mxu0 %v3323
  %3743 = vmatprep.subr.bf16.mxu0 %v3316
  %3744 = vmatpush2.bf16.msra.mxu0 %v3315
  %3745 = vmatprep.subr.bf16.mxu0 %v3308
  %3746 = vmatpush2.bf16.msra.mxu0 %v3307
  %3747 = vmatprep.subr.bf16.mxu0 %v3300
  %3748 = vmatpush2.bf16.msra.mxu0 %v3299
  %3749 = vmatprep.subr.bf16.mxu0 %v3292
  %3750 = vmatpush2.bf16.msra.mxu0 %v3291
  %3751 = vmatprep.subr.bf16.mxu0 %v3284
  %3752 = vmatpush2.bf16.msra.mxu0 %v3283
  %3753 = vmatprep.subr.bf16.mxu0 %v3276
  %3754 = vmatpush2.bf16.msra.mxu0 %v3275
  %3755 = vmatprep.mubr.bf16.mxu0 %v2185
  %3756 = vmatmul.mubr.bf16.gmra.mxu0 %v2184
  %v3757 = vpop.f32.mrf.mxu0
  %v3758 = vadd.f32 %v2099, %v3757
  %v3759 = vpop.f32.mrf.mxu0
  %v3760 = vadd.f32 %v2103, %v3759
  %v3761 = vpop.f32.mrf.mxu0
  %v3762 = vpop.f32.mrf.mxu0
  %3763 = vdwg.mxu0
  %3764 = vmatprep.subr.bf16.mxu0 %v3396
  %3765 = vmatpush1.bf16.msra.mxu0 %v3395
  %3766 = vmatprep.subr.bf16.mxu0 %v3388
  %3767 = vmatpush1.bf16.msra.mxu0 %v3387
  %3768 = vmatprep.subr.bf16.mxu0 %v3380
  %3769 = vmatpush1.bf16.msra.mxu0 %v3379
  %3770 = vmatprep.subr.bf16.mxu0 %v3372
  %3771 = vmatpush1.bf16.msra.mxu0 %v3371
  %3772 = vmatprep.subr.bf16.mxu0 %v3364
  %3773 = vmatpush1.bf16.msra.mxu0 %v3363
  %3774 = vmatprep.subr.bf16.mxu0 %v3356
  %3775 = vmatpush1.bf16.msra.mxu0 %v3355
  %3776 = vmatprep.subr.bf16.mxu0 %v3348
  %3777 = vmatpush1.bf16.msra.mxu0 %v3347
  %3778 = vmatprep.subr.bf16.mxu0 %v3340
  %3779 = vmatpush1.bf16.msra.mxu0 %v3339
  %3780 = vmatprep.subr.bf16.mxu0 %v3460
  %3781 = vmatpush2.bf16.msra.mxu0 %v3459
  %3782 = vmatprep.subr.bf16.mxu0 %v3452
  %3783 = vmatpush2.bf16.msra.mxu0 %v3451
  %3784 = vmatprep.subr.bf16.mxu0 %v3444
  %3785 = vmatpush2.bf16.msra.mxu0 %v3443
  %3786 = vmatprep.subr.bf16.mxu0 %v3436
  %3787 = vmatpush2.bf16.msra.mxu0 %v3435
  %3788 = vmatprep.subr.bf16.mxu0 %v3428
  %3789 = vmatpush2.bf16.msra.mxu0 %v3427
  %3790 = vmatprep.subr.bf16.mxu0 %v3420
  %3791 = vmatpush2.bf16.msra.mxu0 %v3419
  %3792 = vmatprep.subr.bf16.mxu0 %v3412
  %3793 = vmatpush2.bf16.msra.mxu0 %v3411
  %3794 = vmatprep.subr.bf16.mxu0 %v3404
  %3795 = vmatpush2.bf16.msra.mxu0 %v3403
  %3796 = vmatprep.mubr.bf16.mxu0 %v2186
  %3797 = vmatmul.mubr.bf16.gmra.mxu0 %v2186
  %v3798 = vpop.f32.mrf.mxu0
  %v3799 = vadd.f32 %v3758, %v3798
  %v3800 = vpop.f32.mrf.mxu0
  %v3801 = vadd.f32 %v3760, %v3800
  %v3802 = vpop.f32.mrf.mxu0
  %v3803 = vpop.f32.mrf.mxu0
  %3804 = vdwg.mxu0
  %3805 = vmatprep.subr.bf16.mxu0 %v3270
  %3806 = vmatpush1.bf16.msra.mxu0 %v3269
  %3807 = vmatprep.subr.bf16.mxu0 %v3262
  %3808 = vmatpush1.bf16.msra.mxu0 %v3261
  %3809 = vmatprep.subr.bf16.mxu0 %v3254
  %3810 = vmatpush1.bf16.msra.mxu0 %v3253
  %3811 = vmatprep.subr.bf16.mxu0 %v3246
  %3812 = vmatpush1.bf16.msra.mxu0 %v3245
  %3813 = vmatprep.subr.bf16.mxu0 %v3238
  %3814 = vmatpush1.bf16.msra.mxu0 %v3237
  %3815 = vmatprep.subr.bf16.mxu0 %v3230
  %3816 = vmatpush1.bf16.msra.mxu0 %v3229
  %3817 = vmatprep.subr.bf16.mxu0 %v3222
  %3818 = vmatpush1.bf16.msra.mxu0 %v3221
  %3819 = vmatprep.subr.bf16.mxu0 %v3214
  %3820 = vmatpush1.bf16.msra.mxu0 %v3213
  %3821 = vmatprep.subr.bf16.mxu0 %v3334
  %3822 = vmatpush2.bf16.msra.mxu0 %v3333
  %3823 = vmatprep.subr.bf16.mxu0 %v3326
  %3824 = vmatpush2.bf16.msra.mxu0 %v3325
  %3825 = vmatprep.subr.bf16.mxu0 %v3318
  %3826 = vmatpush2.bf16.msra.mxu0 %v3317
  %3827 = vmatprep.subr.bf16.mxu0 %v3310
  %3828 = vmatpush2.bf16.msra.mxu0 %v3309
  %3829 = vmatprep.subr.bf16.mxu0 %v3302
  %3830 = vmatpush2.bf16.msra.mxu0 %v3301
  %3831 = vmatprep.subr.bf16.mxu0 %v3294
  %3832 = vmatpush2.bf16.msra.mxu0 %v3293
  %3833 = vmatprep.subr.bf16.mxu0 %v3286
  %3834 = vmatpush2.bf16.msra.mxu0 %v3285
  %3835 = vmatprep.subr.bf16.mxu0 %v3278
  %3836 = vmatpush2.bf16.msra.mxu0 %v3277
  %3837 = vmatprep.mubr.bf16.mxu0 %v2185
  %3838 = vmatmul.mubr.bf16.gmra.mxu0 %v2184
  %v3839 = vpop.f32.mrf.mxu0
  %v3840 = vadd.f32 %v2107, %v3839
  %v3841 = vpop.f32.mrf.mxu0
  %v3842 = vadd.f32 %v2111, %v3841
  %v3843 = vpop.f32.mrf.mxu0
  %v3844 = vpop.f32.mrf.mxu0
  %3845 = vdwg.mxu0
  %3846 = vmatprep.subr.bf16.mxu0 %v3398
  %3847 = vmatpush1.bf16.msra.mxu0 %v3397
  %3848 = vmatprep.subr.bf16.mxu0 %v3390
  %3849 = vmatpush1.bf16.msra.mxu0 %v3389
  %3850 = vmatprep.subr.bf16.mxu0 %v3382
  %3851 = vmatpush1.bf16.msra.mxu0 %v3381
  %3852 = vmatprep.subr.bf16.mxu0 %v3374
  %3853 = vmatpush1.bf16.msra.mxu0 %v3373
  %3854 = vmatprep.subr.bf16.mxu0 %v3366
  %3855 = vmatpush1.bf16.msra.mxu0 %v3365
  %3856 = vmatprep.subr.bf16.mxu0 %v3358
  %3857 = vmatpush1.bf16.msra.mxu0 %v3357
  %3858 = vmatprep.subr.bf16.mxu0 %v3350
  %3859 = vmatpush1.bf16.msra.mxu0 %v3349
  %3860 = vmatprep.subr.bf16.mxu0 %v3342
  %3861 = vmatpush1.bf16.msra.mxu0 %v3341
  %3862 = vmatprep.subr.bf16.mxu0 %v3462
  %3863 = vmatpush2.bf16.msra.mxu0 %v3461
  %3864 = vmatprep.subr.bf16.mxu0 %v3454
  %3865 = vmatpush2.bf16.msra.mxu0 %v3453
  %3866 = vmatprep.subr.bf16.mxu0 %v3446
  %3867 = vmatpush2.bf16.msra.mxu0 %v3445
  %3868 = vmatprep.subr.bf16.mxu0 %v3438
  %3869 = vmatpush2.bf16.msra.mxu0 %v3437
  %3870 = vmatprep.subr.bf16.mxu0 %v3430
  %3871 = vmatpush2.bf16.msra.mxu0 %v3429
  %3872 = vmatprep.subr.bf16.mxu0 %v3422
  %3873 = vmatpush2.bf16.msra.mxu0 %v3421
  %3874 = vmatprep.subr.bf16.mxu0 %v3414
  %3875 = vmatpush2.bf16.msra.mxu0 %v3413
  %3876 = vmatprep.subr.bf16.mxu0 %v3406
  %3877 = vmatpush2.bf16.msra.mxu0 %v3405
  %3878 = vmatprep.mubr.bf16.mxu0 %v2186
  %3879 = vmatmul.mubr.bf16.gmra.mxu0 %v2186
  %v3880 = vpop.f32.mrf.mxu0
  %v3881 = vadd.f32 %v3840, %v3880
  %v3882 = vpop.f32.mrf.mxu0
  %v3883 = vadd.f32 %v3842, %v3882
  %v3884 = vpop.f32.mrf.mxu0
  %v3885 = vpop.f32.mrf.mxu0
  %3886 = vdwg.mxu0
  %3887 = vmatprep.subr.bf16.mxu0 %v3272
  %3888 = vmatpush1.bf16.msra.mxu0 %v3271
  %3889 = vmatprep.subr.bf16.mxu0 %v3264
  %3890 = vmatpush1.bf16.msra.mxu0 %v3263
  %3891 = vmatprep.subr.bf16.mxu0 %v3256
  %3892 = vmatpush1.bf16.msra.mxu0 %v3255
  %3893 = vmatprep.subr.bf16.mxu0 %v3248
  %3894 = vmatpush1.bf16.msra.mxu0 %v3247
  %3895 = vmatprep.subr.bf16.mxu0 %v3240
  %3896 = vmatpush1.bf16.msra.mxu0 %v3239
  %3897 = vmatprep.subr.bf16.mxu0 %v3232
  %3898 = vmatpush1.bf16.msra.mxu0 %v3231
  %3899 = vmatprep.subr.bf16.mxu0 %v3224
  %3900 = vmatpush1.bf16.msra.mxu0 %v3223
  %3901 = vmatprep.subr.bf16.mxu0 %v3216
  %3902 = vmatpush1.bf16.msra.mxu0 %v3215
  %3903 = vmatprep.subr.bf16.mxu0 %v3336
  %3904 = vmatpush2.bf16.msra.mxu0 %v3335
  %3905 = vmatprep.subr.bf16.mxu0 %v3328
  %3906 = vmatpush2.bf16.msra.mxu0 %v3327
  %3907 = vmatprep.subr.bf16.mxu0 %v3320
  %3908 = vmatpush2.bf16.msra.mxu0 %v3319
  %3909 = vmatprep.subr.bf16.mxu0 %v3312
  %3910 = vmatpush2.bf16.msra.mxu0 %v3311
  %3911 = vmatprep.subr.bf16.mxu0 %v3304
  %3912 = vmatpush2.bf16.msra.mxu0 %v3303
  %3913 = vmatprep.subr.bf16.mxu0 %v3296
  %3914 = vmatpush2.bf16.msra.mxu0 %v3295
  %3915 = vmatprep.subr.bf16.mxu0 %v3288
  %3916 = vmatpush2.bf16.msra.mxu0 %v3287
  %3917 = vmatprep.subr.bf16.mxu0 %v3280
  %3918 = vmatpush2.bf16.msra.mxu0 %v3279
  %3919 = vmatprep.mubr.bf16.mxu0 %v2185
  %3920 = vmatmul.mubr.bf16.gmra.mxu0 %v2184
  %v3921 = vpop.f32.mrf.mxu0
  %v3922 = vadd.f32 %v2115, %v3921
  %v3923 = vpop.f32.mrf.mxu0
  %v3924 = vadd.f32 %v2119, %v3923
  %v3925 = vpop.f32.mrf.mxu0
  %v3926 = vpop.f32.mrf.mxu0
  %3927 = vdwg.mxu0
  %3928 = vmatprep.subr.bf16.mxu0 %v3400
  %3929 = vmatpush1.bf16.msra.mxu0 %v3399
  %3930 = vmatprep.subr.bf16.mxu0 %v3392
  %3931 = vmatpush1.bf16.msra.mxu0 %v3391
  %3932 = vmatprep.subr.bf16.mxu0 %v3384
  %3933 = vmatpush1.bf16.msra.mxu0 %v3383
  %3934 = vmatprep.subr.bf16.mxu0 %v3376
  %3935 = vmatpush1.bf16.msra.mxu0 %v3375
  %3936 = vmatprep.subr.bf16.mxu0 %v3368
  %3937 = vmatpush1.bf16.msra.mxu0 %v3367
  %3938 = vmatprep.subr.bf16.mxu0 %v3360
  %3939 = vmatpush1.bf16.msra.mxu0 %v3359
  %3940 = vmatprep.subr.bf16.mxu0 %v3352
  %3941 = vmatpush1.bf16.msra.mxu0 %v3351
  %3942 = vmatprep.subr.bf16.mxu0 %v3344
  %3943 = vmatpush1.bf16.msra.mxu0 %v3343
  %3944 = vmatprep.subr.bf16.mxu0 %v3464
  %3945 = vmatpush2.bf16.msra.mxu0 %v3463
  %3946 = vmatprep.subr.bf16.mxu0 %v3456
  %3947 = vmatpush2.bf16.msra.mxu0 %v3455
  %3948 = vmatprep.subr.bf16.mxu0 %v3448
  %3949 = vmatpush2.bf16.msra.mxu0 %v3447
  %3950 = vmatprep.subr.bf16.mxu0 %v3440
  %3951 = vmatpush2.bf16.msra.mxu0 %v3439
  %3952 = vmatprep.subr.bf16.mxu0 %v3432
  %3953 = vmatpush2.bf16.msra.mxu0 %v3431
  %3954 = vmatprep.subr.bf16.mxu0 %v3424
  %3955 = vmatpush2.bf16.msra.mxu0 %v3423
  %3956 = vmatprep.subr.bf16.mxu0 %v3416
  %3957 = vmatpush2.bf16.msra.mxu0 %v3415
  %3958 = vmatprep.subr.bf16.mxu0 %v3408
  %3959 = vmatpush2.bf16.msra.mxu0 %v3407
  %3960 = vmatprep.mubr.bf16.mxu0 %v2186
  %3961 = vmatmul.mubr.bf16.gmra.mxu0 %v2186
  %v3962 = vpop.f32.mrf.mxu0
  %v3963 = vadd.f32 %v3922, %v3962
  %v3964 = vpop.f32.mrf.mxu0
  %v3965 = vadd.f32 %v3924, %v3964
  %v3966 = vpop.f32.mrf.mxu0
  %v3967 = vpop.f32.mrf.mxu0
  %3968 = vdwg.mxu0
  %3969 = vmatprep.subr.bf16.mxu0 %v3274
  %3970 = vmatpush1.bf16.msra.mxu0 %v3273
  %3971 = vmatprep.subr.bf16.mxu0 %v3266
  %3972 = vmatpush1.bf16.msra.mxu0 %v3265
  %3973 = vmatprep.subr.bf16.mxu0 %v3258
  %3974 = vmatpush1.bf16.msra.mxu0 %v3257
  %3975 = vmatprep.subr.bf16.mxu0 %v3250
  %3976 = vmatpush1.bf16.msra.mxu0 %v3249
  %3977 = vmatprep.subr.bf16.mxu0 %v3242
  %3978 = vmatpush1.bf16.msra.mxu0 %v3241
  %3979 = vmatprep.subr.bf16.mxu0 %v3234
  %3980 = vmatpush1.bf16.msra.mxu0 %v3233
  %3981 = vmatprep.subr.bf16.mxu0 %v3226
  %3982 = vmatpush1.bf16.msra.mxu0 %v3225
  %3983 = vmatprep.subr.bf16.mxu0 %v3218
  %3984 = vmatpush1.bf16.msra.mxu0 %v3217
  %3985 = vmatprep.subr.bf16.mxu0 %v3338
  %3986 = vmatpush2.bf16.msra.mxu0 %v3337
  %3987 = vmatprep.subr.bf16.mxu0 %v3330
  %3988 = vmatpush2.bf16.msra.mxu0 %v3329
  %3989 = vmatprep.subr.bf16.mxu0 %v3322
  %3990 = vmatpush2.bf16.msra.mxu0 %v3321
  %3991 = vmatprep.subr.bf16.mxu0 %v3314
  %3992 = vmatpush2.bf16.msra.mxu0 %v3313
  %3993 = vmatprep.subr.bf16.mxu0 %v3306
  %3994 = vmatpush2.bf16.msra.mxu0 %v3305
  %3995 = vmatprep.subr.bf16.mxu0 %v3298
  %3996 = vmatpush2.bf16.msra.mxu0 %v3297
  %3997 = vmatprep.subr.bf16.mxu0 %v3290
  %3998 = vmatpush2.bf16.msra.mxu0 %v3289
  %3999 = vmatprep.subr.bf16.mxu0 %v3282
  %4000 = vmatpush2.bf16.msra.mxu0 %v3281
  %4001 = vmatprep.mubr.bf16.mxu0 %v2185
  %4002 = vmatmul.mubr.bf16.gmra.mxu0 %v2184
  %v4003 = vpop.f32.mrf.mxu0
  %v4004 = vadd.f32 %v2123, %v4003
  %v4005 = vpop.f32.mrf.mxu0
  %v4006 = vadd.f32 %v2127, %v4005
  %v4007 = vpop.f32.mrf.mxu0
  %v4008 = vpop.f32.mrf.mxu0
  %4009 = vdwg.mxu0
  %4010 = vmatprep.subr.bf16.mxu0 %v3402
  %4011 = vmatpush1.bf16.msra.mxu0 %v3401
  %4012 = vmatprep.subr.bf16.mxu0 %v3394
  %4013 = vmatpush1.bf16.msra.mxu0 %v3393
  %4014 = vmatprep.subr.bf16.mxu0 %v3386
  %4015 = vmatpush1.bf16.msra.mxu0 %v3385
  %4016 = vmatprep.subr.bf16.mxu0 %v3378
  %4017 = vmatpush1.bf16.msra.mxu0 %v3377
  %4018 = vmatprep.subr.bf16.mxu0 %v3370
  %4019 = vmatpush1.bf16.msra.mxu0 %v3369
  %4020 = vmatprep.subr.bf16.mxu0 %v3362
  %4021 = vmatpush1.bf16.msra.mxu0 %v3361
  %4022 = vmatprep.subr.bf16.mxu0 %v3354
  %4023 = vmatpush1.bf16.msra.mxu0 %v3353
  %4024 = vmatprep.subr.bf16.mxu0 %v3346
  %4025 = vmatpush1.bf16.msra.mxu0 %v3345
  %4026 = vmatprep.subr.bf16.mxu0 %v3466
  %4027 = vmatpush2.bf16.msra.mxu0 %v3465
  %4028 = vmatprep.subr.bf16.mxu0 %v3458
  %4029 = vmatpush2.bf16.msra.mxu0 %v3457
  %4030 = vmatprep.subr.bf16.mxu0 %v3450
  %4031 = vmatpush2.bf16.msra.mxu0 %v3449
  %4032 = vmatprep.subr.bf16.mxu0 %v3442
  %4033 = vmatpush2.bf16.msra.mxu0 %v3441
  %4034 = vmatprep.subr.bf16.mxu0 %v3434
  %4035 = vmatpush2.bf16.msra.mxu0 %v3433
  %4036 = vmatprep.subr.bf16.mxu0 %v3426
  %4037 = vmatpush2.bf16.msra.mxu0 %v3425
  %4038 = vmatprep.subr.bf16.mxu0 %v3418
  %4039 = vmatpush2.bf16.msra.mxu0 %v3417
  %4040 = vmatprep.subr.bf16.mxu0 %v3410
  %4041 = vmatpush2.bf16.msra.mxu0 %v3409
  %4042 = vmatprep.mubr.bf16.mxu0 %v2186
  %4043 = vmatmul.mubr.bf16.gmra.mxu0 %v2186
  %v4044 = vpop.f32.mrf.mxu0
  %v4045 = vadd.f32 %v4004, %v4044
  %v4046 = vpop.f32.mrf.mxu0
  %v4047 = vadd.f32 %v4006, %v4046
  %v4048 = vpop.f32.mrf.mxu0
  %v4049 = vpop.f32.mrf.mxu0
  %4050 = vdwg.mxu0
  %v4051 = vmul.f32 %v3799, 0.5
  %v4052 = vmul.f32 %v3801, 0.5
  %v4053 = vtanh.pop %v4051
  %v4054 = vtanh.pop %v4052
  %v4055 = vadd.f32 %v4053, 1.0
  %v4056 = vadd.f32 %v4054, 1.0
  %v4057 = vmul.f32 %v4055, 0.5
  %v4058 = vmul.f32 %v4056, 0.5
  %v4059 = vmul.f32 %v3881, 0.5
  %v4060 = vmul.f32 %v3883, 0.5
  %v4061 = vtanh.pop %v4059
  %v4062 = vtanh.pop %v4060
  %v4063 = vadd.f32 %v4061, 1.0
  %v4064 = vadd.f32 %v4062, 1.0
  %v4065 = vmul.f32 %v4063, 0.5
  %v4066 = vmul.f32 %v4064, 0.5
  %v4067 = vtanh.pop %v3963
  %v4068 = vtanh.pop %v3965
  %v4069 = vmul.f32 %v4045, 0.5
  %v4070 = vmul.f32 %v4047, 0.5
  %v4071 = vtanh.pop %v4069
  %v4072 = vtanh.pop %v4070
  %v4073 = vadd.f32 %v4071, 1.0
  %v4074 = vadd.f32 %v4072, 1.0
  %v4075 = vmul.f32 %v4073, 0.5
  %v4076 = vmul.f32 %v4074, 0.5
  %v4077 = vmul.f32 %v4065, 0.0
  %v4078 = vmul.f32 %v4066, 0.0
  %v4079 = vmul.f32 %v4057, %v4067
  %v4080 = vmul.f32 %v4058, %v4068
  %v4081 = vadd.f32 %v4077, %v4079
  %v4082 = vadd.f32 %v4078, %v4080
  %v4083 = vtanh.pop %v4081
  %v4084 = vtanh.pop %v4082
  %v4085 = vmul.f32 %v4075, %v4083
  %v4086 = vmul.f32 %v4076, %v4084
  %v4087 = vld [vmem:[#allocation2 + $0x40] sm:$0xff]
  %v4088 = vld [vmem:[#allocation2 + $0x48] sm:$0xff]
  %v4089 = vld [vmem:[#allocation2 + $0x50] sm:$0xff]
  %v4090 = vld [vmem:[#allocation2 + $0x58] sm:$0xff]
  %v4091 = vld [vmem:[#allocation2 + $0x60] sm:$0xff]
  %v4092 = vld [vmem:[#allocation2 + $0x68] sm:$0xff]
  %v4093 = vld [vmem:[#allocation2 + $0x70] sm:$0xff]
  %v4094 = vld [vmem:[#allocation2 + $0x78] sm:$0xff]
  %s4095 = smul.u32 4, 32
  %s4096 = smul.u32 %s4095, 8
  %s4097 = sshll.u32 %s4096, 4
  %4098 = dma.done %s582, %s4097
  %v4099 = vld [vmem:[#allocation3] sm:$0xff]
  %v4100 = vld [vmem:[#allocation3 + $0x8] sm:$0xff]
  %v4101 = vld [vmem:[#allocation3 + $0x10] sm:$0xff]
  %v4102 = vld [vmem:[#allocation3 + $0x18] sm:$0xff]
  %v4103 = vld [vmem:[#allocation3 + $0x20] sm:$0xff]
  %v4104 = vld [vmem:[#allocation3 + $0x28] sm:$0xff]
  %v4105 = vld [vmem:[#allocation3 + $0x30] sm:$0xff]
  %v4106 = vld [vmem:[#allocation3 + $0x38] sm:$0xff]
  %v4107 = vld [vmem:[#allocation3 + $0x40] sm:$0xff]
  %v4108 = vld [vmem:[#allocation3 + $0x48] sm:$0xff]
  %v4109 = vld [vmem:[#allocation3 + $0x50] sm:$0xff]
  %v4110 = vld [vmem:[#allocation3 + $0x58] sm:$0xff]
  %v4111 = vld [vmem:[#allocation3 + $0x60] sm:$0xff]
  %v4112 = vld [vmem:[#allocation3 + $0x68] sm:$0xff]
  %v4113 = vld [vmem:[#allocation3 + $0x70] sm:$0xff]
  %v4114 = vld [vmem:[#allocation3 + $0x78] sm:$0xff]
  %v4115 = vld [vmem:[#allocation3 + $0x80] sm:$0xff]
  %v4116 = vld [vmem:[#allocation3 + $0x88] sm:$0xff]
  %v4117 = vld [vmem:[#allocation3 + $0x90] sm:$0xff]
  %v4118 = vld [vmem:[#allocation3 + $0x98] sm:$0xff]
  %v4119 = vld [vmem:[#allocation3 + $0xa0] sm:$0xff]
  %v4120 = vld [vmem:[#allocation3 + $0xa8] sm:$0xff]
  %v4121 = vld [vmem:[#allocation3 + $0xb0] sm:$0xff]
  %v4122 = vld [vmem:[#allocation3 + $0xb8] sm:$0xff]
  %v4123 = vld [vmem:[#allocation3 + $0xc0] sm:$0xff]
  %v4124 = vld [vmem:[#allocation3 + $0xc8] sm:$0xff]
  %v4125 = vld [vmem:[#allocation3 + $0xd0] sm:$0xff]
  %v4126 = vld [vmem:[#allocation3 + $0xd8] sm:$0xff]
  %v4127 = vld [vmem:[#allocation3 + $0xe0] sm:$0xff]
  %v4128 = vld [vmem:[#allocation3 + $0xe8] sm:$0xff]
  %v4129 = vld [vmem:[#allocation3 + $0xf0] sm:$0xff]
  %v4130 = vld [vmem:[#allocation3 + $0xf8] sm:$0xff]
  %v4131 = vld [vmem:[#allocation3 + $0x100] sm:$0xff]
  %v4132 = vld [vmem:[#allocation3 + $0x108] sm:$0xff]
  %v4133 = vld [vmem:[#allocation3 + $0x110] sm:$0xff]
  %v4134 = vld [vmem:[#allocation3 + $0x118] sm:$0xff]
  %v4135 = vld [vmem:[#allocation3 + $0x120] sm:$0xff]
  %v4136 = vld [vmem:[#allocation3 + $0x128] sm:$0xff]
  %v4137 = vld [vmem:[#allocation3 + $0x130] sm:$0xff]
  %v4138 = vld [vmem:[#allocation3 + $0x138] sm:$0xff]
  %v4139 = vld [vmem:[#allocation3 + $0x140] sm:$0xff]
  %v4140 = vld [vmem:[#allocation3 + $0x148] sm:$0xff]
  %v4141 = vld [vmem:[#allocation3 + $0x150] sm:$0xff]
  %v4142 = vld [vmem:[#allocation3 + $0x158] sm:$0xff]
  %v4143 = vld [vmem:[#allocation3 + $0x160] sm:$0xff]
  %v4144 = vld [vmem:[#allocation3 + $0x168] sm:$0xff]
  %v4145 = vld [vmem:[#allocation3 + $0x170] sm:$0xff]
  %v4146 = vld [vmem:[#allocation3 + $0x178] sm:$0xff]
  %v4147 = vld [vmem:[#allocation3 + $0x180] sm:$0xff]
  %v4148 = vld [vmem:[#allocation3 + $0x188] sm:$0xff]
  %v4149 = vld [vmem:[#allocation3 + $0x190] sm:$0xff]
  %v4150 = vld [vmem:[#allocation3 + $0x198] sm:$0xff]
  %v4151 = vld [vmem:[#allocation3 + $0x1a0] sm:$0xff]
  %v4152 = vld [vmem:[#allocation3 + $0x1a8] sm:$0xff]
  %v4153 = vld [vmem:[#allocation3 + $0x1b0] sm:$0xff]
  %v4154 = vld [vmem:[#allocation3 + $0x1b8] sm:$0xff]
  %v4155 = vld [vmem:[#allocation3 + $0x1c0] sm:$0xff]
  %v4156 = vld [vmem:[#allocation3 + $0x1c8] sm:$0xff]
  %v4157 = vld [vmem:[#allocation3 + $0x1d0] sm:$0xff]
  %v4158 = vld [vmem:[#allocation3 + $0x1d8] sm:$0xff]
  %v4159 = vld [vmem:[#allocation3 + $0x1e0] sm:$0xff]
  %v4160 = vld [vmem:[#allocation3 + $0x1e8] sm:$0xff]
  %v4161 = vld [vmem:[#allocation3 + $0x1f0] sm:$0xff]
  %v4162 = vld [vmem:[#allocation3 + $0x1f8] sm:$0xff]
  %v4163 = vld [vmem:[#allocation3 + $0x200] sm:$0xff]
  %v4164 = vld [vmem:[#allocation3 + $0x208] sm:$0xff]
  %v4165 = vld [vmem:[#allocation3 + $0x210] sm:$0xff]
  %v4166 = vld [vmem:[#allocation3 + $0x218] sm:$0xff]
  %v4167 = vld [vmem:[#allocation3 + $0x220] sm:$0xff]
  %v4168 = vld [vmem:[#allocation3 + $0x228] sm:$0xff]
  %v4169 = vld [vmem:[#allocation3 + $0x230] sm:$0xff]
  %v4170 = vld [vmem:[#allocation3 + $0x238] sm:$0xff]
  %v4171 = vld [vmem:[#allocation3 + $0x240] sm:$0xff]
  %v4172 = vld [vmem:[#allocation3 + $0x248] sm:$0xff]
  %v4173 = vld [vmem:[#allocation3 + $0x250] sm:$0xff]
  %v4174 = vld [vmem:[#allocation3 + $0x258] sm:$0xff]
  %v4175 = vld [vmem:[#allocation3 + $0x260] sm:$0xff]
  %v4176 = vld [vmem:[#allocation3 + $0x268] sm:$0xff]
  %v4177 = vld [vmem:[#allocation3 + $0x270] sm:$0xff]
  %v4178 = vld [vmem:[#allocation3 + $0x278] sm:$0xff]
  %v4179 = vld [vmem:[#allocation3 + $0x280] sm:$0xff]
  %v4180 = vld [vmem:[#allocation3 + $0x288] sm:$0xff]
  %v4181 = vld [vmem:[#allocation3 + $0x290] sm:$0xff]
  %v4182 = vld [vmem:[#allocation3 + $0x298] sm:$0xff]
  %v4183 = vld [vmem:[#allocation3 + $0x2a0] sm:$0xff]
  %v4184 = vld [vmem:[#allocation3 + $0x2a8] sm:$0xff]
  %v4185 = vld [vmem:[#allocation3 + $0x2b0] sm:$0xff]
  %v4186 = vld [vmem:[#allocation3 + $0x2b8] sm:$0xff]
  %v4187 = vld [vmem:[#allocation3 + $0x2c0] sm:$0xff]
  %v4188 = vld [vmem:[#allocation3 + $0x2c8] sm:$0xff]
  %v4189 = vld [vmem:[#allocation3 + $0x2d0] sm:$0xff]
  %v4190 = vld [vmem:[#allocation3 + $0x2d8] sm:$0xff]
  %v4191 = vld [vmem:[#allocation3 + $0x2e0] sm:$0xff]
  %v4192 = vld [vmem:[#allocation3 + $0x2e8] sm:$0xff]
  %v4193 = vld [vmem:[#allocation3 + $0x2f0] sm:$0xff]
  %v4194 = vld [vmem:[#allocation3 + $0x2f8] sm:$0xff]
  %v4195 = vld [vmem:[#allocation3 + $0x300] sm:$0xff]
  %v4196 = vld [vmem:[#allocation3 + $0x308] sm:$0xff]
  %v4197 = vld [vmem:[#allocation3 + $0x310] sm:$0xff]
  %v4198 = vld [vmem:[#allocation3 + $0x318] sm:$0xff]
  %v4199 = vld [vmem:[#allocation3 + $0x320] sm:$0xff]
  %v4200 = vld [vmem:[#allocation3 + $0x328] sm:$0xff]
  %v4201 = vld [vmem:[#allocation3 + $0x330] sm:$0xff]
  %v4202 = vld [vmem:[#allocation3 + $0x338] sm:$0xff]
  %v4203 = vld [vmem:[#allocation3 + $0x340] sm:$0xff]
  %v4204 = vld [vmem:[#allocation3 + $0x348] sm:$0xff]
  %v4205 = vld [vmem:[#allocation3 + $0x350] sm:$0xff]
  %v4206 = vld [vmem:[#allocation3 + $0x358] sm:$0xff]
  %v4207 = vld [vmem:[#allocation3 + $0x360] sm:$0xff]
  %v4208 = vld [vmem:[#allocation3 + $0x368] sm:$0xff]
  %v4209 = vld [vmem:[#allocation3 + $0x370] sm:$0xff]
  %v4210 = vld [vmem:[#allocation3 + $0x378] sm:$0xff]
  %v4211 = vld [vmem:[#allocation3 + $0x380] sm:$0xff]
  %v4212 = vld [vmem:[#allocation3 + $0x388] sm:$0xff]
  %v4213 = vld [vmem:[#allocation3 + $0x390] sm:$0xff]
  %v4214 = vld [vmem:[#allocation3 + $0x398] sm:$0xff]
  %v4215 = vld [vmem:[#allocation3 + $0x3a0] sm:$0xff]
  %v4216 = vld [vmem:[#allocation3 + $0x3a8] sm:$0xff]
  %v4217 = vld [vmem:[#allocation3 + $0x3b0] sm:$0xff]
  %v4218 = vld [vmem:[#allocation3 + $0x3b8] sm:$0xff]
  %v4219 = vld [vmem:[#allocation3 + $0x3c0] sm:$0xff]
  %v4220 = vld [vmem:[#allocation3 + $0x3c8] sm:$0xff]
  %v4221 = vld [vmem:[#allocation3 + $0x3d0] sm:$0xff]
  %v4222 = vld [vmem:[#allocation3 + $0x3d8] sm:$0xff]
  %v4223 = vld [vmem:[#allocation3 + $0x3e0] sm:$0xff]
  %v4224 = vld [vmem:[#allocation3 + $0x3e8] sm:$0xff]
  %v4225 = vld [vmem:[#allocation3 + $0x3f0] sm:$0xff]
  %v4226 = vld [vmem:[#allocation3 + $0x3f8] sm:$0xff]
  %v4355 = vunpack.c.l.b16 %v4099
  %v4356 = vunpack.c.h.b16 %v4099
  %v4357 = vunpack.c.l.b16 %v4100
  %v4358 = vunpack.c.h.b16 %v4100
  %v4359 = vunpack.c.l.b16 %v4101
  %v4360 = vunpack.c.h.b16 %v4101
  %v4361 = vunpack.c.l.b16 %v4102
  %v4362 = vunpack.c.h.b16 %v4102
  %v4363 = vunpack.c.l.b16 %v4103
  %v4364 = vunpack.c.h.b16 %v4103
  %v4365 = vunpack.c.l.b16 %v4104
  %v4366 = vunpack.c.h.b16 %v4104
  %v4367 = vunpack.c.l.b16 %v4105
  %v4368 = vunpack.c.h.b16 %v4105
  %v4369 = vunpack.c.l.b16 %v4106
  %v4370 = vunpack.c.h.b16 %v4106
  %v4371 = vunpack.c.l.b16 %v4107
  %v4372 = vunpack.c.h.b16 %v4107
  %v4373 = vunpack.c.l.b16 %v4108
  %v4374 = vunpack.c.h.b16 %v4108
  %v4375 = vunpack.c.l.b16 %v4109
  %v4376 = vunpack.c.h.b16 %v4109
  %v4377 = vunpack.c.l.b16 %v4110
  %v4378 = vunpack.c.h.b16 %v4110
  %v4379 = vunpack.c.l.b16 %v4111
  %v4380 = vunpack.c.h.b16 %v4111
  %v4381 = vunpack.c.l.b16 %v4112
  %v4382 = vunpack.c.h.b16 %v4112
  %v4383 = vunpack.c.l.b16 %v4113
  %v4384 = vunpack.c.h.b16 %v4113
  %v4385 = vunpack.c.l.b16 %v4114
  %v4386 = vunpack.c.h.b16 %v4114
  %v4387 = vunpack.c.l.b16 %v4115
  %v4388 = vunpack.c.h.b16 %v4115
  %v4389 = vunpack.c.l.b16 %v4116
  %v4390 = vunpack.c.h.b16 %v4116
  %v4391 = vunpack.c.l.b16 %v4117
  %v4392 = vunpack.c.h.b16 %v4117
  %v4393 = vunpack.c.l.b16 %v4118
  %v4394 = vunpack.c.h.b16 %v4118
  %v4395 = vunpack.c.l.b16 %v4119
  %v4396 = vunpack.c.h.b16 %v4119
  %v4397 = vunpack.c.l.b16 %v4120
  %v4398 = vunpack.c.h.b16 %v4120
  %v4399 = vunpack.c.l.b16 %v4121
  %v4400 = vunpack.c.h.b16 %v4121
  %v4401 = vunpack.c.l.b16 %v4122
  %v4402 = vunpack.c.h.b16 %v4122
  %v4403 = vunpack.c.l.b16 %v4123
  %v4404 = vunpack.c.h.b16 %v4123
  %v4405 = vunpack.c.l.b16 %v4124
  %v4406 = vunpack.c.h.b16 %v4124
  %v4407 = vunpack.c.l.b16 %v4125
  %v4408 = vunpack.c.h.b16 %v4125
  %v4409 = vunpack.c.l.b16 %v4126
  %v4410 = vunpack.c.h.b16 %v4126
  %v4411 = vunpack.c.l.b16 %v4127
  %v4412 = vunpack.c.h.b16 %v4127
  %v4413 = vunpack.c.l.b16 %v4128
  %v4414 = vunpack.c.h.b16 %v4128
  %v4415 = vunpack.c.l.b16 %v4129
  %v4416 = vunpack.c.h.b16 %v4129
  %v4417 = vunpack.c.l.b16 %v4130
  %v4418 = vunpack.c.h.b16 %v4130
  %v4419 = vunpack.c.l.b16 %v4131
  %v4420 = vunpack.c.h.b16 %v4131
  %v4421 = vunpack.c.l.b16 %v4132
  %v4422 = vunpack.c.h.b16 %v4132
  %v4423 = vunpack.c.l.b16 %v4133
  %v4424 = vunpack.c.h.b16 %v4133
  %v4425 = vunpack.c.l.b16 %v4134
  %v4426 = vunpack.c.h.b16 %v4134
  %v4427 = vunpack.c.l.b16 %v4135
  %v4428 = vunpack.c.h.b16 %v4135
  %v4429 = vunpack.c.l.b16 %v4136
  %v4430 = vunpack.c.h.b16 %v4136
  %v4431 = vunpack.c.l.b16 %v4137
  %v4432 = vunpack.c.h.b16 %v4137
  %v4433 = vunpack.c.l.b16 %v4138
  %v4434 = vunpack.c.h.b16 %v4138
  %v4435 = vunpack.c.l.b16 %v4139
  %v4436 = vunpack.c.h.b16 %v4139
  %v4437 = vunpack.c.l.b16 %v4140
  %v4438 = vunpack.c.h.b16 %v4140
  %v4439 = vunpack.c.l.b16 %v4141
  %v4440 = vunpack.c.h.b16 %v4141
  %v4441 = vunpack.c.l.b16 %v4142
  %v4442 = vunpack.c.h.b16 %v4142
  %v4443 = vunpack.c.l.b16 %v4143
  %v4444 = vunpack.c.h.b16 %v4143
  %v4445 = vunpack.c.l.b16 %v4144
  %v4446 = vunpack.c.h.b16 %v4144
  %v4447 = vunpack.c.l.b16 %v4145
  %v4448 = vunpack.c.h.b16 %v4145
  %v4449 = vunpack.c.l.b16 %v4146
  %v4450 = vunpack.c.h.b16 %v4146
  %v4451 = vunpack.c.l.b16 %v4147
  %v4452 = vunpack.c.h.b16 %v4147
  %v4453 = vunpack.c.l.b16 %v4148
  %v4454 = vunpack.c.h.b16 %v4148
  %v4455 = vunpack.c.l.b16 %v4149
  %v4456 = vunpack.c.h.b16 %v4149
  %v4457 = vunpack.c.l.b16 %v4150
  %v4458 = vunpack.c.h.b16 %v4150
  %v4459 = vunpack.c.l.b16 %v4151
  %v4460 = vunpack.c.h.b16 %v4151
  %v4461 = vunpack.c.l.b16 %v4152
  %v4462 = vunpack.c.h.b16 %v4152
  %v4463 = vunpack.c.l.b16 %v4153
  %v4464 = vunpack.c.h.b16 %v4153
  %v4465 = vunpack.c.l.b16 %v4154
  %v4466 = vunpack.c.h.b16 %v4154
  %v4467 = vunpack.c.l.b16 %v4155
  %v4468 = vunpack.c.h.b16 %v4155
  %v4469 = vunpack.c.l.b16 %v4156
  %v4470 = vunpack.c.h.b16 %v4156
  %v4471 = vunpack.c.l.b16 %v4157
  %v4472 = vunpack.c.h.b16 %v4157
  %v4473 = vunpack.c.l.b16 %v4158
  %v4474 = vunpack.c.h.b16 %v4158
  %v4475 = vunpack.c.l.b16 %v4159
  %v4476 = vunpack.c.h.b16 %v4159
  %v4477 = vunpack.c.l.b16 %v4160
  %v4478 = vunpack.c.h.b16 %v4160
  %v4479 = vunpack.c.l.b16 %v4161
  %v4480 = vunpack.c.h.b16 %v4161
  %v4481 = vunpack.c.l.b16 %v4162
  %v4482 = vunpack.c.h.b16 %v4162
  %v4483 = vunpack.c.l.b16 %v4163
  %v4484 = vunpack.c.h.b16 %v4163
  %v4485 = vunpack.c.l.b16 %v4164
  %v4486 = vunpack.c.h.b16 %v4164
  %v4487 = vunpack.c.l.b16 %v4165
  %v4488 = vunpack.c.h.b16 %v4165
  %v4489 = vunpack.c.l.b16 %v4166
  %v4490 = vunpack.c.h.b16 %v4166
  %v4491 = vunpack.c.l.b16 %v4167
  %v4492 = vunpack.c.h.b16 %v4167
  %v4493 = vunpack.c.l.b16 %v4168
  %v4494 = vunpack.c.h.b16 %v4168
  %v4495 = vunpack.c.l.b16 %v4169
  %v4496 = vunpack.c.h.b16 %v4169
  %v4497 = vunpack.c.l.b16 %v4170
  %v4498 = vunpack.c.h.b16 %v4170
  %v4499 = vunpack.c.l.b16 %v4171
  %v4500 = vunpack.c.h.b16 %v4171
  %v4501 = vunpack.c.l.b16 %v4172
  %v4502 = vunpack.c.h.b16 %v4172
  %v4503 = vunpack.c.l.b16 %v4173
  %v4504 = vunpack.c.h.b16 %v4173
  %v4505 = vunpack.c.l.b16 %v4174
  %v4506 = vunpack.c.h.b16 %v4174
  %v4507 = vunpack.c.l.b16 %v4175
  %v4508 = vunpack.c.h.b16 %v4175
  %v4509 = vunpack.c.l.b16 %v4176
  %v4510 = vunpack.c.h.b16 %v4176
  %v4511 = vunpack.c.l.b16 %v4177
  %v4512 = vunpack.c.h.b16 %v4177
  %v4513 = vunpack.c.l.b16 %v4178
  %v4514 = vunpack.c.h.b16 %v4178
  %v4515 = vunpack.c.l.b16 %v4179
  %v4516 = vunpack.c.h.b16 %v4179
  %v4517 = vunpack.c.l.b16 %v4180
  %v4518 = vunpack.c.h.b16 %v4180
  %v4519 = vunpack.c.l.b16 %v4181
  %v4520 = vunpack.c.h.b16 %v4181
  %v4521 = vunpack.c.l.b16 %v4182
  %v4522 = vunpack.c.h.b16 %v4182
  %v4523 = vunpack.c.l.b16 %v4183
  %v4524 = vunpack.c.h.b16 %v4183
  %v4525 = vunpack.c.l.b16 %v4184
  %v4526 = vunpack.c.h.b16 %v4184
  %v4527 = vunpack.c.l.b16 %v4185
  %v4528 = vunpack.c.h.b16 %v4185
  %v4529 = vunpack.c.l.b16 %v4186
  %v4530 = vunpack.c.h.b16 %v4186
  %v4531 = vunpack.c.l.b16 %v4187
  %v4532 = vunpack.c.h.b16 %v4187
  %v4533 = vunpack.c.l.b16 %v4188
  %v4534 = vunpack.c.h.b16 %v4188
  %v4535 = vunpack.c.l.b16 %v4189
  %v4536 = vunpack.c.h.b16 %v4189
  %v4537 = vunpack.c.l.b16 %v4190
  %v4538 = vunpack.c.h.b16 %v4190
  %v4539 = vunpack.c.l.b16 %v4191
  %v4540 = vunpack.c.h.b16 %v4191
  %v4541 = vunpack.c.l.b16 %v4192
  %v4542 = vunpack.c.h.b16 %v4192
  %v4543 = vunpack.c.l.b16 %v4193
  %v4544 = vunpack.c.h.b16 %v4193
  %v4545 = vunpack.c.l.b16 %v4194
  %v4546 = vunpack.c.h.b16 %v4194
  %v4547 = vunpack.c.l.b16 %v4195
  %v4548 = vunpack.c.h.b16 %v4195
  %v4549 = vunpack.c.l.b16 %v4196
  %v4550 = vunpack.c.h.b16 %v4196
  %v4551 = vunpack.c.l.b16 %v4197
  %v4552 = vunpack.c.h.b16 %v4197
  %v4553 = vunpack.c.l.b16 %v4198
  %v4554 = vunpack.c.h.b16 %v4198
  %v4555 = vunpack.c.l.b16 %v4199
  %v4556 = vunpack.c.h.b16 %v4199
  %v4557 = vunpack.c.l.b16 %v4200
  %v4558 = vunpack.c.h.b16 %v4200
  %v4559 = vunpack.c.l.b16 %v4201
  %v4560 = vunpack.c.h.b16 %v4201
  %v4561 = vunpack.c.l.b16 %v4202
  %v4562 = vunpack.c.h.b16 %v4202
  %v4563 = vunpack.c.l.b16 %v4203
  %v4564 = vunpack.c.h.b16 %v4203
  %v4565 = vunpack.c.l.b16 %v4204
  %v4566 = vunpack.c.h.b16 %v4204
  %v4567 = vunpack.c.l.b16 %v4205
  %v4568 = vunpack.c.h.b16 %v4205
  %v4569 = vunpack.c.l.b16 %v4206
  %v4570 = vunpack.c.h.b16 %v4206
  %v4571 = vunpack.c.l.b16 %v4207
  %v4572 = vunpack.c.h.b16 %v4207
  %v4573 = vunpack.c.l.b16 %v4208
  %v4574 = vunpack.c.h.b16 %v4208
  %v4575 = vunpack.c.l.b16 %v4209
  %v4576 = vunpack.c.h.b16 %v4209
  %v4577 = vunpack.c.l.b16 %v4210
  %v4578 = vunpack.c.h.b16 %v4210
  %v4579 = vunpack.c.l.b16 %v4211
  %v4580 = vunpack.c.h.b16 %v4211
  %v4581 = vunpack.c.l.b16 %v4212
  %v4582 = vunpack.c.h.b16 %v4212
  %v4583 = vunpack.c.l.b16 %v4213
  %v4584 = vunpack.c.h.b16 %v4213
  %v4585 = vunpack.c.l.b16 %v4214
  %v4586 = vunpack.c.h.b16 %v4214
  %v4587 = vunpack.c.l.b16 %v4215
  %v4588 = vunpack.c.h.b16 %v4215
  %v4589 = vunpack.c.l.b16 %v4216
  %v4590 = vunpack.c.h.b16 %v4216
  %v4591 = vunpack.c.l.b16 %v4217
  %v4592 = vunpack.c.h.b16 %v4217
  %v4593 = vunpack.c.l.b16 %v4218
  %v4594 = vunpack.c.h.b16 %v4218
  %v4595 = vunpack.c.l.b16 %v4219
  %v4596 = vunpack.c.h.b16 %v4219
  %v4597 = vunpack.c.l.b16 %v4220
  %v4598 = vunpack.c.h.b16 %v4220
  %v4599 = vunpack.c.l.b16 %v4221
  %v4600 = vunpack.c.h.b16 %v4221
  %v4601 = vunpack.c.l.b16 %v4222
  %v4602 = vunpack.c.h.b16 %v4222
  %v4603 = vunpack.c.l.b16 %v4223
  %v4604 = vunpack.c.h.b16 %v4223
  %v4605 = vunpack.c.l.b16 %v4224
  %v4606 = vunpack.c.h.b16 %v4224
  %v4607 = vunpack.c.l.b16 %v4225
  %v4608 = vunpack.c.h.b16 %v4225
  %v4609 = vunpack.c.l.b16 %v4226
  %v4610 = vunpack.c.h.b16 %v4226
  %v4611 = vpack.c.b16 %v4363, %v4355
  %v4612 = vpack.c.b16 %v4364, %v4356
  %v4613 = vpack.c.b16 %v4365, %v4357
  %v4614 = vpack.c.b16 %v4366, %v4358
  %v4615 = vpack.c.b16 %v4367, %v4359
  %v4616 = vpack.c.b16 %v4368, %v4360
  %v4617 = vpack.c.b16 %v4369, %v4361
  %v4618 = vpack.c.b16 %v4370, %v4362
  %v4619 = vpack.c.b16 %v4379, %v4371
  %v4620 = vpack.c.b16 %v4380, %v4372
  %v4621 = vpack.c.b16 %v4381, %v4373
  %v4622 = vpack.c.b16 %v4382, %v4374
  %v4623 = vpack.c.b16 %v4383, %v4375
  %v4624 = vpack.c.b16 %v4384, %v4376
  %v4625 = vpack.c.b16 %v4385, %v4377
  %v4626 = vpack.c.b16 %v4386, %v4378
  %v4627 = vpack.c.b16 %v4395, %v4387
  %v4628 = vpack.c.b16 %v4396, %v4388
  %v4629 = vpack.c.b16 %v4397, %v4389
  %v4630 = vpack.c.b16 %v4398, %v4390
  %v4631 = vpack.c.b16 %v4399, %v4391
  %v4632 = vpack.c.b16 %v4400, %v4392
  %v4633 = vpack.c.b16 %v4401, %v4393
  %v4634 = vpack.c.b16 %v4402, %v4394
  %v4635 = vpack.c.b16 %v4411, %v4403
  %v4636 = vpack.c.b16 %v4412, %v4404
  %v4637 = vpack.c.b16 %v4413, %v4405
  %v4638 = vpack.c.b16 %v4414, %v4406
  %v4639 = vpack.c.b16 %v4415, %v4407
  %v4640 = vpack.c.b16 %v4416, %v4408
  %v4641 = vpack.c.b16 %v4417, %v4409
  %v4642 = vpack.c.b16 %v4418, %v4410
  %v4643 = vpack.c.b16 %v4427, %v4419
  %v4644 = vpack.c.b16 %v4428, %v4420
  %v4645 = vpack.c.b16 %v4429, %v4421
  %v4646 = vpack.c.b16 %v4430, %v4422
  %v4647 = vpack.c.b16 %v4431, %v4423
  %v4648 = vpack.c.b16 %v4432, %v4424
  %v4649 = vpack.c.b16 %v4433, %v4425
  %v4650 = vpack.c.b16 %v4434, %v4426
  %v4651 = vpack.c.b16 %v4443, %v4435
  %v4652 = vpack.c.b16 %v4444, %v4436
  %v4653 = vpack.c.b16 %v4445, %v4437
  %v4654 = vpack.c.b16 %v4446, %v4438
  %v4655 = vpack.c.b16 %v4447, %v4439
  %v4656 = vpack.c.b16 %v4448, %v4440
  %v4657 = vpack.c.b16 %v4449, %v4441
  %v4658 = vpack.c.b16 %v4450, %v4442
  %v4659 = vpack.c.b16 %v4459, %v4451
  %v4660 = vpack.c.b16 %v4460, %v4452
  %v4661 = vpack.c.b16 %v4461, %v4453
  %v4662 = vpack.c.b16 %v4462, %v4454
  %v4663 = vpack.c.b16 %v4463, %v4455
  %v4664 = vpack.c.b16 %v4464, %v4456
  %v4665 = vpack.c.b16 %v4465, %v4457
  %v4666 = vpack.c.b16 %v4466, %v4458
  %v4667 = vpack.c.b16 %v4475, %v4467
  %v4668 = vpack.c.b16 %v4476, %v4468
  %v4669 = vpack.c.b16 %v4477, %v4469
  %v4670 = vpack.c.b16 %v4478, %v4470
  %v4671 = vpack.c.b16 %v4479, %v4471
  %v4672 = vpack.c.b16 %v4480, %v4472
  %v4673 = vpack.c.b16 %v4481, %v4473
  %v4674 = vpack.c.b16 %v4482, %v4474
  %v4675 = vpack.c.b16 %v4491, %v4483
  %v4676 = vpack.c.b16 %v4492, %v4484
  %v4677 = vpack.c.b16 %v4493, %v4485
  %v4678 = vpack.c.b16 %v4494, %v4486
  %v4679 = vpack.c.b16 %v4495, %v4487
  %v4680 = vpack.c.b16 %v4496, %v4488
  %v4681 = vpack.c.b16 %v4497, %v4489
  %v4682 = vpack.c.b16 %v4498, %v4490
  %v4683 = vpack.c.b16 %v4507, %v4499
  %v4684 = vpack.c.b16 %v4508, %v4500
  %v4685 = vpack.c.b16 %v4509, %v4501
  %v4686 = vpack.c.b16 %v4510, %v4502
  %v4687 = vpack.c.b16 %v4511, %v4503
  %v4688 = vpack.c.b16 %v4512, %v4504
  %v4689 = vpack.c.b16 %v4513, %v4505
  %v4690 = vpack.c.b16 %v4514, %v4506
  %v4691 = vpack.c.b16 %v4523, %v4515
  %v4692 = vpack.c.b16 %v4524, %v4516
  %v4693 = vpack.c.b16 %v4525, %v4517
  %v4694 = vpack.c.b16 %v4526, %v4518
  %v4695 = vpack.c.b16 %v4527, %v4519
  %v4696 = vpack.c.b16 %v4528, %v4520
  %v4697 = vpack.c.b16 %v4529, %v4521
  %v4698 = vpack.c.b16 %v4530, %v4522
  %v4699 = vpack.c.b16 %v4539, %v4531
  %v4700 = vpack.c.b16 %v4540, %v4532
  %v4701 = vpack.c.b16 %v4541, %v4533
  %v4702 = vpack.c.b16 %v4542, %v4534
  %v4703 = vpack.c.b16 %v4543, %v4535
  %v4704 = vpack.c.b16 %v4544, %v4536
  %v4705 = vpack.c.b16 %v4545, %v4537
  %v4706 = vpack.c.b16 %v4546, %v4538
  %v4707 = vpack.c.b16 %v4555, %v4547
  %v4708 = vpack.c.b16 %v4556, %v4548
  %v4709 = vpack.c.b16 %v4557, %v4549
  %v4710 = vpack.c.b16 %v4558, %v4550
  %v4711 = vpack.c.b16 %v4559, %v4551
  %v4712 = vpack.c.b16 %v4560, %v4552
  %v4713 = vpack.c.b16 %v4561, %v4553
  %v4714 = vpack.c.b16 %v4562, %v4554
  %v4715 = vpack.c.b16 %v4571, %v4563
  %v4716 = vpack.c.b16 %v4572, %v4564
  %v4717 = vpack.c.b16 %v4573, %v4565
  %v4718 = vpack.c.b16 %v4574, %v4566
  %v4719 = vpack.c.b16 %v4575, %v4567
  %v4720 = vpack.c.b16 %v4576, %v4568
  %v4721 = vpack.c.b16 %v4577, %v4569
  %v4722 = vpack.c.b16 %v4578, %v4570
  %v4723 = vpack.c.b16 %v4587, %v4579
  %v4724 = vpack.c.b16 %v4588, %v4580
  %v4725 = vpack.c.b16 %v4589, %v4581
  %v4726 = vpack.c.b16 %v4590, %v4582
  %v4727 = vpack.c.b16 %v4591, %v4583
  %v4728 = vpack.c.b16 %v4592, %v4584
  %v4729 = vpack.c.b16 %v4593, %v4585
  %v4730 = vpack.c.b16 %v4594, %v4586
  %v4731 = vpack.c.b16 %v4603, %v4595
  %v4732 = vpack.c.b16 %v4604, %v4596
  %v4733 = vpack.c.b16 %v4605, %v4597
  %v4734 = vpack.c.b16 %v4606, %v4598
  %v4735 = vpack.c.b16 %v4607, %v4599
  %v4736 = vpack.c.b16 %v4608, %v4600
  %v4737 = vpack.c.b16 %v4609, %v4601
  %v4738 = vpack.c.b16 %v4610, %v4602
  %4867 = vmatprep.subr.bf16.mxu0 %v4668
  %4868 = vmatpush1.bf16.msra.mxu0 %v4667
  %4869 = vmatprep.subr.bf16.mxu0 %v4660
  %4870 = vmatpush1.bf16.msra.mxu0 %v4659
  %4871 = vmatprep.subr.bf16.mxu0 %v4652
  %4872 = vmatpush1.bf16.msra.mxu0 %v4651
  %4873 = vmatprep.subr.bf16.mxu0 %v4644
  %4874 = vmatpush1.bf16.msra.mxu0 %v4643
  %4875 = vmatprep.subr.bf16.mxu0 %v4636
  %4876 = vmatpush1.bf16.msra.mxu0 %v4635
  %4877 = vmatprep.subr.bf16.mxu0 %v4628
  %4878 = vmatpush1.bf16.msra.mxu0 %v4627
  %4879 = vmatprep.subr.bf16.mxu0 %v4620
  %4880 = vmatpush1.bf16.msra.mxu0 %v4619
  %4881 = vmatprep.subr.bf16.mxu0 %v4612
  %4882 = vmatpush1.bf16.msra.mxu0 %v4611
  %4883 = vmatprep.subr.bf16.mxu0 %v4732
  %4884 = vmatpush2.bf16.msra.mxu0 %v4731
  %4885 = vmatprep.subr.bf16.mxu0 %v4724
  %4886 = vmatpush2.bf16.msra.mxu0 %v4723
  %4887 = vmatprep.subr.bf16.mxu0 %v4716
  %4888 = vmatpush2.bf16.msra.mxu0 %v4715
  %4889 = vmatprep.subr.bf16.mxu0 %v4708
  %4890 = vmatpush2.bf16.msra.mxu0 %v4707
  %4891 = vmatprep.subr.bf16.mxu0 %v4700
  %4892 = vmatpush2.bf16.msra.mxu0 %v4699
  %4893 = vmatprep.subr.bf16.mxu0 %v4692
  %4894 = vmatpush2.bf16.msra.mxu0 %v4691
  %4895 = vmatprep.subr.bf16.mxu0 %v4684
  %4896 = vmatpush2.bf16.msra.mxu0 %v4683
  %4897 = vmatprep.subr.bf16.mxu0 %v4676
  %4898 = vmatpush2.bf16.msra.mxu0 %v4675
  %4899 = vmatprep.mubr.bf16.mxu0 %v2185
  %4900 = vmatmul.mubr.bf16.gmra.mxu0 %v2184
  %v4901 = vpop.f32.mrf.mxu0
  %v4902 = vadd.f32 0.0, %v4901
  %v4903 = vpop.f32.mrf.mxu0
  %v4904 = vadd.f32 0.0, %v4903
  %v4905 = vpop.f32.mrf.mxu0
  %v4906 = vpop.f32.mrf.mxu0
  %4907 = vdwg.mxu0
  %4908 = vmatprep.subr.bf16.mxu0 %v4670
  %4909 = vmatpush1.bf16.msra.mxu0 %v4669
  %4910 = vmatprep.subr.bf16.mxu0 %v4662
  %4911 = vmatpush1.bf16.msra.mxu0 %v4661
  %4912 = vmatprep.subr.bf16.mxu0 %v4654
  %4913 = vmatpush1.bf16.msra.mxu0 %v4653
  %4914 = vmatprep.subr.bf16.mxu0 %v4646
  %4915 = vmatpush1.bf16.msra.mxu0 %v4645
  %4916 = vmatprep.subr.bf16.mxu0 %v4638
  %4917 = vmatpush1.bf16.msra.mxu0 %v4637
  %4918 = vmatprep.subr.bf16.mxu0 %v4630
  %4919 = vmatpush1.bf16.msra.mxu0 %v4629
  %4920 = vmatprep.subr.bf16.mxu0 %v4622
  %4921 = vmatpush1.bf16.msra.mxu0 %v4621
  %4922 = vmatprep.subr.bf16.mxu0 %v4614
  %4923 = vmatpush1.bf16.msra.mxu0 %v4613
  %4924 = vmatprep.subr.bf16.mxu0 %v4734
  %4925 = vmatpush2.bf16.msra.mxu0 %v4733
  %4926 = vmatprep.subr.bf16.mxu0 %v4726
  %4927 = vmatpush2.bf16.msra.mxu0 %v4725
  %4928 = vmatprep.subr.bf16.mxu0 %v4718
  %4929 = vmatpush2.bf16.msra.mxu0 %v4717
  %4930 = vmatprep.subr.bf16.mxu0 %v4710
  %4931 = vmatpush2.bf16.msra.mxu0 %v4709
  %4932 = vmatprep.subr.bf16.mxu0 %v4702
  %4933 = vmatpush2.bf16.msra.mxu0 %v4701
  %4934 = vmatprep.subr.bf16.mxu0 %v4694
  %4935 = vmatpush2.bf16.msra.mxu0 %v4693
  %4936 = vmatprep.subr.bf16.mxu0 %v4686
  %4937 = vmatpush2.bf16.msra.mxu0 %v4685
  %4938 = vmatprep.subr.bf16.mxu0 %v4678
  %4939 = vmatpush2.bf16.msra.mxu0 %v4677
  %4940 = vmatprep.mubr.bf16.mxu0 %v2185
  %4941 = vmatmul.mubr.bf16.gmra.mxu0 %v2184
  %v4942 = vpop.f32.mrf.mxu0
  %v4943 = vadd.f32 0.0, %v4942
  %v4944 = vpop.f32.mrf.mxu0
  %v4945 = vadd.f32 0.0, %v4944
  %v4946 = vpop.f32.mrf.mxu0
  %v4947 = vpop.f32.mrf.mxu0
  %4948 = vdwg.mxu0
  %4949 = vmatprep.subr.bf16.mxu0 %v4672
  %4950 = vmatpush1.bf16.msra.mxu0 %v4671
  %4951 = vmatprep.subr.bf16.mxu0 %v4664
  %4952 = vmatpush1.bf16.msra.mxu0 %v4663
  %4953 = vmatprep.subr.bf16.mxu0 %v4656
  %4954 = vmatpush1.bf16.msra.mxu0 %v4655
  %4955 = vmatprep.subr.bf16.mxu0 %v4648
  %4956 = vmatpush1.bf16.msra.mxu0 %v4647
  %4957 = vmatprep.subr.bf16.mxu0 %v4640
  %4958 = vmatpush1.bf16.msra.mxu0 %v4639
  %4959 = vmatprep.subr.bf16.mxu0 %v4632
  %4960 = vmatpush1.bf16.msra.mxu0 %v4631
  %4961 = vmatprep.subr.bf16.mxu0 %v4624
  %4962 = vmatpush1.bf16.msra.mxu0 %v4623
  %4963 = vmatprep.subr.bf16.mxu0 %v4616
  %4964 = vmatpush1.bf16.msra.mxu0 %v4615
  %4965 = vmatprep.subr.bf16.mxu0 %v4736
  %4966 = vmatpush2.bf16.msra.mxu0 %v4735
  %4967 = vmatprep.subr.bf16.mxu0 %v4728
  %4968 = vmatpush2.bf16.msra.mxu0 %v4727
  %4969 = vmatprep.subr.bf16.mxu0 %v4720
  %4970 = vmatpush2.bf16.msra.mxu0 %v4719
  %4971 = vmatprep.subr.bf16.mxu0 %v4712
  %4972 = vmatpush2.bf16.msra.mxu0 %v4711
  %4973 = vmatprep.subr.bf16.mxu0 %v4704
  %4974 = vmatpush2.bf16.msra.mxu0 %v4703
  %4975 = vmatprep.subr.bf16.mxu0 %v4696
  %4976 = vmatpush2.bf16.msra.mxu0 %v4695
  %4977 = vmatprep.subr.bf16.mxu0 %v4688
  %4978 = vmatpush2.bf16.msra.mxu0 %v4687
  %4979 = vmatprep.subr.bf16.mxu0 %v4680
  %4980 = vmatpush2.bf16.msra.mxu0 %v4679
  %4981 = vmatprep.mubr.bf16.mxu0 %v2185
  %4982 = vmatmul.mubr.bf16.gmra.mxu0 %v2184
  %v4983 = vpop.f32.mrf.mxu0
  %v4984 = vadd.f32 0.0, %v4983
  %v4985 = vpop.f32.mrf.mxu0
  %v4986 = vadd.f32 0.0, %v4985
  %v4987 = vpop.f32.mrf.mxu0
  %v4988 = vpop.f32.mrf.mxu0
  %4989 = vdwg.mxu0
  %4990 = vmatprep.subr.bf16.mxu0 %v4674
  %4991 = vmatpush1.bf16.msra.mxu0 %v4673
  %4992 = vmatprep.subr.bf16.mxu0 %v4666
  %4993 = vmatpush1.bf16.msra.mxu0 %v4665
  %4994 = vmatprep.subr.bf16.mxu0 %v4658
  %4995 = vmatpush1.bf16.msra.mxu0 %v4657
  %4996 = vmatprep.subr.bf16.mxu0 %v4650
  %4997 = vmatpush1.bf16.msra.mxu0 %v4649
  %4998 = vmatprep.subr.bf16.mxu0 %v4642
  %4999 = vmatpush1.bf16.msra.mxu0 %v4641
  %5000 = vmatprep.subr.bf16.mxu0 %v4634
  %5001 = vmatpush1.bf16.msra.mxu0 %v4633
  %5002 = vmatprep.subr.bf16.mxu0 %v4626
  %5003 = vmatpush1.bf16.msra.mxu0 %v4625
  %5004 = vmatprep.subr.bf16.mxu0 %v4618
  %5005 = vmatpush1.bf16.msra.mxu0 %v4617
  %5006 = vmatprep.subr.bf16.mxu0 %v4738
  %5007 = vmatpush2.bf16.msra.mxu0 %v4737
  %5008 = vmatprep.subr.bf16.mxu0 %v4730
  %5009 = vmatpush2.bf16.msra.mxu0 %v4729
  %5010 = vmatprep.subr.bf16.mxu0 %v4722
  %5011 = vmatpush2.bf16.msra.mxu0 %v4721
  %5012 = vmatprep.subr.bf16.mxu0 %v4714
  %5013 = vmatpush2.bf16.msra.mxu0 %v4713
  %5014 = vmatprep.subr.bf16.mxu0 %v4706
  %5015 = vmatpush2.bf16.msra.mxu0 %v4705
  %5016 = vmatprep.subr.bf16.mxu0 %v4698
  %5017 = vmatpush2.bf16.msra.mxu0 %v4697
  %5018 = vmatprep.subr.bf16.mxu0 %v4690
  %5019 = vmatpush2.bf16.msra.mxu0 %v4689
  %5020 = vmatprep.subr.bf16.mxu0 %v4682
  %5021 = vmatpush2.bf16.msra.mxu0 %v4681
  %5022 = vmatprep.mubr.bf16.mxu0 %v2185
  %5023 = vmatmul.mubr.bf16.gmra.mxu0 %v2184
  %v5024 = vpop.f32.mrf.mxu0
  %v5025 = vadd.f32 0.0, %v5024
  %v5026 = vpop.f32.mrf.mxu0
  %v5027 = vadd.f32 0.0, %v5026
  %v5028 = vpop.f32.mrf.mxu0
  %v5029 = vpop.f32.mrf.mxu0
  %5030 = vdwg.mxu0
  %v5031 = vadd.f32 %v4087, %v4902
  %v5032 = vadd.f32 %v4088, %v4904
  %v5033 = vadd.f32 %v4089, %v4943
  %v5034 = vadd.f32 %v4090, %v4945
  %v5035 = vadd.f32 %v4091, %v4984
  %v5036 = vadd.f32 %v4092, %v4986
  %v5037 = vadd.f32 %v4093, %v5025
  %v5038 = vadd.f32 %v4094, %v5027
  %v5039 = vmul.f32 %v5031, 0.5
  %v5040 = vmul.f32 %v5032, 0.5
  %v5041 = vtanh.pop %v5039
  %v5042 = vtanh.pop %v5040
  %v5043 = vadd.f32 %v5041, 1.0
  %v5044 = vadd.f32 %v5042, 1.0
  %v5045 = vmul.f32 %v5043, 0.5
  %v5046 = vmul.f32 %v5044, 0.5
  %v5047 = vmul.f32 %v5033, 0.5
  %v5048 = vmul.f32 %v5034, 0.5
  %v5049 = vtanh.pop %v5047
  %v5050 = vtanh.pop %v5048
  %v5051 = vadd.f32 %v5049, 1.0
  %v5052 = vadd.f32 %v5050, 1.0
  %v5053 = vmul.f32 %v5051, 0.5
  %v5054 = vmul.f32 %v5052, 0.5
  %v5055 = vtanh.pop %v5035
  %v5056 = vtanh.pop %v5036
  %v5057 = vmul.f32 %v5037, 0.5
  %v5058 = vmul.f32 %v5038, 0.5
  %v5059 = vtanh.pop %v5057
  %v5060 = vtanh.pop %v5058
  %v5061 = vadd.f32 %v5059, 1.0
  %v5062 = vadd.f32 %v5060, 1.0
  %v5063 = vmul.f32 %v5061, 0.5
  %v5064 = vmul.f32 %v5062, 0.5
  %v5065 = vmul.f32 %v5053, %v2174
  %v5066 = vmul.f32 %v5054, %v2175
  %v5067 = vmul.f32 %v5045, %v5055
  %v5068 = vmul.f32 %v5046, %v5056
  %v5069 = vadd.f32 %v5065, %v5067
  %v5070 = vadd.f32 %v5066, %v5068
  %v5071 = vtanh.pop %v5069
  %v5072 = vtanh.pop %v5070
  %v5073 = vmul.f32 %v5063, %v5071
  %v5074 = vmul.f32 %v5064, %v5072
  %v5075 = vpack.c.bf16 %v5073, %v5073
  %v5076 = vpack.c.bf16 %v5074, %v5074
  %v5077 = vpack.c.bf16 %v4085, %v4085
  %v5078 = vpack.c.bf16 %v4086, %v4086
  %v5079 = vld [vmem:[#allocation4] sm:$0xff]
  %v5080 = vld [vmem:[#allocation4 + $0x8] sm:$0xff]
  %v5081 = vld [vmem:[#allocation4 + $0x10] sm:$0xff]
  %v5082 = vld [vmem:[#allocation4 + $0x18] sm:$0xff]
  %v5083 = vld [vmem:[#allocation4 + $0x20] sm:$0xff]
  %v5084 = vld [vmem:[#allocation4 + $0x28] sm:$0xff]
  %v5085 = vld [vmem:[#allocation4 + $0x30] sm:$0xff]
  %v5086 = vld [vmem:[#allocation4 + $0x38] sm:$0xff]
  %v5087 = vld [vmem:[#allocation4 + $0x40] sm:$0xff]
  %v5088 = vld [vmem:[#allocation4 + $0x48] sm:$0xff]
  %v5089 = vld [vmem:[#allocation4 + $0x50] sm:$0xff]
  %v5090 = vld [vmem:[#allocation4 + $0x58] sm:$0xff]
  %v5091 = vld [vmem:[#allocation4 + $0x60] sm:$0xff]
  %v5092 = vld [vmem:[#allocation4 + $0x68] sm:$0xff]
  %v5093 = vld [vmem:[#allocation4 + $0x70] sm:$0xff]
  %v5094 = vld [vmem:[#allocation4 + $0x78] sm:$0xff]
  %v5095 = vld [vmem:[#allocation4 + $0x80] sm:$0xff]
  %v5096 = vld [vmem:[#allocation4 + $0x88] sm:$0xff]
  %v5097 = vld [vmem:[#allocation4 + $0x90] sm:$0xff]
  %v5098 = vld [vmem:[#allocation4 + $0x98] sm:$0xff]
  %v5099 = vld [vmem:[#allocation4 + $0xa0] sm:$0xff]
  %v5100 = vld [vmem:[#allocation4 + $0xa8] sm:$0xff]
  %v5101 = vld [vmem:[#allocation4 + $0xb0] sm:$0xff]
  %v5102 = vld [vmem:[#allocation4 + $0xb8] sm:$0xff]
  %v5103 = vld [vmem:[#allocation4 + $0xc0] sm:$0xff]
  %v5104 = vld [vmem:[#allocation4 + $0xc8] sm:$0xff]
  %v5105 = vld [vmem:[#allocation4 + $0xd0] sm:$0xff]
  %v5106 = vld [vmem:[#allocation4 + $0xd8] sm:$0xff]
  %v5107 = vld [vmem:[#allocation4 + $0xe0] sm:$0xff]
  %v5108 = vld [vmem:[#allocation4 + $0xe8] sm:$0xff]
  %v5109 = vld [vmem:[#allocation4 + $0xf0] sm:$0xff]
  %v5110 = vld [vmem:[#allocation4 + $0xf8] sm:$0xff]
  %v5111 = vld [vmem:[#allocation4 + $0x100] sm:$0xff]
  %v5112 = vld [vmem:[#allocation4 + $0x108] sm:$0xff]
  %v5113 = vld [vmem:[#allocation4 + $0x110] sm:$0xff]
  %v5114 = vld [vmem:[#allocation4 + $0x118] sm:$0xff]
  %v5115 = vld [vmem:[#allocation4 + $0x120] sm:$0xff]
  %v5116 = vld [vmem:[#allocation4 + $0x128] sm:$0xff]
  %v5117 = vld [vmem:[#allocation4 + $0x130] sm:$0xff]
  %v5118 = vld [vmem:[#allocation4 + $0x138] sm:$0xff]
  %v5119 = vld [vmem:[#allocation4 + $0x140] sm:$0xff]
  %v5120 = vld [vmem:[#allocation4 + $0x148] sm:$0xff]
  %v5121 = vld [vmem:[#allocation4 + $0x150] sm:$0xff]
  %v5122 = vld [vmem:[#allocation4 + $0x158] sm:$0xff]
  %v5123 = vld [vmem:[#allocation4 + $0x160] sm:$0xff]
  %v5124 = vld [vmem:[#allocation4 + $0x168] sm:$0xff]
  %v5125 = vld [vmem:[#allocation4 + $0x170] sm:$0xff]
  %v5126 = vld [vmem:[#allocation4 + $0x178] sm:$0xff]
  %v5127 = vld [vmem:[#allocation4 + $0x180] sm:$0xff]
  %v5128 = vld [vmem:[#allocation4 + $0x188] sm:$0xff]
  %v5129 = vld [vmem:[#allocation4 + $0x190] sm:$0xff]
  %v5130 = vld [vmem:[#allocation4 + $0x198] sm:$0xff]
  %v5131 = vld [vmem:[#allocation4 + $0x1a0] sm:$0xff]
  %v5132 = vld [vmem:[#allocation4 + $0x1a8] sm:$0xff]
  %v5133 = vld [vmem:[#allocation4 + $0x1b0] sm:$0xff]
  %v5134 = vld [vmem:[#allocation4 + $0x1b8] sm:$0xff]
  %v5135 = vld [vmem:[#allocation4 + $0x1c0] sm:$0xff]
  %v5136 = vld [vmem:[#allocation4 + $0x1c8] sm:$0xff]
  %v5137 = vld [vmem:[#allocation4 + $0x1d0] sm:$0xff]
  %v5138 = vld [vmem:[#allocation4 + $0x1d8] sm:$0xff]
  %v5139 = vld [vmem:[#allocation4 + $0x1e0] sm:$0xff]
  %v5140 = vld [vmem:[#allocation4 + $0x1e8] sm:$0xff]
  %v5141 = vld [vmem:[#allocation4 + $0x1f0] sm:$0xff]
  %v5142 = vld [vmem:[#allocation4 + $0x1f8] sm:$0xff]
  %v5143 = vld [vmem:[#allocation4 + $0x200] sm:$0xff]
  %v5144 = vld [vmem:[#allocation4 + $0x208] sm:$0xff]
  %v5145 = vld [vmem:[#allocation4 + $0x210] sm:$0xff]
  %v5146 = vld [vmem:[#allocation4 + $0x218] sm:$0xff]
  %v5147 = vld [vmem:[#allocation4 + $0x220] sm:$0xff]
  %v5148 = vld [vmem:[#allocation4 + $0x228] sm:$0xff]
  %v5149 = vld [vmem:[#allocation4 + $0x230] sm:$0xff]
  %v5150 = vld [vmem:[#allocation4 + $0x238] sm:$0xff]
  %v5151 = vld [vmem:[#allocation4 + $0x240] sm:$0xff]
  %v5152 = vld [vmem:[#allocation4 + $0x248] sm:$0xff]
  %v5153 = vld [vmem:[#allocation4 + $0x250] sm:$0xff]
  %v5154 = vld [vmem:[#allocation4 + $0x258] sm:$0xff]
  %v5155 = vld [vmem:[#allocation4 + $0x260] sm:$0xff]
  %v5156 = vld [vmem:[#allocation4 + $0x268] sm:$0xff]
  %v5157 = vld [vmem:[#allocation4 + $0x270] sm:$0xff]
  %v5158 = vld [vmem:[#allocation4 + $0x278] sm:$0xff]
  %v5159 = vld [vmem:[#allocation4 + $0x280] sm:$0xff]
  %v5160 = vld [vmem:[#allocation4 + $0x288] sm:$0xff]
  %v5161 = vld [vmem:[#allocation4 + $0x290] sm:$0xff]
  %v5162 = vld [vmem:[#allocation4 + $0x298] sm:$0xff]
  %v5163 = vld [vmem:[#allocation4 + $0x2a0] sm:$0xff]
  %v5164 = vld [vmem:[#allocation4 + $0x2a8] sm:$0xff]
  %v5165 = vld [vmem:[#allocation4 + $0x2b0] sm:$0xff]
  %v5166 = vld [vmem:[#allocation4 + $0x2b8] sm:$0xff]
  %v5167 = vld [vmem:[#allocation4 + $0x2c0] sm:$0xff]
  %v5168 = vld [vmem:[#allocation4 + $0x2c8] sm:$0xff]
  %v5169 = vld [vmem:[#allocation4 + $0x2d0] sm:$0xff]
  %v5170 = vld [vmem:[#allocation4 + $0x2d8] sm:$0xff]
  %v5171 = vld [vmem:[#allocation4 + $0x2e0] sm:$0xff]
  %v5172 = vld [vmem:[#allocation4 + $0x2e8] sm:$0xff]
  %v5173 = vld [vmem:[#allocation4 + $0x2f0] sm:$0xff]
  %v5174 = vld [vmem:[#allocation4 + $0x2f8] sm:$0xff]
  %v5175 = vld [vmem:[#allocation4 + $0x300] sm:$0xff]
  %v5176 = vld [vmem:[#allocation4 + $0x308] sm:$0xff]
  %v5177 = vld [vmem:[#allocation4 + $0x310] sm:$0xff]
  %v5178 = vld [vmem:[#allocation4 + $0x318] sm:$0xff]
  %v5179 = vld [vmem:[#allocation4 + $0x320] sm:$0xff]
  %v5180 = vld [vmem:[#allocation4 + $0x328] sm:$0xff]
  %v5181 = vld [vmem:[#allocation4 + $0x330] sm:$0xff]
  %v5182 = vld [vmem:[#allocation4 + $0x338] sm:$0xff]
  %v5183 = vld [vmem:[#allocation4 + $0x340] sm:$0xff]
  %v5184 = vld [vmem:[#allocation4 + $0x348] sm:$0xff]
  %v5185 = vld [vmem:[#allocation4 + $0x350] sm:$0xff]
  %v5186 = vld [vmem:[#allocation4 + $0x358] sm:$0xff]
  %v5187 = vld [vmem:[#allocation4 + $0x360] sm:$0xff]
  %v5188 = vld [vmem:[#allocation4 + $0x368] sm:$0xff]
  %v5189 = vld [vmem:[#allocation4 + $0x370] sm:$0xff]
  %v5190 = vld [vmem:[#allocation4 + $0x378] sm:$0xff]
  %v5191 = vld [vmem:[#allocation4 + $0x380] sm:$0xff]
  %v5192 = vld [vmem:[#allocation4 + $0x388] sm:$0xff]
  %v5193 = vld [vmem:[#allocation4 + $0x390] sm:$0xff]
  %v5194 = vld [vmem:[#allocation4 + $0x398] sm:$0xff]
  %v5195 = vld [vmem:[#allocation4 + $0x3a0] sm:$0xff]
  %v5196 = vld [vmem:[#allocation4 + $0x3a8] sm:$0xff]
  %v5197 = vld [vmem:[#allocation4 + $0x3b0] sm:$0xff]
  %v5198 = vld [vmem:[#allocation4 + $0x3b8] sm:$0xff]
  %v5199 = vld [vmem:[#allocation4 + $0x3c0] sm:$0xff]
  %v5200 = vld [vmem:[#allocation4 + $0x3c8] sm:$0xff]
  %v5201 = vld [vmem:[#allocation4 + $0x3d0] sm:$0xff]
  %v5202 = vld [vmem:[#allocation4 + $0x3d8] sm:$0xff]
  %v5203 = vld [vmem:[#allocation4 + $0x3e0] sm:$0xff]
  %v5204 = vld [vmem:[#allocation4 + $0x3e8] sm:$0xff]
  %v5205 = vld [vmem:[#allocation4 + $0x3f0] sm:$0xff]
  %v5206 = vld [vmem:[#allocation4 + $0x3f8] sm:$0xff]
  %v5207 = vld [vmem:[#allocation4 + $0x400] sm:$0xff]
  %v5208 = vld [vmem:[#allocation4 + $0x408] sm:$0xff]
  %v5209 = vld [vmem:[#allocation4 + $0x410] sm:$0xff]
  %v5210 = vld [vmem:[#allocation4 + $0x418] sm:$0xff]
  %v5211 = vld [vmem:[#allocation4 + $0x420] sm:$0xff]
  %v5212 = vld [vmem:[#allocation4 + $0x428] sm:$0xff]
  %v5213 = vld [vmem:[#allocation4 + $0x430] sm:$0xff]
  %v5214 = vld [vmem:[#allocation4 + $0x438] sm:$0xff]
  %v5215 = vld [vmem:[#allocation4 + $0x440] sm:$0xff]
  %v5216 = vld [vmem:[#allocation4 + $0x448] sm:$0xff]
  %v5217 = vld [vmem:[#allocation4 + $0x450] sm:$0xff]
  %v5218 = vld [vmem:[#allocation4 + $0x458] sm:$0xff]
  %v5219 = vld [vmem:[#allocation4 + $0x460] sm:$0xff]
  %v5220 = vld [vmem:[#allocation4 + $0x468] sm:$0xff]
  %v5221 = vld [vmem:[#allocation4 + $0x470] sm:$0xff]
  %v5222 = vld [vmem:[#allocation4 + $0x478] sm:$0xff]
  %v5223 = vld [vmem:[#allocation4 + $0x480] sm:$0xff]
  %v5224 = vld [vmem:[#allocation4 + $0x488] sm:$0xff]
  %v5225 = vld [vmem:[#allocation4 + $0x490] sm:$0xff]
  %v5226 = vld [vmem:[#allocation4 + $0x498] sm:$0xff]
  %v5227 = vld [vmem:[#allocation4 + $0x4a0] sm:$0xff]
  %v5228 = vld [vmem:[#allocation4 + $0x4a8] sm:$0xff]
  %v5229 = vld [vmem:[#allocation4 + $0x4b0] sm:$0xff]
  %v5230 = vld [vmem:[#allocation4 + $0x4b8] sm:$0xff]
  %v5231 = vld [vmem:[#allocation4 + $0x4c0] sm:$0xff]
  %v5232 = vld [vmem:[#allocation4 + $0x4c8] sm:$0xff]
  %v5233 = vld [vmem:[#allocation4 + $0x4d0] sm:$0xff]
  %v5234 = vld [vmem:[#allocation4 + $0x4d8] sm:$0xff]
  %v5235 = vld [vmem:[#allocation4 + $0x4e0] sm:$0xff]
  %v5236 = vld [vmem:[#allocation4 + $0x4e8] sm:$0xff]
  %v5237 = vld [vmem:[#allocation4 + $0x4f0] sm:$0xff]
  %v5238 = vld [vmem:[#allocation4 + $0x4f8] sm:$0xff]
  %v5239 = vld [vmem:[#allocation4 + $0x500] sm:$0xff]
  %v5240 = vld [vmem:[#allocation4 + $0x508] sm:$0xff]
  %v5241 = vld [vmem:[#allocation4 + $0x510] sm:$0xff]
  %v5242 = vld [vmem:[#allocation4 + $0x518] sm:$0xff]
  %v5243 = vld [vmem:[#allocation4 + $0x520] sm:$0xff]
  %v5244 = vld [vmem:[#allocation4 + $0x528] sm:$0xff]
  %v5245 = vld [vmem:[#allocation4 + $0x530] sm:$0xff]
  %v5246 = vld [vmem:[#allocation4 + $0x538] sm:$0xff]
  %v5247 = vld [vmem:[#allocation4 + $0x540] sm:$0xff]
  %v5248 = vld [vmem:[#allocation4 + $0x548] sm:$0xff]
  %v5249 = vld [vmem:[#allocation4 + $0x550] sm:$0xff]
  %v5250 = vld [vmem:[#allocation4 + $0x558] sm:$0xff]
  %v5251 = vld [vmem:[#allocation4 + $0x560] sm:$0xff]
  %v5252 = vld [vmem:[#allocation4 + $0x568] sm:$0xff]
  %v5253 = vld [vmem:[#allocation4 + $0x570] sm:$0xff]
  %v5254 = vld [vmem:[#allocation4 + $0x578] sm:$0xff]
  %v5255 = vld [vmem:[#allocation4 + $0x580] sm:$0xff]
  %v5256 = vld [vmem:[#allocation4 + $0x588] sm:$0xff]
  %v5257 = vld [vmem:[#allocation4 + $0x590] sm:$0xff]
  %v5258 = vld [vmem:[#allocation4 + $0x598] sm:$0xff]
  %v5259 = vld [vmem:[#allocation4 + $0x5a0] sm:$0xff]
  %v5260 = vld [vmem:[#allocation4 + $0x5a8] sm:$0xff]
  %v5261 = vld [vmem:[#allocation4 + $0x5b0] sm:$0xff]
  %v5262 = vld [vmem:[#allocation4 + $0x5b8] sm:$0xff]
  %v5263 = vld [vmem:[#allocation4 + $0x5c0] sm:$0xff]
  %v5264 = vld [vmem:[#allocation4 + $0x5c8] sm:$0xff]
  %v5265 = vld [vmem:[#allocation4 + $0x5d0] sm:$0xff]
  %v5266 = vld [vmem:[#allocation4 + $0x5d8] sm:$0xff]
  %v5267 = vld [vmem:[#allocation4 + $0x5e0] sm:$0xff]
  %v5268 = vld [vmem:[#allocation4 + $0x5e8] sm:$0xff]
  %v5269 = vld [vmem:[#allocation4 + $0x5f0] sm:$0xff]
  %v5270 = vld [vmem:[#allocation4 + $0x5f8] sm:$0xff]
  %v5271 = vld [vmem:[#allocation4 + $0x600] sm:$0xff]
  %v5272 = vld [vmem:[#allocation4 + $0x608] sm:$0xff]
  %v5273 = vld [vmem:[#allocation4 + $0x610] sm:$0xff]
  %v5274 = vld [vmem:[#allocation4 + $0x618] sm:$0xff]
  %v5275 = vld [vmem:[#allocation4 + $0x620] sm:$0xff]
  %v5276 = vld [vmem:[#allocation4 + $0x628] sm:$0xff]
  %v5277 = vld [vmem:[#allocation4 + $0x630] sm:$0xff]
  %v5278 = vld [vmem:[#allocation4 + $0x638] sm:$0xff]
  %v5279 = vld [vmem:[#allocation4 + $0x640] sm:$0xff]
  %v5280 = vld [vmem:[#allocation4 + $0x648] sm:$0xff]
  %v5281 = vld [vmem:[#allocation4 + $0x650] sm:$0xff]
  %v5282 = vld [vmem:[#allocation4 + $0x658] sm:$0xff]
  %v5283 = vld [vmem:[#allocation4 + $0x660] sm:$0xff]
  %v5284 = vld [vmem:[#allocation4 + $0x668] sm:$0xff]
  %v5285 = vld [vmem:[#allocation4 + $0x670] sm:$0xff]
  %v5286 = vld [vmem:[#allocation4 + $0x678] sm:$0xff]
  %v5287 = vld [vmem:[#allocation4 + $0x680] sm:$0xff]
  %v5288 = vld [vmem:[#allocation4 + $0x688] sm:$0xff]
  %v5289 = vld [vmem:[#allocation4 + $0x690] sm:$0xff]
  %v5290 = vld [vmem:[#allocation4 + $0x698] sm:$0xff]
  %v5291 = vld [vmem:[#allocation4 + $0x6a0] sm:$0xff]
  %v5292 = vld [vmem:[#allocation4 + $0x6a8] sm:$0xff]
  %v5293 = vld [vmem:[#allocation4 + $0x6b0] sm:$0xff]
  %v5294 = vld [vmem:[#allocation4 + $0x6b8] sm:$0xff]
  %v5295 = vld [vmem:[#allocation4 + $0x6c0] sm:$0xff]
  %v5296 = vld [vmem:[#allocation4 + $0x6c8] sm:$0xff]
  %v5297 = vld [vmem:[#allocation4 + $0x6d0] sm:$0xff]
  %v5298 = vld [vmem:[#allocation4 + $0x6d8] sm:$0xff]
  %v5299 = vld [vmem:[#allocation4 + $0x6e0] sm:$0xff]
  %v5300 = vld [vmem:[#allocation4 + $0x6e8] sm:$0xff]
  %v5301 = vld [vmem:[#allocation4 + $0x6f0] sm:$0xff]
  %v5302 = vld [vmem:[#allocation4 + $0x6f8] sm:$0xff]
  %v5303 = vld [vmem:[#allocation4 + $0x700] sm:$0xff]
  %v5304 = vld [vmem:[#allocation4 + $0x708] sm:$0xff]
  %v5305 = vld [vmem:[#allocation4 + $0x710] sm:$0xff]
  %v5306 = vld [vmem:[#allocation4 + $0x718] sm:$0xff]
  %v5307 = vld [vmem:[#allocation4 + $0x720] sm:$0xff]
  %v5308 = vld [vmem:[#allocation4 + $0x728] sm:$0xff]
  %v5309 = vld [vmem:[#allocation4 + $0x730] sm:$0xff]
  %v5310 = vld [vmem:[#allocation4 + $0x738] sm:$0xff]
  %v5311 = vld [vmem:[#allocation4 + $0x740] sm:$0xff]
  %v5312 = vld [vmem:[#allocation4 + $0x748] sm:$0xff]
  %v5313 = vld [vmem:[#allocation4 + $0x750] sm:$0xff]
  %v5314 = vld [vmem:[#allocation4 + $0x758] sm:$0xff]
  %v5315 = vld [vmem:[#allocation4 + $0x760] sm:$0xff]
  %v5316 = vld [vmem:[#allocation4 + $0x768] sm:$0xff]
  %v5317 = vld [vmem:[#allocation4 + $0x770] sm:$0xff]
  %v5318 = vld [vmem:[#allocation4 + $0x778] sm:$0xff]
  %v5319 = vld [vmem:[#allocation4 + $0x780] sm:$0xff]
  %v5320 = vld [vmem:[#allocation4 + $0x788] sm:$0xff]
  %v5321 = vld [vmem:[#allocation4 + $0x790] sm:$0xff]
  %v5322 = vld [vmem:[#allocation4 + $0x798] sm:$0xff]
  %v5323 = vld [vmem:[#allocation4 + $0x7a0] sm:$0xff]
  %v5324 = vld [vmem:[#allocation4 + $0x7a8] sm:$0xff]
  %v5325 = vld [vmem:[#allocation4 + $0x7b0] sm:$0xff]
  %v5326 = vld [vmem:[#allocation4 + $0x7b8] sm:$0xff]
  %v5327 = vld [vmem:[#allocation4 + $0x7c0] sm:$0xff]
  %v5328 = vld [vmem:[#allocation4 + $0x7c8] sm:$0xff]
  %v5329 = vld [vmem:[#allocation4 + $0x7d0] sm:$0xff]
  %v5330 = vld [vmem:[#allocation4 + $0x7d8] sm:$0xff]
  %v5331 = vld [vmem:[#allocation4 + $0x7e0] sm:$0xff]
  %v5332 = vld [vmem:[#allocation4 + $0x7e8] sm:$0xff]
  %v5333 = vld [vmem:[#allocation4 + $0x7f0] sm:$0xff]
  %v5334 = vld [vmem:[#allocation4 + $0x7f8] sm:$0xff]
  %v5591 = vunpack.c.l.b16 %v5079
  %v5592 = vunpack.c.h.b16 %v5079
  %v5593 = vunpack.c.l.b16 %v5080
  %v5594 = vunpack.c.h.b16 %v5080
  %v5595 = vunpack.c.l.b16 %v5081
  %v5596 = vunpack.c.h.b16 %v5081
  %v5597 = vunpack.c.l.b16 %v5082
  %v5598 = vunpack.c.h.b16 %v5082
  %v5599 = vunpack.c.l.b16 %v5083
  %v5600 = vunpack.c.h.b16 %v5083
  %v5601 = vunpack.c.l.b16 %v5084
  %v5602 = vunpack.c.h.b16 %v5084
  %v5603 = vunpack.c.l.b16 %v5085
  %v5604 = vunpack.c.h.b16 %v5085
  %v5605 = vunpack.c.l.b16 %v5086
  %v5606 = vunpack.c.h.b16 %v5086
  %v5607 = vunpack.c.l.b16 %v5087
  %v5608 = vunpack.c.h.b16 %v5087
  %v5609 = vunpack.c.l.b16 %v5088
  %v5610 = vunpack.c.h.b16 %v5088
  %v5611 = vunpack.c.l.b16 %v5089
  %v5612 = vunpack.c.h.b16 %v5089
  %v5613 = vunpack.c.l.b16 %v5090
  %v5614 = vunpack.c.h.b16 %v5090
  %v5615 = vunpack.c.l.b16 %v5091
  %v5616 = vunpack.c.h.b16 %v5091
  %v5617 = vunpack.c.l.b16 %v5092
  %v5618 = vunpack.c.h.b16 %v5092
  %v5619 = vunpack.c.l.b16 %v5093
  %v5620 = vunpack.c.h.b16 %v5093
  %v5621 = vunpack.c.l.b16 %v5094
  %v5622 = vunpack.c.h.b16 %v5094
  %v5623 = vunpack.c.l.b16 %v5095
  %v5624 = vunpack.c.h.b16 %v5095
  %v5625 = vunpack.c.l.b16 %v5096
  %v5626 = vunpack.c.h.b16 %v5096
  %v5627 = vunpack.c.l.b16 %v5097
  %v5628 = vunpack.c.h.b16 %v5097
  %v5629 = vunpack.c.l.b16 %v5098
  %v5630 = vunpack.c.h.b16 %v5098
  %v5631 = vunpack.c.l.b16 %v5099
  %v5632 = vunpack.c.h.b16 %v5099
  %v5633 = vunpack.c.l.b16 %v5100
  %v5634 = vunpack.c.h.b16 %v5100
  %v5635 = vunpack.c.l.b16 %v5101
  %v5636 = vunpack.c.h.b16 %v5101
  %v5637 = vunpack.c.l.b16 %v5102
  %v5638 = vunpack.c.h.b16 %v5102
  %v5639 = vunpack.c.l.b16 %v5103
  %v5640 = vunpack.c.h.b16 %v5103
  %v5641 = vunpack.c.l.b16 %v5104
  %v5642 = vunpack.c.h.b16 %v5104
  %v5643 = vunpack.c.l.b16 %v5105
  %v5644 = vunpack.c.h.b16 %v5105
  %v5645 = vunpack.c.l.b16 %v5106
  %v5646 = vunpack.c.h.b16 %v5106
  %v5647 = vunpack.c.l.b16 %v5107
  %v5648 = vunpack.c.h.b16 %v5107
  %v5649 = vunpack.c.l.b16 %v5108
  %v5650 = vunpack.c.h.b16 %v5108
  %v5651 = vunpack.c.l.b16 %v5109
  %v5652 = vunpack.c.h.b16 %v5109
  %v5653 = vunpack.c.l.b16 %v5110
  %v5654 = vunpack.c.h.b16 %v5110
  %v5655 = vunpack.c.l.b16 %v5111
  %v5656 = vunpack.c.h.b16 %v5111
  %v5657 = vunpack.c.l.b16 %v5112
  %v5658 = vunpack.c.h.b16 %v5112
  %v5659 = vunpack.c.l.b16 %v5113
  %v5660 = vunpack.c.h.b16 %v5113
  %v5661 = vunpack.c.l.b16 %v5114
  %v5662 = vunpack.c.h.b16 %v5114
  %v5663 = vunpack.c.l.b16 %v5115
  %v5664 = vunpack.c.h.b16 %v5115
  %v5665 = vunpack.c.l.b16 %v5116
  %v5666 = vunpack.c.h.b16 %v5116
  %v5667 = vunpack.c.l.b16 %v5117
  %v5668 = vunpack.c.h.b16 %v5117
  %v5669 = vunpack.c.l.b16 %v5118
  %v5670 = vunpack.c.h.b16 %v5118
  %v5671 = vunpack.c.l.b16 %v5119
  %v5672 = vunpack.c.h.b16 %v5119
  %v5673 = vunpack.c.l.b16 %v5120
  %v5674 = vunpack.c.h.b16 %v5120
  %v5675 = vunpack.c.l.b16 %v5121
  %v5676 = vunpack.c.h.b16 %v5121
  %v5677 = vunpack.c.l.b16 %v5122
  %v5678 = vunpack.c.h.b16 %v5122
  %v5679 = vunpack.c.l.b16 %v5123
  %v5680 = vunpack.c.h.b16 %v5123
  %v5681 = vunpack.c.l.b16 %v5124
  %v5682 = vunpack.c.h.b16 %v5124
  %v5683 = vunpack.c.l.b16 %v5125
  %v5684 = vunpack.c.h.b16 %v5125
  %v5685 = vunpack.c.l.b16 %v5126
  %v5686 = vunpack.c.h.b16 %v5126
  %v5687 = vunpack.c.l.b16 %v5127
  %v5688 = vunpack.c.h.b16 %v5127
  %v5689 = vunpack.c.l.b16 %v5128
  %v5690 = vunpack.c.h.b16 %v5128
  %v5691 = vunpack.c.l.b16 %v5129
  %v5692 = vunpack.c.h.b16 %v5129
  %v5693 = vunpack.c.l.b16 %v5130
  %v5694 = vunpack.c.h.b16 %v5130
  %v5695 = vunpack.c.l.b16 %v5131
  %v5696 = vunpack.c.h.b16 %v5131
  %v5697 = vunpack.c.l.b16 %v5132
  %v5698 = vunpack.c.h.b16 %v5132
  %v5699 = vunpack.c.l.b16 %v5133
  %v5700 = vunpack.c.h.b16 %v5133
  %v5701 = vunpack.c.l.b16 %v5134
  %v5702 = vunpack.c.h.b16 %v5134
  %v5703 = vunpack.c.l.b16 %v5135
  %v5704 = vunpack.c.h.b16 %v5135
  %v5705 = vunpack.c.l.b16 %v5136
  %v5706 = vunpack.c.h.b16 %v5136
  %v5707 = vunpack.c.l.b16 %v5137
  %v5708 = vunpack.c.h.b16 %v5137
  %v5709 = vunpack.c.l.b16 %v5138
  %v5710 = vunpack.c.h.b16 %v5138
  %v5711 = vunpack.c.l.b16 %v5139
  %v5712 = vunpack.c.h.b16 %v5139
  %v5713 = vunpack.c.l.b16 %v5140
  %v5714 = vunpack.c.h.b16 %v5140
  %v5715 = vunpack.c.l.b16 %v5141
  %v5716 = vunpack.c.h.b16 %v5141
  %v5717 = vunpack.c.l.b16 %v5142
  %v5718 = vunpack.c.h.b16 %v5142
  %v5719 = vunpack.c.l.b16 %v5143
  %v5720 = vunpack.c.h.b16 %v5143
  %v5721 = vunpack.c.l.b16 %v5144
  %v5722 = vunpack.c.h.b16 %v5144
  %v5723 = vunpack.c.l.b16 %v5145
  %v5724 = vunpack.c.h.b16 %v5145
  %v5725 = vunpack.c.l.b16 %v5146
  %v5726 = vunpack.c.h.b16 %v5146
  %v5727 = vunpack.c.l.b16 %v5147
  %v5728 = vunpack.c.h.b16 %v5147
  %v5729 = vunpack.c.l.b16 %v5148
  %v5730 = vunpack.c.h.b16 %v5148
  %v5731 = vunpack.c.l.b16 %v5149
  %v5732 = vunpack.c.h.b16 %v5149
  %v5733 = vunpack.c.l.b16 %v5150
  %v5734 = vunpack.c.h.b16 %v5150
  %v5735 = vunpack.c.l.b16 %v5151
  %v5736 = vunpack.c.h.b16 %v5151
  %v5737 = vunpack.c.l.b16 %v5152
  %v5738 = vunpack.c.h.b16 %v5152
  %v5739 = vunpack.c.l.b16 %v5153
  %v5740 = vunpack.c.h.b16 %v5153
  %v5741 = vunpack.c.l.b16 %v5154
  %v5742 = vunpack.c.h.b16 %v5154
  %v5743 = vunpack.c.l.b16 %v5155
  %v5744 = vunpack.c.h.b16 %v5155
  %v5745 = vunpack.c.l.b16 %v5156
  %v5746 = vunpack.c.h.b16 %v5156
  %v5747 = vunpack.c.l.b16 %v5157
  %v5748 = vunpack.c.h.b16 %v5157
  %v5749 = vunpack.c.l.b16 %v5158
  %v5750 = vunpack.c.h.b16 %v5158
  %v5751 = vunpack.c.l.b16 %v5159
  %v5752 = vunpack.c.h.b16 %v5159
  %v5753 = vunpack.c.l.b16 %v5160
  %v5754 = vunpack.c.h.b16 %v5160
  %v5755 = vunpack.c.l.b16 %v5161
  %v5756 = vunpack.c.h.b16 %v5161
  %v5757 = vunpack.c.l.b16 %v5162
  %v5758 = vunpack.c.h.b16 %v5162
  %v5759 = vunpack.c.l.b16 %v5163
  %v5760 = vunpack.c.h.b16 %v5163
  %v5761 = vunpack.c.l.b16 %v5164
  %v5762 = vunpack.c.h.b16 %v5164
  %v5763 = vunpack.c.l.b16 %v5165
  %v5764 = vunpack.c.h.b16 %v5165
  %v5765 = vunpack.c.l.b16 %v5166
  %v5766 = vunpack.c.h.b16 %v5166
  %v5767 = vunpack.c.l.b16 %v5167
  %v5768 = vunpack.c.h.b16 %v5167
  %v5769 = vunpack.c.l.b16 %v5168
  %v5770 = vunpack.c.h.b16 %v5168
  %v5771 = vunpack.c.l.b16 %v5169
  %v5772 = vunpack.c.h.b16 %v5169
  %v5773 = vunpack.c.l.b16 %v5170
  %v5774 = vunpack.c.h.b16 %v5170
  %v5775 = vunpack.c.l.b16 %v5171
  %v5776 = vunpack.c.h.b16 %v5171
  %v5777 = vunpack.c.l.b16 %v5172
  %v5778 = vunpack.c.h.b16 %v5172
  %v5779 = vunpack.c.l.b16 %v5173
  %v5780 = vunpack.c.h.b16 %v5173
  %v5781 = vunpack.c.l.b16 %v5174
  %v5782 = vunpack.c.h.b16 %v5174
  %v5783 = vunpack.c.l.b16 %v5175
  %v5784 = vunpack.c.h.b16 %v5175
  %v5785 = vunpack.c.l.b16 %v5176
  %v5786 = vunpack.c.h.b16 %v5176
  %v5787 = vunpack.c.l.b16 %v5177
  %v5788 = vunpack.c.h.b16 %v5177
  %v5789 = vunpack.c.l.b16 %v5178
  %v5790 = vunpack.c.h.b16 %v5178
  %v5791 = vunpack.c.l.b16 %v5179
  %v5792 = vunpack.c.h.b16 %v5179
  %v5793 = vunpack.c.l.b16 %v5180
  %v5794 = vunpack.c.h.b16 %v5180
  %v5795 = vunpack.c.l.b16 %v5181
  %v5796 = vunpack.c.h.b16 %v5181
  %v5797 = vunpack.c.l.b16 %v5182
  %v5798 = vunpack.c.h.b16 %v5182
  %v5799 = vunpack.c.l.b16 %v5183
  %v5800 = vunpack.c.h.b16 %v5183
  %v5801 = vunpack.c.l.b16 %v5184
  %v5802 = vunpack.c.h.b16 %v5184
  %v5803 = vunpack.c.l.b16 %v5185
  %v5804 = vunpack.c.h.b16 %v5185
  %v5805 = vunpack.c.l.b16 %v5186
  %v5806 = vunpack.c.h.b16 %v5186
  %v5807 = vunpack.c.l.b16 %v5187
  %v5808 = vunpack.c.h.b16 %v5187
  %v5809 = vunpack.c.l.b16 %v5188
  %v5810 = vunpack.c.h.b16 %v5188
  %v5811 = vunpack.c.l.b16 %v5189
  %v5812 = vunpack.c.h.b16 %v5189
  %v5813 = vunpack.c.l.b16 %v5190
  %v5814 = vunpack.c.h.b16 %v5190
  %v5815 = vunpack.c.l.b16 %v5191
  %v5816 = vunpack.c.h.b16 %v5191
  %v5817 = vunpack.c.l.b16 %v5192
  %v5818 = vunpack.c.h.b16 %v5192
  %v5819 = vunpack.c.l.b16 %v5193
  %v5820 = vunpack.c.h.b16 %v5193
  %v5821 = vunpack.c.l.b16 %v5194
  %v5822 = vunpack.c.h.b16 %v5194
  %v5823 = vunpack.c.l.b16 %v5195
  %v5824 = vunpack.c.h.b16 %v5195
  %v5825 = vunpack.c.l.b16 %v5196
  %v5826 = vunpack.c.h.b16 %v5196
  %v5827 = vunpack.c.l.b16 %v5197
  %v5828 = vunpack.c.h.b16 %v5197
  %v5829 = vunpack.c.l.b16 %v5198
  %v5830 = vunpack.c.h.b16 %v5198
  %v5831 = vunpack.c.l.b16 %v5199
  %v5832 = vunpack.c.h.b16 %v5199
  %v5833 = vunpack.c.l.b16 %v5200
  %v5834 = vunpack.c.h.b16 %v5200
  %v5835 = vunpack.c.l.b16 %v5201
  %v5836 = vunpack.c.h.b16 %v5201
  %v5837 = vunpack.c.l.b16 %v5202
  %v5838 = vunpack.c.h.b16 %v5202
  %v5839 = vunpack.c.l.b16 %v5203
  %v5840 = vunpack.c.h.b16 %v5203
  %v5841 = vunpack.c.l.b16 %v5204
  %v5842 = vunpack.c.h.b16 %v5204
  %v5843 = vunpack.c.l.b16 %v5205
  %v5844 = vunpack.c.h.b16 %v5205
  %v5845 = vunpack.c.l.b16 %v5206
  %v5846 = vunpack.c.h.b16 %v5206
  %v5847 = vunpack.c.l.b16 %v5207
  %v5848 = vunpack.c.h.b16 %v5207
  %v5849 = vunpack.c.l.b16 %v5208
  %v5850 = vunpack.c.h.b16 %v5208
  %v5851 = vunpack.c.l.b16 %v5209
  %v5852 = vunpack.c.h.b16 %v5209
  %v5853 = vunpack.c.l.b16 %v5210
  %v5854 = vunpack.c.h.b16 %v5210
  %v5855 = vunpack.c.l.b16 %v5211
  %v5856 = vunpack.c.h.b16 %v5211
  %v5857 = vunpack.c.l.b16 %v5212
  %v5858 = vunpack.c.h.b16 %v5212
  %v5859 = vunpack.c.l.b16 %v5213
  %v5860 = vunpack.c.h.b16 %v5213
  %v5861 = vunpack.c.l.b16 %v5214
  %v5862 = vunpack.c.h.b16 %v5214
  %v5863 = vunpack.c.l.b16 %v5215
  %v5864 = vunpack.c.h.b16 %v5215
  %v5865 = vunpack.c.l.b16 %v5216
  %v5866 = vunpack.c.h.b16 %v5216
  %v5867 = vunpack.c.l.b16 %v5217
  %v5868 = vunpack.c.h.b16 %v5217
  %v5869 = vunpack.c.l.b16 %v5218
  %v5870 = vunpack.c.h.b16 %v5218
  %v5871 = vunpack.c.l.b16 %v5219
  %v5872 = vunpack.c.h.b16 %v5219
  %v5873 = vunpack.c.l.b16 %v5220
  %v5874 = vunpack.c.h.b16 %v5220
  %v5875 = vunpack.c.l.b16 %v5221
  %v5876 = vunpack.c.h.b16 %v5221
  %v5877 = vunpack.c.l.b16 %v5222
  %v5878 = vunpack.c.h.b16 %v5222
  %v5879 = vunpack.c.l.b16 %v5223
  %v5880 = vunpack.c.h.b16 %v5223
  %v5881 = vunpack.c.l.b16 %v5224
  %v5882 = vunpack.c.h.b16 %v5224
  %v5883 = vunpack.c.l.b16 %v5225
  %v5884 = vunpack.c.h.b16 %v5225
  %v5885 = vunpack.c.l.b16 %v5226
  %v5886 = vunpack.c.h.b16 %v5226
  %v5887 = vunpack.c.l.b16 %v5227
  %v5888 = vunpack.c.h.b16 %v5227
  %v5889 = vunpack.c.l.b16 %v5228
  %v5890 = vunpack.c.h.b16 %v5228
  %v5891 = vunpack.c.l.b16 %v5229
  %v5892 = vunpack.c.h.b16 %v5229
  %v5893 = vunpack.c.l.b16 %v5230
  %v5894 = vunpack.c.h.b16 %v5230
  %v5895 = vunpack.c.l.b16 %v5231
  %v5896 = vunpack.c.h.b16 %v5231
  %v5897 = vunpack.c.l.b16 %v5232
  %v5898 = vunpack.c.h.b16 %v5232
  %v5899 = vunpack.c.l.b16 %v5233
  %v5900 = vunpack.c.h.b16 %v5233
  %v5901 = vunpack.c.l.b16 %v5234
  %v5902 = vunpack.c.h.b16 %v5234
  %v5903 = vunpack.c.l.b16 %v5235
  %v5904 = vunpack.c.h.b16 %v5235
  %v5905 = vunpack.c.l.b16 %v5236
  %v5906 = vunpack.c.h.b16 %v5236
  %v5907 = vunpack.c.l.b16 %v5237
  %v5908 = vunpack.c.h.b16 %v5237
  %v5909 = vunpack.c.l.b16 %v5238
  %v5910 = vunpack.c.h.b16 %v5238
  %v5911 = vunpack.c.l.b16 %v5239
  %v5912 = vunpack.c.h.b16 %v5239
  %v5913 = vunpack.c.l.b16 %v5240
  %v5914 = vunpack.c.h.b16 %v5240
  %v5915 = vunpack.c.l.b16 %v5241
  %v5916 = vunpack.c.h.b16 %v5241
  %v5917 = vunpack.c.l.b16 %v5242
  %v5918 = vunpack.c.h.b16 %v5242
  %v5919 = vunpack.c.l.b16 %v5243
  %v5920 = vunpack.c.h.b16 %v5243
  %v5921 = vunpack.c.l.b16 %v5244
  %v5922 = vunpack.c.h.b16 %v5244
  %v5923 = vunpack.c.l.b16 %v5245
  %v5924 = vunpack.c.h.b16 %v5245
  %v5925 = vunpack.c.l.b16 %v5246
  %v5926 = vunpack.c.h.b16 %v5246
  %v5927 = vunpack.c.l.b16 %v5247
  %v5928 = vunpack.c.h.b16 %v5247
  %v5929 = vunpack.c.l.b16 %v5248
  %v5930 = vunpack.c.h.b16 %v5248
  %v5931 = vunpack.c.l.b16 %v5249
  %v5932 = vunpack.c.h.b16 %v5249
  %v5933 = vunpack.c.l.b16 %v5250
  %v5934 = vunpack.c.h.b16 %v5250
  %v5935 = vunpack.c.l.b16 %v5251
  %v5936 = vunpack.c.h.b16 %v5251
  %v5937 = vunpack.c.l.b16 %v5252
  %v5938 = vunpack.c.h.b16 %v5252
  %v5939 = vunpack.c.l.b16 %v5253
  %v5940 = vunpack.c.h.b16 %v5253
  %v5941 = vunpack.c.l.b16 %v5254
  %v5942 = vunpack.c.h.b16 %v5254
  %v5943 = vunpack.c.l.b16 %v5255
  %v5944 = vunpack.c.h.b16 %v5255
  %v5945 = vunpack.c.l.b16 %v5256
  %v5946 = vunpack.c.h.b16 %v5256
  %v5947 = vunpack.c.l.b16 %v5257
  %v5948 = vunpack.c.h.b16 %v5257
  %v5949 = vunpack.c.l.b16 %v5258
  %v5950 = vunpack.c.h.b16 %v5258
  %v5951 = vunpack.c.l.b16 %v5259
  %v5952 = vunpack.c.h.b16 %v5259
  %v5953 = vunpack.c.l.b16 %v5260
  %v5954 = vunpack.c.h.b16 %v5260
  %v5955 = vunpack.c.l.b16 %v5261
  %v5956 = vunpack.c.h.b16 %v5261
  %v5957 = vunpack.c.l.b16 %v5262
  %v5958 = vunpack.c.h.b16 %v5262
  %v5959 = vunpack.c.l.b16 %v5263
  %v5960 = vunpack.c.h.b16 %v5263
  %v5961 = vunpack.c.l.b16 %v5264
  %v5962 = vunpack.c.h.b16 %v5264
  %v5963 = vunpack.c.l.b16 %v5265
  %v5964 = vunpack.c.h.b16 %v5265
  %v5965 = vunpack.c.l.b16 %v5266
  %v5966 = vunpack.c.h.b16 %v5266
  %v5967 = vunpack.c.l.b16 %v5267
  %v5968 = vunpack.c.h.b16 %v5267
  %v5969 = vunpack.c.l.b16 %v5268
  %v5970 = vunpack.c.h.b16 %v5268
  %v5971 = vunpack.c.l.b16 %v5269
  %v5972 = vunpack.c.h.b16 %v5269
  %v5973 = vunpack.c.l.b16 %v5270
  %v5974 = vunpack.c.h.b16 %v5270
  %v5975 = vunpack.c.l.b16 %v5271
  %v5976 = vunpack.c.h.b16 %v5271
  %v5977 = vunpack.c.l.b16 %v5272
  %v5978 = vunpack.c.h.b16 %v5272
  %v5979 = vunpack.c.l.b16 %v5273
  %v5980 = vunpack.c.h.b16 %v5273
  %v5981 = vunpack.c.l.b16 %v5274
  %v5982 = vunpack.c.h.b16 %v5274
  %v5983 = vunpack.c.l.b16 %v5275
  %v5984 = vunpack.c.h.b16 %v5275
  %v5985 = vunpack.c.l.b16 %v5276
  %v5986 = vunpack.c.h.b16 %v5276
  %v5987 = vunpack.c.l.b16 %v5277
  %v5988 = vunpack.c.h.b16 %v5277
  %v5989 = vunpack.c.l.b16 %v5278
  %v5990 = vunpack.c.h.b16 %v5278
  %v5991 = vunpack.c.l.b16 %v5279
  %v5992 = vunpack.c.h.b16 %v5279
  %v5993 = vunpack.c.l.b16 %v5280
  %v5994 = vunpack.c.h.b16 %v5280
  %v5995 = vunpack.c.l.b16 %v5281
  %v5996 = vunpack.c.h.b16 %v5281
  %v5997 = vunpack.c.l.b16 %v5282
  %v5998 = vunpack.c.h.b16 %v5282
  %v5999 = vunpack.c.l.b16 %v5283
  %v6000 = vunpack.c.h.b16 %v5283
  %v6001 = vunpack.c.l.b16 %v5284
  %v6002 = vunpack.c.h.b16 %v5284
  %v6003 = vunpack.c.l.b16 %v5285
  %v6004 = vunpack.c.h.b16 %v5285
  %v6005 = vunpack.c.l.b16 %v5286
  %v6006 = vunpack.c.h.b16 %v5286
  %v6007 = vunpack.c.l.b16 %v5287
  %v6008 = vunpack.c.h.b16 %v5287
  %v6009 = vunpack.c.l.b16 %v5288
  %v6010 = vunpack.c.h.b16 %v5288
  %v6011 = vunpack.c.l.b16 %v5289
  %v6012 = vunpack.c.h.b16 %v5289
  %v6013 = vunpack.c.l.b16 %v5290
  %v6014 = vunpack.c.h.b16 %v5290
  %v6015 = vunpack.c.l.b16 %v5291
  %v6016 = vunpack.c.h.b16 %v5291
  %v6017 = vunpack.c.l.b16 %v5292
  %v6018 = vunpack.c.h.b16 %v5292
  %v6019 = vunpack.c.l.b16 %v5293
  %v6020 = vunpack.c.h.b16 %v5293
  %v6021 = vunpack.c.l.b16 %v5294
  %v6022 = vunpack.c.h.b16 %v5294
  %v6023 = vunpack.c.l.b16 %v5295
  %v6024 = vunpack.c.h.b16 %v5295
  %v6025 = vunpack.c.l.b16 %v5296
  %v6026 = vunpack.c.h.b16 %v5296
  %v6027 = vunpack.c.l.b16 %v5297
  %v6028 = vunpack.c.h.b16 %v5297
  %v6029 = vunpack.c.l.b16 %v5298
  %v6030 = vunpack.c.h.b16 %v5298
  %v6031 = vunpack.c.l.b16 %v5299
  %v6032 = vunpack.c.h.b16 %v5299
  %v6033 = vunpack.c.l.b16 %v5300
  %v6034 = vunpack.c.h.b16 %v5300
  %v6035 = vunpack.c.l.b16 %v5301
  %v6036 = vunpack.c.h.b16 %v5301
  %v6037 = vunpack.c.l.b16 %v5302
  %v6038 = vunpack.c.h.b16 %v5302
  %v6039 = vunpack.c.l.b16 %v5303
  %v6040 = vunpack.c.h.b16 %v5303
  %v6041 = vunpack.c.l.b16 %v5304
  %v6042 = vunpack.c.h.b16 %v5304
  %v6043 = vunpack.c.l.b16 %v5305
  %v6044 = vunpack.c.h.b16 %v5305
  %v6045 = vunpack.c.l.b16 %v5306
  %v6046 = vunpack.c.h.b16 %v5306
  %v6047 = vunpack.c.l.b16 %v5307
  %v6048 = vunpack.c.h.b16 %v5307
  %v6049 = vunpack.c.l.b16 %v5308
  %v6050 = vunpack.c.h.b16 %v5308
  %v6051 = vunpack.c.l.b16 %v5309
  %v6052 = vunpack.c.h.b16 %v5309
  %v6053 = vunpack.c.l.b16 %v5310
  %v6054 = vunpack.c.h.b16 %v5310
  %v6055 = vunpack.c.l.b16 %v5311
  %v6056 = vunpack.c.h.b16 %v5311
  %v6057 = vunpack.c.l.b16 %v5312
  %v6058 = vunpack.c.h.b16 %v5312
  %v6059 = vunpack.c.l.b16 %v5313
  %v6060 = vunpack.c.h.b16 %v5313
  %v6061 = vunpack.c.l.b16 %v5314
  %v6062 = vunpack.c.h.b16 %v5314
  %v6063 = vunpack.c.l.b16 %v5315
  %v6064 = vunpack.c.h.b16 %v5315
  %v6065 = vunpack.c.l.b16 %v5316
  %v6066 = vunpack.c.h.b16 %v5316
  %v6067 = vunpack.c.l.b16 %v5317
  %v6068 = vunpack.c.h.b16 %v5317
  %v6069 = vunpack.c.l.b16 %v5318
  %v6070 = vunpack.c.h.b16 %v5318
  %v6071 = vunpack.c.l.b16 %v5319
  %v6072 = vunpack.c.h.b16 %v5319
  %v6073 = vunpack.c.l.b16 %v5320
  %v6074 = vunpack.c.h.b16 %v5320
  %v6075 = vunpack.c.l.b16 %v5321
  %v6076 = vunpack.c.h.b16 %v5321
  %v6077 = vunpack.c.l.b16 %v5322
  %v6078 = vunpack.c.h.b16 %v5322
  %v6079 = vunpack.c.l.b16 %v5323
  %v6080 = vunpack.c.h.b16 %v5323
  %v6081 = vunpack.c.l.b16 %v5324
  %v6082 = vunpack.c.h.b16 %v5324
  %v6083 = vunpack.c.l.b16 %v5325
  %v6084 = vunpack.c.h.b16 %v5325
  %v6085 = vunpack.c.l.b16 %v5326
  %v6086 = vunpack.c.h.b16 %v5326
  %v6087 = vunpack.c.l.b16 %v5327
  %v6088 = vunpack.c.h.b16 %v5327
  %v6089 = vunpack.c.l.b16 %v5328
  %v6090 = vunpack.c.h.b16 %v5328
  %v6091 = vunpack.c.l.b16 %v5329
  %v6092 = vunpack.c.h.b16 %v5329
  %v6093 = vunpack.c.l.b16 %v5330
  %v6094 = vunpack.c.h.b16 %v5330
  %v6095 = vunpack.c.l.b16 %v5331
  %v6096 = vunpack.c.h.b16 %v5331
  %v6097 = vunpack.c.l.b16 %v5332
  %v6098 = vunpack.c.h.b16 %v5332
  %v6099 = vunpack.c.l.b16 %v5333
  %v6100 = vunpack.c.h.b16 %v5333
  %v6101 = vunpack.c.l.b16 %v5334
  %v6102 = vunpack.c.h.b16 %v5334
  %v6103 = vpack.c.b16 %v5599, %v5591
  %v6104 = vpack.c.b16 %v5600, %v5592
  %v6105 = vpack.c.b16 %v5601, %v5593
  %v6106 = vpack.c.b16 %v5602, %v5594
  %v6107 = vpack.c.b16 %v5603, %v5595
  %v6108 = vpack.c.b16 %v5604, %v5596
  %v6109 = vpack.c.b16 %v5605, %v5597
  %v6110 = vpack.c.b16 %v5606, %v5598
  %v6111 = vpack.c.b16 %v5615, %v5607
  %v6112 = vpack.c.b16 %v5616, %v5608
  %v6113 = vpack.c.b16 %v5617, %v5609
  %v6114 = vpack.c.b16 %v5618, %v5610
  %v6115 = vpack.c.b16 %v5619, %v5611
  %v6116 = vpack.c.b16 %v5620, %v5612
  %v6117 = vpack.c.b16 %v5621, %v5613
  %v6118 = vpack.c.b16 %v5622, %v5614
  %v6119 = vpack.c.b16 %v5631, %v5623
  %v6120 = vpack.c.b16 %v5632, %v5624
  %v6121 = vpack.c.b16 %v5633, %v5625
  %v6122 = vpack.c.b16 %v5634, %v5626
  %v6123 = vpack.c.b16 %v5635, %v5627
  %v6124 = vpack.c.b16 %v5636, %v5628
  %v6125 = vpack.c.b16 %v5637, %v5629
  %v6126 = vpack.c.b16 %v5638, %v5630
  %v6127 = vpack.c.b16 %v5647, %v5639
  %v6128 = vpack.c.b16 %v5648, %v5640
  %v6129 = vpack.c.b16 %v5649, %v5641
  %v6130 = vpack.c.b16 %v5650, %v5642
  %v6131 = vpack.c.b16 %v5651, %v5643
  %v6132 = vpack.c.b16 %v5652, %v5644
  %v6133 = vpack.c.b16 %v5653, %v5645
  %v6134 = vpack.c.b16 %v5654, %v5646
  %v6135 = vpack.c.b16 %v5663, %v5655
  %v6136 = vpack.c.b16 %v5664, %v5656
  %v6137 = vpack.c.b16 %v5665, %v5657
  %v6138 = vpack.c.b16 %v5666, %v5658
  %v6139 = vpack.c.b16 %v5667, %v5659
  %v6140 = vpack.c.b16 %v5668, %v5660
  %v6141 = vpack.c.b16 %v5669, %v5661
  %v6142 = vpack.c.b16 %v5670, %v5662
  %v6143 = vpack.c.b16 %v5679, %v5671
  %v6144 = vpack.c.b16 %v5680, %v5672
  %v6145 = vpack.c.b16 %v5681, %v5673
  %v6146 = vpack.c.b16 %v5682, %v5674
  %v6147 = vpack.c.b16 %v5683, %v5675
  %v6148 = vpack.c.b16 %v5684, %v5676
  %v6149 = vpack.c.b16 %v5685, %v5677
  %v6150 = vpack.c.b16 %v5686, %v5678
  %v6151 = vpack.c.b16 %v5695, %v5687
  %v6152 = vpack.c.b16 %v5696, %v5688
  %v6153 = vpack.c.b16 %v5697, %v5689
  %v6154 = vpack.c.b16 %v5698, %v5690
  %v6155 = vpack.c.b16 %v5699, %v5691
  %v6156 = vpack.c.b16 %v5700, %v5692
  %v6157 = vpack.c.b16 %v5701, %v5693
  %v6158 = vpack.c.b16 %v5702, %v5694
  %v6159 = vpack.c.b16 %v5711, %v5703
  %v6160 = vpack.c.b16 %v5712, %v5704
  %v6161 = vpack.c.b16 %v5713, %v5705
  %v6162 = vpack.c.b16 %v5714, %v5706
  %v6163 = vpack.c.b16 %v5715, %v5707
  %v6164 = vpack.c.b16 %v5716, %v5708
  %v6165 = vpack.c.b16 %v5717, %v5709
  %v6166 = vpack.c.b16 %v5718, %v5710
  %v6167 = vpack.c.b16 %v5727, %v5719
  %v6168 = vpack.c.b16 %v5728, %v5720
  %v6169 = vpack.c.b16 %v5729, %v5721
  %v6170 = vpack.c.b16 %v5730, %v5722
  %v6171 = vpack.c.b16 %v5731, %v5723
  %v6172 = vpack.c.b16 %v5732, %v5724
  %v6173 = vpack.c.b16 %v5733, %v5725
  %v6174 = vpack.c.b16 %v5734, %v5726
  %v6175 = vpack.c.b16 %v5743, %v5735
  %v6176 = vpack.c.b16 %v5744, %v5736
  %v6177 = vpack.c.b16 %v5745, %v5737
  %v6178 = vpack.c.b16 %v5746, %v5738
  %v6179 = vpack.c.b16 %v5747, %v5739
  %v6180 = vpack.c.b16 %v5748, %v5740
  %v6181 = vpack.c.b16 %v5749, %v5741
  %v6182 = vpack.c.b16 %v5750, %v5742
  %v6183 = vpack.c.b16 %v5759, %v5751
  %v6184 = vpack.c.b16 %v5760, %v5752
  %v6185 = vpack.c.b16 %v5761, %v5753
  %v6186 = vpack.c.b16 %v5762, %v5754
  %v6187 = vpack.c.b16 %v5763, %v5755
  %v6188 = vpack.c.b16 %v5764, %v5756
  %v6189 = vpack.c.b16 %v5765, %v5757
  %v6190 = vpack.c.b16 %v5766, %v5758
  %v6191 = vpack.c.b16 %v5775, %v5767
  %v6192 = vpack.c.b16 %v5776, %v5768
  %v6193 = vpack.c.b16 %v5777, %v5769
  %v6194 = vpack.c.b16 %v5778, %v5770
  %v6195 = vpack.c.b16 %v5779, %v5771
  %v6196 = vpack.c.b16 %v5780, %v5772
  %v6197 = vpack.c.b16 %v5781, %v5773
  %v6198 = vpack.c.b16 %v5782, %v5774
  %v6199 = vpack.c.b16 %v5791, %v5783
  %v6200 = vpack.c.b16 %v5792, %v5784
  %v6201 = vpack.c.b16 %v5793, %v5785
  %v6202 = vpack.c.b16 %v5794, %v5786
  %v6203 = vpack.c.b16 %v5795, %v5787
  %v6204 = vpack.c.b16 %v5796, %v5788
  %v6205 = vpack.c.b16 %v5797, %v5789
  %v6206 = vpack.c.b16 %v5798, %v5790
  %v6207 = vpack.c.b16 %v5807, %v5799
  %v6208 = vpack.c.b16 %v5808, %v5800
  %v6209 = vpack.c.b16 %v5809, %v5801
  %v6210 = vpack.c.b16 %v5810, %v5802
  %v6211 = vpack.c.b16 %v5811, %v5803
  %v6212 = vpack.c.b16 %v5812, %v5804
  %v6213 = vpack.c.b16 %v5813, %v5805
  %v6214 = vpack.c.b16 %v5814, %v5806
  %v6215 = vpack.c.b16 %v5823, %v5815
  %v6216 = vpack.c.b16 %v5824, %v5816
  %v6217 = vpack.c.b16 %v5825, %v5817
  %v6218 = vpack.c.b16 %v5826, %v5818
  %v6219 = vpack.c.b16 %v5827, %v5819
  %v6220 = vpack.c.b16 %v5828, %v5820
  %v6221 = vpack.c.b16 %v5829, %v5821
  %v6222 = vpack.c.b16 %v5830, %v5822
  %v6223 = vpack.c.b16 %v5839, %v5831
  %v6224 = vpack.c.b16 %v5840, %v5832
  %v6225 = vpack.c.b16 %v5841, %v5833
  %v6226 = vpack.c.b16 %v5842, %v5834
  %v6227 = vpack.c.b16 %v5843, %v5835
  %v6228 = vpack.c.b16 %v5844, %v5836
  %v6229 = vpack.c.b16 %v5845, %v5837
  %v6230 = vpack.c.b16 %v5846, %v5838
  %v6231 = vpack.c.b16 %v5855, %v5847
  %v6232 = vpack.c.b16 %v5856, %v5848
  %v6233 = vpack.c.b16 %v5857, %v5849
  %v6234 = vpack.c.b16 %v5858, %v5850
  %v6235 = vpack.c.b16 %v5859, %v5851
  %v6236 = vpack.c.b16 %v5860, %v5852
  %v6237 = vpack.c.b16 %v5861, %v5853
  %v6238 = vpack.c.b16 %v5862, %v5854
  %v6239 = vpack.c.b16 %v5871, %v5863
  %v6240 = vpack.c.b16 %v5872, %v5864
  %v6241 = vpack.c.b16 %v5873, %v5865
  %v6242 = vpack.c.b16 %v5874, %v5866
  %v6243 = vpack.c.b16 %v5875, %v5867
  %v6244 = vpack.c.b16 %v5876, %v5868
  %v6245 = vpack.c.b16 %v5877, %v5869
  %v6246 = vpack.c.b16 %v5878, %v5870
  %v6247 = vpack.c.b16 %v5887, %v5879
  %v6248 = vpack.c.b16 %v5888, %v5880
  %v6249 = vpack.c.b16 %v5889, %v5881
  %v6250 = vpack.c.b16 %v5890, %v5882
  %v6251 = vpack.c.b16 %v5891, %v5883
  %v6252 = vpack.c.b16 %v5892, %v5884
  %v6253 = vpack.c.b16 %v5893, %v5885
  %v6254 = vpack.c.b16 %v5894, %v5886
  %v6255 = vpack.c.b16 %v5903, %v5895
  %v6256 = vpack.c.b16 %v5904, %v5896
  %v6257 = vpack.c.b16 %v5905, %v5897
  %v6258 = vpack.c.b16 %v5906, %v5898
  %v6259 = vpack.c.b16 %v5907, %v5899
  %v6260 = vpack.c.b16 %v5908, %v5900
  %v6261 = vpack.c.b16 %v5909, %v5901
  %v6262 = vpack.c.b16 %v5910, %v5902
  %v6263 = vpack.c.b16 %v5919, %v5911
  %v6264 = vpack.c.b16 %v5920, %v5912
  %v6265 = vpack.c.b16 %v5921, %v5913
  %v6266 = vpack.c.b16 %v5922, %v5914
  %v6267 = vpack.c.b16 %v5923, %v5915
  %v6268 = vpack.c.b16 %v5924, %v5916
  %v6269 = vpack.c.b16 %v5925, %v5917
  %v6270 = vpack.c.b16 %v5926, %v5918
  %v6271 = vpack.c.b16 %v5935, %v5927
  %v6272 = vpack.c.b16 %v5936, %v5928
  %v6273 = vpack.c.b16 %v5937, %v5929
  %v6274 = vpack.c.b16 %v5938, %v5930
  %v6275 = vpack.c.b16 %v5939, %v5931
  %v6276 = vpack.c.b16 %v5940, %v5932
  %v6277 = vpack.c.b16 %v5941, %v5933
  %v6278 = vpack.c.b16 %v5942, %v5934
  %v6279 = vpack.c.b16 %v5951, %v5943
  %v6280 = vpack.c.b16 %v5952, %v5944
  %v6281 = vpack.c.b16 %v5953, %v5945
  %v6282 = vpack.c.b16 %v5954, %v5946
  %v6283 = vpack.c.b16 %v5955, %v5947
  %v6284 = vpack.c.b16 %v5956, %v5948
  %v6285 = vpack.c.b16 %v5957, %v5949
  %v6286 = vpack.c.b16 %v5958, %v5950
  %v6287 = vpack.c.b16 %v5967, %v5959
  %v6288 = vpack.c.b16 %v5968, %v5960
  %v6289 = vpack.c.b16 %v5969, %v5961
  %v6290 = vpack.c.b16 %v5970, %v5962
  %v6291 = vpack.c.b16 %v5971, %v5963
  %v6292 = vpack.c.b16 %v5972, %v5964
  %v6293 = vpack.c.b16 %v5973, %v5965
  %v6294 = vpack.c.b16 %v5974, %v5966
  %v6295 = vpack.c.b16 %v5983, %v5975
  %v6296 = vpack.c.b16 %v5984, %v5976
  %v6297 = vpack.c.b16 %v5985, %v5977
  %v6298 = vpack.c.b16 %v5986, %v5978
  %v6299 = vpack.c.b16 %v5987, %v5979
  %v6300 = vpack.c.b16 %v5988, %v5980
  %v6301 = vpack.c.b16 %v5989, %v5981
  %v6302 = vpack.c.b16 %v5990, %v5982
  %v6303 = vpack.c.b16 %v5999, %v5991
  %v6304 = vpack.c.b16 %v6000, %v5992
  %v6305 = vpack.c.b16 %v6001, %v5993
  %v6306 = vpack.c.b16 %v6002, %v5994
  %v6307 = vpack.c.b16 %v6003, %v5995
  %v6308 = vpack.c.b16 %v6004, %v5996
  %v6309 = vpack.c.b16 %v6005, %v5997
  %v6310 = vpack.c.b16 %v6006, %v5998
  %v6311 = vpack.c.b16 %v6015, %v6007
  %v6312 = vpack.c.b16 %v6016, %v6008
  %v6313 = vpack.c.b16 %v6017, %v6009
  %v6314 = vpack.c.b16 %v6018, %v6010
  %v6315 = vpack.c.b16 %v6019, %v6011
  %v6316 = vpack.c.b16 %v6020, %v6012
  %v6317 = vpack.c.b16 %v6021, %v6013
  %v6318 = vpack.c.b16 %v6022, %v6014
  %v6319 = vpack.c.b16 %v6031, %v6023
  %v6320 = vpack.c.b16 %v6032, %v6024
  %v6321 = vpack.c.b16 %v6033, %v6025
  %v6322 = vpack.c.b16 %v6034, %v6026
  %v6323 = vpack.c.b16 %v6035, %v6027
  %v6324 = vpack.c.b16 %v6036, %v6028
  %v6325 = vpack.c.b16 %v6037, %v6029
  %v6326 = vpack.c.b16 %v6038, %v6030
  %v6327 = vpack.c.b16 %v6047, %v6039
  %v6328 = vpack.c.b16 %v6048, %v6040
  %v6329 = vpack.c.b16 %v6049, %v6041
  %v6330 = vpack.c.b16 %v6050, %v6042
  %v6331 = vpack.c.b16 %v6051, %v6043
  %v6332 = vpack.c.b16 %v6052, %v6044
  %v6333 = vpack.c.b16 %v6053, %v6045
  %v6334 = vpack.c.b16 %v6054, %v6046
  %v6335 = vpack.c.b16 %v6063, %v6055
  %v6336 = vpack.c.b16 %v6064, %v6056
  %v6337 = vpack.c.b16 %v6065, %v6057
  %v6338 = vpack.c.b16 %v6066, %v6058
  %v6339 = vpack.c.b16 %v6067, %v6059
  %v6340 = vpack.c.b16 %v6068, %v6060
  %v6341 = vpack.c.b16 %v6069, %v6061
  %v6342 = vpack.c.b16 %v6070, %v6062
  %v6343 = vpack.c.b16 %v6079, %v6071
  %v6344 = vpack.c.b16 %v6080, %v6072
  %v6345 = vpack.c.b16 %v6081, %v6073
  %v6346 = vpack.c.b16 %v6082, %v6074
  %v6347 = vpack.c.b16 %v6083, %v6075
  %v6348 = vpack.c.b16 %v6084, %v6076
  %v6349 = vpack.c.b16 %v6085, %v6077
  %v6350 = vpack.c.b16 %v6086, %v6078
  %v6351 = vpack.c.b16 %v6095, %v6087
  %v6352 = vpack.c.b16 %v6096, %v6088
  %v6353 = vpack.c.b16 %v6097, %v6089
  %v6354 = vpack.c.b16 %v6098, %v6090
  %v6355 = vpack.c.b16 %v6099, %v6091
  %v6356 = vpack.c.b16 %v6100, %v6092
  %v6357 = vpack.c.b16 %v6101, %v6093
  %v6358 = vpack.c.b16 %v6102, %v6094
  %6615 = vmatprep.subr.bf16.mxu0 %v6160
  %6616 = vmatpush1.bf16.msra.mxu0 %v6159
  %6617 = vmatprep.subr.bf16.mxu0 %v6152
  %6618 = vmatpush1.bf16.msra.mxu0 %v6151
  %6619 = vmatprep.subr.bf16.mxu0 %v6144
  %6620 = vmatpush1.bf16.msra.mxu0 %v6143
  %6621 = vmatprep.subr.bf16.mxu0 %v6136
  %6622 = vmatpush1.bf16.msra.mxu0 %v6135
  %6623 = vmatprep.subr.bf16.mxu0 %v6128
  %6624 = vmatpush1.bf16.msra.mxu0 %v6127
  %6625 = vmatprep.subr.bf16.mxu0 %v6120
  %6626 = vmatpush1.bf16.msra.mxu0 %v6119
  %6627 = vmatprep.subr.bf16.mxu0 %v6112
  %6628 = vmatpush1.bf16.msra.mxu0 %v6111
  %6629 = vmatprep.subr.bf16.mxu0 %v6104
  %6630 = vmatpush1.bf16.msra.mxu0 %v6103
  %6631 = vmatprep.subr.bf16.mxu0 %v6224
  %6632 = vmatpush2.bf16.msra.mxu0 %v6223
  %6633 = vmatprep.subr.bf16.mxu0 %v6216
  %6634 = vmatpush2.bf16.msra.mxu0 %v6215
  %6635 = vmatprep.subr.bf16.mxu0 %v6208
  %6636 = vmatpush2.bf16.msra.mxu0 %v6207
  %6637 = vmatprep.subr.bf16.mxu0 %v6200
  %6638 = vmatpush2.bf16.msra.mxu0 %v6199
  %6639 = vmatprep.subr.bf16.mxu0 %v6192
  %6640 = vmatpush2.bf16.msra.mxu0 %v6191
  %6641 = vmatprep.subr.bf16.mxu0 %v6184
  %6642 = vmatpush2.bf16.msra.mxu0 %v6183
  %6643 = vmatprep.subr.bf16.mxu0 %v6176
  %6644 = vmatpush2.bf16.msra.mxu0 %v6175
  %6645 = vmatprep.subr.bf16.mxu0 %v6168
  %6646 = vmatpush2.bf16.msra.mxu0 %v6167
  %6647 = vmatprep.mubr.bf16.mxu0 %v5076
  %6648 = vmatmul.mubr.bf16.gmra.mxu0 %v5075
  %v6649 = vpop.f32.mrf.mxu0
  %v6650 = vadd.f32 %v2099, %v6649
  %v6651 = vpop.f32.mrf.mxu0
  %v6652 = vadd.f32 %v2103, %v6651
  %v6653 = vpop.f32.mrf.mxu0
  %v6654 = vpop.f32.mrf.mxu0
  %6655 = vdwg.mxu0
  %6656 = vmatprep.subr.bf16.mxu0 %v6288
  %6657 = vmatpush1.bf16.msra.mxu0 %v6287
  %6658 = vmatprep.subr.bf16.mxu0 %v6280
  %6659 = vmatpush1.bf16.msra.mxu0 %v6279
  %6660 = vmatprep.subr.bf16.mxu0 %v6272
  %6661 = vmatpush1.bf16.msra.mxu0 %v6271
  %6662 = vmatprep.subr.bf16.mxu0 %v6264
  %6663 = vmatpush1.bf16.msra.mxu0 %v6263
  %6664 = vmatprep.subr.bf16.mxu0 %v6256
  %6665 = vmatpush1.bf16.msra.mxu0 %v6255
  %6666 = vmatprep.subr.bf16.mxu0 %v6248
  %6667 = vmatpush1.bf16.msra.mxu0 %v6247
  %6668 = vmatprep.subr.bf16.mxu0 %v6240
  %6669 = vmatpush1.bf16.msra.mxu0 %v6239
  %6670 = vmatprep.subr.bf16.mxu0 %v6232
  %6671 = vmatpush1.bf16.msra.mxu0 %v6231
  %6672 = vmatprep.subr.bf16.mxu0 %v6352
  %6673 = vmatpush2.bf16.msra.mxu0 %v6351
  %6674 = vmatprep.subr.bf16.mxu0 %v6344
  %6675 = vmatpush2.bf16.msra.mxu0 %v6343
  %6676 = vmatprep.subr.bf16.mxu0 %v6336
  %6677 = vmatpush2.bf16.msra.mxu0 %v6335
  %6678 = vmatprep.subr.bf16.mxu0 %v6328
  %6679 = vmatpush2.bf16.msra.mxu0 %v6327
  %6680 = vmatprep.subr.bf16.mxu0 %v6320
  %6681 = vmatpush2.bf16.msra.mxu0 %v6319
  %6682 = vmatprep.subr.bf16.mxu0 %v6312
  %6683 = vmatpush2.bf16.msra.mxu0 %v6311
  %6684 = vmatprep.subr.bf16.mxu0 %v6304
  %6685 = vmatpush2.bf16.msra.mxu0 %v6303
  %6686 = vmatprep.subr.bf16.mxu0 %v6296
  %6687 = vmatpush2.bf16.msra.mxu0 %v6295
  %6688 = vmatprep.mubr.bf16.mxu0 %v5078
  %6689 = vmatmul.mubr.bf16.gmra.mxu0 %v5077
  %v6690 = vpop.f32.mrf.mxu0
  %v6691 = vadd.f32 %v6650, %v6690
  %v6692 = vpop.f32.mrf.mxu0
  %v6693 = vadd.f32 %v6652, %v6692
  %v6694 = vpop.f32.mrf.mxu0
  %v6695 = vpop.f32.mrf.mxu0
  %6696 = vdwg.mxu0
  %6697 = vmatprep.subr.bf16.mxu0 %v6162
  %6698 = vmatpush1.bf16.msra.mxu0 %v6161
  %6699 = vmatprep.subr.bf16.mxu0 %v6154
  %6700 = vmatpush1.bf16.msra.mxu0 %v6153
  %6701 = vmatprep.subr.bf16.mxu0 %v6146
  %6702 = vmatpush1.bf16.msra.mxu0 %v6145
  %6703 = vmatprep.subr.bf16.mxu0 %v6138
  %6704 = vmatpush1.bf16.msra.mxu0 %v6137
  %6705 = vmatprep.subr.bf16.mxu0 %v6130
  %6706 = vmatpush1.bf16.msra.mxu0 %v6129
  %6707 = vmatprep.subr.bf16.mxu0 %v6122
  %6708 = vmatpush1.bf16.msra.mxu0 %v6121
  %6709 = vmatprep.subr.bf16.mxu0 %v6114
  %6710 = vmatpush1.bf16.msra.mxu0 %v6113
  %6711 = vmatprep.subr.bf16.mxu0 %v6106
  %6712 = vmatpush1.bf16.msra.mxu0 %v6105
  %6713 = vmatprep.subr.bf16.mxu0 %v6226
  %6714 = vmatpush2.bf16.msra.mxu0 %v6225
  %6715 = vmatprep.subr.bf16.mxu0 %v6218
  %6716 = vmatpush2.bf16.msra.mxu0 %v6217
  %6717 = vmatprep.subr.bf16.mxu0 %v6210
  %6718 = vmatpush2.bf16.msra.mxu0 %v6209
  %6719 = vmatprep.subr.bf16.mxu0 %v6202
  %6720 = vmatpush2.bf16.msra.mxu0 %v6201
  %6721 = vmatprep.subr.bf16.mxu0 %v6194
  %6722 = vmatpush2.bf16.msra.mxu0 %v6193
  %6723 = vmatprep.subr.bf16.mxu0 %v6186
  %6724 = vmatpush2.bf16.msra.mxu0 %v6185
  %6725 = vmatprep.subr.bf16.mxu0 %v6178
  %6726 = vmatpush2.bf16.msra.mxu0 %v6177
  %6727 = vmatprep.subr.bf16.mxu0 %v6170
  %6728 = vmatpush2.bf16.msra.mxu0 %v6169
  %6729 = vmatprep.mubr.bf16.mxu0 %v5076
  %6730 = vmatmul.mubr.bf16.gmra.mxu0 %v5075
  %v6731 = vpop.f32.mrf.mxu0
  %v6732 = vadd.f32 %v2107, %v6731
  %v6733 = vpop.f32.mrf.mxu0
  %v6734 = vadd.f32 %v2111, %v6733
  %v6735 = vpop.f32.mrf.mxu0
  %v6736 = vpop.f32.mrf.mxu0
  %6737 = vdwg.mxu0
  %6738 = vmatprep.subr.bf16.mxu0 %v6290
  %6739 = vmatpush1.bf16.msra.mxu0 %v6289
  %6740 = vmatprep.subr.bf16.mxu0 %v6282
  %6741 = vmatpush1.bf16.msra.mxu0 %v6281
  %6742 = vmatprep.subr.bf16.mxu0 %v6274
  %6743 = vmatpush1.bf16.msra.mxu0 %v6273
  %6744 = vmatprep.subr.bf16.mxu0 %v6266
  %6745 = vmatpush1.bf16.msra.mxu0 %v6265
  %6746 = vmatprep.subr.bf16.mxu0 %v6258
  %6747 = vmatpush1.bf16.msra.mxu0 %v6257
  %6748 = vmatprep.subr.bf16.mxu0 %v6250
  %6749 = vmatpush1.bf16.msra.mxu0 %v6249
  %6750 = vmatprep.subr.bf16.mxu0 %v6242
  %6751 = vmatpush1.bf16.msra.mxu0 %v6241
  %6752 = vmatprep.subr.bf16.mxu0 %v6234
  %6753 = vmatpush1.bf16.msra.mxu0 %v6233
  %6754 = vmatprep.subr.bf16.mxu0 %v6354
  %6755 = vmatpush2.bf16.msra.mxu0 %v6353
  %6756 = vmatprep.subr.bf16.mxu0 %v6346
  %6757 = vmatpush2.bf16.msra.mxu0 %v6345
  %6758 = vmatprep.subr.bf16.mxu0 %v6338
  %6759 = vmatpush2.bf16.msra.mxu0 %v6337
  %6760 = vmatprep.subr.bf16.mxu0 %v6330
  %6761 = vmatpush2.bf16.msra.mxu0 %v6329
  %6762 = vmatprep.subr.bf16.mxu0 %v6322
  %6763 = vmatpush2.bf16.msra.mxu0 %v6321
  %6764 = vmatprep.subr.bf16.mxu0 %v6314
  %6765 = vmatpush2.bf16.msra.mxu0 %v6313
  %6766 = vmatprep.subr.bf16.mxu0 %v6306
  %6767 = vmatpush2.bf16.msra.mxu0 %v6305
  %6768 = vmatprep.subr.bf16.mxu0 %v6298
  %6769 = vmatpush2.bf16.msra.mxu0 %v6297
  %6770 = vmatprep.mubr.bf16.mxu0 %v5078
  %6771 = vmatmul.mubr.bf16.gmra.mxu0 %v5077
  %v6772 = vpop.f32.mrf.mxu0
  %v6773 = vadd.f32 %v6732, %v6772
  %v6774 = vpop.f32.mrf.mxu0
  %v6775 = vadd.f32 %v6734, %v6774
  %v6776 = vpop.f32.mrf.mxu0
  %v6777 = vpop.f32.mrf.mxu0
  %6778 = vdwg.mxu0
  %6779 = vmatprep.subr.bf16.mxu0 %v6164
  %6780 = vmatpush1.bf16.msra.mxu0 %v6163
  %6781 = vmatprep.subr.bf16.mxu0 %v6156
  %6782 = vmatpush1.bf16.msra.mxu0 %v6155
  %6783 = vmatprep.subr.bf16.mxu0 %v6148
  %6784 = vmatpush1.bf16.msra.mxu0 %v6147
  %6785 = vmatprep.subr.bf16.mxu0 %v6140
  %6786 = vmatpush1.bf16.msra.mxu0 %v6139
  %6787 = vmatprep.subr.bf16.mxu0 %v6132
  %6788 = vmatpush1.bf16.msra.mxu0 %v6131
  %6789 = vmatprep.subr.bf16.mxu0 %v6124
  %6790 = vmatpush1.bf16.msra.mxu0 %v6123
  %6791 = vmatprep.subr.bf16.mxu0 %v6116
  %6792 = vmatpush1.bf16.msra.mxu0 %v6115
  %6793 = vmatprep.subr.bf16.mxu0 %v6108
  %6794 = vmatpush1.bf16.msra.mxu0 %v6107
  %6795 = vmatprep.subr.bf16.mxu0 %v6228
  %6796 = vmatpush2.bf16.msra.mxu0 %v6227
  %6797 = vmatprep.subr.bf16.mxu0 %v6220
  %6798 = vmatpush2.bf16.msra.mxu0 %v6219
  %6799 = vmatprep.subr.bf16.mxu0 %v6212
  %6800 = vmatpush2.bf16.msra.mxu0 %v6211
  %6801 = vmatprep.subr.bf16.mxu0 %v6204
  %6802 = vmatpush2.bf16.msra.mxu0 %v6203
  %6803 = vmatprep.subr.bf16.mxu0 %v6196
  %6804 = vmatpush2.bf16.msra.mxu0 %v6195
  %6805 = vmatprep.subr.bf16.mxu0 %v6188
  %6806 = vmatpush2.bf16.msra.mxu0 %v6187
  %6807 = vmatprep.subr.bf16.mxu0 %v6180
  %6808 = vmatpush2.bf16.msra.mxu0 %v6179
  %6809 = vmatprep.subr.bf16.mxu0 %v6172
  %6810 = vmatpush2.bf16.msra.mxu0 %v6171
  %6811 = vmatprep.mubr.bf16.mxu0 %v5076
  %6812 = vmatmul.mubr.bf16.gmra.mxu0 %v5075
  %v6813 = vpop.f32.mrf.mxu0
  %v6814 = vadd.f32 %v2115, %v6813
  %v6815 = vpop.f32.mrf.mxu0
  %v6816 = vadd.f32 %v2119, %v6815
  %v6817 = vpop.f32.mrf.mxu0
  %v6818 = vpop.f32.mrf.mxu0
  %6819 = vdwg.mxu0
  %6820 = vmatprep.subr.bf16.mxu0 %v6292
  %6821 = vmatpush1.bf16.msra.mxu0 %v6291
  %6822 = vmatprep.subr.bf16.mxu0 %v6284
  %6823 = vmatpush1.bf16.msra.mxu0 %v6283
  %6824 = vmatprep.subr.bf16.mxu0 %v6276
  %6825 = vmatpush1.bf16.msra.mxu0 %v6275
  %6826 = vmatprep.subr.bf16.mxu0 %v6268
  %6827 = vmatpush1.bf16.msra.mxu0 %v6267
  %6828 = vmatprep.subr.bf16.mxu0 %v6260
  %6829 = vmatpush1.bf16.msra.mxu0 %v6259
  %6830 = vmatprep.subr.bf16.mxu0 %v6252
  %6831 = vmatpush1.bf16.msra.mxu0 %v6251
  %6832 = vmatprep.subr.bf16.mxu0 %v6244
  %6833 = vmatpush1.bf16.msra.mxu0 %v6243
  %6834 = vmatprep.subr.bf16.mxu0 %v6236
  %6835 = vmatpush1.bf16.msra.mxu0 %v6235
  %6836 = vmatprep.subr.bf16.mxu0 %v6356
  %6837 = vmatpush2.bf16.msra.mxu0 %v6355
  %6838 = vmatprep.subr.bf16.mxu0 %v6348
  %6839 = vmatpush2.bf16.msra.mxu0 %v6347
  %6840 = vmatprep.subr.bf16.mxu0 %v6340
  %6841 = vmatpush2.bf16.msra.mxu0 %v6339
  %6842 = vmatprep.subr.bf16.mxu0 %v6332
  %6843 = vmatpush2.bf16.msra.mxu0 %v6331
  %6844 = vmatprep.subr.bf16.mxu0 %v6324
  %6845 = vmatpush2.bf16.msra.mxu0 %v6323
  %6846 = vmatprep.subr.bf16.mxu0 %v6316
  %6847 = vmatpush2.bf16.msra.mxu0 %v6315
  %6848 = vmatprep.subr.bf16.mxu0 %v6308
  %6849 = vmatpush2.bf16.msra.mxu0 %v6307
  %6850 = vmatprep.subr.bf16.mxu0 %v6300
  %6851 = vmatpush2.bf16.msra.mxu0 %v6299
  %6852 = vmatprep.mubr.bf16.mxu0 %v5078
  %6853 = vmatmul.mubr.bf16.gmra.mxu0 %v5077
  %v6854 = vpop.f32.mrf.mxu0
  %v6855 = vadd.f32 %v6814, %v6854
  %v6856 = vpop.f32.mrf.mxu0
  %v6857 = vadd.f32 %v6816, %v6856
  %v6858 = vpop.f32.mrf.mxu0
  %v6859 = vpop.f32.mrf.mxu0
  %6860 = vdwg.mxu0
  %6861 = vmatprep.subr.bf16.mxu0 %v6166
  %6862 = vmatpush1.bf16.msra.mxu0 %v6165
  %6863 = vmatprep.subr.bf16.mxu0 %v6158
  %6864 = vmatpush1.bf16.msra.mxu0 %v6157
  %6865 = vmatprep.subr.bf16.mxu0 %v6150
  %6866 = vmatpush1.bf16.msra.mxu0 %v6149
  %6867 = vmatprep.subr.bf16.mxu0 %v6142
  %6868 = vmatpush1.bf16.msra.mxu0 %v6141
  %6869 = vmatprep.subr.bf16.mxu0 %v6134
  %6870 = vmatpush1.bf16.msra.mxu0 %v6133
  %6871 = vmatprep.subr.bf16.mxu0 %v6126
  %6872 = vmatpush1.bf16.msra.mxu0 %v6125
  %6873 = vmatprep.subr.bf16.mxu0 %v6118
  %6874 = vmatpush1.bf16.msra.mxu0 %v6117
  %6875 = vmatprep.subr.bf16.mxu0 %v6110
  %6876 = vmatpush1.bf16.msra.mxu0 %v6109
  %6877 = vmatprep.subr.bf16.mxu0 %v6230
  %6878 = vmatpush2.bf16.msra.mxu0 %v6229
  %6879 = vmatprep.subr.bf16.mxu0 %v6222
  %6880 = vmatpush2.bf16.msra.mxu0 %v6221
  %6881 = vmatprep.subr.bf16.mxu0 %v6214
  %6882 = vmatpush2.bf16.msra.mxu0 %v6213
  %6883 = vmatprep.subr.bf16.mxu0 %v6206
  %6884 = vmatpush2.bf16.msra.mxu0 %v6205
  %6885 = vmatprep.subr.bf16.mxu0 %v6198
  %6886 = vmatpush2.bf16.msra.mxu0 %v6197
  %6887 = vmatprep.subr.bf16.mxu0 %v6190
  %6888 = vmatpush2.bf16.msra.mxu0 %v6189
  %6889 = vmatprep.subr.bf16.mxu0 %v6182
  %6890 = vmatpush2.bf16.msra.mxu0 %v6181
  %6891 = vmatprep.subr.bf16.mxu0 %v6174
  %6892 = vmatpush2.bf16.msra.mxu0 %v6173
  %6893 = vmatprep.mubr.bf16.mxu0 %v5076
  %6894 = vmatmul.mubr.bf16.gmra.mxu0 %v5075
  %v6895 = vpop.f32.mrf.mxu0
  %v6896 = vadd.f32 %v2123, %v6895
  %v6897 = vpop.f32.mrf.mxu0
  %v6898 = vadd.f32 %v2127, %v6897
  %v6899 = vpop.f32.mrf.mxu0
  %v6900 = vpop.f32.mrf.mxu0
  %6901 = vdwg.mxu0
  %6902 = vmatprep.subr.bf16.mxu0 %v6294
  %6903 = vmatpush1.bf16.msra.mxu0 %v6293
  %6904 = vmatprep.subr.bf16.mxu0 %v6286
  %6905 = vmatpush1.bf16.msra.mxu0 %v6285
  %6906 = vmatprep.subr.bf16.mxu0 %v6278
  %6907 = vmatpush1.bf16.msra.mxu0 %v6277
  %6908 = vmatprep.subr.bf16.mxu0 %v6270
  %6909 = vmatpush1.bf16.msra.mxu0 %v6269
  %6910 = vmatprep.subr.bf16.mxu0 %v6262
  %6911 = vmatpush1.bf16.msra.mxu0 %v6261
  %6912 = vmatprep.subr.bf16.mxu0 %v6254
  %6913 = vmatpush1.bf16.msra.mxu0 %v6253
  %6914 = vmatprep.subr.bf16.mxu0 %v6246
  %6915 = vmatpush1.bf16.msra.mxu0 %v6245
  %6916 = vmatprep.subr.bf16.mxu0 %v6238
  %6917 = vmatpush1.bf16.msra.mxu0 %v6237
  %6918 = vmatprep.subr.bf16.mxu0 %v6358
  %6919 = vmatpush2.bf16.msra.mxu0 %v6357
  %6920 = vmatprep.subr.bf16.mxu0 %v6350
  %6921 = vmatpush2.bf16.msra.mxu0 %v6349
  %6922 = vmatprep.subr.bf16.mxu0 %v6342
  %6923 = vmatpush2.bf16.msra.mxu0 %v6341
  %6924 = vmatprep.subr.bf16.mxu0 %v6334
  %6925 = vmatpush2.bf16.msra.mxu0 %v6333
  %6926 = vmatprep.subr.bf16.mxu0 %v6326
  %6927 = vmatpush2.bf16.msra.mxu0 %v6325
  %6928 = vmatprep.subr.bf16.mxu0 %v6318
  %6929 = vmatpush2.bf16.msra.mxu0 %v6317
  %6930 = vmatprep.subr.bf16.mxu0 %v6310
  %6931 = vmatpush2.bf16.msra.mxu0 %v6309
  %6932 = vmatprep.subr.bf16.mxu0 %v6302
  %6933 = vmatpush2.bf16.msra.mxu0 %v6301
  %6934 = vmatprep.mubr.bf16.mxu0 %v5078
  %6935 = vmatmul.mubr.bf16.gmra.mxu0 %v5077
  %v6936 = vpop.f32.mrf.mxu0
  %v6937 = vadd.f32 %v6896, %v6936
  %v6938 = vpop.f32.mrf.mxu0
  %v6939 = vadd.f32 %v6898, %v6938
  %v6940 = vpop.f32.mrf.mxu0
  %v6941 = vpop.f32.mrf.mxu0
  %6942 = vdwg.mxu0
  %v6943 = vmul.f32 %v6691, 0.5
  %v6944 = vmul.f32 %v6693, 0.5
  %v6945 = vtanh.pop %v6943
  %v6946 = vtanh.pop %v6944
  %v6947 = vadd.f32 %v6945, 1.0
  %v6948 = vadd.f32 %v6946, 1.0
  %v6949 = vmul.f32 %v6947, 0.5
  %v6950 = vmul.f32 %v6948, 0.5
  %v6951 = vmul.f32 %v6773, 0.5
  %v6952 = vmul.f32 %v6775, 0.5
  %v6953 = vtanh.pop %v6951
  %v6954 = vtanh.pop %v6952
  %v6955 = vadd.f32 %v6953, 1.0
  %v6956 = vadd.f32 %v6954, 1.0
  %v6957 = vmul.f32 %v6955, 0.5
  %v6958 = vmul.f32 %v6956, 0.5
  %v6959 = vtanh.pop %v6855
  %v6960 = vtanh.pop %v6857
  %v6961 = vmul.f32 %v6937, 0.5
  %v6962 = vmul.f32 %v6939, 0.5
  %v6963 = vtanh.pop %v6961
  %v6964 = vtanh.pop %v6962
  %v6965 = vadd.f32 %v6963, 1.0
  %v6966 = vadd.f32 %v6964, 1.0
  %v6967 = vmul.f32 %v6965, 0.5
  %v6968 = vmul.f32 %v6966, 0.5
  %v6969 = vmul.f32 %v6957, %v4081
  %v6970 = vmul.f32 %v6958, %v4082
  %v6971 = vmul.f32 %v6949, %v6959
  %v6972 = vmul.f32 %v6950, %v6960
  %v6973 = vadd.f32 %v6969, %v6971
  %v6974 = vadd.f32 %v6970, %v6972
  %v6975 = vtanh.pop %v6973
  %v6976 = vtanh.pop %v6974
  %v6977 = vmul.f32 %v6967, %v6975
  %v6978 = vmul.f32 %v6968, %v6976
  %v6979 = vld [vmem:[#allocation2 + $0x80] sm:$0xff]
  %v6980 = vld [vmem:[#allocation2 + $0x88] sm:$0xff]
  %v6981 = vld [vmem:[#allocation2 + $0x90] sm:$0xff]
  %v6982 = vld [vmem:[#allocation2 + $0x98] sm:$0xff]
  %v6983 = vld [vmem:[#allocation2 + $0xa0] sm:$0xff]
  %v6984 = vld [vmem:[#allocation2 + $0xa8] sm:$0xff]
  %v6985 = vld [vmem:[#allocation2 + $0xb0] sm:$0xff]
  %v6986 = vld [vmem:[#allocation2 + $0xb8] sm:$0xff]
  %6987 = vmatprep.subr.bf16.mxu0 %v4668
  %6988 = vmatpush1.bf16.msra.mxu0 %v4667
  %6989 = vmatprep.subr.bf16.mxu0 %v4660
  %6990 = vmatpush1.bf16.msra.mxu0 %v4659
  %6991 = vmatprep.subr.bf16.mxu0 %v4652
  %6992 = vmatpush1.bf16.msra.mxu0 %v4651
  %6993 = vmatprep.subr.bf16.mxu0 %v4644
  %6994 = vmatpush1.bf16.msra.mxu0 %v4643
  %6995 = vmatprep.subr.bf16.mxu0 %v4636
  %6996 = vmatpush1.bf16.msra.mxu0 %v4635
  %6997 = vmatprep.subr.bf16.mxu0 %v4628
  %6998 = vmatpush1.bf16.msra.mxu0 %v4627
  %6999 = vmatprep.subr.bf16.mxu0 %v4620
  %7000 = vmatpush1.bf16.msra.mxu0 %v4619
  %7001 = vmatprep.subr.bf16.mxu0 %v4612
  %7002 = vmatpush1.bf16.msra.mxu0 %v4611
  %7003 = vmatprep.subr.bf16.mxu0 %v4732
  %7004 = vmatpush2.bf16.msra.mxu0 %v4731
  %7005 = vmatprep.subr.bf16.mxu0 %v4724
  %7006 = vmatpush2.bf16.msra.mxu0 %v4723
  %7007 = vmatprep.subr.bf16.mxu0 %v4716
  %7008 = vmatpush2.bf16.msra.mxu0 %v4715
  %7009 = vmatprep.subr.bf16.mxu0 %v4708
  %7010 = vmatpush2.bf16.msra.mxu0 %v4707
  %7011 = vmatprep.subr.bf16.mxu0 %v4700
  %7012 = vmatpush2.bf16.msra.mxu0 %v4699
  %7013 = vmatprep.subr.bf16.mxu0 %v4692
  %7014 = vmatpush2.bf16.msra.mxu0 %v4691
  %7015 = vmatprep.subr.bf16.mxu0 %v4684
  %7016 = vmatpush2.bf16.msra.mxu0 %v4683
  %7017 = vmatprep.subr.bf16.mxu0 %v4676
  %7018 = vmatpush2.bf16.msra.mxu0 %v4675
  %7019 = vmatprep.mubr.bf16.mxu0 %v5076
  %7020 = vmatmul.mubr.bf16.gmra.mxu0 %v5075
  %v7021 = vpop.f32.mrf.mxu0
  %v7022 = vadd.f32 0.0, %v7021
  %v7023 = vpop.f32.mrf.mxu0
  %v7024 = vadd.f32 0.0, %v7023
  %v7025 = vpop.f32.mrf.mxu0
  %v7026 = vpop.f32.mrf.mxu0
  %7027 = vdwg.mxu0
  %7028 = vmatprep.subr.bf16.mxu0 %v4670
  %7029 = vmatpush1.bf16.msra.mxu0 %v4669
  %7030 = vmatprep.subr.bf16.mxu0 %v4662
  %7031 = vmatpush1.bf16.msra.mxu0 %v4661
  %7032 = vmatprep.subr.bf16.mxu0 %v4654
  %7033 = vmatpush1.bf16.msra.mxu0 %v4653
  %7034 = vmatprep.subr.bf16.mxu0 %v4646
  %7035 = vmatpush1.bf16.msra.mxu0 %v4645
  %7036 = vmatprep.subr.bf16.mxu0 %v4638
  %7037 = vmatpush1.bf16.msra.mxu0 %v4637
  %7038 = vmatprep.subr.bf16.mxu0 %v4630
  %7039 = vmatpush1.bf16.msra.mxu0 %v4629
  %7040 = vmatprep.subr.bf16.mxu0 %v4622
  %7041 = vmatpush1.bf16.msra.mxu0 %v4621
  %7042 = vmatprep.subr.bf16.mxu0 %v4614
  %7043 = vmatpush1.bf16.msra.mxu0 %v4613
  %7044 = vmatprep.subr.bf16.mxu0 %v4734
  %7045 = vmatpush2.bf16.msra.mxu0 %v4733
  %7046 = vmatprep.subr.bf16.mxu0 %v4726
  %7047 = vmatpush2.bf16.msra.mxu0 %v4725
  %7048 = vmatprep.subr.bf16.mxu0 %v4718
  %7049 = vmatpush2.bf16.msra.mxu0 %v4717
  %7050 = vmatprep.subr.bf16.mxu0 %v4710
  %7051 = vmatpush2.bf16.msra.mxu0 %v4709
  %7052 = vmatprep.subr.bf16.mxu0 %v4702
  %7053 = vmatpush2.bf16.msra.mxu0 %v4701
  %7054 = vmatprep.subr.bf16.mxu0 %v4694
  %7055 = vmatpush2.bf16.msra.mxu0 %v4693
  %7056 = vmatprep.subr.bf16.mxu0 %v4686
  %7057 = vmatpush2.bf16.msra.mxu0 %v4685
  %7058 = vmatprep.subr.bf16.mxu0 %v4678
  %7059 = vmatpush2.bf16.msra.mxu0 %v4677
  %7060 = vmatprep.mubr.bf16.mxu0 %v5076
  %7061 = vmatmul.mubr.bf16.gmra.mxu0 %v5075
  %v7062 = vpop.f32.mrf.mxu0
  %v7063 = vadd.f32 0.0, %v7062
  %v7064 = vpop.f32.mrf.mxu0
  %v7065 = vadd.f32 0.0, %v7064
  %v7066 = vpop.f32.mrf.mxu0
  %v7067 = vpop.f32.mrf.mxu0
  %7068 = vdwg.mxu0
  %7069 = vmatprep.subr.bf16.mxu0 %v4672
  %7070 = vmatpush1.bf16.msra.mxu0 %v4671
  %7071 = vmatprep.subr.bf16.mxu0 %v4664
  %7072 = vmatpush1.bf16.msra.mxu0 %v4663
  %7073 = vmatprep.subr.bf16.mxu0 %v4656
  %7074 = vmatpush1.bf16.msra.mxu0 %v4655
  %7075 = vmatprep.subr.bf16.mxu0 %v4648
  %7076 = vmatpush1.bf16.msra.mxu0 %v4647
  %7077 = vmatprep.subr.bf16.mxu0 %v4640
  %7078 = vmatpush1.bf16.msra.mxu0 %v4639
  %7079 = vmatprep.subr.bf16.mxu0 %v4632
  %7080 = vmatpush1.bf16.msra.mxu0 %v4631
  %7081 = vmatprep.subr.bf16.mxu0 %v4624
  %7082 = vmatpush1.bf16.msra.mxu0 %v4623
  %7083 = vmatprep.subr.bf16.mxu0 %v4616
  %7084 = vmatpush1.bf16.msra.mxu0 %v4615
  %7085 = vmatprep.subr.bf16.mxu0 %v4736
  %7086 = vmatpush2.bf16.msra.mxu0 %v4735
  %7087 = vmatprep.subr.bf16.mxu0 %v4728
  %7088 = vmatpush2.bf16.msra.mxu0 %v4727
  %7089 = vmatprep.subr.bf16.mxu0 %v4720
  %7090 = vmatpush2.bf16.msra.mxu0 %v4719
  %7091 = vmatprep.subr.bf16.mxu0 %v4712
  %7092 = vmatpush2.bf16.msra.mxu0 %v4711
  %7093 = vmatprep.subr.bf16.mxu0 %v4704
  %7094 = vmatpush2.bf16.msra.mxu0 %v4703
  %7095 = vmatprep.subr.bf16.mxu0 %v4696
  %7096 = vmatpush2.bf16.msra.mxu0 %v4695
  %7097 = vmatprep.subr.bf16.mxu0 %v4688
  %7098 = vmatpush2.bf16.msra.mxu0 %v4687
  %7099 = vmatprep.subr.bf16.mxu0 %v4680
  %7100 = vmatpush2.bf16.msra.mxu0 %v4679
  %7101 = vmatprep.mubr.bf16.mxu0 %v5076
  %7102 = vmatmul.mubr.bf16.gmra.mxu0 %v5075
  %v7103 = vpop.f32.mrf.mxu0
  %v7104 = vadd.f32 0.0, %v7103
  %v7105 = vpop.f32.mrf.mxu0
  %v7106 = vadd.f32 0.0, %v7105
  %v7107 = vpop.f32.mrf.mxu0
  %v7108 = vpop.f32.mrf.mxu0
  %7109 = vdwg.mxu0
  %7110 = vmatprep.subr.bf16.mxu0 %v4674
  %7111 = vmatpush1.bf16.msra.mxu0 %v4673
  %7112 = vmatprep.subr.bf16.mxu0 %v4666
  %7113 = vmatpush1.bf16.msra.mxu0 %v4665
  %7114 = vmatprep.subr.bf16.mxu0 %v4658
  %7115 = vmatpush1.bf16.msra.mxu0 %v4657
  %7116 = vmatprep.subr.bf16.mxu0 %v4650
  %7117 = vmatpush1.bf16.msra.mxu0 %v4649
  %7118 = vmatprep.subr.bf16.mxu0 %v4642
  %7119 = vmatpush1.bf16.msra.mxu0 %v4641
  %7120 = vmatprep.subr.bf16.mxu0 %v4634
  %7121 = vmatpush1.bf16.msra.mxu0 %v4633
  %7122 = vmatprep.subr.bf16.mxu0 %v4626
  %7123 = vmatpush1.bf16.msra.mxu0 %v4625
  %7124 = vmatprep.subr.bf16.mxu0 %v4618
  %7125 = vmatpush1.bf16.msra.mxu0 %v4617
  %7126 = vmatprep.subr.bf16.mxu0 %v4738
  %7127 = vmatpush2.bf16.msra.mxu0 %v4737
  %7128 = vmatprep.subr.bf16.mxu0 %v4730
  %7129 = vmatpush2.bf16.msra.mxu0 %v4729
  %7130 = vmatprep.subr.bf16.mxu0 %v4722
  %7131 = vmatpush2.bf16.msra.mxu0 %v4721
  %7132 = vmatprep.subr.bf16.mxu0 %v4714
  %7133 = vmatpush2.bf16.msra.mxu0 %v4713
  %7134 = vmatprep.subr.bf16.mxu0 %v4706
  %7135 = vmatpush2.bf16.msra.mxu0 %v4705
  %7136 = vmatprep.subr.bf16.mxu0 %v4698
  %7137 = vmatpush2.bf16.msra.mxu0 %v4697
  %7138 = vmatprep.subr.bf16.mxu0 %v4690
  %7139 = vmatpush2.bf16.msra.mxu0 %v4689
  %7140 = vmatprep.subr.bf16.mxu0 %v4682
  %7141 = vmatpush2.bf16.msra.mxu0 %v4681
  %7142 = vmatprep.mubr.bf16.mxu0 %v5076
  %7143 = vmatmul.mubr.bf16.gmra.mxu0 %v5075
  %v7144 = vpop.f32.mrf.mxu0
  %v7145 = vadd.f32 0.0, %v7144
  %v7146 = vpop.f32.mrf.mxu0
  %v7147 = vadd.f32 0.0, %v7146
  %v7148 = vpop.f32.mrf.mxu0
  %v7149 = vpop.f32.mrf.mxu0
  %7150 = vdwg.mxu0
  %v7151 = vadd.f32 %v6979, %v7022
  %v7152 = vadd.f32 %v6980, %v7024
  %v7153 = vadd.f32 %v6981, %v7063
  %v7154 = vadd.f32 %v6982, %v7065
  %v7155 = vadd.f32 %v6983, %v7104
  %v7156 = vadd.f32 %v6984, %v7106
  %v7157 = vadd.f32 %v6985, %v7145
  %v7158 = vadd.f32 %v6986, %v7147
  %v7159 = vmul.f32 %v7151, 0.5
  %v7160 = vmul.f32 %v7152, 0.5
  %v7161 = vtanh.pop %v7159
  %v7162 = vtanh.pop %v7160
  %v7163 = vadd.f32 %v7161, 1.0
  %v7164 = vadd.f32 %v7162, 1.0
  %v7165 = vmul.f32 %v7163, 0.5
  %v7166 = vmul.f32 %v7164, 0.5
  %v7167 = vmul.f32 %v7153, 0.5
  %v7168 = vmul.f32 %v7154, 0.5
  %v7169 = vtanh.pop %v7167
  %v7170 = vtanh.pop %v7168
  %v7171 = vadd.f32 %v7169, 1.0
  %v7172 = vadd.f32 %v7170, 1.0
  %v7173 = vmul.f32 %v7171, 0.5
  %v7174 = vmul.f32 %v7172, 0.5
  %v7175 = vtanh.pop %v7155
  %v7176 = vtanh.pop %v7156
  %v7177 = vmul.f32 %v7157, 0.5
  %v7178 = vmul.f32 %v7158, 0.5
  %v7179 = vtanh.pop %v7177
  %v7180 = vtanh.pop %v7178
  %v7181 = vadd.f32 %v7179, 1.0
  %v7182 = vadd.f32 %v7180, 1.0
  %v7183 = vmul.f32 %v7181, 0.5
  %v7184 = vmul.f32 %v7182, 0.5
  %v7185 = vmul.f32 %v7173, %v5069
  %v7186 = vmul.f32 %v7174, %v5070
  %v7187 = vmul.f32 %v7165, %v7175
  %v7188 = vmul.f32 %v7166, %v7176
  %v7189 = vadd.f32 %v7185, %v7187
  %v7190 = vadd.f32 %v7186, %v7188
  %v7191 = vtanh.pop %v7189
  %v7192 = vtanh.pop %v7190
  %v7193 = vmul.f32 %v7183, %v7191
  %v7194 = vmul.f32 %v7184, %v7192
  %v7195 = vpack.c.bf16 %v7193, %v7193
  %v7196 = vpack.c.bf16 %v7194, %v7194
  %v7197 = vpack.c.bf16 %v6977, %v6977
  %v7198 = vpack.c.bf16 %v6978, %v6978
  %7199 = vmatprep.subr.bf16.mxu0 %v6160
  %7200 = vmatpush1.bf16.msra.mxu0 %v6159
  %7201 = vmatprep.subr.bf16.mxu0 %v6152
  %7202 = vmatpush1.bf16.msra.mxu0 %v6151
  %7203 = vmatprep.subr.bf16.mxu0 %v6144
  %7204 = vmatpush1.bf16.msra.mxu0 %v6143
  %7205 = vmatprep.subr.bf16.mxu0 %v6136
  %7206 = vmatpush1.bf16.msra.mxu0 %v6135
  %7207 = vmatprep.subr.bf16.mxu0 %v6128
  %7208 = vmatpush1.bf16.msra.mxu0 %v6127
  %7209 = vmatprep.subr.bf16.mxu0 %v6120
  %7210 = vmatpush1.bf16.msra.mxu0 %v6119
  %7211 = vmatprep.subr.bf16.mxu0 %v6112
  %7212 = vmatpush1.bf16.msra.mxu0 %v6111
  %7213 = vmatprep.subr.bf16.mxu0 %v6104
  %7214 = vmatpush1.bf16.msra.mxu0 %v6103
  %7215 = vmatprep.subr.bf16.mxu0 %v6224
  %7216 = vmatpush2.bf16.msra.mxu0 %v6223
  %7217 = vmatprep.subr.bf16.mxu0 %v6216
  %7218 = vmatpush2.bf16.msra.mxu0 %v6215
  %7219 = vmatprep.subr.bf16.mxu0 %v6208
  %7220 = vmatpush2.bf16.msra.mxu0 %v6207
  %7221 = vmatprep.subr.bf16.mxu0 %v6200
  %7222 = vmatpush2.bf16.msra.mxu0 %v6199
  %7223 = vmatprep.subr.bf16.mxu0 %v6192
  %7224 = vmatpush2.bf16.msra.mxu0 %v6191
  %7225 = vmatprep.subr.bf16.mxu0 %v6184
  %7226 = vmatpush2.bf16.msra.mxu0 %v6183
  %7227 = vmatprep.subr.bf16.mxu0 %v6176
  %7228 = vmatpush2.bf16.msra.mxu0 %v6175
  %7229 = vmatprep.subr.bf16.mxu0 %v6168
  %7230 = vmatpush2.bf16.msra.mxu0 %v6167
  %7231 = vmatprep.mubr.bf16.mxu0 %v7196
  %7232 = vmatmul.mubr.bf16.gmra.mxu0 %v7195
  %v7233 = vpop.f32.mrf.mxu0
  %v7234 = vadd.f32 %v2099, %v7233
  %v7235 = vpop.f32.mrf.mxu0
  %v7236 = vadd.f32 %v2103, %v7235
  %v7237 = vpop.f32.mrf.mxu0
  %v7238 = vpop.f32.mrf.mxu0
  %7239 = vdwg.mxu0
  %7240 = vmatprep.subr.bf16.mxu0 %v6288
  %7241 = vmatpush1.bf16.msra.mxu0 %v6287
  %7242 = vmatprep.subr.bf16.mxu0 %v6280
  %7243 = vmatpush1.bf16.msra.mxu0 %v6279
  %7244 = vmatprep.subr.bf16.mxu0 %v6272
  %7245 = vmatpush1.bf16.msra.mxu0 %v6271
  %7246 = vmatprep.subr.bf16.mxu0 %v6264
  %7247 = vmatpush1.bf16.msra.mxu0 %v6263
  %7248 = vmatprep.subr.bf16.mxu0 %v6256
  %7249 = vmatpush1.bf16.msra.mxu0 %v6255
  %7250 = vmatprep.subr.bf16.mxu0 %v6248
  %7251 = vmatpush1.bf16.msra.mxu0 %v6247
  %7252 = vmatprep.subr.bf16.mxu0 %v6240
  %7253 = vmatpush1.bf16.msra.mxu0 %v6239
  %7254 = vmatprep.subr.bf16.mxu0 %v6232
  %7255 = vmatpush1.bf16.msra.mxu0 %v6231
  %7256 = vmatprep.subr.bf16.mxu0 %v6352
  %7257 = vmatpush2.bf16.msra.mxu0 %v6351
  %7258 = vmatprep.subr.bf16.mxu0 %v6344
  %7259 = vmatpush2.bf16.msra.mxu0 %v6343
  %7260 = vmatprep.subr.bf16.mxu0 %v6336
  %7261 = vmatpush2.bf16.msra.mxu0 %v6335
  %7262 = vmatprep.subr.bf16.mxu0 %v6328
  %7263 = vmatpush2.bf16.msra.mxu0 %v6327
  %7264 = vmatprep.subr.bf16.mxu0 %v6320
  %7265 = vmatpush2.bf16.msra.mxu0 %v6319
  %7266 = vmatprep.subr.bf16.mxu0 %v6312
  %7267 = vmatpush2.bf16.msra.mxu0 %v6311
  %7268 = vmatprep.subr.bf16.mxu0 %v6304
  %7269 = vmatpush2.bf16.msra.mxu0 %v6303
  %7270 = vmatprep.subr.bf16.mxu0 %v6296
  %7271 = vmatpush2.bf16.msra.mxu0 %v6295
  %7272 = vmatprep.mubr.bf16.mxu0 %v7198
  %7273 = vmatmul.mubr.bf16.gmra.mxu0 %v7197
  %v7274 = vpop.f32.mrf.mxu0
  %v7275 = vadd.f32 %v7234, %v7274
  %v7276 = vpop.f32.mrf.mxu0
  %v7277 = vadd.f32 %v7236, %v7276
  %v7278 = vpop.f32.mrf.mxu0
  %v7279 = vpop.f32.mrf.mxu0
  %7280 = vdwg.mxu0
  %7281 = vmatprep.subr.bf16.mxu0 %v6162
  %7282 = vmatpush1.bf16.msra.mxu0 %v6161
  %7283 = vmatprep.subr.bf16.mxu0 %v6154
  %7284 = vmatpush1.bf16.msra.mxu0 %v6153
  %7285 = vmatprep.subr.bf16.mxu0 %v6146
  %7286 = vmatpush1.bf16.msra.mxu0 %v6145
  %7287 = vmatprep.subr.bf16.mxu0 %v6138
  %7288 = vmatpush1.bf16.msra.mxu0 %v6137
  %7289 = vmatprep.subr.bf16.mxu0 %v6130
  %7290 = vmatpush1.bf16.msra.mxu0 %v6129
  %7291 = vmatprep.subr.bf16.mxu0 %v6122
  %7292 = vmatpush1.bf16.msra.mxu0 %v6121
  %7293 = vmatprep.subr.bf16.mxu0 %v6114
  %7294 = vmatpush1.bf16.msra.mxu0 %v6113
  %7295 = vmatprep.subr.bf16.mxu0 %v6106
  %7296 = vmatpush1.bf16.msra.mxu0 %v6105
  %7297 = vmatprep.subr.bf16.mxu0 %v6226
  %7298 = vmatpush2.bf16.msra.mxu0 %v6225
  %7299 = vmatprep.subr.bf16.mxu0 %v6218
  %7300 = vmatpush2.bf16.msra.mxu0 %v6217
  %7301 = vmatprep.subr.bf16.mxu0 %v6210
  %7302 = vmatpush2.bf16.msra.mxu0 %v6209
  %7303 = vmatprep.subr.bf16.mxu0 %v6202
  %7304 = vmatpush2.bf16.msra.mxu0 %v6201
  %7305 = vmatprep.subr.bf16.mxu0 %v6194
  %7306 = vmatpush2.bf16.msra.mxu0 %v6193
  %7307 = vmatprep.subr.bf16.mxu0 %v6186
  %7308 = vmatpush2.bf16.msra.mxu0 %v6185
  %7309 = vmatprep.subr.bf16.mxu0 %v6178
  %7310 = vmatpush2.bf16.msra.mxu0 %v6177
  %7311 = vmatprep.subr.bf16.mxu0 %v6170
  %7312 = vmatpush2.bf16.msra.mxu0 %v6169
  %7313 = vmatprep.mubr.bf16.mxu0 %v7196
  %7314 = vmatmul.mubr.bf16.gmra.mxu0 %v7195
  %v7315 = vpop.f32.mrf.mxu0
  %v7316 = vadd.f32 %v2107, %v7315
  %v7317 = vpop.f32.mrf.mxu0
  %v7318 = vadd.f32 %v2111, %v7317
  %v7319 = vpop.f32.mrf.mxu0
  %v7320 = vpop.f32.mrf.mxu0
  %7321 = vdwg.mxu0
  %7322 = vmatprep.subr.bf16.mxu0 %v6290
  %7323 = vmatpush1.bf16.msra.mxu0 %v6289
  %7324 = vmatprep.subr.bf16.mxu0 %v6282
  %7325 = vmatpush1.bf16.msra.mxu0 %v6281
  %7326 = vmatprep.subr.bf16.mxu0 %v6274
  %7327 = vmatpush1.bf16.msra.mxu0 %v6273
  %7328 = vmatprep.subr.bf16.mxu0 %v6266
  %7329 = vmatpush1.bf16.msra.mxu0 %v6265
  %7330 = vmatprep.subr.bf16.mxu0 %v6258
  %7331 = vmatpush1.bf16.msra.mxu0 %v6257
  %7332 = vmatprep.subr.bf16.mxu0 %v6250
  %7333 = vmatpush1.bf16.msra.mxu0 %v6249
  %7334 = vmatprep.subr.bf16.mxu0 %v6242
  %7335 = vmatpush1.bf16.msra.mxu0 %v6241
  %7336 = vmatprep.subr.bf16.mxu0 %v6234
  %7337 = vmatpush1.bf16.msra.mxu0 %v6233
  %7338 = vmatprep.subr.bf16.mxu0 %v6354
  %7339 = vmatpush2.bf16.msra.mxu0 %v6353
  %7340 = vmatprep.subr.bf16.mxu0 %v6346
  %7341 = vmatpush2.bf16.msra.mxu0 %v6345
  %7342 = vmatprep.subr.bf16.mxu0 %v6338
  %7343 = vmatpush2.bf16.msra.mxu0 %v6337
  %7344 = vmatprep.subr.bf16.mxu0 %v6330
  %7345 = vmatpush2.bf16.msra.mxu0 %v6329
  %7346 = vmatprep.subr.bf16.mxu0 %v6322
  %7347 = vmatpush2.bf16.msra.mxu0 %v6321
  %7348 = vmatprep.subr.bf16.mxu0 %v6314
  %7349 = vmatpush2.bf16.msra.mxu0 %v6313
  %7350 = vmatprep.subr.bf16.mxu0 %v6306
  %7351 = vmatpush2.bf16.msra.mxu0 %v6305
  %7352 = vmatprep.subr.bf16.mxu0 %v6298
  %7353 = vmatpush2.bf16.msra.mxu0 %v6297
  %7354 = vmatprep.mubr.bf16.mxu0 %v7198
  %7355 = vmatmul.mubr.bf16.gmra.mxu0 %v7197
  %v7356 = vpop.f32.mrf.mxu0
  %v7357 = vadd.f32 %v7316, %v7356
  %v7358 = vpop.f32.mrf.mxu0
  %v7359 = vadd.f32 %v7318, %v7358
  %v7360 = vpop.f32.mrf.mxu0
  %v7361 = vpop.f32.mrf.mxu0
  %7362 = vdwg.mxu0
  %7363 = vmatprep.subr.bf16.mxu0 %v6164
  %7364 = vmatpush1.bf16.msra.mxu0 %v6163
  %7365 = vmatprep.subr.bf16.mxu0 %v6156
  %7366 = vmatpush1.bf16.msra.mxu0 %v6155
  %7367 = vmatprep.subr.bf16.mxu0 %v6148
  %7368 = vmatpush1.bf16.msra.mxu0 %v6147
  %7369 = vmatprep.subr.bf16.mxu0 %v6140
  %7370 = vmatpush1.bf16.msra.mxu0 %v6139
  %7371 = vmatprep.subr.bf16.mxu0 %v6132
  %7372 = vmatpush1.bf16.msra.mxu0 %v6131
  %7373 = vmatprep.subr.bf16.mxu0 %v6124
  %7374 = vmatpush1.bf16.msra.mxu0 %v6123
  %7375 = vmatprep.subr.bf16.mxu0 %v6116
  %7376 = vmatpush1.bf16.msra.mxu0 %v6115
  %7377 = vmatprep.subr.bf16.mxu0 %v6108
  %7378 = vmatpush1.bf16.msra.mxu0 %v6107
  %7379 = vmatprep.subr.bf16.mxu0 %v6228
  %7380 = vmatpush2.bf16.msra.mxu0 %v6227
  %7381 = vmatprep.subr.bf16.mxu0 %v6220
  %7382 = vmatpush2.bf16.msra.mxu0 %v6219
  %7383 = vmatprep.subr.bf16.mxu0 %v6212
  %7384 = vmatpush2.bf16.msra.mxu0 %v6211
  %7385 = vmatprep.subr.bf16.mxu0 %v6204
  %7386 = vmatpush2.bf16.msra.mxu0 %v6203
  %7387 = vmatprep.subr.bf16.mxu0 %v6196
  %7388 = vmatpush2.bf16.msra.mxu0 %v6195
  %7389 = vmatprep.subr.bf16.mxu0 %v6188
  %7390 = vmatpush2.bf16.msra.mxu0 %v6187
  %7391 = vmatprep.subr.bf16.mxu0 %v6180
  %7392 = vmatpush2.bf16.msra.mxu0 %v6179
  %7393 = vmatprep.subr.bf16.mxu0 %v6172
  %7394 = vmatpush2.bf16.msra.mxu0 %v6171
  %7395 = vmatprep.mubr.bf16.mxu0 %v7196
  %7396 = vmatmul.mubr.bf16.gmra.mxu0 %v7195
  %v7397 = vpop.f32.mrf.mxu0
  %v7398 = vadd.f32 %v2115, %v7397
  %v7399 = vpop.f32.mrf.mxu0
  %v7400 = vadd.f32 %v2119, %v7399
  %v7401 = vpop.f32.mrf.mxu0
  %v7402 = vpop.f32.mrf.mxu0
  %7403 = vdwg.mxu0
  %7404 = vmatprep.subr.bf16.mxu0 %v6292
  %7405 = vmatpush1.bf16.msra.mxu0 %v6291
  %7406 = vmatprep.subr.bf16.mxu0 %v6284
  %7407 = vmatpush1.bf16.msra.mxu0 %v6283
  %7408 = vmatprep.subr.bf16.mxu0 %v6276
  %7409 = vmatpush1.bf16.msra.mxu0 %v6275
  %7410 = vmatprep.subr.bf16.mxu0 %v6268
  %7411 = vmatpush1.bf16.msra.mxu0 %v6267
  %7412 = vmatprep.subr.bf16.mxu0 %v6260
  %7413 = vmatpush1.bf16.msra.mxu0 %v6259
  %7414 = vmatprep.subr.bf16.mxu0 %v6252
  %7415 = vmatpush1.bf16.msra.mxu0 %v6251
  %7416 = vmatprep.subr.bf16.mxu0 %v6244
  %7417 = vmatpush1.bf16.msra.mxu0 %v6243
  %7418 = vmatprep.subr.bf16.mxu0 %v6236
  %7419 = vmatpush1.bf16.msra.mxu0 %v6235
  %7420 = vmatprep.subr.bf16.mxu0 %v6356
  %7421 = vmatpush2.bf16.msra.mxu0 %v6355
  %7422 = vmatprep.subr.bf16.mxu0 %v6348
  %7423 = vmatpush2.bf16.msra.mxu0 %v6347
  %7424 = vmatprep.subr.bf16.mxu0 %v6340
  %7425 = vmatpush2.bf16.msra.mxu0 %v6339
  %7426 = vmatprep.subr.bf16.mxu0 %v6332
  %7427 = vmatpush2.bf16.msra.mxu0 %v6331
  %7428 = vmatprep.subr.bf16.mxu0 %v6324
  %7429 = vmatpush2.bf16.msra.mxu0 %v6323
  %7430 = vmatprep.subr.bf16.mxu0 %v6316
  %7431 = vmatpush2.bf16.msra.mxu0 %v6315
  %7432 = vmatprep.subr.bf16.mxu0 %v6308
  %7433 = vmatpush2.bf16.msra.mxu0 %v6307
  %7434 = vmatprep.subr.bf16.mxu0 %v6300
  %7435 = vmatpush2.bf16.msra.mxu0 %v6299
  %7436 = vmatprep.mubr.bf16.mxu0 %v7198
  %7437 = vmatmul.mubr.bf16.gmra.mxu0 %v7197
  %v7438 = vpop.f32.mrf.mxu0
  %v7439 = vadd.f32 %v7398, %v7438
  %v7440 = vpop.f32.mrf.mxu0
  %v7441 = vadd.f32 %v7400, %v7440
  %v7442 = vpop.f32.mrf.mxu0
  %v7443 = vpop.f32.mrf.mxu0
  %7444 = vdwg.mxu0
  %7445 = vmatprep.subr.bf16.mxu0 %v6166
  %7446 = vmatpush1.bf16.msra.mxu0 %v6165
  %7447 = vmatprep.subr.bf16.mxu0 %v6158
  %7448 = vmatpush1.bf16.msra.mxu0 %v6157
  %7449 = vmatprep.subr.bf16.mxu0 %v6150
  %7450 = vmatpush1.bf16.msra.mxu0 %v6149
  %7451 = vmatprep.subr.bf16.mxu0 %v6142
  %7452 = vmatpush1.bf16.msra.mxu0 %v6141
  %7453 = vmatprep.subr.bf16.mxu0 %v6134
  %7454 = vmatpush1.bf16.msra.mxu0 %v6133
  %7455 = vmatprep.subr.bf16.mxu0 %v6126
  %7456 = vmatpush1.bf16.msra.mxu0 %v6125
  %7457 = vmatprep.subr.bf16.mxu0 %v6118
  %7458 = vmatpush1.bf16.msra.mxu0 %v6117
  %7459 = vmatprep.subr.bf16.mxu0 %v6110
  %7460 = vmatpush1.bf16.msra.mxu0 %v6109
  %7461 = vmatprep.subr.bf16.mxu0 %v6230
  %7462 = vmatpush2.bf16.msra.mxu0 %v6229
  %7463 = vmatprep.subr.bf16.mxu0 %v6222
  %7464 = vmatpush2.bf16.msra.mxu0 %v6221
  %7465 = vmatprep.subr.bf16.mxu0 %v6214
  %7466 = vmatpush2.bf16.msra.mxu0 %v6213
  %7467 = vmatprep.subr.bf16.mxu0 %v6206
  %7468 = vmatpush2.bf16.msra.mxu0 %v6205
  %7469 = vmatprep.subr.bf16.mxu0 %v6198
  %7470 = vmatpush2.bf16.msra.mxu0 %v6197
  %7471 = vmatprep.subr.bf16.mxu0 %v6190
  %7472 = vmatpush2.bf16.msra.mxu0 %v6189
  %7473 = vmatprep.subr.bf16.mxu0 %v6182
  %7474 = vmatpush2.bf16.msra.mxu0 %v6181
  %7475 = vmatprep.subr.bf16.mxu0 %v6174
  %7476 = vmatpush2.bf16.msra.mxu0 %v6173
  %7477 = vmatprep.mubr.bf16.mxu0 %v7196
  %7478 = vmatmul.mubr.bf16.gmra.mxu0 %v7195
  %v7479 = vpop.f32.mrf.mxu0
  %v7480 = vadd.f32 %v2123, %v7479
  %v7481 = vpop.f32.mrf.mxu0
  %v7482 = vadd.f32 %v2127, %v7481
  %v7483 = vpop.f32.mrf.mxu0
  %v7484 = vpop.f32.mrf.mxu0
  %7485 = vdwg.mxu0
  %7486 = vmatprep.subr.bf16.mxu0 %v6294
  %7487 = vmatpush1.bf16.msra.mxu0 %v6293
  %7488 = vmatprep.subr.bf16.mxu0 %v6286
  %7489 = vmatpush1.bf16.msra.mxu0 %v6285
  %7490 = vmatprep.subr.bf16.mxu0 %v6278
  %7491 = vmatpush1.bf16.msra.mxu0 %v6277
  %7492 = vmatprep.subr.bf16.mxu0 %v6270
  %7493 = vmatpush1.bf16.msra.mxu0 %v6269
  %7494 = vmatprep.subr.bf16.mxu0 %v6262
  %7495 = vmatpush1.bf16.msra.mxu0 %v6261
  %7496 = vmatprep.subr.bf16.mxu0 %v6254
  %7497 = vmatpush1.bf16.msra.mxu0 %v6253
  %7498 = vmatprep.subr.bf16.mxu0 %v6246
  %7499 = vmatpush1.bf16.msra.mxu0 %v6245
  %7500 = vmatprep.subr.bf16.mxu0 %v6238
  %7501 = vmatpush1.bf16.msra.mxu0 %v6237
  %7502 = vmatprep.subr.bf16.mxu0 %v6358
  %7503 = vmatpush2.bf16.msra.mxu0 %v6357
  %7504 = vmatprep.subr.bf16.mxu0 %v6350
  %7505 = vmatpush2.bf16.msra.mxu0 %v6349
  %7506 = vmatprep.subr.bf16.mxu0 %v6342
  %7507 = vmatpush2.bf16.msra.mxu0 %v6341
  %7508 = vmatprep.subr.bf16.mxu0 %v6334
  %7509 = vmatpush2.bf16.msra.mxu0 %v6333
  %7510 = vmatprep.subr.bf16.mxu0 %v6326
  %7511 = vmatpush2.bf16.msra.mxu0 %v6325
  %7512 = vmatprep.subr.bf16.mxu0 %v6318
  %7513 = vmatpush2.bf16.msra.mxu0 %v6317
  %7514 = vmatprep.subr.bf16.mxu0 %v6310
  %7515 = vmatpush2.bf16.msra.mxu0 %v6309
  %7516 = vmatprep.subr.bf16.mxu0 %v6302
  %7517 = vmatpush2.bf16.msra.mxu0 %v6301
  %7518 = vmatprep.mubr.bf16.mxu0 %v7198
  %7519 = vmatmul.mubr.bf16.gmra.mxu0 %v7197
  %v7520 = vpop.f32.mrf.mxu0
  %v7521 = vadd.f32 %v7480, %v7520
  %v7522 = vpop.f32.mrf.mxu0
  %v7523 = vadd.f32 %v7482, %v7522
  %v7524 = vpop.f32.mrf.mxu0
  %v7525 = vpop.f32.mrf.mxu0
  %7526 = vdwg.mxu0
  %v7527 = vmul.f32 %v7275, 0.5
  %v7528 = vmul.f32 %v7277, 0.5
  %v7529 = vtanh.pop %v7527
  %v7530 = vtanh.pop %v7528
  %v7531 = vadd.f32 %v7529, 1.0
  %v7532 = vadd.f32 %v7530, 1.0
  %v7533 = vmul.f32 %v7531, 0.5
  %v7534 = vmul.f32 %v7532, 0.5
  %v7535 = vmul.f32 %v7357, 0.5
  %v7536 = vmul.f32 %v7359, 0.5
  %v7537 = vtanh.pop %v7535
  %v7538 = vtanh.pop %v7536
  %v7539 = vadd.f32 %v7537, 1.0
  %v7540 = vadd.f32 %v7538, 1.0
  %v7541 = vmul.f32 %v7539, 0.5
  %v7542 = vmul.f32 %v7540, 0.5
  %v7543 = vtanh.pop %v7439
  %v7544 = vtanh.pop %v7441
  %v7545 = vmul.f32 %v7521, 0.5
  %v7546 = vmul.f32 %v7523, 0.5
  %v7547 = vtanh.pop %v7545
  %v7548 = vtanh.pop %v7546
  %v7549 = vadd.f32 %v7547, 1.0
  %v7550 = vadd.f32 %v7548, 1.0
  %v7551 = vmul.f32 %v7549, 0.5
  %v7552 = vmul.f32 %v7550, 0.5
  %v7553 = vmul.f32 %v7541, %v6973
  %v7554 = vmul.f32 %v7542, %v6974
  %v7555 = vmul.f32 %v7533, %v7543
  %v7556 = vmul.f32 %v7534, %v7544
  %v7557 = vadd.f32 %v7553, %v7555
  %v7558 = vadd.f32 %v7554, %v7556
  %v7559 = vtanh.pop %v7557
  %v7560 = vtanh.pop %v7558
  %v7561 = vmul.f32 %v7551, %v7559
  %v7562 = vmul.f32 %v7552, %v7560
  %v7563 = vld [vmem:[#allocation2 + $0xc0] sm:$0xff]
  %v7564 = vld [vmem:[#allocation2 + $0xc8] sm:$0xff]
  %v7565 = vld [vmem:[#allocation2 + $0xd0] sm:$0xff]
  %v7566 = vld [vmem:[#allocation2 + $0xd8] sm:$0xff]
  %v7567 = vld [vmem:[#allocation2 + $0xe0] sm:$0xff]
  %v7568 = vld [vmem:[#allocation2 + $0xe8] sm:$0xff]
  %v7569 = vld [vmem:[#allocation2 + $0xf0] sm:$0xff]
  %v7570 = vld [vmem:[#allocation2 + $0xf8] sm:$0xff]
  %7571 = vmatprep.subr.bf16.mxu0 %v4668
  %7572 = vmatpush1.bf16.msra.mxu0 %v4667
  %7573 = vmatprep.subr.bf16.mxu0 %v4660
  %7574 = vmatpush1.bf16.msra.mxu0 %v4659
  %7575 = vmatprep.subr.bf16.mxu0 %v4652
  %7576 = vmatpush1.bf16.msra.mxu0 %v4651
  %7577 = vmatprep.subr.bf16.mxu0 %v4644
  %7578 = vmatpush1.bf16.msra.mxu0 %v4643
  %7579 = vmatprep.subr.bf16.mxu0 %v4636
  %7580 = vmatpush1.bf16.msra.mxu0 %v4635
  %7581 = vmatprep.subr.bf16.mxu0 %v4628
  %7582 = vmatpush1.bf16.msra.mxu0 %v4627
  %7583 = vmatprep.subr.bf16.mxu0 %v4620
  %7584 = vmatpush1.bf16.msra.mxu0 %v4619
  %7585 = vmatprep.subr.bf16.mxu0 %v4612
  %7586 = vmatpush1.bf16.msra.mxu0 %v4611
  %7587 = vmatprep.subr.bf16.mxu0 %v4732
  %7588 = vmatpush2.bf16.msra.mxu0 %v4731
  %7589 = vmatprep.subr.bf16.mxu0 %v4724
  %7590 = vmatpush2.bf16.msra.mxu0 %v4723
  %7591 = vmatprep.subr.bf16.mxu0 %v4716
  %7592 = vmatpush2.bf16.msra.mxu0 %v4715
  %7593 = vmatprep.subr.bf16.mxu0 %v4708
  %7594 = vmatpush2.bf16.msra.mxu0 %v4707
  %7595 = vmatprep.subr.bf16.mxu0 %v4700
  %7596 = vmatpush2.bf16.msra.mxu0 %v4699
  %7597 = vmatprep.subr.bf16.mxu0 %v4692
  %7598 = vmatpush2.bf16.msra.mxu0 %v4691
  %7599 = vmatprep.subr.bf16.mxu0 %v4684
  %7600 = vmatpush2.bf16.msra.mxu0 %v4683
  %7601 = vmatprep.subr.bf16.mxu0 %v4676
  %7602 = vmatpush2.bf16.msra.mxu0 %v4675
  %7603 = vmatprep.mubr.bf16.mxu0 %v7196
  %7604 = vmatmul.mubr.bf16.gmra.mxu0 %v7195
  %v7605 = vpop.f32.mrf.mxu0
  %v7606 = vadd.f32 0.0, %v7605
  %v7607 = vpop.f32.mrf.mxu0
  %v7608 = vadd.f32 0.0, %v7607
  %v7609 = vpop.f32.mrf.mxu0
  %v7610 = vpop.f32.mrf.mxu0
  %7611 = vdwg.mxu0
  %7612 = vmatprep.subr.bf16.mxu0 %v4670
  %7613 = vmatpush1.bf16.msra.mxu0 %v4669
  %7614 = vmatprep.subr.bf16.mxu0 %v4662
  %7615 = vmatpush1.bf16.msra.mxu0 %v4661
  %7616 = vmatprep.subr.bf16.mxu0 %v4654
  %7617 = vmatpush1.bf16.msra.mxu0 %v4653
  %7618 = vmatprep.subr.bf16.mxu0 %v4646
  %7619 = vmatpush1.bf16.msra.mxu0 %v4645
  %7620 = vmatprep.subr.bf16.mxu0 %v4638
  %7621 = vmatpush1.bf16.msra.mxu0 %v4637
  %7622 = vmatprep.subr.bf16.mxu0 %v4630
  %7623 = vmatpush1.bf16.msra.mxu0 %v4629
  %7624 = vmatprep.subr.bf16.mxu0 %v4622
  %7625 = vmatpush1.bf16.msra.mxu0 %v4621
  %7626 = vmatprep.subr.bf16.mxu0 %v4614
  %7627 = vmatpush1.bf16.msra.mxu0 %v4613
  %7628 = vmatprep.subr.bf16.mxu0 %v4734
  %7629 = vmatpush2.bf16.msra.mxu0 %v4733
  %7630 = vmatprep.subr.bf16.mxu0 %v4726
  %7631 = vmatpush2.bf16.msra.mxu0 %v4725
  %7632 = vmatprep.subr.bf16.mxu0 %v4718
  %7633 = vmatpush2.bf16.msra.mxu0 %v4717
  %7634 = vmatprep.subr.bf16.mxu0 %v4710
  %7635 = vmatpush2.bf16.msra.mxu0 %v4709
  %7636 = vmatprep.subr.bf16.mxu0 %v4702
  %7637 = vmatpush2.bf16.msra.mxu0 %v4701
  %7638 = vmatprep.subr.bf16.mxu0 %v4694
  %7639 = vmatpush2.bf16.msra.mxu0 %v4693
  %7640 = vmatprep.subr.bf16.mxu0 %v4686
  %7641 = vmatpush2.bf16.msra.mxu0 %v4685
  %7642 = vmatprep.subr.bf16.mxu0 %v4678
  %7643 = vmatpush2.bf16.msra.mxu0 %v4677
  %7644 = vmatprep.mubr.bf16.mxu0 %v7196
  %7645 = vmatmul.mubr.bf16.gmra.mxu0 %v7195
  %v7646 = vpop.f32.mrf.mxu0
  %v7647 = vadd.f32 0.0, %v7646
  %v7648 = vpop.f32.mrf.mxu0
  %v7649 = vadd.f32 0.0, %v7648
  %v7650 = vpop.f32.mrf.mxu0
  %v7651 = vpop.f32.mrf.mxu0
  %7652 = vdwg.mxu0
  %7653 = vmatprep.subr.bf16.mxu0 %v4672
  %7654 = vmatpush1.bf16.msra.mxu0 %v4671
  %7655 = vmatprep.subr.bf16.mxu0 %v4664
  %7656 = vmatpush1.bf16.msra.mxu0 %v4663
  %7657 = vmatprep.subr.bf16.mxu0 %v4656
  %7658 = vmatpush1.bf16.msra.mxu0 %v4655
  %7659 = vmatprep.subr.bf16.mxu0 %v4648
  %7660 = vmatpush1.bf16.msra.mxu0 %v4647
  %7661 = vmatprep.subr.bf16.mxu0 %v4640
  %7662 = vmatpush1.bf16.msra.mxu0 %v4639
  %7663 = vmatprep.subr.bf16.mxu0 %v4632
  %7664 = vmatpush1.bf16.msra.mxu0 %v4631
  %7665 = vmatprep.subr.bf16.mxu0 %v4624
  %7666 = vmatpush1.bf16.msra.mxu0 %v4623
  %7667 = vmatprep.subr.bf16.mxu0 %v4616
  %7668 = vmatpush1.bf16.msra.mxu0 %v4615
  %7669 = vmatprep.subr.bf16.mxu0 %v4736
  %7670 = vmatpush2.bf16.msra.mxu0 %v4735
  %7671 = vmatprep.subr.bf16.mxu0 %v4728
  %7672 = vmatpush2.bf16.msra.mxu0 %v4727
  %7673 = vmatprep.subr.bf16.mxu0 %v4720
  %7674 = vmatpush2.bf16.msra.mxu0 %v4719
  %7675 = vmatprep.subr.bf16.mxu0 %v4712
  %7676 = vmatpush2.bf16.msra.mxu0 %v4711
  %7677 = vmatprep.subr.bf16.mxu0 %v4704
  %7678 = vmatpush2.bf16.msra.mxu0 %v4703
  %7679 = vmatprep.subr.bf16.mxu0 %v4696
  %7680 = vmatpush2.bf16.msra.mxu0 %v4695
  %7681 = vmatprep.subr.bf16.mxu0 %v4688
  %7682 = vmatpush2.bf16.msra.mxu0 %v4687
  %7683 = vmatprep.subr.bf16.mxu0 %v4680
  %7684 = vmatpush2.bf16.msra.mxu0 %v4679
  %7685 = vmatprep.mubr.bf16.mxu0 %v7196
  %7686 = vmatmul.mubr.bf16.gmra.mxu0 %v7195
  %v7687 = vpop.f32.mrf.mxu0
  %v7688 = vadd.f32 0.0, %v7687
  %v7689 = vpop.f32.mrf.mxu0
  %v7690 = vadd.f32 0.0, %v7689
  %v7691 = vpop.f32.mrf.mxu0
  %v7692 = vpop.f32.mrf.mxu0
  %7693 = vdwg.mxu0
  %7694 = vmatprep.subr.bf16.mxu0 %v4674
  %7695 = vmatpush1.bf16.msra.mxu0 %v4673
  %7696 = vmatprep.subr.bf16.mxu0 %v4666
  %7697 = vmatpush1.bf16.msra.mxu0 %v4665
  %7698 = vmatprep.subr.bf16.mxu0 %v4658
  %7699 = vmatpush1.bf16.msra.mxu0 %v4657
  %7700 = vmatprep.subr.bf16.mxu0 %v4650
  %7701 = vmatpush1.bf16.msra.mxu0 %v4649
  %7702 = vmatprep.subr.bf16.mxu0 %v4642
  %7703 = vmatpush1.bf16.msra.mxu0 %v4641
  %7704 = vmatprep.subr.bf16.mxu0 %v4634
  %7705 = vmatpush1.bf16.msra.mxu0 %v4633
  %7706 = vmatprep.subr.bf16.mxu0 %v4626
  %7707 = vmatpush1.bf16.msra.mxu0 %v4625
  %7708 = vmatprep.subr.bf16.mxu0 %v4618
  %7709 = vmatpush1.bf16.msra.mxu0 %v4617
  %7710 = vmatprep.subr.bf16.mxu0 %v4738
  %7711 = vmatpush2.bf16.msra.mxu0 %v4737
  %7712 = vmatprep.subr.bf16.mxu0 %v4730
  %7713 = vmatpush2.bf16.msra.mxu0 %v4729
  %7714 = vmatprep.subr.bf16.mxu0 %v4722
  %7715 = vmatpush2.bf16.msra.mxu0 %v4721
  %7716 = vmatprep.subr.bf16.mxu0 %v4714
  %7717 = vmatpush2.bf16.msra.mxu0 %v4713
  %7718 = vmatprep.subr.bf16.mxu0 %v4706
  %7719 = vmatpush2.bf16.msra.mxu0 %v4705
  %7720 = vmatprep.subr.bf16.mxu0 %v4698
  %7721 = vmatpush2.bf16.msra.mxu0 %v4697
  %7722 = vmatprep.subr.bf16.mxu0 %v4690
  %7723 = vmatpush2.bf16.msra.mxu0 %v4689
  %7724 = vmatprep.subr.bf16.mxu0 %v4682
  %7725 = vmatpush2.bf16.msra.mxu0 %v4681
  %7726 = vmatprep.mubr.bf16.mxu0 %v7196
  %7727 = vmatmul.mubr.bf16.gmra.mxu0 %v7195
  %v7728 = vpop.f32.mrf.mxu0
  %v7729 = vadd.f32 0.0, %v7728
  %v7730 = vpop.f32.mrf.mxu0
  %v7731 = vadd.f32 0.0, %v7730
  %v7732 = vpop.f32.mrf.mxu0
  %v7733 = vpop.f32.mrf.mxu0
  %7734 = vdwg.mxu0
  %v7735 = vadd.f32 %v7563, %v7606
  %v7736 = vadd.f32 %v7564, %v7608
  %v7737 = vadd.f32 %v7565, %v7647
  %v7738 = vadd.f32 %v7566, %v7649
  %v7739 = vadd.f32 %v7567, %v7688
  %v7740 = vadd.f32 %v7568, %v7690
  %v7741 = vadd.f32 %v7569, %v7729
  %v7742 = vadd.f32 %v7570, %v7731
  %v7743 = vmul.f32 %v7735, 0.5
  %v7744 = vmul.f32 %v7736, 0.5
  %v7745 = vtanh.pop %v7743
  %v7746 = vtanh.pop %v7744
  %v7747 = vadd.f32 %v7745, 1.0
  %v7748 = vadd.f32 %v7746, 1.0
  %v7749 = vmul.f32 %v7747, 0.5
  %v7750 = vmul.f32 %v7748, 0.5
  %v7751 = vmul.f32 %v7737, 0.5
  %v7752 = vmul.f32 %v7738, 0.5
  %v7753 = vtanh.pop %v7751
  %v7754 = vtanh.pop %v7752
  %v7755 = vadd.f32 %v7753, 1.0
  %v7756 = vadd.f32 %v7754, 1.0
  %v7757 = vmul.f32 %v7755, 0.5
  %v7758 = vmul.f32 %v7756, 0.5
  %v7759 = vtanh.pop %v7739
  %v7760 = vtanh.pop %v7740
  %v7761 = vmul.f32 %v7741, 0.5
  %v7762 = vmul.f32 %v7742, 0.5
  %v7763 = vtanh.pop %v7761
  %v7764 = vtanh.pop %v7762
  %v7765 = vadd.f32 %v7763, 1.0
  %v7766 = vadd.f32 %v7764, 1.0
  %v7767 = vmul.f32 %v7765, 0.5
  %v7768 = vmul.f32 %v7766, 0.5
  %v7769 = vmul.f32 %v7757, %v7189
  %v7770 = vmul.f32 %v7758, %v7190
  %v7771 = vmul.f32 %v7749, %v7759
  %v7772 = vmul.f32 %v7750, %v7760
  %v7773 = vadd.f32 %v7769, %v7771
  %v7774 = vadd.f32 %v7770, %v7772
  %v7775 = vtanh.pop %v7773
  %v7776 = vtanh.pop %v7774
  %v7777 = vmul.f32 %v7767, %v7775
  %v7778 = vmul.f32 %v7768, %v7776
  %v7779 = vpack.c.bf16 %v7777, %v7777
  %v7780 = vpack.c.bf16 %v7778, %v7778
  %v7781 = vpack.c.bf16 %v7561, %v7561
  %v7782 = vpack.c.bf16 %v7562, %v7562
  %7783 = vmatprep.subr.bf16.mxu0 %v6160
  %7784 = vmatpush1.bf16.msra.mxu0 %v6159
  %7785 = vmatprep.subr.bf16.mxu0 %v6152
  %7786 = vmatpush1.bf16.msra.mxu0 %v6151
  %7787 = vmatprep.subr.bf16.mxu0 %v6144
  %7788 = vmatpush1.bf16.msra.mxu0 %v6143
  %7789 = vmatprep.subr.bf16.mxu0 %v6136
  %7790 = vmatpush1.bf16.msra.mxu0 %v6135
  %7791 = vmatprep.subr.bf16.mxu0 %v6128
  %7792 = vmatpush1.bf16.msra.mxu0 %v6127
  %7793 = vmatprep.subr.bf16.mxu0 %v6120
  %7794 = vmatpush1.bf16.msra.mxu0 %v6119
  %7795 = vmatprep.subr.bf16.mxu0 %v6112
  %7796 = vmatpush1.bf16.msra.mxu0 %v6111
  %7797 = vmatprep.subr.bf16.mxu0 %v6104
  %7798 = vmatpush1.bf16.msra.mxu0 %v6103
  %7799 = vmatprep.subr.bf16.mxu0 %v6224
  %7800 = vmatpush2.bf16.msra.mxu0 %v6223
  %7801 = vmatprep.subr.bf16.mxu0 %v6216
  %7802 = vmatpush2.bf16.msra.mxu0 %v6215
  %7803 = vmatprep.subr.bf16.mxu0 %v6208
  %7804 = vmatpush2.bf16.msra.mxu0 %v6207
  %7805 = vmatprep.subr.bf16.mxu0 %v6200
  %7806 = vmatpush2.bf16.msra.mxu0 %v6199
  %7807 = vmatprep.subr.bf16.mxu0 %v6192
  %7808 = vmatpush2.bf16.msra.mxu0 %v6191
  %7809 = vmatprep.subr.bf16.mxu0 %v6184
  %7810 = vmatpush2.bf16.msra.mxu0 %v6183
  %7811 = vmatprep.subr.bf16.mxu0 %v6176
  %7812 = vmatpush2.bf16.msra.mxu0 %v6175
  %7813 = vmatprep.subr.bf16.mxu0 %v6168
  %7814 = vmatpush2.bf16.msra.mxu0 %v6167
  %7815 = vmatprep.mubr.bf16.mxu0 %v7780
  %7816 = vmatmul.mubr.bf16.gmra.mxu0 %v7779
  %v7817 = vpop.f32.mrf.mxu0
  %v7818 = vadd.f32 %v2099, %v7817
  %v7819 = vpop.f32.mrf.mxu0
  %v7820 = vadd.f32 %v2103, %v7819
  %v7821 = vpop.f32.mrf.mxu0
  %v7822 = vpop.f32.mrf.mxu0
  %7823 = vdwg.mxu0
  %7824 = vmatprep.subr.bf16.mxu0 %v6288
  %7825 = vmatpush1.bf16.msra.mxu0 %v6287
  %7826 = vmatprep.subr.bf16.mxu0 %v6280
  %7827 = vmatpush1.bf16.msra.mxu0 %v6279
  %7828 = vmatprep.subr.bf16.mxu0 %v6272
  %7829 = vmatpush1.bf16.msra.mxu0 %v6271
  %7830 = vmatprep.subr.bf16.mxu0 %v6264
  %7831 = vmatpush1.bf16.msra.mxu0 %v6263
  %7832 = vmatprep.subr.bf16.mxu0 %v6256
  %7833 = vmatpush1.bf16.msra.mxu0 %v6255
  %7834 = vmatprep.subr.bf16.mxu0 %v6248
  %7835 = vmatpush1.bf16.msra.mxu0 %v6247
  %7836 = vmatprep.subr.bf16.mxu0 %v6240
  %7837 = vmatpush1.bf16.msra.mxu0 %v6239
  %7838 = vmatprep.subr.bf16.mxu0 %v6232
  %7839 = vmatpush1.bf16.msra.mxu0 %v6231
  %7840 = vmatprep.subr.bf16.mxu0 %v6352
  %7841 = vmatpush2.bf16.msra.mxu0 %v6351
  %7842 = vmatprep.subr.bf16.mxu0 %v6344
  %7843 = vmatpush2.bf16.msra.mxu0 %v6343
  %7844 = vmatprep.subr.bf16.mxu0 %v6336
  %7845 = vmatpush2.bf16.msra.mxu0 %v6335
  %7846 = vmatprep.subr.bf16.mxu0 %v6328
  %7847 = vmatpush2.bf16.msra.mxu0 %v6327
  %7848 = vmatprep.subr.bf16.mxu0 %v6320
  %7849 = vmatpush2.bf16.msra.mxu0 %v6319
  %7850 = vmatprep.subr.bf16.mxu0 %v6312
  %7851 = vmatpush2.bf16.msra.mxu0 %v6311
  %7852 = vmatprep.subr.bf16.mxu0 %v6304
  %7853 = vmatpush2.bf16.msra.mxu0 %v6303
  %7854 = vmatprep.subr.bf16.mxu0 %v6296
  %7855 = vmatpush2.bf16.msra.mxu0 %v6295
  %7856 = vmatprep.mubr.bf16.mxu0 %v7782
  %7857 = vmatmul.mubr.bf16.gmra.mxu0 %v7781
  %v7858 = vpop.f32.mrf.mxu0
  %v7859 = vadd.f32 %v7818, %v7858
  %v7860 = vpop.f32.mrf.mxu0
  %v7861 = vadd.f32 %v7820, %v7860
  %v7862 = vpop.f32.mrf.mxu0
  %v7863 = vpop.f32.mrf.mxu0
  %7864 = vdwg.mxu0
  %7865 = vmatprep.subr.bf16.mxu0 %v6162
  %7866 = vmatpush1.bf16.msra.mxu0 %v6161
  %7867 = vmatprep.subr.bf16.mxu0 %v6154
  %7868 = vmatpush1.bf16.msra.mxu0 %v6153
  %7869 = vmatprep.subr.bf16.mxu0 %v6146
  %7870 = vmatpush1.bf16.msra.mxu0 %v6145
  %7871 = vmatprep.subr.bf16.mxu0 %v6138
  %7872 = vmatpush1.bf16.msra.mxu0 %v6137
  %7873 = vmatprep.subr.bf16.mxu0 %v6130
  %7874 = vmatpush1.bf16.msra.mxu0 %v6129
  %7875 = vmatprep.subr.bf16.mxu0 %v6122
  %7876 = vmatpush1.bf16.msra.mxu0 %v6121
  %7877 = vmatprep.subr.bf16.mxu0 %v6114
  %7878 = vmatpush1.bf16.msra.mxu0 %v6113
  %7879 = vmatprep.subr.bf16.mxu0 %v6106
  %7880 = vmatpush1.bf16.msra.mxu0 %v6105
  %7881 = vmatprep.subr.bf16.mxu0 %v6226
  %7882 = vmatpush2.bf16.msra.mxu0 %v6225
  %7883 = vmatprep.subr.bf16.mxu0 %v6218
  %7884 = vmatpush2.bf16.msra.mxu0 %v6217
  %7885 = vmatprep.subr.bf16.mxu0 %v6210
  %7886 = vmatpush2.bf16.msra.mxu0 %v6209
  %7887 = vmatprep.subr.bf16.mxu0 %v6202
  %7888 = vmatpush2.bf16.msra.mxu0 %v6201
  %7889 = vmatprep.subr.bf16.mxu0 %v6194
  %7890 = vmatpush2.bf16.msra.mxu0 %v6193
  %7891 = vmatprep.subr.bf16.mxu0 %v6186
  %7892 = vmatpush2.bf16.msra.mxu0 %v6185
  %7893 = vmatprep.subr.bf16.mxu0 %v6178
  %7894 = vmatpush2.bf16.msra.mxu0 %v6177
  %7895 = vmatprep.subr.bf16.mxu0 %v6170
  %7896 = vmatpush2.bf16.msra.mxu0 %v6169
  %7897 = vmatprep.mubr.bf16.mxu0 %v7780
  %7898 = vmatmul.mubr.bf16.gmra.mxu0 %v7779
  %v7899 = vpop.f32.mrf.mxu0
  %v7900 = vadd.f32 %v2107, %v7899
  %v7901 = vpop.f32.mrf.mxu0
  %v7902 = vadd.f32 %v2111, %v7901
  %v7903 = vpop.f32.mrf.mxu0
  %v7904 = vpop.f32.mrf.mxu0
  %7905 = vdwg.mxu0
  %7906 = vmatprep.subr.bf16.mxu0 %v6290
  %7907 = vmatpush1.bf16.msra.mxu0 %v6289
  %7908 = vmatprep.subr.bf16.mxu0 %v6282
  %7909 = vmatpush1.bf16.msra.mxu0 %v6281
  %7910 = vmatprep.subr.bf16.mxu0 %v6274
  %7911 = vmatpush1.bf16.msra.mxu0 %v6273
  %7912 = vmatprep.subr.bf16.mxu0 %v6266
  %7913 = vmatpush1.bf16.msra.mxu0 %v6265
  %7914 = vmatprep.subr.bf16.mxu0 %v6258
  %7915 = vmatpush1.bf16.msra.mxu0 %v6257
  %7916 = vmatprep.subr.bf16.mxu0 %v6250
  %7917 = vmatpush1.bf16.msra.mxu0 %v6249
  %7918 = vmatprep.subr.bf16.mxu0 %v6242
  %7919 = vmatpush1.bf16.msra.mxu0 %v6241
  %7920 = vmatprep.subr.bf16.mxu0 %v6234
  %7921 = vmatpush1.bf16.msra.mxu0 %v6233
  %7922 = vmatprep.subr.bf16.mxu0 %v6354
  %7923 = vmatpush2.bf16.msra.mxu0 %v6353
  %7924 = vmatprep.subr.bf16.mxu0 %v6346
  %7925 = vmatpush2.bf16.msra.mxu0 %v6345
  %7926 = vmatprep.subr.bf16.mxu0 %v6338
  %7927 = vmatpush2.bf16.msra.mxu0 %v6337
  %7928 = vmatprep.subr.bf16.mxu0 %v6330
  %7929 = vmatpush2.bf16.msra.mxu0 %v6329
  %7930 = vmatprep.subr.bf16.mxu0 %v6322
  %7931 = vmatpush2.bf16.msra.mxu0 %v6321
  %7932 = vmatprep.subr.bf16.mxu0 %v6314
  %7933 = vmatpush2.bf16.msra.mxu0 %v6313
  %7934 = vmatprep.subr.bf16.mxu0 %v6306
  %7935 = vmatpush2.bf16.msra.mxu0 %v6305
  %7936 = vmatprep.subr.bf16.mxu0 %v6298
  %7937 = vmatpush2.bf16.msra.mxu0 %v6297
  %7938 = vmatprep.mubr.bf16.mxu0 %v7782
  %7939 = vmatmul.mubr.bf16.gmra.mxu0 %v7781
  %v7940 = vpop.f32.mrf.mxu0
  %v7941 = vadd.f32 %v7900, %v7940
  %v7942 = vpop.f32.mrf.mxu0
  %v7943 = vadd.f32 %v7902, %v7942
  %v7944 = vpop.f32.mrf.mxu0
  %v7945 = vpop.f32.mrf.mxu0
  %7946 = vdwg.mxu0
  %7947 = vmatprep.subr.bf16.mxu0 %v6164
  %7948 = vmatpush1.bf16.msra.mxu0 %v6163
  %7949 = vmatprep.subr.bf16.mxu0 %v6156
  %7950 = vmatpush1.bf16.msra.mxu0 %v6155
  %7951 = vmatprep.subr.bf16.mxu0 %v6148
  %7952 = vmatpush1.bf16.msra.mxu0 %v6147
  %7953 = vmatprep.subr.bf16.mxu0 %v6140
  %7954 = vmatpush1.bf16.msra.mxu0 %v6139
  %7955 = vmatprep.subr.bf16.mxu0 %v6132
  %7956 = vmatpush1.bf16.msra.mxu0 %v6131
  %7957 = vmatprep.subr.bf16.mxu0 %v6124
  %7958 = vmatpush1.bf16.msra.mxu0 %v6123
  %7959 = vmatprep.subr.bf16.mxu0 %v6116
  %7960 = vmatpush1.bf16.msra.mxu0 %v6115
  %7961 = vmatprep.subr.bf16.mxu0 %v6108
  %7962 = vmatpush1.bf16.msra.mxu0 %v6107
  %7963 = vmatprep.subr.bf16.mxu0 %v6228
  %7964 = vmatpush2.bf16.msra.mxu0 %v6227
  %7965 = vmatprep.subr.bf16.mxu0 %v6220
  %7966 = vmatpush2.bf16.msra.mxu0 %v6219
  %7967 = vmatprep.subr.bf16.mxu0 %v6212
  %7968 = vmatpush2.bf16.msra.mxu0 %v6211
  %7969 = vmatprep.subr.bf16.mxu0 %v6204
  %7970 = vmatpush2.bf16.msra.mxu0 %v6203
  %7971 = vmatprep.subr.bf16.mxu0 %v6196
  %7972 = vmatpush2.bf16.msra.mxu0 %v6195
  %7973 = vmatprep.subr.bf16.mxu0 %v6188
  %7974 = vmatpush2.bf16.msra.mxu0 %v6187
  %7975 = vmatprep.subr.bf16.mxu0 %v6180
  %7976 = vmatpush2.bf16.msra.mxu0 %v6179
  %7977 = vmatprep.subr.bf16.mxu0 %v6172
  %7978 = vmatpush2.bf16.msra.mxu0 %v6171
  %7979 = vmatprep.mubr.bf16.mxu0 %v7780
  %7980 = vmatmul.mubr.bf16.gmra.mxu0 %v7779
  %v7981 = vpop.f32.mrf.mxu0
  %v7982 = vadd.f32 %v2115, %v7981
  %v7983 = vpop.f32.mrf.mxu0
  %v7984 = vadd.f32 %v2119, %v7983
  %v7985 = vpop.f32.mrf.mxu0
  %v7986 = vpop.f32.mrf.mxu0
  %7987 = vdwg.mxu0
  %7988 = vmatprep.subr.bf16.mxu0 %v6292
  %7989 = vmatpush1.bf16.msra.mxu0 %v6291
  %7990 = vmatprep.subr.bf16.mxu0 %v6284
  %7991 = vmatpush1.bf16.msra.mxu0 %v6283
  %7992 = vmatprep.subr.bf16.mxu0 %v6276
  %7993 = vmatpush1.bf16.msra.mxu0 %v6275
  %7994 = vmatprep.subr.bf16.mxu0 %v6268
  %7995 = vmatpush1.bf16.msra.mxu0 %v6267
  %7996 = vmatprep.subr.bf16.mxu0 %v6260
  %7997 = vmatpush1.bf16.msra.mxu0 %v6259
  %7998 = vmatprep.subr.bf16.mxu0 %v6252
  %7999 = vmatpush1.bf16.msra.mxu0 %v6251
  %8000 = vmatprep.subr.bf16.mxu0 %v6244
  %8001 = vmatpush1.bf16.msra.mxu0 %v6243
  %8002 = vmatprep.subr.bf16.mxu0 %v6236
  %8003 = vmatpush1.bf16.msra.mxu0 %v6235
  %8004 = vmatprep.subr.bf16.mxu0 %v6356
  %8005 = vmatpush2.bf16.msra.mxu0 %v6355
  %8006 = vmatprep.subr.bf16.mxu0 %v6348
  %8007 = vmatpush2.bf16.msra.mxu0 %v6347
  %8008 = vmatprep.subr.bf16.mxu0 %v6340
  %8009 = vmatpush2.bf16.msra.mxu0 %v6339
  %8010 = vmatprep.subr.bf16.mxu0 %v6332
  %8011 = vmatpush2.bf16.msra.mxu0 %v6331
  %8012 = vmatprep.subr.bf16.mxu0 %v6324
  %8013 = vmatpush2.bf16.msra.mxu0 %v6323
  %8014 = vmatprep.subr.bf16.mxu0 %v6316
  %8015 = vmatpush2.bf16.msra.mxu0 %v6315
  %8016 = vmatprep.subr.bf16.mxu0 %v6308
  %8017 = vmatpush2.bf16.msra.mxu0 %v6307
  %8018 = vmatprep.subr.bf16.mxu0 %v6300
  %8019 = vmatpush2.bf16.msra.mxu0 %v6299
  %8020 = vmatprep.mubr.bf16.mxu0 %v7782
  %8021 = vmatmul.mubr.bf16.gmra.mxu0 %v7781
  %v8022 = vpop.f32.mrf.mxu0
  %v8023 = vadd.f32 %v7982, %v8022
  %v8024 = vpop.f32.mrf.mxu0
  %v8025 = vadd.f32 %v7984, %v8024
  %v8026 = vpop.f32.mrf.mxu0
  %v8027 = vpop.f32.mrf.mxu0
  %8028 = vdwg.mxu0
  %8029 = vmatprep.subr.bf16.mxu0 %v6166
  %8030 = vmatpush1.bf16.msra.mxu0 %v6165
  %8031 = vmatprep.subr.bf16.mxu0 %v6158
  %8032 = vmatpush1.bf16.msra.mxu0 %v6157
  %8033 = vmatprep.subr.bf16.mxu0 %v6150
  %8034 = vmatpush1.bf16.msra.mxu0 %v6149
  %8035 = vmatprep.subr.bf16.mxu0 %v6142
  %8036 = vmatpush1.bf16.msra.mxu0 %v6141
  %8037 = vmatprep.subr.bf16.mxu0 %v6134
  %8038 = vmatpush1.bf16.msra.mxu0 %v6133
  %8039 = vmatprep.subr.bf16.mxu0 %v6126
  %8040 = vmatpush1.bf16.msra.mxu0 %v6125
  %8041 = vmatprep.subr.bf16.mxu0 %v6118
  %8042 = vmatpush1.bf16.msra.mxu0 %v6117
  %8043 = vmatprep.subr.bf16.mxu0 %v6110
  %8044 = vmatpush1.bf16.msra.mxu0 %v6109
  %8045 = vmatprep.subr.bf16.mxu0 %v6230
  %8046 = vmatpush2.bf16.msra.mxu0 %v6229
  %8047 = vmatprep.subr.bf16.mxu0 %v6222
  %8048 = vmatpush2.bf16.msra.mxu0 %v6221
  %8049 = vmatprep.subr.bf16.mxu0 %v6214
  %8050 = vmatpush2.bf16.msra.mxu0 %v6213
  %8051 = vmatprep.subr.bf16.mxu0 %v6206
  %8052 = vmatpush2.bf16.msra.mxu0 %v6205
  %8053 = vmatprep.subr.bf16.mxu0 %v6198
  %8054 = vmatpush2.bf16.msra.mxu0 %v6197
  %8055 = vmatprep.subr.bf16.mxu0 %v6190
  %8056 = vmatpush2.bf16.msra.mxu0 %v6189
  %8057 = vmatprep.subr.bf16.mxu0 %v6182
  %8058 = vmatpush2.bf16.msra.mxu0 %v6181
  %8059 = vmatprep.subr.bf16.mxu0 %v6174
  %8060 = vmatpush2.bf16.msra.mxu0 %v6173
  %8061 = vmatprep.mubr.bf16.mxu0 %v7780
  %8062 = vmatmul.mubr.bf16.gmra.mxu0 %v7779
  %v8063 = vpop.f32.mrf.mxu0
  %v8064 = vadd.f32 %v2123, %v8063
  %v8065 = vpop.f32.mrf.mxu0
  %v8066 = vadd.f32 %v2127, %v8065
  %v8067 = vpop.f32.mrf.mxu0
  %v8068 = vpop.f32.mrf.mxu0
  %8069 = vdwg.mxu0
  %8070 = vmatprep.subr.bf16.mxu0 %v6294
  %8071 = vmatpush1.bf16.msra.mxu0 %v6293
  %8072 = vmatprep.subr.bf16.mxu0 %v6286
  %8073 = vmatpush1.bf16.msra.mxu0 %v6285
  %8074 = vmatprep.subr.bf16.mxu0 %v6278
  %8075 = vmatpush1.bf16.msra.mxu0 %v6277
  %8076 = vmatprep.subr.bf16.mxu0 %v6270
  %8077 = vmatpush1.bf16.msra.mxu0 %v6269
  %8078 = vmatprep.subr.bf16.mxu0 %v6262
  %8079 = vmatpush1.bf16.msra.mxu0 %v6261
  %8080 = vmatprep.subr.bf16.mxu0 %v6254
  %8081 = vmatpush1.bf16.msra.mxu0 %v6253
  %8082 = vmatprep.subr.bf16.mxu0 %v6246
  %8083 = vmatpush1.bf16.msra.mxu0 %v6245
  %8084 = vmatprep.subr.bf16.mxu0 %v6238
  %8085 = vmatpush1.bf16.msra.mxu0 %v6237
  %8086 = vmatprep.subr.bf16.mxu0 %v6358
  %8087 = vmatpush2.bf16.msra.mxu0 %v6357
  %8088 = vmatprep.subr.bf16.mxu0 %v6350
  %8089 = vmatpush2.bf16.msra.mxu0 %v6349
  %8090 = vmatprep.subr.bf16.mxu0 %v6342
  %8091 = vmatpush2.bf16.msra.mxu0 %v6341
  %8092 = vmatprep.subr.bf16.mxu0 %v6334
  %8093 = vmatpush2.bf16.msra.mxu0 %v6333
  %8094 = vmatprep.subr.bf16.mxu0 %v6326
  %8095 = vmatpush2.bf16.msra.mxu0 %v6325
  %8096 = vmatprep.subr.bf16.mxu0 %v6318
  %8097 = vmatpush2.bf16.msra.mxu0 %v6317
  %8098 = vmatprep.subr.bf16.mxu0 %v6310
  %8099 = vmatpush2.bf16.msra.mxu0 %v6309
  %8100 = vmatprep.subr.bf16.mxu0 %v6302
  %8101 = vmatpush2.bf16.msra.mxu0 %v6301
  %8102 = vmatprep.mubr.bf16.mxu0 %v7782
  %8103 = vmatmul.mubr.bf16.gmra.mxu0 %v7781
  %v8104 = vpop.f32.mrf.mxu0
  %v8105 = vadd.f32 %v8064, %v8104
  %v8106 = vpop.f32.mrf.mxu0
  %v8107 = vadd.f32 %v8066, %v8106
  %v8108 = vpop.f32.mrf.mxu0
  %v8109 = vpop.f32.mrf.mxu0
  %8110 = vdwg.mxu0
  %v8111 = vmul.f32 %v7859, 0.5
  %v8112 = vmul.f32 %v7861, 0.5
  %v8113 = vtanh.pop %v8111
  %v8114 = vtanh.pop %v8112
  %v8115 = vadd.f32 %v8113, 1.0
  %v8116 = vadd.f32 %v8114, 1.0
  %v8117 = vmul.f32 %v8115, 0.5
  %v8118 = vmul.f32 %v8116, 0.5
  %v8119 = vmul.f32 %v7941, 0.5
  %v8120 = vmul.f32 %v7943, 0.5
  %v8121 = vtanh.pop %v8119
  %v8122 = vtanh.pop %v8120
  %v8123 = vadd.f32 %v8121, 1.0
  %v8124 = vadd.f32 %v8122, 1.0
  %v8125 = vmul.f32 %v8123, 0.5
  %v8126 = vmul.f32 %v8124, 0.5
  %v8127 = vtanh.pop %v8023
  %v8128 = vtanh.pop %v8025
  %v8129 = vmul.f32 %v8105, 0.5
  %v8130 = vmul.f32 %v8107, 0.5
  %v8131 = vtanh.pop %v8129
  %v8132 = vtanh.pop %v8130
  %v8133 = vadd.f32 %v8131, 1.0
  %v8134 = vadd.f32 %v8132, 1.0
  %v8135 = vmul.f32 %v8133, 0.5
  %v8136 = vmul.f32 %v8134, 0.5
  %v8137 = vmul.f32 %v8125, %v7557
  %v8138 = vmul.f32 %v8126, %v7558
  %v8139 = vmul.f32 %v8117, %v8127
  %v8140 = vmul.f32 %v8118, %v8128
  %v8141 = vadd.f32 %v8137, %v8139
  %v8142 = vadd.f32 %v8138, %v8140
  %v8143 = vtanh.pop %v8141
  %v8144 = vtanh.pop %v8142
  %v8145 = vmul.f32 %v8135, %v8143
  %v8146 = vmul.f32 %v8136, %v8144
  %v8147 = vld [vmem:[#allocation2 + $0x100] sm:$0xff]
  %v8148 = vld [vmem:[#allocation2 + $0x108] sm:$0xff]
  %v8149 = vld [vmem:[#allocation2 + $0x110] sm:$0xff]
  %v8150 = vld [vmem:[#allocation2 + $0x118] sm:$0xff]
  %v8151 = vld [vmem:[#allocation2 + $0x120] sm:$0xff]
  %v8152 = vld [vmem:[#allocation2 + $0x128] sm:$0xff]
  %v8153 = vld [vmem:[#allocation2 + $0x130] sm:$0xff]
  %v8154 = vld [vmem:[#allocation2 + $0x138] sm:$0xff]
  %8155 = vmatprep.subr.bf16.mxu0 %v4668
  %8156 = vmatpush1.bf16.msra.mxu0 %v4667
  %8157 = vmatprep.subr.bf16.mxu0 %v4660
  %8158 = vmatpush1.bf16.msra.mxu0 %v4659
  %8159 = vmatprep.subr.bf16.mxu0 %v4652
  %8160 = vmatpush1.bf16.msra.mxu0 %v4651
  %8161 = vmatprep.subr.bf16.mxu0 %v4644
  %8162 = vmatpush1.bf16.msra.mxu0 %v4643
  %8163 = vmatprep.subr.bf16.mxu0 %v4636
  %8164 = vmatpush1.bf16.msra.mxu0 %v4635
  %8165 = vmatprep.subr.bf16.mxu0 %v4628
  %8166 = vmatpush1.bf16.msra.mxu0 %v4627
  %8167 = vmatprep.subr.bf16.mxu0 %v4620
  %8168 = vmatpush1.bf16.msra.mxu0 %v4619
  %8169 = vmatprep.subr.bf16.mxu0 %v4612
  %8170 = vmatpush1.bf16.msra.mxu0 %v4611
  %8171 = vmatprep.subr.bf16.mxu0 %v4732
  %8172 = vmatpush2.bf16.msra.mxu0 %v4731
  %8173 = vmatprep.subr.bf16.mxu0 %v4724
  %8174 = vmatpush2.bf16.msra.mxu0 %v4723
  %8175 = vmatprep.subr.bf16.mxu0 %v4716
  %8176 = vmatpush2.bf16.msra.mxu0 %v4715
  %8177 = vmatprep.subr.bf16.mxu0 %v4708
  %8178 = vmatpush2.bf16.msra.mxu0 %v4707
  %8179 = vmatprep.subr.bf16.mxu0 %v4700
  %8180 = vmatpush2.bf16.msra.mxu0 %v4699
  %8181 = vmatprep.subr.bf16.mxu0 %v4692
  %8182 = vmatpush2.bf16.msra.mxu0 %v4691
  %8183 = vmatprep.subr.bf16.mxu0 %v4684
  %8184 = vmatpush2.bf16.msra.mxu0 %v4683
  %8185 = vmatprep.subr.bf16.mxu0 %v4676
  %8186 = vmatpush2.bf16.msra.mxu0 %v4675
  %8187 = vmatprep.mubr.bf16.mxu0 %v7780
  %8188 = vmatmul.mubr.bf16.gmra.mxu0 %v7779
  %v8189 = vpop.f32.mrf.mxu0
  %v8190 = vadd.f32 0.0, %v8189
  %v8191 = vpop.f32.mrf.mxu0
  %v8192 = vadd.f32 0.0, %v8191
  %v8193 = vpop.f32.mrf.mxu0
  %v8194 = vpop.f32.mrf.mxu0
  %8195 = vdwg.mxu0
  %8196 = vmatprep.subr.bf16.mxu0 %v4670
  %8197 = vmatpush1.bf16.msra.mxu0 %v4669
  %8198 = vmatprep.subr.bf16.mxu0 %v4662
  %8199 = vmatpush1.bf16.msra.mxu0 %v4661
  %8200 = vmatprep.subr.bf16.mxu0 %v4654
  %8201 = vmatpush1.bf16.msra.mxu0 %v4653
  %8202 = vmatprep.subr.bf16.mxu0 %v4646
  %8203 = vmatpush1.bf16.msra.mxu0 %v4645
  %8204 = vmatprep.subr.bf16.mxu0 %v4638
  %8205 = vmatpush1.bf16.msra.mxu0 %v4637
  %8206 = vmatprep.subr.bf16.mxu0 %v4630
  %8207 = vmatpush1.bf16.msra.mxu0 %v4629
  %8208 = vmatprep.subr.bf16.mxu0 %v4622
  %8209 = vmatpush1.bf16.msra.mxu0 %v4621
  %8210 = vmatprep.subr.bf16.mxu0 %v4614
  %8211 = vmatpush1.bf16.msra.mxu0 %v4613
  %8212 = vmatprep.subr.bf16.mxu0 %v4734
  %8213 = vmatpush2.bf16.msra.mxu0 %v4733
  %8214 = vmatprep.subr.bf16.mxu0 %v4726
  %8215 = vmatpush2.bf16.msra.mxu0 %v4725
  %8216 = vmatprep.subr.bf16.mxu0 %v4718
  %8217 = vmatpush2.bf16.msra.mxu0 %v4717
  %8218 = vmatprep.subr.bf16.mxu0 %v4710
  %8219 = vmatpush2.bf16.msra.mxu0 %v4709
  %8220 = vmatprep.subr.bf16.mxu0 %v4702
  %8221 = vmatpush2.bf16.msra.mxu0 %v4701
  %8222 = vmatprep.subr.bf16.mxu0 %v4694
  %8223 = vmatpush2.bf16.msra.mxu0 %v4693
  %8224 = vmatprep.subr.bf16.mxu0 %v4686
  %8225 = vmatpush2.bf16.msra.mxu0 %v4685
  %8226 = vmatprep.subr.bf16.mxu0 %v4678
  %8227 = vmatpush2.bf16.msra.mxu0 %v4677
  %8228 = vmatprep.mubr.bf16.mxu0 %v7780
  %8229 = vmatmul.mubr.bf16.gmra.mxu0 %v7779
  %v8230 = vpop.f32.mrf.mxu0
  %v8231 = vadd.f32 0.0, %v8230
  %v8232 = vpop.f32.mrf.mxu0
  %v8233 = vadd.f32 0.0, %v8232
  %v8234 = vpop.f32.mrf.mxu0
  %v8235 = vpop.f32.mrf.mxu0
  %8236 = vdwg.mxu0
  %8237 = vmatprep.subr.bf16.mxu0 %v4672
  %8238 = vmatpush1.bf16.msra.mxu0 %v4671
  %8239 = vmatprep.subr.bf16.mxu0 %v4664
  %8240 = vmatpush1.bf16.msra.mxu0 %v4663
  %8241 = vmatprep.subr.bf16.mxu0 %v4656
  %8242 = vmatpush1.bf16.msra.mxu0 %v4655
  %8243 = vmatprep.subr.bf16.mxu0 %v4648
  %8244 = vmatpush1.bf16.msra.mxu0 %v4647
  %8245 = vmatprep.subr.bf16.mxu0 %v4640
  %8246 = vmatpush1.bf16.msra.mxu0 %v4639
  %8247 = vmatprep.subr.bf16.mxu0 %v4632
  %8248 = vmatpush1.bf16.msra.mxu0 %v4631
  %8249 = vmatprep.subr.bf16.mxu0 %v4624
  %8250 = vmatpush1.bf16.msra.mxu0 %v4623
  %8251 = vmatprep.subr.bf16.mxu0 %v4616
  %8252 = vmatpush1.bf16.msra.mxu0 %v4615
  %8253 = vmatprep.subr.bf16.mxu0 %v4736
  %8254 = vmatpush2.bf16.msra.mxu0 %v4735
  %8255 = vmatprep.subr.bf16.mxu0 %v4728
  %8256 = vmatpush2.bf16.msra.mxu0 %v4727
  %8257 = vmatprep.subr.bf16.mxu0 %v4720
  %8258 = vmatpush2.bf16.msra.mxu0 %v4719
  %8259 = vmatprep.subr.bf16.mxu0 %v4712
  %8260 = vmatpush2.bf16.msra.mxu0 %v4711
  %8261 = vmatprep.subr.bf16.mxu0 %v4704
  %8262 = vmatpush2.bf16.msra.mxu0 %v4703
  %8263 = vmatprep.subr.bf16.mxu0 %v4696
  %8264 = vmatpush2.bf16.msra.mxu0 %v4695
  %8265 = vmatprep.subr.bf16.mxu0 %v4688
  %8266 = vmatpush2.bf16.msra.mxu0 %v4687
  %8267 = vmatprep.subr.bf16.mxu0 %v4680
  %8268 = vmatpush2.bf16.msra.mxu0 %v4679
  %8269 = vmatprep.mubr.bf16.mxu0 %v7780
  %8270 = vmatmul.mubr.bf16.gmra.mxu0 %v7779
  %v8271 = vpop.f32.mrf.mxu0
  %v8272 = vadd.f32 0.0, %v8271
  %v8273 = vpop.f32.mrf.mxu0
  %v8274 = vadd.f32 0.0, %v8273
  %v8275 = vpop.f32.mrf.mxu0
  %v8276 = vpop.f32.mrf.mxu0
  %8277 = vdwg.mxu0
  %8278 = vmatprep.subr.bf16.mxu0 %v4674
  %8279 = vmatpush1.bf16.msra.mxu0 %v4673
  %8280 = vmatprep.subr.bf16.mxu0 %v4666
  %8281 = vmatpush1.bf16.msra.mxu0 %v4665
  %8282 = vmatprep.subr.bf16.mxu0 %v4658
  %8283 = vmatpush1.bf16.msra.mxu0 %v4657
  %8284 = vmatprep.subr.bf16.mxu0 %v4650
  %8285 = vmatpush1.bf16.msra.mxu0 %v4649
  %8286 = vmatprep.subr.bf16.mxu0 %v4642
  %8287 = vmatpush1.bf16.msra.mxu0 %v4641
  %8288 = vmatprep.subr.bf16.mxu0 %v4634
  %8289 = vmatpush1.bf16.msra.mxu0 %v4633
  %8290 = vmatprep.subr.bf16.mxu0 %v4626
  %8291 = vmatpush1.bf16.msra.mxu0 %v4625
  %8292 = vmatprep.subr.bf16.mxu0 %v4618
  %8293 = vmatpush1.bf16.msra.mxu0 %v4617
  %8294 = vmatprep.subr.bf16.mxu0 %v4738
  %8295 = vmatpush2.bf16.msra.mxu0 %v4737
  %8296 = vmatprep.subr.bf16.mxu0 %v4730
  %8297 = vmatpush2.bf16.msra.mxu0 %v4729
  %8298 = vmatprep.subr.bf16.mxu0 %v4722
  %8299 = vmatpush2.bf16.msra.mxu0 %v4721
  %8300 = vmatprep.subr.bf16.mxu0 %v4714
  %8301 = vmatpush2.bf16.msra.mxu0 %v4713
  %8302 = vmatprep.subr.bf16.mxu0 %v4706
  %8303 = vmatpush2.bf16.msra.mxu0 %v4705
  %8304 = vmatprep.subr.bf16.mxu0 %v4698
  %8305 = vmatpush2.bf16.msra.mxu0 %v4697
  %8306 = vmatprep.subr.bf16.mxu0 %v4690
  %8307 = vmatpush2.bf16.msra.mxu0 %v4689
  %8308 = vmatprep.subr.bf16.mxu0 %v4682
  %8309 = vmatpush2.bf16.msra.mxu0 %v4681
  %8310 = vmatprep.mubr.bf16.mxu0 %v7780
  %8311 = vmatmul.mubr.bf16.gmra.mxu0 %v7779
  %v8312 = vpop.f32.mrf.mxu0
  %v8313 = vadd.f32 0.0, %v8312
  %v8314 = vpop.f32.mrf.mxu0
  %v8315 = vadd.f32 0.0, %v8314
  %v8316 = vpop.f32.mrf.mxu0
  %v8317 = vpop.f32.mrf.mxu0
  %8318 = vdwg.mxu0
  %v8319 = vadd.f32 %v8147, %v8190
  %v8320 = vadd.f32 %v8148, %v8192
  %v8321 = vadd.f32 %v8149, %v8231
  %v8322 = vadd.f32 %v8150, %v8233
  %v8323 = vadd.f32 %v8151, %v8272
  %v8324 = vadd.f32 %v8152, %v8274
  %v8325 = vadd.f32 %v8153, %v8313
  %v8326 = vadd.f32 %v8154, %v8315
  %v8327 = vmul.f32 %v8319, 0.5
  %v8328 = vmul.f32 %v8320, 0.5
  %v8329 = vtanh.pop %v8327
  %v8330 = vtanh.pop %v8328
  %v8331 = vadd.f32 %v8329, 1.0
  %v8332 = vadd.f32 %v8330, 1.0
  %v8333 = vmul.f32 %v8331, 0.5
  %v8334 = vmul.f32 %v8332, 0.5
  %v8335 = vmul.f32 %v8321, 0.5
  %v8336 = vmul.f32 %v8322, 0.5
  %v8337 = vtanh.pop %v8335
  %v8338 = vtanh.pop %v8336
  %v8339 = vadd.f32 %v8337, 1.0
  %v8340 = vadd.f32 %v8338, 1.0
  %v8341 = vmul.f32 %v8339, 0.5
  %v8342 = vmul.f32 %v8340, 0.5
  %v8343 = vtanh.pop %v8323
  %v8344 = vtanh.pop %v8324
  %v8345 = vmul.f32 %v8325, 0.5
  %v8346 = vmul.f32 %v8326, 0.5
  %v8347 = vtanh.pop %v8345
  %v8348 = vtanh.pop %v8346
  %v8349 = vadd.f32 %v8347, 1.0
  %v8350 = vadd.f32 %v8348, 1.0
  %v8351 = vmul.f32 %v8349, 0.5
  %v8352 = vmul.f32 %v8350, 0.5
  %v8353 = vmul.f32 %v8341, %v7773
  %v8354 = vmul.f32 %v8342, %v7774
  %v8355 = vmul.f32 %v8333, %v8343
  %v8356 = vmul.f32 %v8334, %v8344
  %v8357 = vadd.f32 %v8353, %v8355
  %v8358 = vadd.f32 %v8354, %v8356
  %v8359 = vtanh.pop %v8357
  %v8360 = vtanh.pop %v8358
  %v8361 = vmul.f32 %v8351, %v8359
  %v8362 = vmul.f32 %v8352, %v8360
  %v8363 = vpack.c.bf16 %v8361, %v8361
  %v8364 = vpack.c.bf16 %v8362, %v8362
  %v8365 = vpack.c.bf16 %v8145, %v8145
  %v8366 = vpack.c.bf16 %v8146, %v8146
  %8367 = vmatprep.subr.bf16.mxu0 %v6160
  %8368 = vmatpush1.bf16.msra.mxu0 %v6159
  %8369 = vmatprep.subr.bf16.mxu0 %v6152
  %8370 = vmatpush1.bf16.msra.mxu0 %v6151
  %8371 = vmatprep.subr.bf16.mxu0 %v6144
  %8372 = vmatpush1.bf16.msra.mxu0 %v6143
  %8373 = vmatprep.subr.bf16.mxu0 %v6136
  %8374 = vmatpush1.bf16.msra.mxu0 %v6135
  %8375 = vmatprep.subr.bf16.mxu0 %v6128
  %8376 = vmatpush1.bf16.msra.mxu0 %v6127
  %8377 = vmatprep.subr.bf16.mxu0 %v6120
  %8378 = vmatpush1.bf16.msra.mxu0 %v6119
  %8379 = vmatprep.subr.bf16.mxu0 %v6112
  %8380 = vmatpush1.bf16.msra.mxu0 %v6111
  %8381 = vmatprep.subr.bf16.mxu0 %v6104
  %8382 = vmatpush1.bf16.msra.mxu0 %v6103
  %8383 = vmatprep.subr.bf16.mxu0 %v6224
  %8384 = vmatpush2.bf16.msra.mxu0 %v6223
  %8385 = vmatprep.subr.bf16.mxu0 %v6216
  %8386 = vmatpush2.bf16.msra.mxu0 %v6215
  %8387 = vmatprep.subr.bf16.mxu0 %v6208
  %8388 = vmatpush2.bf16.msra.mxu0 %v6207
  %8389 = vmatprep.subr.bf16.mxu0 %v6200
  %8390 = vmatpush2.bf16.msra.mxu0 %v6199
  %8391 = vmatprep.subr.bf16.mxu0 %v6192
  %8392 = vmatpush2.bf16.msra.mxu0 %v6191
  %8393 = vmatprep.subr.bf16.mxu0 %v6184
  %8394 = vmatpush2.bf16.msra.mxu0 %v6183
  %8395 = vmatprep.subr.bf16.mxu0 %v6176
  %8396 = vmatpush2.bf16.msra.mxu0 %v6175
  %8397 = vmatprep.subr.bf16.mxu0 %v6168
  %8398 = vmatpush2.bf16.msra.mxu0 %v6167
  %8399 = vmatprep.mubr.bf16.mxu0 %v8364
  %8400 = vmatmul.mubr.bf16.gmra.mxu0 %v8363
  %v8401 = vpop.f32.mrf.mxu0
  %v8402 = vadd.f32 %v2099, %v8401
  %v8403 = vpop.f32.mrf.mxu0
  %v8404 = vadd.f32 %v2103, %v8403
  %v8405 = vpop.f32.mrf.mxu0
  %v8406 = vpop.f32.mrf.mxu0
  %8407 = vdwg.mxu0
  %8408 = vmatprep.subr.bf16.mxu0 %v6288
  %8409 = vmatpush1.bf16.msra.mxu0 %v6287
  %8410 = vmatprep.subr.bf16.mxu0 %v6280
  %8411 = vmatpush1.bf16.msra.mxu0 %v6279
  %8412 = vmatprep.subr.bf16.mxu0 %v6272
  %8413 = vmatpush1.bf16.msra.mxu0 %v6271
  %8414 = vmatprep.subr.bf16.mxu0 %v6264
  %8415 = vmatpush1.bf16.msra.mxu0 %v6263
  %8416 = vmatprep.subr.bf16.mxu0 %v6256
  %8417 = vmatpush1.bf16.msra.mxu0 %v6255
  %8418 = vmatprep.subr.bf16.mxu0 %v6248
  %8419 = vmatpush1.bf16.msra.mxu0 %v6247
  %8420 = vmatprep.subr.bf16.mxu0 %v6240
  %8421 = vmatpush1.bf16.msra.mxu0 %v6239
  %8422 = vmatprep.subr.bf16.mxu0 %v6232
  %8423 = vmatpush1.bf16.msra.mxu0 %v6231
  %8424 = vmatprep.subr.bf16.mxu0 %v6352
  %8425 = vmatpush2.bf16.msra.mxu0 %v6351
  %8426 = vmatprep.subr.bf16.mxu0 %v6344
  %8427 = vmatpush2.bf16.msra.mxu0 %v6343
  %8428 = vmatprep.subr.bf16.mxu0 %v6336
  %8429 = vmatpush2.bf16.msra.mxu0 %v6335
  %8430 = vmatprep.subr.bf16.mxu0 %v6328
  %8431 = vmatpush2.bf16.msra.mxu0 %v6327
  %8432 = vmatprep.subr.bf16.mxu0 %v6320
  %8433 = vmatpush2.bf16.msra.mxu0 %v6319
  %8434 = vmatprep.subr.bf16.mxu0 %v6312
  %8435 = vmatpush2.bf16.msra.mxu0 %v6311
  %8436 = vmatprep.subr.bf16.mxu0 %v6304
  %8437 = vmatpush2.bf16.msra.mxu0 %v6303
  %8438 = vmatprep.subr.bf16.mxu0 %v6296
  %8439 = vmatpush2.bf16.msra.mxu0 %v6295
  %8440 = vmatprep.mubr.bf16.mxu0 %v8366
  %8441 = vmatmul.mubr.bf16.gmra.mxu0 %v8365
  %v8442 = vpop.f32.mrf.mxu0
  %v8443 = vadd.f32 %v8402, %v8442
  %v8444 = vpop.f32.mrf.mxu0
  %v8445 = vadd.f32 %v8404, %v8444
  %v8446 = vpop.f32.mrf.mxu0
  %v8447 = vpop.f32.mrf.mxu0
  %8448 = vdwg.mxu0
  %8449 = vmatprep.subr.bf16.mxu0 %v6162
  %8450 = vmatpush1.bf16.msra.mxu0 %v6161
  %8451 = vmatprep.subr.bf16.mxu0 %v6154
  %8452 = vmatpush1.bf16.msra.mxu0 %v6153
  %8453 = vmatprep.subr.bf16.mxu0 %v6146
  %8454 = vmatpush1.bf16.msra.mxu0 %v6145
  %8455 = vmatprep.subr.bf16.mxu0 %v6138
  %8456 = vmatpush1.bf16.msra.mxu0 %v6137
  %8457 = vmatprep.subr.bf16.mxu0 %v6130
  %8458 = vmatpush1.bf16.msra.mxu0 %v6129
  %8459 = vmatprep.subr.bf16.mxu0 %v6122
  %8460 = vmatpush1.bf16.msra.mxu0 %v6121
  %8461 = vmatprep.subr.bf16.mxu0 %v6114
  %8462 = vmatpush1.bf16.msra.mxu0 %v6113
  %8463 = vmatprep.subr.bf16.mxu0 %v6106
  %8464 = vmatpush1.bf16.msra.mxu0 %v6105
  %8465 = vmatprep.subr.bf16.mxu0 %v6226
  %8466 = vmatpush2.bf16.msra.mxu0 %v6225
  %8467 = vmatprep.subr.bf16.mxu0 %v6218
  %8468 = vmatpush2.bf16.msra.mxu0 %v6217
  %8469 = vmatprep.subr.bf16.mxu0 %v6210
  %8470 = vmatpush2.bf16.msra.mxu0 %v6209
  %8471 = vmatprep.subr.bf16.mxu0 %v6202
  %8472 = vmatpush2.bf16.msra.mxu0 %v6201
  %8473 = vmatprep.subr.bf16.mxu0 %v6194
  %8474 = vmatpush2.bf16.msra.mxu0 %v6193
  %8475 = vmatprep.subr.bf16.mxu0 %v6186
  %8476 = vmatpush2.bf16.msra.mxu0 %v6185
  %8477 = vmatprep.subr.bf16.mxu0 %v6178
  %8478 = vmatpush2.bf16.msra.mxu0 %v6177
  %8479 = vmatprep.subr.bf16.mxu0 %v6170
  %8480 = vmatpush2.bf16.msra.mxu0 %v6169
  %8481 = vmatprep.mubr.bf16.mxu0 %v8364
  %8482 = vmatmul.mubr.bf16.gmra.mxu0 %v8363
  %v8483 = vpop.f32.mrf.mxu0
  %v8484 = vadd.f32 %v2107, %v8483
  %v8485 = vpop.f32.mrf.mxu0
  %v8486 = vadd.f32 %v2111, %v8485
  %v8487 = vpop.f32.mrf.mxu0
  %v8488 = vpop.f32.mrf.mxu0
  %8489 = vdwg.mxu0
  %8490 = vmatprep.subr.bf16.mxu0 %v6290
  %8491 = vmatpush1.bf16.msra.mxu0 %v6289
  %8492 = vmatprep.subr.bf16.mxu0 %v6282
  %8493 = vmatpush1.bf16.msra.mxu0 %v6281
  %8494 = vmatprep.subr.bf16.mxu0 %v6274
  %8495 = vmatpush1.bf16.msra.mxu0 %v6273
  %8496 = vmatprep.subr.bf16.mxu0 %v6266
  %8497 = vmatpush1.bf16.msra.mxu0 %v6265
  %8498 = vmatprep.subr.bf16.mxu0 %v6258
  %8499 = vmatpush1.bf16.msra.mxu0 %v6257
  %8500 = vmatprep.subr.bf16.mxu0 %v6250
  %8501 = vmatpush1.bf16.msra.mxu0 %v6249
  %8502 = vmatprep.subr.bf16.mxu0 %v6242
  %8503 = vmatpush1.bf16.msra.mxu0 %v6241
  %8504 = vmatprep.subr.bf16.mxu0 %v6234
  %8505 = vmatpush1.bf16.msra.mxu0 %v6233
  %8506 = vmatprep.subr.bf16.mxu0 %v6354
  %8507 = vmatpush2.bf16.msra.mxu0 %v6353
  %8508 = vmatprep.subr.bf16.mxu0 %v6346
  %8509 = vmatpush2.bf16.msra.mxu0 %v6345
  %8510 = vmatprep.subr.bf16.mxu0 %v6338
  %8511 = vmatpush2.bf16.msra.mxu0 %v6337
  %8512 = vmatprep.subr.bf16.mxu0 %v6330
  %8513 = vmatpush2.bf16.msra.mxu0 %v6329
  %8514 = vmatprep.subr.bf16.mxu0 %v6322
  %8515 = vmatpush2.bf16.msra.mxu0 %v6321
  %8516 = vmatprep.subr.bf16.mxu0 %v6314
  %8517 = vmatpush2.bf16.msra.mxu0 %v6313
  %8518 = vmatprep.subr.bf16.mxu0 %v6306
  %8519 = vmatpush2.bf16.msra.mxu0 %v6305
  %8520 = vmatprep.subr.bf16.mxu0 %v6298
  %8521 = vmatpush2.bf16.msra.mxu0 %v6297
  %8522 = vmatprep.mubr.bf16.mxu0 %v8366
  %8523 = vmatmul.mubr.bf16.gmra.mxu0 %v8365
  %v8524 = vpop.f32.mrf.mxu0
  %v8525 = vadd.f32 %v8484, %v8524
  %v8526 = vpop.f32.mrf.mxu0
  %v8527 = vadd.f32 %v8486, %v8526
  %v8528 = vpop.f32.mrf.mxu0
  %v8529 = vpop.f32.mrf.mxu0
  %8530 = vdwg.mxu0
  %8531 = vmatprep.subr.bf16.mxu0 %v6164
  %8532 = vmatpush1.bf16.msra.mxu0 %v6163
  %8533 = vmatprep.subr.bf16.mxu0 %v6156
  %8534 = vmatpush1.bf16.msra.mxu0 %v6155
  %8535 = vmatprep.subr.bf16.mxu0 %v6148
  %8536 = vmatpush1.bf16.msra.mxu0 %v6147
  %8537 = vmatprep.subr.bf16.mxu0 %v6140
  %8538 = vmatpush1.bf16.msra.mxu0 %v6139
  %8539 = vmatprep.subr.bf16.mxu0 %v6132
  %8540 = vmatpush1.bf16.msra.mxu0 %v6131
  %8541 = vmatprep.subr.bf16.mxu0 %v6124
  %8542 = vmatpush1.bf16.msra.mxu0 %v6123
  %8543 = vmatprep.subr.bf16.mxu0 %v6116
  %8544 = vmatpush1.bf16.msra.mxu0 %v6115
  %8545 = vmatprep.subr.bf16.mxu0 %v6108
  %8546 = vmatpush1.bf16.msra.mxu0 %v6107
  %8547 = vmatprep.subr.bf16.mxu0 %v6228
  %8548 = vmatpush2.bf16.msra.mxu0 %v6227
  %8549 = vmatprep.subr.bf16.mxu0 %v6220
  %8550 = vmatpush2.bf16.msra.mxu0 %v6219
  %8551 = vmatprep.subr.bf16.mxu0 %v6212
  %8552 = vmatpush2.bf16.msra.mxu0 %v6211
  %8553 = vmatprep.subr.bf16.mxu0 %v6204
  %8554 = vmatpush2.bf16.msra.mxu0 %v6203
  %8555 = vmatprep.subr.bf16.mxu0 %v6196
  %8556 = vmatpush2.bf16.msra.mxu0 %v6195
  %8557 = vmatprep.subr.bf16.mxu0 %v6188
  %8558 = vmatpush2.bf16.msra.mxu0 %v6187
  %8559 = vmatprep.subr.bf16.mxu0 %v6180
  %8560 = vmatpush2.bf16.msra.mxu0 %v6179
  %8561 = vmatprep.subr.bf16.mxu0 %v6172
  %8562 = vmatpush2.bf16.msra.mxu0 %v6171
  %8563 = vmatprep.mubr.bf16.mxu0 %v8364
  %8564 = vmatmul.mubr.bf16.gmra.mxu0 %v8363
  %v8565 = vpop.f32.mrf.mxu0
  %v8566 = vadd.f32 %v2115, %v8565
  %v8567 = vpop.f32.mrf.mxu0
  %v8568 = vadd.f32 %v2119, %v8567
  %v8569 = vpop.f32.mrf.mxu0
  %v8570 = vpop.f32.mrf.mxu0
  %8571 = vdwg.mxu0
  %8572 = vmatprep.subr.bf16.mxu0 %v6292
  %8573 = vmatpush1.bf16.msra.mxu0 %v6291
  %8574 = vmatprep.subr.bf16.mxu0 %v6284
  %8575 = vmatpush1.bf16.msra.mxu0 %v6283
  %8576 = vmatprep.subr.bf16.mxu0 %v6276
  %8577 = vmatpush1.bf16.msra.mxu0 %v6275
  %8578 = vmatprep.subr.bf16.mxu0 %v6268
  %8579 = vmatpush1.bf16.msra.mxu0 %v6267
  %8580 = vmatprep.subr.bf16.mxu0 %v6260
  %8581 = vmatpush1.bf16.msra.mxu0 %v6259
  %8582 = vmatprep.subr.bf16.mxu0 %v6252
  %8583 = vmatpush1.bf16.msra.mxu0 %v6251
  %8584 = vmatprep.subr.bf16.mxu0 %v6244
  %8585 = vmatpush1.bf16.msra.mxu0 %v6243
  %8586 = vmatprep.subr.bf16.mxu0 %v6236
  %8587 = vmatpush1.bf16.msra.mxu0 %v6235
  %8588 = vmatprep.subr.bf16.mxu0 %v6356
  %8589 = vmatpush2.bf16.msra.mxu0 %v6355
  %8590 = vmatprep.subr.bf16.mxu0 %v6348
  %8591 = vmatpush2.bf16.msra.mxu0 %v6347
  %8592 = vmatprep.subr.bf16.mxu0 %v6340
  %8593 = vmatpush2.bf16.msra.mxu0 %v6339
  %8594 = vmatprep.subr.bf16.mxu0 %v6332
  %8595 = vmatpush2.bf16.msra.mxu0 %v6331
  %8596 = vmatprep.subr.bf16.mxu0 %v6324
  %8597 = vmatpush2.bf16.msra.mxu0 %v6323
  %8598 = vmatprep.subr.bf16.mxu0 %v6316
  %8599 = vmatpush2.bf16.msra.mxu0 %v6315
  %8600 = vmatprep.subr.bf16.mxu0 %v6308
  %8601 = vmatpush2.bf16.msra.mxu0 %v6307
  %8602 = vmatprep.subr.bf16.mxu0 %v6300
  %8603 = vmatpush2.bf16.msra.mxu0 %v6299
  %8604 = vmatprep.mubr.bf16.mxu0 %v8366
  %8605 = vmatmul.mubr.bf16.gmra.mxu0 %v8365
  %v8606 = vpop.f32.mrf.mxu0
  %v8607 = vadd.f32 %v8566, %v8606
  %v8608 = vpop.f32.mrf.mxu0
  %v8609 = vadd.f32 %v8568, %v8608
  %v8610 = vpop.f32.mrf.mxu0
  %v8611 = vpop.f32.mrf.mxu0
  %8612 = vdwg.mxu0
  %8613 = vmatprep.subr.bf16.mxu0 %v6166
  %8614 = vmatpush1.bf16.msra.mxu0 %v6165
  %8615 = vmatprep.subr.bf16.mxu0 %v6158
  %8616 = vmatpush1.bf16.msra.mxu0 %v6157
  %8617 = vmatprep.subr.bf16.mxu0 %v6150
  %8618 = vmatpush1.bf16.msra.mxu0 %v6149
  %8619 = vmatprep.subr.bf16.mxu0 %v6142
  %8620 = vmatpush1.bf16.msra.mxu0 %v6141
  %8621 = vmatprep.subr.bf16.mxu0 %v6134
  %8622 = vmatpush1.bf16.msra.mxu0 %v6133
  %8623 = vmatprep.subr.bf16.mxu0 %v6126
  %8624 = vmatpush1.bf16.msra.mxu0 %v6125
  %8625 = vmatprep.subr.bf16.mxu0 %v6118
  %8626 = vmatpush1.bf16.msra.mxu0 %v6117
  %8627 = vmatprep.subr.bf16.mxu0 %v6110
  %8628 = vmatpush1.bf16.msra.mxu0 %v6109
  %8629 = vmatprep.subr.bf16.mxu0 %v6230
  %8630 = vmatpush2.bf16.msra.mxu0 %v6229
  %8631 = vmatprep.subr.bf16.mxu0 %v6222
  %8632 = vmatpush2.bf16.msra.mxu0 %v6221
  %8633 = vmatprep.subr.bf16.mxu0 %v6214
  %8634 = vmatpush2.bf16.msra.mxu0 %v6213
  %8635 = vmatprep.subr.bf16.mxu0 %v6206
  %8636 = vmatpush2.bf16.msra.mxu0 %v6205
  %8637 = vmatprep.subr.bf16.mxu0 %v6198
  %8638 = vmatpush2.bf16.msra.mxu0 %v6197
  %8639 = vmatprep.subr.bf16.mxu0 %v6190
  %8640 = vmatpush2.bf16.msra.mxu0 %v6189
  %8641 = vmatprep.subr.bf16.mxu0 %v6182
  %8642 = vmatpush2.bf16.msra.mxu0 %v6181
  %8643 = vmatprep.subr.bf16.mxu0 %v6174
  %8644 = vmatpush2.bf16.msra.mxu0 %v6173
  %8645 = vmatprep.mubr.bf16.mxu0 %v8364
  %8646 = vmatmul.mubr.bf16.gmra.mxu0 %v8363
  %v8647 = vpop.f32.mrf.mxu0
  %v8648 = vadd.f32 %v2123, %v8647
  %v8649 = vpop.f32.mrf.mxu0
  %v8650 = vadd.f32 %v2127, %v8649
  %v8651 = vpop.f32.mrf.mxu0
  %v8652 = vpop.f32.mrf.mxu0
  %8653 = vdwg.mxu0
  %8654 = vmatprep.subr.bf16.mxu0 %v6294
  %8655 = vmatpush1.bf16.msra.mxu0 %v6293
  %8656 = vmatprep.subr.bf16.mxu0 %v6286
  %8657 = vmatpush1.bf16.msra.mxu0 %v6285
  %8658 = vmatprep.subr.bf16.mxu0 %v6278
  %8659 = vmatpush1.bf16.msra.mxu0 %v6277
  %8660 = vmatprep.subr.bf16.mxu0 %v6270
  %8661 = vmatpush1.bf16.msra.mxu0 %v6269
  %8662 = vmatprep.subr.bf16.mxu0 %v6262
  %8663 = vmatpush1.bf16.msra.mxu0 %v6261
  %8664 = vmatprep.subr.bf16.mxu0 %v6254
  %8665 = vmatpush1.bf16.msra.mxu0 %v6253
  %8666 = vmatprep.subr.bf16.mxu0 %v6246
  %8667 = vmatpush1.bf16.msra.mxu0 %v6245
  %8668 = vmatprep.subr.bf16.mxu0 %v6238
  %8669 = vmatpush1.bf16.msra.mxu0 %v6237
  %8670 = vmatprep.subr.bf16.mxu0 %v6358
  %8671 = vmatpush2.bf16.msra.mxu0 %v6357
  %8672 = vmatprep.subr.bf16.mxu0 %v6350
  %8673 = vmatpush2.bf16.msra.mxu0 %v6349
  %8674 = vmatprep.subr.bf16.mxu0 %v6342
  %8675 = vmatpush2.bf16.msra.mxu0 %v6341
  %8676 = vmatprep.subr.bf16.mxu0 %v6334
  %8677 = vmatpush2.bf16.msra.mxu0 %v6333
  %8678 = vmatprep.subr.bf16.mxu0 %v6326
  %8679 = vmatpush2.bf16.msra.mxu0 %v6325
  %8680 = vmatprep.subr.bf16.mxu0 %v6318
  %8681 = vmatpush2.bf16.msra.mxu0 %v6317
  %8682 = vmatprep.subr.bf16.mxu0 %v6310
  %8683 = vmatpush2.bf16.msra.mxu0 %v6309
  %8684 = vmatprep.subr.bf16.mxu0 %v6302
  %8685 = vmatpush2.bf16.msra.mxu0 %v6301
  %8686 = vmatprep.mubr.bf16.mxu0 %v8366
  %8687 = vmatmul.mubr.bf16.gmra.mxu0 %v8365
  %v8688 = vpop.f32.mrf.mxu0
  %v8689 = vadd.f32 %v8648, %v8688
  %v8690 = vpop.f32.mrf.mxu0
  %v8691 = vadd.f32 %v8650, %v8690
  %v8692 = vpop.f32.mrf.mxu0
  %v8693 = vpop.f32.mrf.mxu0
  %8694 = vdwg.mxu0
  %v8695 = vmul.f32 %v8443, 0.5
  %v8696 = vmul.f32 %v8445, 0.5
  %v8697 = vtanh.pop %v8695
  %v8698 = vtanh.pop %v8696
  %v8699 = vadd.f32 %v8697, 1.0
  %v8700 = vadd.f32 %v8698, 1.0
  %v8701 = vmul.f32 %v8699, 0.5
  %v8702 = vmul.f32 %v8700, 0.5
  %v8703 = vmul.f32 %v8525, 0.5
  %v8704 = vmul.f32 %v8527, 0.5
  %v8705 = vtanh.pop %v8703
  %v8706 = vtanh.pop %v8704
  %v8707 = vadd.f32 %v8705, 1.0
  %v8708 = vadd.f32 %v8706, 1.0
  %v8709 = vmul.f32 %v8707, 0.5
  %v8710 = vmul.f32 %v8708, 0.5
  %v8711 = vtanh.pop %v8607
  %v8712 = vtanh.pop %v8609
  %v8713 = vmul.f32 %v8689, 0.5
  %v8714 = vmul.f32 %v8691, 0.5
  %v8715 = vtanh.pop %v8713
  %v8716 = vtanh.pop %v8714
  %v8717 = vadd.f32 %v8715, 1.0
  %v8718 = vadd.f32 %v8716, 1.0
  %v8719 = vmul.f32 %v8717, 0.5
  %v8720 = vmul.f32 %v8718, 0.5
  %v8721 = vmul.f32 %v8709, %v8141
  %v8722 = vmul.f32 %v8710, %v8142
  %v8723 = vmul.f32 %v8701, %v8711
  %v8724 = vmul.f32 %v8702, %v8712
  %v8725 = vadd.f32 %v8721, %v8723
  %v8726 = vadd.f32 %v8722, %v8724
  %v8727 = vtanh.pop %v8725
  %v8728 = vtanh.pop %v8726
  %v8729 = vmul.f32 %v8719, %v8727
  %v8730 = vmul.f32 %v8720, %v8728
  %v8731 = vld [vmem:[#allocation2 + $0x140] sm:$0xff]
  %v8732 = vld [vmem:[#allocation2 + $0x148] sm:$0xff]
  %v8733 = vld [vmem:[#allocation2 + $0x150] sm:$0xff]
  %v8734 = vld [vmem:[#allocation2 + $0x158] sm:$0xff]
  %v8735 = vld [vmem:[#allocation2 + $0x160] sm:$0xff]
  %v8736 = vld [vmem:[#allocation2 + $0x168] sm:$0xff]
  %v8737 = vld [vmem:[#allocation2 + $0x170] sm:$0xff]
  %v8738 = vld [vmem:[#allocation2 + $0x178] sm:$0xff]
  %8739 = vmatprep.subr.bf16.mxu0 %v4668
  %8740 = vmatpush1.bf16.msra.mxu0 %v4667
  %8741 = vmatprep.subr.bf16.mxu0 %v4660
  %8742 = vmatpush1.bf16.msra.mxu0 %v4659
  %8743 = vmatprep.subr.bf16.mxu0 %v4652
  %8744 = vmatpush1.bf16.msra.mxu0 %v4651
  %8745 = vmatprep.subr.bf16.mxu0 %v4644
  %8746 = vmatpush1.bf16.msra.mxu0 %v4643
  %8747 = vmatprep.subr.bf16.mxu0 %v4636
  %8748 = vmatpush1.bf16.msra.mxu0 %v4635
  %8749 = vmatprep.subr.bf16.mxu0 %v4628
  %8750 = vmatpush1.bf16.msra.mxu0 %v4627
  %8751 = vmatprep.subr.bf16.mxu0 %v4620
  %8752 = vmatpush1.bf16.msra.mxu0 %v4619
  %8753 = vmatprep.subr.bf16.mxu0 %v4612
  %8754 = vmatpush1.bf16.msra.mxu0 %v4611
  %8755 = vmatprep.subr.bf16.mxu0 %v4732
  %8756 = vmatpush2.bf16.msra.mxu0 %v4731
  %8757 = vmatprep.subr.bf16.mxu0 %v4724
  %8758 = vmatpush2.bf16.msra.mxu0 %v4723
  %8759 = vmatprep.subr.bf16.mxu0 %v4716
  %8760 = vmatpush2.bf16.msra.mxu0 %v4715
  %8761 = vmatprep.subr.bf16.mxu0 %v4708
  %8762 = vmatpush2.bf16.msra.mxu0 %v4707
  %8763 = vmatprep.subr.bf16.mxu0 %v4700
  %8764 = vmatpush2.bf16.msra.mxu0 %v4699
  %8765 = vmatprep.subr.bf16.mxu0 %v4692
  %8766 = vmatpush2.bf16.msra.mxu0 %v4691
  %8767 = vmatprep.subr.bf16.mxu0 %v4684
  %8768 = vmatpush2.bf16.msra.mxu0 %v4683
  %8769 = vmatprep.subr.bf16.mxu0 %v4676
  %8770 = vmatpush2.bf16.msra.mxu0 %v4675
  %8771 = vmatprep.mubr.bf16.mxu0 %v8364
  %8772 = vmatmul.mubr.bf16.gmra.mxu0 %v8363
  %v8773 = vpop.f32.mrf.mxu0
  %v8774 = vadd.f32 0.0, %v8773
  %v8775 = vpop.f32.mrf.mxu0
  %v8776 = vadd.f32 0.0, %v8775
  %v8777 = vpop.f32.mrf.mxu0
  %v8778 = vpop.f32.mrf.mxu0
  %8779 = vdwg.mxu0
  %8780 = vmatprep.subr.bf16.mxu0 %v4670
  %8781 = vmatpush1.bf16.msra.mxu0 %v4669
  %8782 = vmatprep.subr.bf16.mxu0 %v4662
  %8783 = vmatpush1.bf16.msra.mxu0 %v4661
  %8784 = vmatprep.subr.bf16.mxu0 %v4654
  %8785 = vmatpush1.bf16.msra.mxu0 %v4653
  %8786 = vmatprep.subr.bf16.mxu0 %v4646
  %8787 = vmatpush1.bf16.msra.mxu0 %v4645
  %8788 = vmatprep.subr.bf16.mxu0 %v4638
  %8789 = vmatpush1.bf16.msra.mxu0 %v4637
  %8790 = vmatprep.subr.bf16.mxu0 %v4630
  %8791 = vmatpush1.bf16.msra.mxu0 %v4629
  %8792 = vmatprep.subr.bf16.mxu0 %v4622
  %8793 = vmatpush1.bf16.msra.mxu0 %v4621
  %8794 = vmatprep.subr.bf16.mxu0 %v4614
  %8795 = vmatpush1.bf16.msra.mxu0 %v4613
  %8796 = vmatprep.subr.bf16.mxu0 %v4734
  %8797 = vmatpush2.bf16.msra.mxu0 %v4733
  %8798 = vmatprep.subr.bf16.mxu0 %v4726
  %8799 = vmatpush2.bf16.msra.mxu0 %v4725
  %8800 = vmatprep.subr.bf16.mxu0 %v4718
  %8801 = vmatpush2.bf16.msra.mxu0 %v4717
  %8802 = vmatprep.subr.bf16.mxu0 %v4710
  %8803 = vmatpush2.bf16.msra.mxu0 %v4709
  %8804 = vmatprep.subr.bf16.mxu0 %v4702
  %8805 = vmatpush2.bf16.msra.mxu0 %v4701
  %8806 = vmatprep.subr.bf16.mxu0 %v4694
  %8807 = vmatpush2.bf16.msra.mxu0 %v4693
  %8808 = vmatprep.subr.bf16.mxu0 %v4686
  %8809 = vmatpush2.bf16.msra.mxu0 %v4685
  %8810 = vmatprep.subr.bf16.mxu0 %v4678
  %8811 = vmatpush2.bf16.msra.mxu0 %v4677
  %8812 = vmatprep.mubr.bf16.mxu0 %v8364
  %8813 = vmatmul.mubr.bf16.gmra.mxu0 %v8363
  %v8814 = vpop.f32.mrf.mxu0
  %v8815 = vadd.f32 0.0, %v8814
  %v8816 = vpop.f32.mrf.mxu0
  %v8817 = vadd.f32 0.0, %v8816
  %v8818 = vpop.f32.mrf.mxu0
  %v8819 = vpop.f32.mrf.mxu0
  %8820 = vdwg.mxu0
  %8821 = vmatprep.subr.bf16.mxu0 %v4672
  %8822 = vmatpush1.bf16.msra.mxu0 %v4671
  %8823 = vmatprep.subr.bf16.mxu0 %v4664
  %8824 = vmatpush1.bf16.msra.mxu0 %v4663
  %8825 = vmatprep.subr.bf16.mxu0 %v4656
  %8826 = vmatpush1.bf16.msra.mxu0 %v4655
  %8827 = vmatprep.subr.bf16.mxu0 %v4648
  %8828 = vmatpush1.bf16.msra.mxu0 %v4647
  %8829 = vmatprep.subr.bf16.mxu0 %v4640
  %8830 = vmatpush1.bf16.msra.mxu0 %v4639
  %8831 = vmatprep.subr.bf16.mxu0 %v4632
  %8832 = vmatpush1.bf16.msra.mxu0 %v4631
  %8833 = vmatprep.subr.bf16.mxu0 %v4624
  %8834 = vmatpush1.bf16.msra.mxu0 %v4623
  %8835 = vmatprep.subr.bf16.mxu0 %v4616
  %8836 = vmatpush1.bf16.msra.mxu0 %v4615
  %8837 = vmatprep.subr.bf16.mxu0 %v4736
  %8838 = vmatpush2.bf16.msra.mxu0 %v4735
  %8839 = vmatprep.subr.bf16.mxu0 %v4728
  %8840 = vmatpush2.bf16.msra.mxu0 %v4727
  %8841 = vmatprep.subr.bf16.mxu0 %v4720
  %8842 = vmatpush2.bf16.msra.mxu0 %v4719
  %8843 = vmatprep.subr.bf16.mxu0 %v4712
  %8844 = vmatpush2.bf16.msra.mxu0 %v4711
  %8845 = vmatprep.subr.bf16.mxu0 %v4704
  %8846 = vmatpush2.bf16.msra.mxu0 %v4703
  %8847 = vmatprep.subr.bf16.mxu0 %v4696
  %8848 = vmatpush2.bf16.msra.mxu0 %v4695
  %8849 = vmatprep.subr.bf16.mxu0 %v4688
  %8850 = vmatpush2.bf16.msra.mxu0 %v4687
  %8851 = vmatprep.subr.bf16.mxu0 %v4680
  %8852 = vmatpush2.bf16.msra.mxu0 %v4679
  %8853 = vmatprep.mubr.bf16.mxu0 %v8364
  %8854 = vmatmul.mubr.bf16.gmra.mxu0 %v8363
  %v8855 = vpop.f32.mrf.mxu0
  %v8856 = vadd.f32 0.0, %v8855
  %v8857 = vpop.f32.mrf.mxu0
  %v8858 = vadd.f32 0.0, %v8857
  %v8859 = vpop.f32.mrf.mxu0
  %v8860 = vpop.f32.mrf.mxu0
  %8861 = vdwg.mxu0
  %8862 = vmatprep.subr.bf16.mxu0 %v4674
  %8863 = vmatpush1.bf16.msra.mxu0 %v4673
  %8864 = vmatprep.subr.bf16.mxu0 %v4666
  %8865 = vmatpush1.bf16.msra.mxu0 %v4665
  %8866 = vmatprep.subr.bf16.mxu0 %v4658
  %8867 = vmatpush1.bf16.msra.mxu0 %v4657
  %8868 = vmatprep.subr.bf16.mxu0 %v4650
  %8869 = vmatpush1.bf16.msra.mxu0 %v4649
  %8870 = vmatprep.subr.bf16.mxu0 %v4642
  %8871 = vmatpush1.bf16.msra.mxu0 %v4641
  %8872 = vmatprep.subr.bf16.mxu0 %v4634
  %8873 = vmatpush1.bf16.msra.mxu0 %v4633
  %8874 = vmatprep.subr.bf16.mxu0 %v4626
  %8875 = vmatpush1.bf16.msra.mxu0 %v4625
  %8876 = vmatprep.subr.bf16.mxu0 %v4618
  %8877 = vmatpush1.bf16.msra.mxu0 %v4617
  %8878 = vmatprep.subr.bf16.mxu0 %v4738
  %8879 = vmatpush2.bf16.msra.mxu0 %v4737
  %8880 = vmatprep.subr.bf16.mxu0 %v4730
  %8881 = vmatpush2.bf16.msra.mxu0 %v4729
  %8882 = vmatprep.subr.bf16.mxu0 %v4722
  %8883 = vmatpush2.bf16.msra.mxu0 %v4721
  %8884 = vmatprep.subr.bf16.mxu0 %v4714
  %8885 = vmatpush2.bf16.msra.mxu0 %v4713
  %8886 = vmatprep.subr.bf16.mxu0 %v4706
  %8887 = vmatpush2.bf16.msra.mxu0 %v4705
  %8888 = vmatprep.subr.bf16.mxu0 %v4698
  %8889 = vmatpush2.bf16.msra.mxu0 %v4697
  %8890 = vmatprep.subr.bf16.mxu0 %v4690
  %8891 = vmatpush2.bf16.msra.mxu0 %v4689
  %8892 = vmatprep.subr.bf16.mxu0 %v4682
  %8893 = vmatpush2.bf16.msra.mxu0 %v4681
  %8894 = vmatprep.mubr.bf16.mxu0 %v8364
  %8895 = vmatmul.mubr.bf16.gmra.mxu0 %v8363
  %v8896 = vpop.f32.mrf.mxu0
  %v8897 = vadd.f32 0.0, %v8896
  %v8898 = vpop.f32.mrf.mxu0
  %v8899 = vadd.f32 0.0, %v8898
  %v8900 = vpop.f32.mrf.mxu0
  %v8901 = vpop.f32.mrf.mxu0
  %8902 = vdwg.mxu0
  %v8903 = vadd.f32 %v8731, %v8774
  %v8904 = vadd.f32 %v8732, %v8776
  %v8905 = vadd.f32 %v8733, %v8815
  %v8906 = vadd.f32 %v8734, %v8817
  %v8907 = vadd.f32 %v8735, %v8856
  %v8908 = vadd.f32 %v8736, %v8858
  %v8909 = vadd.f32 %v8737, %v8897
  %v8910 = vadd.f32 %v8738, %v8899
  %v8911 = vmul.f32 %v8903, 0.5
  %v8912 = vmul.f32 %v8904, 0.5
  %v8913 = vtanh.pop %v8911
  %v8914 = vtanh.pop %v8912
  %v8915 = vadd.f32 %v8913, 1.0
  %v8916 = vadd.f32 %v8914, 1.0
  %v8917 = vmul.f32 %v8915, 0.5
  %v8918 = vmul.f32 %v8916, 0.5
  %v8919 = vmul.f32 %v8905, 0.5
  %v8920 = vmul.f32 %v8906, 0.5
  %v8921 = vtanh.pop %v8919
  %v8922 = vtanh.pop %v8920
  %v8923 = vadd.f32 %v8921, 1.0
  %v8924 = vadd.f32 %v8922, 1.0
  %v8925 = vmul.f32 %v8923, 0.5
  %v8926 = vmul.f32 %v8924, 0.5
  %v8927 = vtanh.pop %v8907
  %v8928 = vtanh.pop %v8908
  %v8929 = vmul.f32 %v8909, 0.5
  %v8930 = vmul.f32 %v8910, 0.5
  %v8931 = vtanh.pop %v8929
  %v8932 = vtanh.pop %v8930
  %v8933 = vadd.f32 %v8931, 1.0
  %v8934 = vadd.f32 %v8932, 1.0
  %v8935 = vmul.f32 %v8933, 0.5
  %v8936 = vmul.f32 %v8934, 0.5
  %v8937 = vmul.f32 %v8925, %v8357
  %v8938 = vmul.f32 %v8926, %v8358
  %v8939 = vmul.f32 %v8917, %v8927
  %v8940 = vmul.f32 %v8918, %v8928
  %v8941 = vadd.f32 %v8937, %v8939
  %v8942 = vadd.f32 %v8938, %v8940
  %v8943 = vtanh.pop %v8941
  %v8944 = vtanh.pop %v8942
  %v8945 = vmul.f32 %v8935, %v8943
  %v8946 = vmul.f32 %v8936, %v8944
  %v8947 = vpack.c.bf16 %v8945, %v8945
  %v8948 = vpack.c.bf16 %v8946, %v8946
  %v8949 = vpack.c.bf16 %v8729, %v8729
  %v8950 = vpack.c.bf16 %v8730, %v8730
  %8951 = vmatprep.subr.bf16.mxu0 %v6160
  %8952 = vmatpush1.bf16.msra.mxu0 %v6159
  %8953 = vmatprep.subr.bf16.mxu0 %v6152
  %8954 = vmatpush1.bf16.msra.mxu0 %v6151
  %8955 = vmatprep.subr.bf16.mxu0 %v6144
  %8956 = vmatpush1.bf16.msra.mxu0 %v6143
  %8957 = vmatprep.subr.bf16.mxu0 %v6136
  %8958 = vmatpush1.bf16.msra.mxu0 %v6135
  %8959 = vmatprep.subr.bf16.mxu0 %v6128
  %8960 = vmatpush1.bf16.msra.mxu0 %v6127
  %8961 = vmatprep.subr.bf16.mxu0 %v6120
  %8962 = vmatpush1.bf16.msra.mxu0 %v6119
  %8963 = vmatprep.subr.bf16.mxu0 %v6112
  %8964 = vmatpush1.bf16.msra.mxu0 %v6111
  %8965 = vmatprep.subr.bf16.mxu0 %v6104
  %8966 = vmatpush1.bf16.msra.mxu0 %v6103
  %8967 = vmatprep.subr.bf16.mxu0 %v6224
  %8968 = vmatpush2.bf16.msra.mxu0 %v6223
  %8969 = vmatprep.subr.bf16.mxu0 %v6216
  %8970 = vmatpush2.bf16.msra.mxu0 %v6215
  %8971 = vmatprep.subr.bf16.mxu0 %v6208
  %8972 = vmatpush2.bf16.msra.mxu0 %v6207
  %8973 = vmatprep.subr.bf16.mxu0 %v6200
  %8974 = vmatpush2.bf16.msra.mxu0 %v6199
  %8975 = vmatprep.subr.bf16.mxu0 %v6192
  %8976 = vmatpush2.bf16.msra.mxu0 %v6191
  %8977 = vmatprep.subr.bf16.mxu0 %v6184
  %8978 = vmatpush2.bf16.msra.mxu0 %v6183
  %8979 = vmatprep.subr.bf16.mxu0 %v6176
  %8980 = vmatpush2.bf16.msra.mxu0 %v6175
  %8981 = vmatprep.subr.bf16.mxu0 %v6168
  %8982 = vmatpush2.bf16.msra.mxu0 %v6167
  %8983 = vmatprep.mubr.bf16.mxu0 %v8948
  %8984 = vmatmul.mubr.bf16.gmra.mxu0 %v8947
  %v8985 = vpop.f32.mrf.mxu0
  %v8986 = vadd.f32 %v2099, %v8985
  %v8987 = vpop.f32.mrf.mxu0
  %v8988 = vadd.f32 %v2103, %v8987
  %v8989 = vpop.f32.mrf.mxu0
  %v8990 = vpop.f32.mrf.mxu0
  %8991 = vdwg.mxu0
  %8992 = vmatprep.subr.bf16.mxu0 %v6288
  %8993 = vmatpush1.bf16.msra.mxu0 %v6287
  %8994 = vmatprep.subr.bf16.mxu0 %v6280
  %8995 = vmatpush1.bf16.msra.mxu0 %v6279
  %8996 = vmatprep.subr.bf16.mxu0 %v6272
  %8997 = vmatpush1.bf16.msra.mxu0 %v6271
  %8998 = vmatprep.subr.bf16.mxu0 %v6264
  %8999 = vmatpush1.bf16.msra.mxu0 %v6263
  %9000 = vmatprep.subr.bf16.mxu0 %v6256
  %9001 = vmatpush1.bf16.msra.mxu0 %v6255
  %9002 = vmatprep.subr.bf16.mxu0 %v6248
  %9003 = vmatpush1.bf16.msra.mxu0 %v6247
  %9004 = vmatprep.subr.bf16.mxu0 %v6240
  %9005 = vmatpush1.bf16.msra.mxu0 %v6239
  %9006 = vmatprep.subr.bf16.mxu0 %v6232
  %9007 = vmatpush1.bf16.msra.mxu0 %v6231
  %9008 = vmatprep.subr.bf16.mxu0 %v6352
  %9009 = vmatpush2.bf16.msra.mxu0 %v6351
  %9010 = vmatprep.subr.bf16.mxu0 %v6344
  %9011 = vmatpush2.bf16.msra.mxu0 %v6343
  %9012 = vmatprep.subr.bf16.mxu0 %v6336
  %9013 = vmatpush2.bf16.msra.mxu0 %v6335
  %9014 = vmatprep.subr.bf16.mxu0 %v6328
  %9015 = vmatpush2.bf16.msra.mxu0 %v6327
  %9016 = vmatprep.subr.bf16.mxu0 %v6320
  %9017 = vmatpush2.bf16.msra.mxu0 %v6319
  %9018 = vmatprep.subr.bf16.mxu0 %v6312
  %9019 = vmatpush2.bf16.msra.mxu0 %v6311
  %9020 = vmatprep.subr.bf16.mxu0 %v6304
  %9021 = vmatpush2.bf16.msra.mxu0 %v6303
  %9022 = vmatprep.subr.bf16.mxu0 %v6296
  %9023 = vmatpush2.bf16.msra.mxu0 %v6295
  %9024 = vmatprep.mubr.bf16.mxu0 %v8950
  %9025 = vmatmul.mubr.bf16.gmra.mxu0 %v8949
  %v9026 = vpop.f32.mrf.mxu0
  %v9027 = vadd.f32 %v8986, %v9026
  %v9028 = vpop.f32.mrf.mxu0
  %v9029 = vadd.f32 %v8988, %v9028
  %v9030 = vpop.f32.mrf.mxu0
  %v9031 = vpop.f32.mrf.mxu0
  %9032 = vdwg.mxu0
  %9033 = vmatprep.subr.bf16.mxu0 %v6162
  %9034 = vmatpush1.bf16.msra.mxu0 %v6161
  %9035 = vmatprep.subr.bf16.mxu0 %v6154
  %9036 = vmatpush1.bf16.msra.mxu0 %v6153
  %9037 = vmatprep.subr.bf16.mxu0 %v6146
  %9038 = vmatpush1.bf16.msra.mxu0 %v6145
  %9039 = vmatprep.subr.bf16.mxu0 %v6138
  %9040 = vmatpush1.bf16.msra.mxu0 %v6137
  %9041 = vmatprep.subr.bf16.mxu0 %v6130
  %9042 = vmatpush1.bf16.msra.mxu0 %v6129
  %9043 = vmatprep.subr.bf16.mxu0 %v6122
  %9044 = vmatpush1.bf16.msra.mxu0 %v6121
  %9045 = vmatprep.subr.bf16.mxu0 %v6114
  %9046 = vmatpush1.bf16.msra.mxu0 %v6113
  %9047 = vmatprep.subr.bf16.mxu0 %v6106
  %9048 = vmatpush1.bf16.msra.mxu0 %v6105
  %9049 = vmatprep.subr.bf16.mxu0 %v6226
  %9050 = vmatpush2.bf16.msra.mxu0 %v6225
  %9051 = vmatprep.subr.bf16.mxu0 %v6218
  %9052 = vmatpush2.bf16.msra.mxu0 %v6217
  %9053 = vmatprep.subr.bf16.mxu0 %v6210
  %9054 = vmatpush2.bf16.msra.mxu0 %v6209
  %9055 = vmatprep.subr.bf16.mxu0 %v6202
  %9056 = vmatpush2.bf16.msra.mxu0 %v6201
  %9057 = vmatprep.subr.bf16.mxu0 %v6194
  %9058 = vmatpush2.bf16.msra.mxu0 %v6193
  %9059 = vmatprep.subr.bf16.mxu0 %v6186
  %9060 = vmatpush2.bf16.msra.mxu0 %v6185
  %9061 = vmatprep.subr.bf16.mxu0 %v6178
  %9062 = vmatpush2.bf16.msra.mxu0 %v6177
  %9063 = vmatprep.subr.bf16.mxu0 %v6170
  %9064 = vmatpush2.bf16.msra.mxu0 %v6169
  %9065 = vmatprep.mubr.bf16.mxu0 %v8948
  %9066 = vmatmul.mubr.bf16.gmra.mxu0 %v8947
  %v9067 = vpop.f32.mrf.mxu0
  %v9068 = vadd.f32 %v2107, %v9067
  %v9069 = vpop.f32.mrf.mxu0
  %v9070 = vadd.f32 %v2111, %v9069
  %v9071 = vpop.f32.mrf.mxu0
  %v9072 = vpop.f32.mrf.mxu0
  %9073 = vdwg.mxu0
  %9074 = vmatprep.subr.bf16.mxu0 %v6290
  %9075 = vmatpush1.bf16.msra.mxu0 %v6289
  %9076 = vmatprep.subr.bf16.mxu0 %v6282
  %9077 = vmatpush1.bf16.msra.mxu0 %v6281
  %9078 = vmatprep.subr.bf16.mxu0 %v6274
  %9079 = vmatpush1.bf16.msra.mxu0 %v6273
  %9080 = vmatprep.subr.bf16.mxu0 %v6266
  %9081 = vmatpush1.bf16.msra.mxu0 %v6265
  %9082 = vmatprep.subr.bf16.mxu0 %v6258
  %9083 = vmatpush1.bf16.msra.mxu0 %v6257
  %9084 = vmatprep.subr.bf16.mxu0 %v6250
  %9085 = vmatpush1.bf16.msra.mxu0 %v6249
  %9086 = vmatprep.subr.bf16.mxu0 %v6242
  %9087 = vmatpush1.bf16.msra.mxu0 %v6241
  %9088 = vmatprep.subr.bf16.mxu0 %v6234
  %9089 = vmatpush1.bf16.msra.mxu0 %v6233
  %9090 = vmatprep.subr.bf16.mxu0 %v6354
  %9091 = vmatpush2.bf16.msra.mxu0 %v6353
  %9092 = vmatprep.subr.bf16.mxu0 %v6346
  %9093 = vmatpush2.bf16.msra.mxu0 %v6345
  %9094 = vmatprep.subr.bf16.mxu0 %v6338
  %9095 = vmatpush2.bf16.msra.mxu0 %v6337
  %9096 = vmatprep.subr.bf16.mxu0 %v6330
  %9097 = vmatpush2.bf16.msra.mxu0 %v6329
  %9098 = vmatprep.subr.bf16.mxu0 %v6322
  %9099 = vmatpush2.bf16.msra.mxu0 %v6321
  %9100 = vmatprep.subr.bf16.mxu0 %v6314
  %9101 = vmatpush2.bf16.msra.mxu0 %v6313
  %9102 = vmatprep.subr.bf16.mxu0 %v6306
  %9103 = vmatpush2.bf16.msra.mxu0 %v6305
  %9104 = vmatprep.subr.bf16.mxu0 %v6298
  %9105 = vmatpush2.bf16.msra.mxu0 %v6297
  %9106 = vmatprep.mubr.bf16.mxu0 %v8950
  %9107 = vmatmul.mubr.bf16.gmra.mxu0 %v8949
  %v9108 = vpop.f32.mrf.mxu0
  %v9109 = vadd.f32 %v9068, %v9108
  %v9110 = vpop.f32.mrf.mxu0
  %v9111 = vadd.f32 %v9070, %v9110
  %v9112 = vpop.f32.mrf.mxu0
  %v9113 = vpop.f32.mrf.mxu0
  %9114 = vdwg.mxu0
  %9115 = vmatprep.subr.bf16.mxu0 %v6164
  %9116 = vmatpush1.bf16.msra.mxu0 %v6163
  %9117 = vmatprep.subr.bf16.mxu0 %v6156
  %9118 = vmatpush1.bf16.msra.mxu0 %v6155
  %9119 = vmatprep.subr.bf16.mxu0 %v6148
  %9120 = vmatpush1.bf16.msra.mxu0 %v6147
  %9121 = vmatprep.subr.bf16.mxu0 %v6140
  %9122 = vmatpush1.bf16.msra.mxu0 %v6139
  %9123 = vmatprep.subr.bf16.mxu0 %v6132
  %9124 = vmatpush1.bf16.msra.mxu0 %v6131
  %9125 = vmatprep.subr.bf16.mxu0 %v6124
  %9126 = vmatpush1.bf16.msra.mxu0 %v6123
  %9127 = vmatprep.subr.bf16.mxu0 %v6116
  %9128 = vmatpush1.bf16.msra.mxu0 %v6115
  %9129 = vmatprep.subr.bf16.mxu0 %v6108
  %9130 = vmatpush1.bf16.msra.mxu0 %v6107
  %9131 = vmatprep.subr.bf16.mxu0 %v6228
  %9132 = vmatpush2.bf16.msra.mxu0 %v6227
  %9133 = vmatprep.subr.bf16.mxu0 %v6220
  %9134 = vmatpush2.bf16.msra.mxu0 %v6219
  %9135 = vmatprep.subr.bf16.mxu0 %v6212
  %9136 = vmatpush2.bf16.msra.mxu0 %v6211
  %9137 = vmatprep.subr.bf16.mxu0 %v6204
  %9138 = vmatpush2.bf16.msra.mxu0 %v6203
  %9139 = vmatprep.subr.bf16.mxu0 %v6196
  %9140 = vmatpush2.bf16.msra.mxu0 %v6195
  %9141 = vmatprep.subr.bf16.mxu0 %v6188
  %9142 = vmatpush2.bf16.msra.mxu0 %v6187
  %9143 = vmatprep.subr.bf16.mxu0 %v6180
  %9144 = vmatpush2.bf16.msra.mxu0 %v6179
  %9145 = vmatprep.subr.bf16.mxu0 %v6172
  %9146 = vmatpush2.bf16.msra.mxu0 %v6171
  %9147 = vmatprep.mubr.bf16.mxu0 %v8948
  %9148 = vmatmul.mubr.bf16.gmra.mxu0 %v8947
  %v9149 = vpop.f32.mrf.mxu0
  %v9150 = vadd.f32 %v2115, %v9149
  %v9151 = vpop.f32.mrf.mxu0
  %v9152 = vadd.f32 %v2119, %v9151
  %v9153 = vpop.f32.mrf.mxu0
  %v9154 = vpop.f32.mrf.mxu0
  %9155 = vdwg.mxu0
  %9156 = vmatprep.subr.bf16.mxu0 %v6292
  %9157 = vmatpush1.bf16.msra.mxu0 %v6291
  %9158 = vmatprep.subr.bf16.mxu0 %v6284
  %9159 = vmatpush1.bf16.msra.mxu0 %v6283
  %9160 = vmatprep.subr.bf16.mxu0 %v6276
  %9161 = vmatpush1.bf16.msra.mxu0 %v6275
  %9162 = vmatprep.subr.bf16.mxu0 %v6268
  %9163 = vmatpush1.bf16.msra.mxu0 %v6267
  %9164 = vmatprep.subr.bf16.mxu0 %v6260
  %9165 = vmatpush1.bf16.msra.mxu0 %v6259
  %9166 = vmatprep.subr.bf16.mxu0 %v6252
  %9167 = vmatpush1.bf16.msra.mxu0 %v6251
  %9168 = vmatprep.subr.bf16.mxu0 %v6244
  %9169 = vmatpush1.bf16.msra.mxu0 %v6243
  %9170 = vmatprep.subr.bf16.mxu0 %v6236
  %9171 = vmatpush1.bf16.msra.mxu0 %v6235
  %9172 = vmatprep.subr.bf16.mxu0 %v6356
  %9173 = vmatpush2.bf16.msra.mxu0 %v6355
  %9174 = vmatprep.subr.bf16.mxu0 %v6348
  %9175 = vmatpush2.bf16.msra.mxu0 %v6347
  %9176 = vmatprep.subr.bf16.mxu0 %v6340
  %9177 = vmatpush2.bf16.msra.mxu0 %v6339
  %9178 = vmatprep.subr.bf16.mxu0 %v6332
  %9179 = vmatpush2.bf16.msra.mxu0 %v6331
  %9180 = vmatprep.subr.bf16.mxu0 %v6324
  %9181 = vmatpush2.bf16.msra.mxu0 %v6323
  %9182 = vmatprep.subr.bf16.mxu0 %v6316
  %9183 = vmatpush2.bf16.msra.mxu0 %v6315
  %9184 = vmatprep.subr.bf16.mxu0 %v6308
  %9185 = vmatpush2.bf16.msra.mxu0 %v6307
  %9186 = vmatprep.subr.bf16.mxu0 %v6300
  %9187 = vmatpush2.bf16.msra.mxu0 %v6299
  %9188 = vmatprep.mubr.bf16.mxu0 %v8950
  %9189 = vmatmul.mubr.bf16.gmra.mxu0 %v8949
  %v9190 = vpop.f32.mrf.mxu0
  %v9191 = vadd.f32 %v9150, %v9190
  %v9192 = vpop.f32.mrf.mxu0
  %v9193 = vadd.f32 %v9152, %v9192
  %v9194 = vpop.f32.mrf.mxu0
  %v9195 = vpop.f32.mrf.mxu0
  %9196 = vdwg.mxu0
  %9197 = vmatprep.subr.bf16.mxu0 %v6166
  %9198 = vmatpush1.bf16.msra.mxu0 %v6165
  %9199 = vmatprep.subr.bf16.mxu0 %v6158
  %9200 = vmatpush1.bf16.msra.mxu0 %v6157
  %9201 = vmatprep.subr.bf16.mxu0 %v6150
  %9202 = vmatpush1.bf16.msra.mxu0 %v6149
  %9203 = vmatprep.subr.bf16.mxu0 %v6142
  %9204 = vmatpush1.bf16.msra.mxu0 %v6141
  %9205 = vmatprep.subr.bf16.mxu0 %v6134
  %9206 = vmatpush1.bf16.msra.mxu0 %v6133
  %9207 = vmatprep.subr.bf16.mxu0 %v6126
  %9208 = vmatpush1.bf16.msra.mxu0 %v6125
  %9209 = vmatprep.subr.bf16.mxu0 %v6118
  %9210 = vmatpush1.bf16.msra.mxu0 %v6117
  %9211 = vmatprep.subr.bf16.mxu0 %v6110
  %9212 = vmatpush1.bf16.msra.mxu0 %v6109
  %9213 = vmatprep.subr.bf16.mxu0 %v6230
  %9214 = vmatpush2.bf16.msra.mxu0 %v6229
  %9215 = vmatprep.subr.bf16.mxu0 %v6222
  %9216 = vmatpush2.bf16.msra.mxu0 %v6221
  %9217 = vmatprep.subr.bf16.mxu0 %v6214
  %9218 = vmatpush2.bf16.msra.mxu0 %v6213
  %9219 = vmatprep.subr.bf16.mxu0 %v6206
  %9220 = vmatpush2.bf16.msra.mxu0 %v6205
  %9221 = vmatprep.subr.bf16.mxu0 %v6198
  %9222 = vmatpush2.bf16.msra.mxu0 %v6197
  %9223 = vmatprep.subr.bf16.mxu0 %v6190
  %9224 = vmatpush2.bf16.msra.mxu0 %v6189
  %9225 = vmatprep.subr.bf16.mxu0 %v6182
  %9226 = vmatpush2.bf16.msra.mxu0 %v6181
  %9227 = vmatprep.subr.bf16.mxu0 %v6174
  %9228 = vmatpush2.bf16.msra.mxu0 %v6173
  %9229 = vmatprep.mubr.bf16.mxu0 %v8948
  %9230 = vmatmul.mubr.bf16.gmra.mxu0 %v8947
  %v9231 = vpop.f32.mrf.mxu0
  %v9232 = vadd.f32 %v2123, %v9231
  %v9233 = vpop.f32.mrf.mxu0
  %v9234 = vadd.f32 %v2127, %v9233
  %v9235 = vpop.f32.mrf.mxu0
  %v9236 = vpop.f32.mrf.mxu0
  %9237 = vdwg.mxu0
  %9238 = vmatprep.subr.bf16.mxu0 %v6294
  %9239 = vmatpush1.bf16.msra.mxu0 %v6293
  %9240 = vmatprep.subr.bf16.mxu0 %v6286
  %9241 = vmatpush1.bf16.msra.mxu0 %v6285
  %9242 = vmatprep.subr.bf16.mxu0 %v6278
  %9243 = vmatpush1.bf16.msra.mxu0 %v6277
  %9244 = vmatprep.subr.bf16.mxu0 %v6270
  %9245 = vmatpush1.bf16.msra.mxu0 %v6269
  %9246 = vmatprep.subr.bf16.mxu0 %v6262
  %9247 = vmatpush1.bf16.msra.mxu0 %v6261
  %9248 = vmatprep.subr.bf16.mxu0 %v6254
  %9249 = vmatpush1.bf16.msra.mxu0 %v6253
  %9250 = vmatprep.subr.bf16.mxu0 %v6246
  %9251 = vmatpush1.bf16.msra.mxu0 %v6245
  %9252 = vmatprep.subr.bf16.mxu0 %v6238
  %9253 = vmatpush1.bf16.msra.mxu0 %v6237
  %9254 = vmatprep.subr.bf16.mxu0 %v6358
  %9255 = vmatpush2.bf16.msra.mxu0 %v6357
  %9256 = vmatprep.subr.bf16.mxu0 %v6350
  %9257 = vmatpush2.bf16.msra.mxu0 %v6349
  %9258 = vmatprep.subr.bf16.mxu0 %v6342
  %9259 = vmatpush2.bf16.msra.mxu0 %v6341
  %9260 = vmatprep.subr.bf16.mxu0 %v6334
  %9261 = vmatpush2.bf16.msra.mxu0 %v6333
  %9262 = vmatprep.subr.bf16.mxu0 %v6326
  %9263 = vmatpush2.bf16.msra.mxu0 %v6325
  %9264 = vmatprep.subr.bf16.mxu0 %v6318
  %9265 = vmatpush2.bf16.msra.mxu0 %v6317
  %9266 = vmatprep.subr.bf16.mxu0 %v6310
  %9267 = vmatpush2.bf16.msra.mxu0 %v6309
  %9268 = vmatprep.subr.bf16.mxu0 %v6302
  %9269 = vmatpush2.bf16.msra.mxu0 %v6301
  %9270 = vmatprep.mubr.bf16.mxu0 %v8950
  %9271 = vmatmul.mubr.bf16.gmra.mxu0 %v8949
  %v9272 = vpop.f32.mrf.mxu0
  %v9273 = vadd.f32 %v9232, %v9272
  %v9274 = vpop.f32.mrf.mxu0
  %v9275 = vadd.f32 %v9234, %v9274
  %v9276 = vpop.f32.mrf.mxu0
  %v9277 = vpop.f32.mrf.mxu0
  %9278 = vdwg.mxu0
  %v9279 = vmul.f32 %v9027, 0.5
  %v9280 = vmul.f32 %v9029, 0.5
  %v9281 = vtanh.pop %v9279
  %v9282 = vtanh.pop %v9280
  %v9283 = vadd.f32 %v9281, 1.0
  %v9284 = vadd.f32 %v9282, 1.0
  %v9285 = vmul.f32 %v9283, 0.5
  %v9286 = vmul.f32 %v9284, 0.5
  %v9287 = vmul.f32 %v9109, 0.5
  %v9288 = vmul.f32 %v9111, 0.5
  %v9289 = vtanh.pop %v9287
  %v9290 = vtanh.pop %v9288
  %v9291 = vadd.f32 %v9289, 1.0
  %v9292 = vadd.f32 %v9290, 1.0
  %v9293 = vmul.f32 %v9291, 0.5
  %v9294 = vmul.f32 %v9292, 0.5
  %v9295 = vtanh.pop %v9191
  %v9296 = vtanh.pop %v9193
  %v9297 = vmul.f32 %v9273, 0.5
  %v9298 = vmul.f32 %v9275, 0.5
  %v9299 = vtanh.pop %v9297
  %v9300 = vtanh.pop %v9298
  %v9301 = vadd.f32 %v9299, 1.0
  %v9302 = vadd.f32 %v9300, 1.0
  %v9303 = vmul.f32 %v9301, 0.5
  %v9304 = vmul.f32 %v9302, 0.5
  %v9305 = vmul.f32 %v9293, %v8725
  %v9306 = vmul.f32 %v9294, %v8726
  %v9307 = vmul.f32 %v9285, %v9295
  %v9308 = vmul.f32 %v9286, %v9296
  %v9309 = vadd.f32 %v9305, %v9307
  %v9310 = vadd.f32 %v9306, %v9308
  %v9311 = vtanh.pop %v9309
  %v9312 = vtanh.pop %v9310
  %v9313 = vmul.f32 %v9303, %v9311
  %v9314 = vmul.f32 %v9304, %v9312
  %v9315 = vld [vmem:[#allocation2 + $0x180] sm:$0xff]
  %v9316 = vld [vmem:[#allocation2 + $0x188] sm:$0xff]
  %v9317 = vld [vmem:[#allocation2 + $0x190] sm:$0xff]
  %v9318 = vld [vmem:[#allocation2 + $0x198] sm:$0xff]
  %v9319 = vld [vmem:[#allocation2 + $0x1a0] sm:$0xff]
  %v9320 = vld [vmem:[#allocation2 + $0x1a8] sm:$0xff]
  %v9321 = vld [vmem:[#allocation2 + $0x1b0] sm:$0xff]
  %v9322 = vld [vmem:[#allocation2 + $0x1b8] sm:$0xff]
  %9323 = vmatprep.subr.bf16.mxu0 %v4668
  %9324 = vmatpush1.bf16.msra.mxu0 %v4667
  %9325 = vmatprep.subr.bf16.mxu0 %v4660
  %9326 = vmatpush1.bf16.msra.mxu0 %v4659
  %9327 = vmatprep.subr.bf16.mxu0 %v4652
  %9328 = vmatpush1.bf16.msra.mxu0 %v4651
  %9329 = vmatprep.subr.bf16.mxu0 %v4644
  %9330 = vmatpush1.bf16.msra.mxu0 %v4643
  %9331 = vmatprep.subr.bf16.mxu0 %v4636
  %9332 = vmatpush1.bf16.msra.mxu0 %v4635
  %9333 = vmatprep.subr.bf16.mxu0 %v4628
  %9334 = vmatpush1.bf16.msra.mxu0 %v4627
  %9335 = vmatprep.subr.bf16.mxu0 %v4620
  %9336 = vmatpush1.bf16.msra.mxu0 %v4619
  %9337 = vmatprep.subr.bf16.mxu0 %v4612
  %9338 = vmatpush1.bf16.msra.mxu0 %v4611
  %9339 = vmatprep.subr.bf16.mxu0 %v4732
  %9340 = vmatpush2.bf16.msra.mxu0 %v4731
  %9341 = vmatprep.subr.bf16.mxu0 %v4724
  %9342 = vmatpush2.bf16.msra.mxu0 %v4723
  %9343 = vmatprep.subr.bf16.mxu0 %v4716
  %9344 = vmatpush2.bf16.msra.mxu0 %v4715
  %9345 = vmatprep.subr.bf16.mxu0 %v4708
  %9346 = vmatpush2.bf16.msra.mxu0 %v4707
  %9347 = vmatprep.subr.bf16.mxu0 %v4700
  %9348 = vmatpush2.bf16.msra.mxu0 %v4699
  %9349 = vmatprep.subr.bf16.mxu0 %v4692
  %9350 = vmatpush2.bf16.msra.mxu0 %v4691
  %9351 = vmatprep.subr.bf16.mxu0 %v4684
  %9352 = vmatpush2.bf16.msra.mxu0 %v4683
  %9353 = vmatprep.subr.bf16.mxu0 %v4676
  %9354 = vmatpush2.bf16.msra.mxu0 %v4675
  %9355 = vmatprep.mubr.bf16.mxu0 %v8948
  %9356 = vmatmul.mubr.bf16.gmra.mxu0 %v8947
  %v9357 = vpop.f32.mrf.mxu0
  %v9358 = vadd.f32 0.0, %v9357
  %v9359 = vpop.f32.mrf.mxu0
  %v9360 = vadd.f32 0.0, %v9359
  %v9361 = vpop.f32.mrf.mxu0
  %v9362 = vpop.f32.mrf.mxu0
  %9363 = vdwg.mxu0
  %9364 = vmatprep.subr.bf16.mxu0 %v4670
  %9365 = vmatpush1.bf16.msra.mxu0 %v4669
  %9366 = vmatprep.subr.bf16.mxu0 %v4662
  %9367 = vmatpush1.bf16.msra.mxu0 %v4661
  %9368 = vmatprep.subr.bf16.mxu0 %v4654
  %9369 = vmatpush1.bf16.msra.mxu0 %v4653
  %9370 = vmatprep.subr.bf16.mxu0 %v4646
  %9371 = vmatpush1.bf16.msra.mxu0 %v4645
  %9372 = vmatprep.subr.bf16.mxu0 %v4638
  %9373 = vmatpush1.bf16.msra.mxu0 %v4637
  %9374 = vmatprep.subr.bf16.mxu0 %v4630
  %9375 = vmatpush1.bf16.msra.mxu0 %v4629
  %9376 = vmatprep.subr.bf16.mxu0 %v4622
  %9377 = vmatpush1.bf16.msra.mxu0 %v4621
  %9378 = vmatprep.subr.bf16.mxu0 %v4614
  %9379 = vmatpush1.bf16.msra.mxu0 %v4613
  %9380 = vmatprep.subr.bf16.mxu0 %v4734
  %9381 = vmatpush2.bf16.msra.mxu0 %v4733
  %9382 = vmatprep.subr.bf16.mxu0 %v4726
  %9383 = vmatpush2.bf16.msra.mxu0 %v4725
  %9384 = vmatprep.subr.bf16.mxu0 %v4718
  %9385 = vmatpush2.bf16.msra.mxu0 %v4717
  %9386 = vmatprep.subr.bf16.mxu0 %v4710
  %9387 = vmatpush2.bf16.msra.mxu0 %v4709
  %9388 = vmatprep.subr.bf16.mxu0 %v4702
  %9389 = vmatpush2.bf16.msra.mxu0 %v4701
  %9390 = vmatprep.subr.bf16.mxu0 %v4694
  %9391 = vmatpush2.bf16.msra.mxu0 %v4693
  %9392 = vmatprep.subr.bf16.mxu0 %v4686
  %9393 = vmatpush2.bf16.msra.mxu0 %v4685
  %9394 = vmatprep.subr.bf16.mxu0 %v4678
  %9395 = vmatpush2.bf16.msra.mxu0 %v4677
  %9396 = vmatprep.mubr.bf16.mxu0 %v8948
  %9397 = vmatmul.mubr.bf16.gmra.mxu0 %v8947
  %v9398 = vpop.f32.mrf.mxu0
  %v9399 = vadd.f32 0.0, %v9398
  %v9400 = vpop.f32.mrf.mxu0
  %v9401 = vadd.f32 0.0, %v9400
  %v9402 = vpop.f32.mrf.mxu0
  %v9403 = vpop.f32.mrf.mxu0
  %9404 = vdwg.mxu0
  %9405 = vmatprep.subr.bf16.mxu0 %v4672
  %9406 = vmatpush1.bf16.msra.mxu0 %v4671
  %9407 = vmatprep.subr.bf16.mxu0 %v4664
  %9408 = vmatpush1.bf16.msra.mxu0 %v4663
  %9409 = vmatprep.subr.bf16.mxu0 %v4656
  %9410 = vmatpush1.bf16.msra.mxu0 %v4655
  %9411 = vmatprep.subr.bf16.mxu0 %v4648
  %9412 = vmatpush1.bf16.msra.mxu0 %v4647
  %9413 = vmatprep.subr.bf16.mxu0 %v4640
  %9414 = vmatpush1.bf16.msra.mxu0 %v4639
  %9415 = vmatprep.subr.bf16.mxu0 %v4632
  %9416 = vmatpush1.bf16.msra.mxu0 %v4631
  %9417 = vmatprep.subr.bf16.mxu0 %v4624
  %9418 = vmatpush1.bf16.msra.mxu0 %v4623
  %9419 = vmatprep.subr.bf16.mxu0 %v4616
  %9420 = vmatpush1.bf16.msra.mxu0 %v4615
  %9421 = vmatprep.subr.bf16.mxu0 %v4736
  %9422 = vmatpush2.bf16.msra.mxu0 %v4735
  %9423 = vmatprep.subr.bf16.mxu0 %v4728
  %9424 = vmatpush2.bf16.msra.mxu0 %v4727
  %9425 = vmatprep.subr.bf16.mxu0 %v4720
  %9426 = vmatpush2.bf16.msra.mxu0 %v4719
  %9427 = vmatprep.subr.bf16.mxu0 %v4712
  %9428 = vmatpush2.bf16.msra.mxu0 %v4711
  %9429 = vmatprep.subr.bf16.mxu0 %v4704
  %9430 = vmatpush2.bf16.msra.mxu0 %v4703
  %9431 = vmatprep.subr.bf16.mxu0 %v4696
  %9432 = vmatpush2.bf16.msra.mxu0 %v4695
  %9433 = vmatprep.subr.bf16.mxu0 %v4688
  %9434 = vmatpush2.bf16.msra.mxu0 %v4687
  %9435 = vmatprep.subr.bf16.mxu0 %v4680
  %9436 = vmatpush2.bf16.msra.mxu0 %v4679
  %9437 = vmatprep.mubr.bf16.mxu0 %v8948
  %9438 = vmatmul.mubr.bf16.gmra.mxu0 %v8947
  %v9439 = vpop.f32.mrf.mxu0
  %v9440 = vadd.f32 0.0, %v9439
  %v9441 = vpop.f32.mrf.mxu0
  %v9442 = vadd.f32 0.0, %v9441
  %v9443 = vpop.f32.mrf.mxu0
  %v9444 = vpop.f32.mrf.mxu0
  %9445 = vdwg.mxu0
  %9446 = vmatprep.subr.bf16.mxu0 %v4674
  %9447 = vmatpush1.bf16.msra.mxu0 %v4673
  %9448 = vmatprep.subr.bf16.mxu0 %v4666
  %9449 = vmatpush1.bf16.msra.mxu0 %v4665
  %9450 = vmatprep.subr.bf16.mxu0 %v4658
  %9451 = vmatpush1.bf16.msra.mxu0 %v4657
  %9452 = vmatprep.subr.bf16.mxu0 %v4650
  %9453 = vmatpush1.bf16.msra.mxu0 %v4649
  %9454 = vmatprep.subr.bf16.mxu0 %v4642
  %9455 = vmatpush1.bf16.msra.mxu0 %v4641
  %9456 = vmatprep.subr.bf16.mxu0 %v4634
  %9457 = vmatpush1.bf16.msra.mxu0 %v4633
  %9458 = vmatprep.subr.bf16.mxu0 %v4626
  %9459 = vmatpush1.bf16.msra.mxu0 %v4625
  %9460 = vmatprep.subr.bf16.mxu0 %v4618
  %9461 = vmatpush1.bf16.msra.mxu0 %v4617
  %9462 = vmatprep.subr.bf16.mxu0 %v4738
  %9463 = vmatpush2.bf16.msra.mxu0 %v4737
  %9464 = vmatprep.subr.bf16.mxu0 %v4730
  %9465 = vmatpush2.bf16.msra.mxu0 %v4729
  %9466 = vmatprep.subr.bf16.mxu0 %v4722
  %9467 = vmatpush2.bf16.msra.mxu0 %v4721
  %9468 = vmatprep.subr.bf16.mxu0 %v4714
  %9469 = vmatpush2.bf16.msra.mxu0 %v4713
  %9470 = vmatprep.subr.bf16.mxu0 %v4706
  %9471 = vmatpush2.bf16.msra.mxu0 %v4705
  %9472 = vmatprep.subr.bf16.mxu0 %v4698
  %9473 = vmatpush2.bf16.msra.mxu0 %v4697
  %9474 = vmatprep.subr.bf16.mxu0 %v4690
  %9475 = vmatpush2.bf16.msra.mxu0 %v4689
  %9476 = vmatprep.subr.bf16.mxu0 %v4682
  %9477 = vmatpush2.bf16.msra.mxu0 %v4681
  %9478 = vmatprep.mubr.bf16.mxu0 %v8948
  %9479 = vmatmul.mubr.bf16.gmra.mxu0 %v8947
  %v9480 = vpop.f32.mrf.mxu0
  %v9481 = vadd.f32 0.0, %v9480
  %v9482 = vpop.f32.mrf.mxu0
  %v9483 = vadd.f32 0.0, %v9482
  %v9484 = vpop.f32.mrf.mxu0
  %v9485 = vpop.f32.mrf.mxu0
  %9486 = vdwg.mxu0
  %v9487 = vadd.f32 %v9315, %v9358
  %v9488 = vadd.f32 %v9316, %v9360
  %v9489 = vadd.f32 %v9317, %v9399
  %v9490 = vadd.f32 %v9318, %v9401
  %v9491 = vadd.f32 %v9319, %v9440
  %v9492 = vadd.f32 %v9320, %v9442
  %v9493 = vadd.f32 %v9321, %v9481
  %v9494 = vadd.f32 %v9322, %v9483
  %v9495 = vmul.f32 %v9487, 0.5
  %v9496 = vmul.f32 %v9488, 0.5
  %v9497 = vtanh.pop %v9495
  %v9498 = vtanh.pop %v9496
  %v9499 = vadd.f32 %v9497, 1.0
  %v9500 = vadd.f32 %v9498, 1.0
  %v9501 = vmul.f32 %v9499, 0.5
  %v9502 = vmul.f32 %v9500, 0.5
  %v9503 = vmul.f32 %v9489, 0.5
  %v9504 = vmul.f32 %v9490, 0.5
  %v9505 = vtanh.pop %v9503
  %v9506 = vtanh.pop %v9504
  %v9507 = vadd.f32 %v9505, 1.0
  %v9508 = vadd.f32 %v9506, 1.0
  %v9509 = vmul.f32 %v9507, 0.5
  %v9510 = vmul.f32 %v9508, 0.5
  %v9511 = vtanh.pop %v9491
  %v9512 = vtanh.pop %v9492
  %v9513 = vmul.f32 %v9493, 0.5
  %v9514 = vmul.f32 %v9494, 0.5
  %v9515 = vtanh.pop %v9513
  %v9516 = vtanh.pop %v9514
  %v9517 = vadd.f32 %v9515, 1.0
  %v9518 = vadd.f32 %v9516, 1.0
  %v9519 = vmul.f32 %v9517, 0.5
  %v9520 = vmul.f32 %v9518, 0.5
  %v9521 = vmul.f32 %v9509, %v8941
  %v9522 = vmul.f32 %v9510, %v8942
  %v9523 = vmul.f32 %v9501, %v9511
  %v9524 = vmul.f32 %v9502, %v9512
  %v9525 = vadd.f32 %v9521, %v9523
  %v9526 = vadd.f32 %v9522, %v9524
  %v9527 = vtanh.pop %v9525
  %v9528 = vtanh.pop %v9526
  %v9529 = vmul.f32 %v9519, %v9527
  %v9530 = vmul.f32 %v9520, %v9528
  %v9531 = vpack.c.bf16 %v9529, %v9529
  %v9532 = vpack.c.bf16 %v9530, %v9530
  %v9533 = vpack.c.bf16 %v9313, %v9313
  %v9534 = vpack.c.bf16 %v9314, %v9314
  %9535 = vmatprep.subr.bf16.mxu0 %v6160
  %9536 = vmatpush1.bf16.msra.mxu0 %v6159
  %9537 = vmatprep.subr.bf16.mxu0 %v6152
  %9538 = vmatpush1.bf16.msra.mxu0 %v6151
  %9539 = vmatprep.subr.bf16.mxu0 %v6144
  %9540 = vmatpush1.bf16.msra.mxu0 %v6143
  %9541 = vmatprep.subr.bf16.mxu0 %v6136
  %9542 = vmatpush1.bf16.msra.mxu0 %v6135
  %9543 = vmatprep.subr.bf16.mxu0 %v6128
  %9544 = vmatpush1.bf16.msra.mxu0 %v6127
  %9545 = vmatprep.subr.bf16.mxu0 %v6120
  %9546 = vmatpush1.bf16.msra.mxu0 %v6119
  %9547 = vmatprep.subr.bf16.mxu0 %v6112
  %9548 = vmatpush1.bf16.msra.mxu0 %v6111
  %9549 = vmatprep.subr.bf16.mxu0 %v6104
  %9550 = vmatpush1.bf16.msra.mxu0 %v6103
  %9551 = vmatprep.subr.bf16.mxu0 %v6224
  %9552 = vmatpush2.bf16.msra.mxu0 %v6223
  %9553 = vmatprep.subr.bf16.mxu0 %v6216
  %9554 = vmatpush2.bf16.msra.mxu0 %v6215
  %9555 = vmatprep.subr.bf16.mxu0 %v6208
  %9556 = vmatpush2.bf16.msra.mxu0 %v6207
  %9557 = vmatprep.subr.bf16.mxu0 %v6200
  %9558 = vmatpush2.bf16.msra.mxu0 %v6199
  %9559 = vmatprep.subr.bf16.mxu0 %v6192
  %9560 = vmatpush2.bf16.msra.mxu0 %v6191
  %9561 = vmatprep.subr.bf16.mxu0 %v6184
  %9562 = vmatpush2.bf16.msra.mxu0 %v6183
  %9563 = vmatprep.subr.bf16.mxu0 %v6176
  %9564 = vmatpush2.bf16.msra.mxu0 %v6175
  %9565 = vmatprep.subr.bf16.mxu0 %v6168
  %9566 = vmatpush2.bf16.msra.mxu0 %v6167
  %9567 = vmatprep.mubr.bf16.mxu0 %v9532
  %9568 = vmatmul.mubr.bf16.gmra.mxu0 %v9531
  %v9569 = vpop.f32.mrf.mxu0
  %v9570 = vadd.f32 %v2099, %v9569
  %v9571 = vpop.f32.mrf.mxu0
  %v9572 = vadd.f32 %v2103, %v9571
  %v9573 = vpop.f32.mrf.mxu0
  %v9574 = vpop.f32.mrf.mxu0
  %9575 = vdwg.mxu0
  %9576 = vmatprep.subr.bf16.mxu0 %v6288
  %9577 = vmatpush1.bf16.msra.mxu0 %v6287
  %9578 = vmatprep.subr.bf16.mxu0 %v6280
  %9579 = vmatpush1.bf16.msra.mxu0 %v6279
  %9580 = vmatprep.subr.bf16.mxu0 %v6272
  %9581 = vmatpush1.bf16.msra.mxu0 %v6271
  %9582 = vmatprep.subr.bf16.mxu0 %v6264
  %9583 = vmatpush1.bf16.msra.mxu0 %v6263
  %9584 = vmatprep.subr.bf16.mxu0 %v6256
  %9585 = vmatpush1.bf16.msra.mxu0 %v6255
  %9586 = vmatprep.subr.bf16.mxu0 %v6248
  %9587 = vmatpush1.bf16.msra.mxu0 %v6247
  %9588 = vmatprep.subr.bf16.mxu0 %v6240
  %9589 = vmatpush1.bf16.msra.mxu0 %v6239
  %9590 = vmatprep.subr.bf16.mxu0 %v6232
  %9591 = vmatpush1.bf16.msra.mxu0 %v6231
  %9592 = vmatprep.subr.bf16.mxu0 %v6352
  %9593 = vmatpush2.bf16.msra.mxu0 %v6351
  %9594 = vmatprep.subr.bf16.mxu0 %v6344
  %9595 = vmatpush2.bf16.msra.mxu0 %v6343
  %9596 = vmatprep.subr.bf16.mxu0 %v6336
  %9597 = vmatpush2.bf16.msra.mxu0 %v6335
  %9598 = vmatprep.subr.bf16.mxu0 %v6328
  %9599 = vmatpush2.bf16.msra.mxu0 %v6327
  %9600 = vmatprep.subr.bf16.mxu0 %v6320
  %9601 = vmatpush2.bf16.msra.mxu0 %v6319
  %9602 = vmatprep.subr.bf16.mxu0 %v6312
  %9603 = vmatpush2.bf16.msra.mxu0 %v6311
  %9604 = vmatprep.subr.bf16.mxu0 %v6304
  %9605 = vmatpush2.bf16.msra.mxu0 %v6303
  %9606 = vmatprep.subr.bf16.mxu0 %v6296
  %9607 = vmatpush2.bf16.msra.mxu0 %v6295
  %9608 = vmatprep.mubr.bf16.mxu0 %v9534
  %9609 = vmatmul.mubr.bf16.gmra.mxu0 %v9533
  %v9610 = vpop.f32.mrf.mxu0
  %v9611 = vadd.f32 %v9570, %v9610
  %v9612 = vpop.f32.mrf.mxu0
  %v9613 = vadd.f32 %v9572, %v9612
  %v9614 = vpop.f32.mrf.mxu0
  %v9615 = vpop.f32.mrf.mxu0
  %9616 = vdwg.mxu0
  %9617 = vmatprep.subr.bf16.mxu0 %v6162
  %9618 = vmatpush1.bf16.msra.mxu0 %v6161
  %9619 = vmatprep.subr.bf16.mxu0 %v6154
  %9620 = vmatpush1.bf16.msra.mxu0 %v6153
  %9621 = vmatprep.subr.bf16.mxu0 %v6146
  %9622 = vmatpush1.bf16.msra.mxu0 %v6145
  %9623 = vmatprep.subr.bf16.mxu0 %v6138
  %9624 = vmatpush1.bf16.msra.mxu0 %v6137
  %9625 = vmatprep.subr.bf16.mxu0 %v6130
  %9626 = vmatpush1.bf16.msra.mxu0 %v6129
  %9627 = vmatprep.subr.bf16.mxu0 %v6122
  %9628 = vmatpush1.bf16.msra.mxu0 %v6121
  %9629 = vmatprep.subr.bf16.mxu0 %v6114
  %9630 = vmatpush1.bf16.msra.mxu0 %v6113
  %9631 = vmatprep.subr.bf16.mxu0 %v6106
  %9632 = vmatpush1.bf16.msra.mxu0 %v6105
  %9633 = vmatprep.subr.bf16.mxu0 %v6226
  %9634 = vmatpush2.bf16.msra.mxu0 %v6225
  %9635 = vmatprep.subr.bf16.mxu0 %v6218
  %9636 = vmatpush2.bf16.msra.mxu0 %v6217
  %9637 = vmatprep.subr.bf16.mxu0 %v6210
  %9638 = vmatpush2.bf16.msra.mxu0 %v6209
  %9639 = vmatprep.subr.bf16.mxu0 %v6202
  %9640 = vmatpush2.bf16.msra.mxu0 %v6201
  %9641 = vmatprep.subr.bf16.mxu0 %v6194
  %9642 = vmatpush2.bf16.msra.mxu0 %v6193
  %9643 = vmatprep.subr.bf16.mxu0 %v6186
  %9644 = vmatpush2.bf16.msra.mxu0 %v6185
  %9645 = vmatprep.subr.bf16.mxu0 %v6178
  %9646 = vmatpush2.bf16.msra.mxu0 %v6177
  %9647 = vmatprep.subr.bf16.mxu0 %v6170
  %9648 = vmatpush2.bf16.msra.mxu0 %v6169
  %9649 = vmatprep.mubr.bf16.mxu0 %v9532
  %9650 = vmatmul.mubr.bf16.gmra.mxu0 %v9531
  %v9651 = vpop.f32.mrf.mxu0
  %v9652 = vadd.f32 %v2107, %v9651
  %v9653 = vpop.f32.mrf.mxu0
  %v9654 = vadd.f32 %v2111, %v9653
  %v9655 = vpop.f32.mrf.mxu0
  %v9656 = vpop.f32.mrf.mxu0
  %9657 = vdwg.mxu0
  %9658 = vmatprep.subr.bf16.mxu0 %v6290
  %9659 = vmatpush1.bf16.msra.mxu0 %v6289
  %9660 = vmatprep.subr.bf16.mxu0 %v6282
  %9661 = vmatpush1.bf16.msra.mxu0 %v6281
  %9662 = vmatprep.subr.bf16.mxu0 %v6274
  %9663 = vmatpush1.bf16.msra.mxu0 %v6273
  %9664 = vmatprep.subr.bf16.mxu0 %v6266
  %9665 = vmatpush1.bf16.msra.mxu0 %v6265
  %9666 = vmatprep.subr.bf16.mxu0 %v6258
  %9667 = vmatpush1.bf16.msra.mxu0 %v6257
  %9668 = vmatprep.subr.bf16.mxu0 %v6250
  %9669 = vmatpush1.bf16.msra.mxu0 %v6249
  %9670 = vmatprep.subr.bf16.mxu0 %v6242
  %9671 = vmatpush1.bf16.msra.mxu0 %v6241
  %9672 = vmatprep.subr.bf16.mxu0 %v6234
  %9673 = vmatpush1.bf16.msra.mxu0 %v6233
  %9674 = vmatprep.subr.bf16.mxu0 %v6354
  %9675 = vmatpush2.bf16.msra.mxu0 %v6353
  %9676 = vmatprep.subr.bf16.mxu0 %v6346
  %9677 = vmatpush2.bf16.msra.mxu0 %v6345
  %9678 = vmatprep.subr.bf16.mxu0 %v6338
  %9679 = vmatpush2.bf16.msra.mxu0 %v6337
  %9680 = vmatprep.subr.bf16.mxu0 %v6330
  %9681 = vmatpush2.bf16.msra.mxu0 %v6329
  %9682 = vmatprep.subr.bf16.mxu0 %v6322
  %9683 = vmatpush2.bf16.msra.mxu0 %v6321
  %9684 = vmatprep.subr.bf16.mxu0 %v6314
  %9685 = vmatpush2.bf16.msra.mxu0 %v6313
  %9686 = vmatprep.subr.bf16.mxu0 %v6306
  %9687 = vmatpush2.bf16.msra.mxu0 %v6305
  %9688 = vmatprep.subr.bf16.mxu0 %v6298
  %9689 = vmatpush2.bf16.msra.mxu0 %v6297
  %9690 = vmatprep.mubr.bf16.mxu0 %v9534
  %9691 = vmatmul.mubr.bf16.gmra.mxu0 %v9533
  %v9692 = vpop.f32.mrf.mxu0
  %v9693 = vadd.f32 %v9652, %v9692
  %v9694 = vpop.f32.mrf.mxu0
  %v9695 = vadd.f32 %v9654, %v9694
  %v9696 = vpop.f32.mrf.mxu0
  %v9697 = vpop.f32.mrf.mxu0
  %9698 = vdwg.mxu0
  %9699 = vmatprep.subr.bf16.mxu0 %v6164
  %9700 = vmatpush1.bf16.msra.mxu0 %v6163
  %9701 = vmatprep.subr.bf16.mxu0 %v6156
  %9702 = vmatpush1.bf16.msra.mxu0 %v6155
  %9703 = vmatprep.subr.bf16.mxu0 %v6148
  %9704 = vmatpush1.bf16.msra.mxu0 %v6147
  %9705 = vmatprep.subr.bf16.mxu0 %v6140
  %9706 = vmatpush1.bf16.msra.mxu0 %v6139
  %9707 = vmatprep.subr.bf16.mxu0 %v6132
  %9708 = vmatpush1.bf16.msra.mxu0 %v6131
  %9709 = vmatprep.subr.bf16.mxu0 %v6124
  %9710 = vmatpush1.bf16.msra.mxu0 %v6123
  %9711 = vmatprep.subr.bf16.mxu0 %v6116
  %9712 = vmatpush1.bf16.msra.mxu0 %v6115
  %9713 = vmatprep.subr.bf16.mxu0 %v6108
  %9714 = vmatpush1.bf16.msra.mxu0 %v6107
  %9715 = vmatprep.subr.bf16.mxu0 %v6228
  %9716 = vmatpush2.bf16.msra.mxu0 %v6227
  %9717 = vmatprep.subr.bf16.mxu0 %v6220
  %9718 = vmatpush2.bf16.msra.mxu0 %v6219
  %9719 = vmatprep.subr.bf16.mxu0 %v6212
  %9720 = vmatpush2.bf16.msra.mxu0 %v6211
  %9721 = vmatprep.subr.bf16.mxu0 %v6204
  %9722 = vmatpush2.bf16.msra.mxu0 %v6203
  %9723 = vmatprep.subr.bf16.mxu0 %v6196
  %9724 = vmatpush2.bf16.msra.mxu0 %v6195
  %9725 = vmatprep.subr.bf16.mxu0 %v6188
  %9726 = vmatpush2.bf16.msra.mxu0 %v6187
  %9727 = vmatprep.subr.bf16.mxu0 %v6180
  %9728 = vmatpush2.bf16.msra.mxu0 %v6179
  %9729 = vmatprep.subr.bf16.mxu0 %v6172
  %9730 = vmatpush2.bf16.msra.mxu0 %v6171
  %9731 = vmatprep.mubr.bf16.mxu0 %v9532
  %9732 = vmatmul.mubr.bf16.gmra.mxu0 %v9531
  %v9733 = vpop.f32.mrf.mxu0
  %v9734 = vadd.f32 %v2115, %v9733
  %v9735 = vpop.f32.mrf.mxu0
  %v9736 = vadd.f32 %v2119, %v9735
  %v9737 = vpop.f32.mrf.mxu0
  %v9738 = vpop.f32.mrf.mxu0
  %9739 = vdwg.mxu0
  %9740 = vmatprep.subr.bf16.mxu0 %v6292
  %9741 = vmatpush1.bf16.msra.mxu0 %v6291
  %9742 = vmatprep.subr.bf16.mxu0 %v6284
  %9743 = vmatpush1.bf16.msra.mxu0 %v6283
  %9744 = vmatprep.subr.bf16.mxu0 %v6276
  %9745 = vmatpush1.bf16.msra.mxu0 %v6275
  %9746 = vmatprep.subr.bf16.mxu0 %v6268
  %9747 = vmatpush1.bf16.msra.mxu0 %v6267
  %9748 = vmatprep.subr.bf16.mxu0 %v6260
  %9749 = vmatpush1.bf16.msra.mxu0 %v6259
  %9750 = vmatprep.subr.bf16.mxu0 %v6252
  %9751 = vmatpush1.bf16.msra.mxu0 %v6251
  %9752 = vmatprep.subr.bf16.mxu0 %v6244
  %9753 = vmatpush1.bf16.msra.mxu0 %v6243
  %9754 = vmatprep.subr.bf16.mxu0 %v6236
  %9755 = vmatpush1.bf16.msra.mxu0 %v6235
  %9756 = vmatprep.subr.bf16.mxu0 %v6356
  %9757 = vmatpush2.bf16.msra.mxu0 %v6355
  %9758 = vmatprep.subr.bf16.mxu0 %v6348
  %9759 = vmatpush2.bf16.msra.mxu0 %v6347
  %9760 = vmatprep.subr.bf16.mxu0 %v6340
  %9761 = vmatpush2.bf16.msra.mxu0 %v6339
  %9762 = vmatprep.subr.bf16.mxu0 %v6332
  %9763 = vmatpush2.bf16.msra.mxu0 %v6331
  %9764 = vmatprep.subr.bf16.mxu0 %v6324
  %9765 = vmatpush2.bf16.msra.mxu0 %v6323
  %9766 = vmatprep.subr.bf16.mxu0 %v6316
  %9767 = vmatpush2.bf16.msra.mxu0 %v6315
  %9768 = vmatprep.subr.bf16.mxu0 %v6308
  %9769 = vmatpush2.bf16.msra.mxu0 %v6307
  %9770 = vmatprep.subr.bf16.mxu0 %v6300
  %9771 = vmatpush2.bf16.msra.mxu0 %v6299
  %9772 = vmatprep.mubr.bf16.mxu0 %v9534
  %9773 = vmatmul.mubr.bf16.gmra.mxu0 %v9533
  %v9774 = vpop.f32.mrf.mxu0
  %v9775 = vadd.f32 %v9734, %v9774
  %v9776 = vpop.f32.mrf.mxu0
  %v9777 = vadd.f32 %v9736, %v9776
  %v9778 = vpop.f32.mrf.mxu0
  %v9779 = vpop.f32.mrf.mxu0
  %9780 = vdwg.mxu0
  %9781 = vmatprep.subr.bf16.mxu0 %v6166
  %9782 = vmatpush1.bf16.msra.mxu0 %v6165
  %9783 = vmatprep.subr.bf16.mxu0 %v6158
  %9784 = vmatpush1.bf16.msra.mxu0 %v6157
  %9785 = vmatprep.subr.bf16.mxu0 %v6150
  %9786 = vmatpush1.bf16.msra.mxu0 %v6149
  %9787 = vmatprep.subr.bf16.mxu0 %v6142
  %9788 = vmatpush1.bf16.msra.mxu0 %v6141
  %9789 = vmatprep.subr.bf16.mxu0 %v6134
  %9790 = vmatpush1.bf16.msra.mxu0 %v6133
  %9791 = vmatprep.subr.bf16.mxu0 %v6126
  %9792 = vmatpush1.bf16.msra.mxu0 %v6125
  %9793 = vmatprep.subr.bf16.mxu0 %v6118
  %9794 = vmatpush1.bf16.msra.mxu0 %v6117
  %9795 = vmatprep.subr.bf16.mxu0 %v6110
  %9796 = vmatpush1.bf16.msra.mxu0 %v6109
  %9797 = vmatprep.subr.bf16.mxu0 %v6230
  %9798 = vmatpush2.bf16.msra.mxu0 %v6229
  %9799 = vmatprep.subr.bf16.mxu0 %v6222
  %9800 = vmatpush2.bf16.msra.mxu0 %v6221
  %9801 = vmatprep.subr.bf16.mxu0 %v6214
  %9802 = vmatpush2.bf16.msra.mxu0 %v6213
  %9803 = vmatprep.subr.bf16.mxu0 %v6206
  %9804 = vmatpush2.bf16.msra.mxu0 %v6205
  %9805 = vmatprep.subr.bf16.mxu0 %v6198
  %9806 = vmatpush2.bf16.msra.mxu0 %v6197
  %9807 = vmatprep.subr.bf16.mxu0 %v6190
  %9808 = vmatpush2.bf16.msra.mxu0 %v6189
  %9809 = vmatprep.subr.bf16.mxu0 %v6182
  %9810 = vmatpush2.bf16.msra.mxu0 %v6181
  %9811 = vmatprep.subr.bf16.mxu0 %v6174
  %9812 = vmatpush2.bf16.msra.mxu0 %v6173
  %9813 = vmatprep.mubr.bf16.mxu0 %v9532
  %9814 = vmatmul.mubr.bf16.gmra.mxu0 %v9531
  %v9815 = vpop.f32.mrf.mxu0
  %v9816 = vadd.f32 %v2123, %v9815
  %v9817 = vpop.f32.mrf.mxu0
  %v9818 = vadd.f32 %v2127, %v9817
  %v9819 = vpop.f32.mrf.mxu0
  %v9820 = vpop.f32.mrf.mxu0
  %9821 = vdwg.mxu0
  %9822 = vmatprep.subr.bf16.mxu0 %v6294
  %9823 = vmatpush1.bf16.msra.mxu0 %v6293
  %9824 = vmatprep.subr.bf16.mxu0 %v6286
  %9825 = vmatpush1.bf16.msra.mxu0 %v6285
  %9826 = vmatprep.subr.bf16.mxu0 %v6278
  %9827 = vmatpush1.bf16.msra.mxu0 %v6277
  %9828 = vmatprep.subr.bf16.mxu0 %v6270
  %9829 = vmatpush1.bf16.msra.mxu0 %v6269
  %9830 = vmatprep.subr.bf16.mxu0 %v6262
  %9831 = vmatpush1.bf16.msra.mxu0 %v6261
  %9832 = vmatprep.subr.bf16.mxu0 %v6254
  %9833 = vmatpush1.bf16.msra.mxu0 %v6253
  %9834 = vmatprep.subr.bf16.mxu0 %v6246
  %9835 = vmatpush1.bf16.msra.mxu0 %v6245
  %9836 = vmatprep.subr.bf16.mxu0 %v6238
  %9837 = vmatpush1.bf16.msra.mxu0 %v6237
  %9838 = vmatprep.subr.bf16.mxu0 %v6358
  %9839 = vmatpush2.bf16.msra.mxu0 %v6357
  %9840 = vmatprep.subr.bf16.mxu0 %v6350
  %9841 = vmatpush2.bf16.msra.mxu0 %v6349
  %9842 = vmatprep.subr.bf16.mxu0 %v6342
  %9843 = vmatpush2.bf16.msra.mxu0 %v6341
  %9844 = vmatprep.subr.bf16.mxu0 %v6334
  %9845 = vmatpush2.bf16.msra.mxu0 %v6333
  %9846 = vmatprep.subr.bf16.mxu0 %v6326
  %9847 = vmatpush2.bf16.msra.mxu0 %v6325
  %9848 = vmatprep.subr.bf16.mxu0 %v6318
  %9849 = vmatpush2.bf16.msra.mxu0 %v6317
  %9850 = vmatprep.subr.bf16.mxu0 %v6310
  %9851 = vmatpush2.bf16.msra.mxu0 %v6309
  %9852 = vmatprep.subr.bf16.mxu0 %v6302
  %9853 = vmatpush2.bf16.msra.mxu0 %v6301
  %9854 = vmatprep.mubr.bf16.mxu0 %v9534
  %9855 = vmatmul.mubr.bf16.gmra.mxu0 %v9533
  %v9856 = vpop.f32.mrf.mxu0
  %v9857 = vadd.f32 %v9816, %v9856
  %v9858 = vpop.f32.mrf.mxu0
  %v9859 = vadd.f32 %v9818, %v9858
  %v9860 = vpop.f32.mrf.mxu0
  %v9861 = vpop.f32.mrf.mxu0
  %9862 = vdwg.mxu0
  %v9863 = vmul.f32 %v9611, 0.5
  %v9864 = vmul.f32 %v9613, 0.5
  %v9865 = vtanh.pop %v9863
  %v9866 = vtanh.pop %v9864
  %v9867 = vadd.f32 %v9865, 1.0
  %v9868 = vadd.f32 %v9866, 1.0
  %v9869 = vmul.f32 %v9867, 0.5
  %v9870 = vmul.f32 %v9868, 0.5
  %v9871 = vmul.f32 %v9693, 0.5
  %v9872 = vmul.f32 %v9695, 0.5
  %v9873 = vtanh.pop %v9871
  %v9874 = vtanh.pop %v9872
  %v9875 = vadd.f32 %v9873, 1.0
  %v9876 = vadd.f32 %v9874, 1.0
  %v9877 = vmul.f32 %v9875, 0.5
  %v9878 = vmul.f32 %v9876, 0.5
  %v9879 = vtanh.pop %v9775
  %v9880 = vtanh.pop %v9777
  %v9881 = vmul.f32 %v9857, 0.5
  %v9882 = vmul.f32 %v9859, 0.5
  %v9883 = vtanh.pop %v9881
  %v9884 = vtanh.pop %v9882
  %v9885 = vadd.f32 %v9883, 1.0
  %v9886 = vadd.f32 %v9884, 1.0
  %v9887 = vmul.f32 %v9885, 0.5
  %v9888 = vmul.f32 %v9886, 0.5
  %v9889 = vmul.f32 %v9877, %v9309
  %v9890 = vmul.f32 %v9878, %v9310
  %v9891 = vmul.f32 %v9869, %v9879
  %v9892 = vmul.f32 %v9870, %v9880
  %v9893 = vadd.f32 %v9889, %v9891
  %v9894 = vadd.f32 %v9890, %v9892
  %v9895 = vtanh.pop %v9893
  %v9896 = vtanh.pop %v9894
  %v9897 = vmul.f32 %v9887, %v9895
  %v9898 = vmul.f32 %v9888, %v9896
  %v9899 = vld [vmem:[#allocation2 + $0x1c0] sm:$0xff]
  %v9900 = vld [vmem:[#allocation2 + $0x1c8] sm:$0xff]
  %v9901 = vld [vmem:[#allocation2 + $0x1d0] sm:$0xff]
  %v9902 = vld [vmem:[#allocation2 + $0x1d8] sm:$0xff]
  %v9903 = vld [vmem:[#allocation2 + $0x1e0] sm:$0xff]
  %v9904 = vld [vmem:[#allocation2 + $0x1e8] sm:$0xff]
  %v9905 = vld [vmem:[#allocation2 + $0x1f0] sm:$0xff]
  %v9906 = vld [vmem:[#allocation2 + $0x1f8] sm:$0xff]
  %9907 = vmatprep.subr.bf16.mxu0 %v4668
  %9908 = vmatpush1.bf16.msra.mxu0 %v4667
  %9909 = vmatprep.subr.bf16.mxu0 %v4660
  %9910 = vmatpush1.bf16.msra.mxu0 %v4659
  %9911 = vmatprep.subr.bf16.mxu0 %v4652
  %9912 = vmatpush1.bf16.msra.mxu0 %v4651
  %9913 = vmatprep.subr.bf16.mxu0 %v4644
  %9914 = vmatpush1.bf16.msra.mxu0 %v4643
  %9915 = vmatprep.subr.bf16.mxu0 %v4636
  %9916 = vmatpush1.bf16.msra.mxu0 %v4635
  %9917 = vmatprep.subr.bf16.mxu0 %v4628
  %9918 = vmatpush1.bf16.msra.mxu0 %v4627
  %9919 = vmatprep.subr.bf16.mxu0 %v4620
  %9920 = vmatpush1.bf16.msra.mxu0 %v4619
  %9921 = vmatprep.subr.bf16.mxu0 %v4612
  %9922 = vmatpush1.bf16.msra.mxu0 %v4611
  %9923 = vmatprep.subr.bf16.mxu0 %v4732
  %9924 = vmatpush2.bf16.msra.mxu0 %v4731
  %9925 = vmatprep.subr.bf16.mxu0 %v4724
  %9926 = vmatpush2.bf16.msra.mxu0 %v4723
  %9927 = vmatprep.subr.bf16.mxu0 %v4716
  %9928 = vmatpush2.bf16.msra.mxu0 %v4715
  %9929 = vmatprep.subr.bf16.mxu0 %v4708
  %9930 = vmatpush2.bf16.msra.mxu0 %v4707
  %9931 = vmatprep.subr.bf16.mxu0 %v4700
  %9932 = vmatpush2.bf16.msra.mxu0 %v4699
  %9933 = vmatprep.subr.bf16.mxu0 %v4692
  %9934 = vmatpush2.bf16.msra.mxu0 %v4691
  %9935 = vmatprep.subr.bf16.mxu0 %v4684
  %9936 = vmatpush2.bf16.msra.mxu0 %v4683
  %9937 = vmatprep.subr.bf16.mxu0 %v4676
  %9938 = vmatpush2.bf16.msra.mxu0 %v4675
  %9939 = vmatprep.mubr.bf16.mxu0 %v9532
  %9940 = vmatmul.mubr.bf16.gmra.mxu0 %v9531
  %v9941 = vpop.f32.mrf.mxu0
  %v9942 = vadd.f32 0.0, %v9941
  %v9943 = vpop.f32.mrf.mxu0
  %v9944 = vadd.f32 0.0, %v9943
  %v9945 = vpop.f32.mrf.mxu0
  %v9946 = vpop.f32.mrf.mxu0
  %9947 = vdwg.mxu0
  %9948 = vmatprep.subr.bf16.mxu0 %v4670
  %9949 = vmatpush1.bf16.msra.mxu0 %v4669
  %9950 = vmatprep.subr.bf16.mxu0 %v4662
  %9951 = vmatpush1.bf16.msra.mxu0 %v4661
  %9952 = vmatprep.subr.bf16.mxu0 %v4654
  %9953 = vmatpush1.bf16.msra.mxu0 %v4653
  %9954 = vmatprep.subr.bf16.mxu0 %v4646
  %9955 = vmatpush1.bf16.msra.mxu0 %v4645
  %9956 = vmatprep.subr.bf16.mxu0 %v4638
  %9957 = vmatpush1.bf16.msra.mxu0 %v4637
  %9958 = vmatprep.subr.bf16.mxu0 %v4630
  %9959 = vmatpush1.bf16.msra.mxu0 %v4629
  %9960 = vmatprep.subr.bf16.mxu0 %v4622
  %9961 = vmatpush1.bf16.msra.mxu0 %v4621
  %9962 = vmatprep.subr.bf16.mxu0 %v4614
  %9963 = vmatpush1.bf16.msra.mxu0 %v4613
  %9964 = vmatprep.subr.bf16.mxu0 %v4734
  %9965 = vmatpush2.bf16.msra.mxu0 %v4733
  %9966 = vmatprep.subr.bf16.mxu0 %v4726
  %9967 = vmatpush2.bf16.msra.mxu0 %v4725
  %9968 = vmatprep.subr.bf16.mxu0 %v4718
  %9969 = vmatpush2.bf16.msra.mxu0 %v4717
  %9970 = vmatprep.subr.bf16.mxu0 %v4710
  %9971 = vmatpush2.bf16.msra.mxu0 %v4709
  %9972 = vmatprep.subr.bf16.mxu0 %v4702
  %9973 = vmatpush2.bf16.msra.mxu0 %v4701
  %9974 = vmatprep.subr.bf16.mxu0 %v4694
  %9975 = vmatpush2.bf16.msra.mxu0 %v4693
  %9976 = vmatprep.subr.bf16.mxu0 %v4686
  %9977 = vmatpush2.bf16.msra.mxu0 %v4685
  %9978 = vmatprep.subr.bf16.mxu0 %v4678
  %9979 = vmatpush2.bf16.msra.mxu0 %v4677
  %9980 = vmatprep.mubr.bf16.mxu0 %v9532
  %9981 = vmatmul.mubr.bf16.gmra.mxu0 %v9531
  %v9982 = vpop.f32.mrf.mxu0
  %v9983 = vadd.f32 0.0, %v9982
  %v9984 = vpop.f32.mrf.mxu0
  %v9985 = vadd.f32 0.0, %v9984
  %v9986 = vpop.f32.mrf.mxu0
  %v9987 = vpop.f32.mrf.mxu0
  %9988 = vdwg.mxu0
  %9989 = vmatprep.subr.bf16.mxu0 %v4672
  %9990 = vmatpush1.bf16.msra.mxu0 %v4671
  %9991 = vmatprep.subr.bf16.mxu0 %v4664
  %9992 = vmatpush1.bf16.msra.mxu0 %v4663
  %9993 = vmatprep.subr.bf16.mxu0 %v4656
  %9994 = vmatpush1.bf16.msra.mxu0 %v4655
  %9995 = vmatprep.subr.bf16.mxu0 %v4648
  %9996 = vmatpush1.bf16.msra.mxu0 %v4647
  %9997 = vmatprep.subr.bf16.mxu0 %v4640
  %9998 = vmatpush1.bf16.msra.mxu0 %v4639
  %9999 = vmatprep.subr.bf16.mxu0 %v4632
  %10000 = vmatpush1.bf16.msra.mxu0 %v4631
  %10001 = vmatprep.subr.bf16.mxu0 %v4624
  %10002 = vmatpush1.bf16.msra.mxu0 %v4623
  %10003 = vmatprep.subr.bf16.mxu0 %v4616
  %10004 = vmatpush1.bf16.msra.mxu0 %v4615
  %10005 = vmatprep.subr.bf16.mxu0 %v4736
  %10006 = vmatpush2.bf16.msra.mxu0 %v4735
  %10007 = vmatprep.subr.bf16.mxu0 %v4728
  %10008 = vmatpush2.bf16.msra.mxu0 %v4727
  %10009 = vmatprep.subr.bf16.mxu0 %v4720
  %10010 = vmatpush2.bf16.msra.mxu0 %v4719
  %10011 = vmatprep.subr.bf16.mxu0 %v4712
  %10012 = vmatpush2.bf16.msra.mxu0 %v4711
  %10013 = vmatprep.subr.bf16.mxu0 %v4704
  %10014 = vmatpush2.bf16.msra.mxu0 %v4703
  %10015 = vmatprep.subr.bf16.mxu0 %v4696
  %10016 = vmatpush2.bf16.msra.mxu0 %v4695
  %10017 = vmatprep.subr.bf16.mxu0 %v4688
  %10018 = vmatpush2.bf16.msra.mxu0 %v4687
  %10019 = vmatprep.subr.bf16.mxu0 %v4680
  %10020 = vmatpush2.bf16.msra.mxu0 %v4679
  %10021 = vmatprep.mubr.bf16.mxu0 %v9532
  %10022 = vmatmul.mubr.bf16.gmra.mxu0 %v9531
  %v10023 = vpop.f32.mrf.mxu0
  %v10024 = vadd.f32 0.0, %v10023
  %v10025 = vpop.f32.mrf.mxu0
  %v10026 = vadd.f32 0.0, %v10025
  %v10027 = vpop.f32.mrf.mxu0
  %v10028 = vpop.f32.mrf.mxu0
  %10029 = vdwg.mxu0
  %10030 = vmatprep.subr.bf16.mxu0 %v4674
  %10031 = vmatpush1.bf16.msra.mxu0 %v4673
  %10032 = vmatprep.subr.bf16.mxu0 %v4666
  %10033 = vmatpush1.bf16.msra.mxu0 %v4665
  %10034 = vmatprep.subr.bf16.mxu0 %v4658
  %10035 = vmatpush1.bf16.msra.mxu0 %v4657
  %10036 = vmatprep.subr.bf16.mxu0 %v4650
  %10037 = vmatpush1.bf16.msra.mxu0 %v4649
  %10038 = vmatprep.subr.bf16.mxu0 %v4642
  %10039 = vmatpush1.bf16.msra.mxu0 %v4641
  %10040 = vmatprep.subr.bf16.mxu0 %v4634
  %10041 = vmatpush1.bf16.msra.mxu0 %v4633
  %10042 = vmatprep.subr.bf16.mxu0 %v4626
  %10043 = vmatpush1.bf16.msra.mxu0 %v4625
  %10044 = vmatprep.subr.bf16.mxu0 %v4618
  %10045 = vmatpush1.bf16.msra.mxu0 %v4617
  %10046 = vmatprep.subr.bf16.mxu0 %v4738
  %10047 = vmatpush2.bf16.msra.mxu0 %v4737
  %10048 = vmatprep.subr.bf16.mxu0 %v4730
  %10049 = vmatpush2.bf16.msra.mxu0 %v4729
  %10050 = vmatprep.subr.bf16.mxu0 %v4722
  %10051 = vmatpush2.bf16.msra.mxu0 %v4721
  %10052 = vmatprep.subr.bf16.mxu0 %v4714
  %10053 = vmatpush2.bf16.msra.mxu0 %v4713
  %10054 = vmatprep.subr.bf16.mxu0 %v4706
  %10055 = vmatpush2.bf16.msra.mxu0 %v4705
  %10056 = vmatprep.subr.bf16.mxu0 %v4698
  %10057 = vmatpush2.bf16.msra.mxu0 %v4697
  %10058 = vmatprep.subr.bf16.mxu0 %v4690
  %10059 = vmatpush2.bf16.msra.mxu0 %v4689
  %10060 = vmatprep.subr.bf16.mxu0 %v4682
  %10061 = vmatpush2.bf16.msra.mxu0 %v4681
  %10062 = vmatprep.mubr.bf16.mxu0 %v9532
  %10063 = vmatmul.mubr.bf16.gmra.mxu0 %v9531
  %v10064 = vpop.f32.mrf.mxu0
  %v10065 = vadd.f32 0.0, %v10064
  %v10066 = vpop.f32.mrf.mxu0
  %v10067 = vadd.f32 0.0, %v10066
  %v10068 = vpop.f32.mrf.mxu0
  %v10069 = vpop.f32.mrf.mxu0
  %10070 = vdwg.mxu0
  %v10071 = vadd.f32 %v9899, %v9942
  %v10072 = vadd.f32 %v9900, %v9944
  %v10073 = vadd.f32 %v9901, %v9983
  %v10074 = vadd.f32 %v9902, %v9985
  %v10075 = vadd.f32 %v9903, %v10024
  %v10076 = vadd.f32 %v9904, %v10026
  %v10077 = vadd.f32 %v9905, %v10065
  %v10078 = vadd.f32 %v9906, %v10067
  %v10079 = vmul.f32 %v10071, 0.5
  %v10080 = vmul.f32 %v10072, 0.5
  %v10081 = vtanh.pop %v10079
  %v10082 = vtanh.pop %v10080
  %v10083 = vadd.f32 %v10081, 1.0
  %v10084 = vadd.f32 %v10082, 1.0
  %v10085 = vmul.f32 %v10083, 0.5
  %v10086 = vmul.f32 %v10084, 0.5
  %v10087 = vmul.f32 %v10073, 0.5
  %v10088 = vmul.f32 %v10074, 0.5
  %v10089 = vtanh.pop %v10087
  %v10090 = vtanh.pop %v10088
  %v10091 = vadd.f32 %v10089, 1.0
  %v10092 = vadd.f32 %v10090, 1.0
  %v10093 = vmul.f32 %v10091, 0.5
  %v10094 = vmul.f32 %v10092, 0.5
  %v10095 = vtanh.pop %v10075
  %v10096 = vtanh.pop %v10076
  %v10097 = vmul.f32 %v10077, 0.5
  %v10098 = vmul.f32 %v10078, 0.5
  %v10099 = vtanh.pop %v10097
  %v10100 = vtanh.pop %v10098
  %v10101 = vadd.f32 %v10099, 1.0
  %v10102 = vadd.f32 %v10100, 1.0
  %v10103 = vmul.f32 %v10101, 0.5
  %v10104 = vmul.f32 %v10102, 0.5
  %v10105 = vmul.f32 %v10093, %v9525
  %v10106 = vmul.f32 %v10094, %v9526
  %v10107 = vmul.f32 %v10085, %v10095
  %v10108 = vmul.f32 %v10086, %v10096
  %v10109 = vadd.f32 %v10105, %v10107
  %v10110 = vadd.f32 %v10106, %v10108
  %v10111 = vtanh.pop %v10109
  %v10112 = vtanh.pop %v10110
  %v10113 = vmul.f32 %v10103, %v10111
  %v10114 = vmul.f32 %v10104, %v10112
  %v10115 = vpack.c.bf16 %v10113, %v10113
  %v10116 = vpack.c.bf16 %v10114, %v10114
  %v10117 = vpack.c.bf16 %v9897, %v9897
  %v10118 = vpack.c.bf16 %v9898, %v9898
  %10119 = vmatprep.subr.bf16.mxu0 %v6160
  %10120 = vmatpush1.bf16.msra.mxu0 %v6159
  %10121 = vmatprep.subr.bf16.mxu0 %v6152
  %10122 = vmatpush1.bf16.msra.mxu0 %v6151
  %10123 = vmatprep.subr.bf16.mxu0 %v6144
  %10124 = vmatpush1.bf16.msra.mxu0 %v6143
  %10125 = vmatprep.subr.bf16.mxu0 %v6136
  %10126 = vmatpush1.bf16.msra.mxu0 %v6135
  %10127 = vmatprep.subr.bf16.mxu0 %v6128
  %10128 = vmatpush1.bf16.msra.mxu0 %v6127
  %10129 = vmatprep.subr.bf16.mxu0 %v6120
  %10130 = vmatpush1.bf16.msra.mxu0 %v6119
  %10131 = vmatprep.subr.bf16.mxu0 %v6112
  %10132 = vmatpush1.bf16.msra.mxu0 %v6111
  %10133 = vmatprep.subr.bf16.mxu0 %v6104
  %10134 = vmatpush1.bf16.msra.mxu0 %v6103
  %10135 = vmatprep.subr.bf16.mxu0 %v6224
  %10136 = vmatpush2.bf16.msra.mxu0 %v6223
  %10137 = vmatprep.subr.bf16.mxu0 %v6216
  %10138 = vmatpush2.bf16.msra.mxu0 %v6215
  %10139 = vmatprep.subr.bf16.mxu0 %v6208
  %10140 = vmatpush2.bf16.msra.mxu0 %v6207
  %10141 = vmatprep.subr.bf16.mxu0 %v6200
  %10142 = vmatpush2.bf16.msra.mxu0 %v6199
  %10143 = vmatprep.subr.bf16.mxu0 %v6192
  %10144 = vmatpush2.bf16.msra.mxu0 %v6191
  %10145 = vmatprep.subr.bf16.mxu0 %v6184
  %10146 = vmatpush2.bf16.msra.mxu0 %v6183
  %10147 = vmatprep.subr.bf16.mxu0 %v6176
  %10148 = vmatpush2.bf16.msra.mxu0 %v6175
  %10149 = vmatprep.subr.bf16.mxu0 %v6168
  %10150 = vmatpush2.bf16.msra.mxu0 %v6167
  %10151 = vmatprep.mubr.bf16.mxu0 %v10116
  %10152 = vmatmul.mubr.bf16.gmra.mxu0 %v10115
  %v10153 = vpop.f32.mrf.mxu0
  %v10154 = vadd.f32 %v2099, %v10153
  %v10155 = vpop.f32.mrf.mxu0
  %v10156 = vadd.f32 %v2103, %v10155
  %v10157 = vpop.f32.mrf.mxu0
  %v10158 = vpop.f32.mrf.mxu0
  %10159 = vdwg.mxu0
  %10160 = vmatprep.subr.bf16.mxu0 %v6288
  %10161 = vmatpush1.bf16.msra.mxu0 %v6287
  %10162 = vmatprep.subr.bf16.mxu0 %v6280
  %10163 = vmatpush1.bf16.msra.mxu0 %v6279
  %10164 = vmatprep.subr.bf16.mxu0 %v6272
  %10165 = vmatpush1.bf16.msra.mxu0 %v6271
  %10166 = vmatprep.subr.bf16.mxu0 %v6264
  %10167 = vmatpush1.bf16.msra.mxu0 %v6263
  %10168 = vmatprep.subr.bf16.mxu0 %v6256
  %10169 = vmatpush1.bf16.msra.mxu0 %v6255
  %10170 = vmatprep.subr.bf16.mxu0 %v6248
  %10171 = vmatpush1.bf16.msra.mxu0 %v6247
  %10172 = vmatprep.subr.bf16.mxu0 %v6240
  %10173 = vmatpush1.bf16.msra.mxu0 %v6239
  %10174 = vmatprep.subr.bf16.mxu0 %v6232
  %10175 = vmatpush1.bf16.msra.mxu0 %v6231
  %10176 = vmatprep.subr.bf16.mxu0 %v6352
  %10177 = vmatpush2.bf16.msra.mxu0 %v6351
  %10178 = vmatprep.subr.bf16.mxu0 %v6344
  %10179 = vmatpush2.bf16.msra.mxu0 %v6343
  %10180 = vmatprep.subr.bf16.mxu0 %v6336
  %10181 = vmatpush2.bf16.msra.mxu0 %v6335
  %10182 = vmatprep.subr.bf16.mxu0 %v6328
  %10183 = vmatpush2.bf16.msra.mxu0 %v6327
  %10184 = vmatprep.subr.bf16.mxu0 %v6320
  %10185 = vmatpush2.bf16.msra.mxu0 %v6319
  %10186 = vmatprep.subr.bf16.mxu0 %v6312
  %10187 = vmatpush2.bf16.msra.mxu0 %v6311
  %10188 = vmatprep.subr.bf16.mxu0 %v6304
  %10189 = vmatpush2.bf16.msra.mxu0 %v6303
  %10190 = vmatprep.subr.bf16.mxu0 %v6296
  %10191 = vmatpush2.bf16.msra.mxu0 %v6295
  %10192 = vmatprep.mubr.bf16.mxu0 %v10118
  %10193 = vmatmul.mubr.bf16.gmra.mxu0 %v10117
  %v10194 = vpop.f32.mrf.mxu0
  %v10195 = vadd.f32 %v10154, %v10194
  %v10196 = vpop.f32.mrf.mxu0
  %v10197 = vadd.f32 %v10156, %v10196
  %v10198 = vpop.f32.mrf.mxu0
  %v10199 = vpop.f32.mrf.mxu0
  %10200 = vdwg.mxu0
  %10201 = vmatprep.subr.bf16.mxu0 %v6162
  %10202 = vmatpush1.bf16.msra.mxu0 %v6161
  %10203 = vmatprep.subr.bf16.mxu0 %v6154
  %10204 = vmatpush1.bf16.msra.mxu0 %v6153
  %10205 = vmatprep.subr.bf16.mxu0 %v6146
  %10206 = vmatpush1.bf16.msra.mxu0 %v6145
  %10207 = vmatprep.subr.bf16.mxu0 %v6138
  %10208 = vmatpush1.bf16.msra.mxu0 %v6137
  %10209 = vmatprep.subr.bf16.mxu0 %v6130
  %10210 = vmatpush1.bf16.msra.mxu0 %v6129
  %10211 = vmatprep.subr.bf16.mxu0 %v6122
  %10212 = vmatpush1.bf16.msra.mxu0 %v6121
  %10213 = vmatprep.subr.bf16.mxu0 %v6114
  %10214 = vmatpush1.bf16.msra.mxu0 %v6113
  %10215 = vmatprep.subr.bf16.mxu0 %v6106
  %10216 = vmatpush1.bf16.msra.mxu0 %v6105
  %10217 = vmatprep.subr.bf16.mxu0 %v6226
  %10218 = vmatpush2.bf16.msra.mxu0 %v6225
  %10219 = vmatprep.subr.bf16.mxu0 %v6218
  %10220 = vmatpush2.bf16.msra.mxu0 %v6217
  %10221 = vmatprep.subr.bf16.mxu0 %v6210
  %10222 = vmatpush2.bf16.msra.mxu0 %v6209
  %10223 = vmatprep.subr.bf16.mxu0 %v6202
  %10224 = vmatpush2.bf16.msra.mxu0 %v6201
  %10225 = vmatprep.subr.bf16.mxu0 %v6194
  %10226 = vmatpush2.bf16.msra.mxu0 %v6193
  %10227 = vmatprep.subr.bf16.mxu0 %v6186
  %10228 = vmatpush2.bf16.msra.mxu0 %v6185
  %10229 = vmatprep.subr.bf16.mxu0 %v6178
  %10230 = vmatpush2.bf16.msra.mxu0 %v6177
  %10231 = vmatprep.subr.bf16.mxu0 %v6170
  %10232 = vmatpush2.bf16.msra.mxu0 %v6169
  %10233 = vmatprep.mubr.bf16.mxu0 %v10116
  %10234 = vmatmul.mubr.bf16.gmra.mxu0 %v10115
  %v10235 = vpop.f32.mrf.mxu0
  %v10236 = vadd.f32 %v2107, %v10235
  %v10237 = vpop.f32.mrf.mxu0
  %v10238 = vadd.f32 %v2111, %v10237
  %v10239 = vpop.f32.mrf.mxu0
  %v10240 = vpop.f32.mrf.mxu0
  %10241 = vdwg.mxu0
  %10242 = vmatprep.subr.bf16.mxu0 %v6290
  %10243 = vmatpush1.bf16.msra.mxu0 %v6289
  %10244 = vmatprep.subr.bf16.mxu0 %v6282
  %10245 = vmatpush1.bf16.msra.mxu0 %v6281
  %10246 = vmatprep.subr.bf16.mxu0 %v6274
  %10247 = vmatpush1.bf16.msra.mxu0 %v6273
  %10248 = vmatprep.subr.bf16.mxu0 %v6266
  %10249 = vmatpush1.bf16.msra.mxu0 %v6265
  %10250 = vmatprep.subr.bf16.mxu0 %v6258
  %10251 = vmatpush1.bf16.msra.mxu0 %v6257
  %10252 = vmatprep.subr.bf16.mxu0 %v6250
  %10253 = vmatpush1.bf16.msra.mxu0 %v6249
  %10254 = vmatprep.subr.bf16.mxu0 %v6242
  %10255 = vmatpush1.bf16.msra.mxu0 %v6241
  %10256 = vmatprep.subr.bf16.mxu0 %v6234
  %10257 = vmatpush1.bf16.msra.mxu0 %v6233
  %10258 = vmatprep.subr.bf16.mxu0 %v6354
  %10259 = vmatpush2.bf16.msra.mxu0 %v6353
  %10260 = vmatprep.subr.bf16.mxu0 %v6346
  %10261 = vmatpush2.bf16.msra.mxu0 %v6345
  %10262 = vmatprep.subr.bf16.mxu0 %v6338
  %10263 = vmatpush2.bf16.msra.mxu0 %v6337
  %10264 = vmatprep.subr.bf16.mxu0 %v6330
  %10265 = vmatpush2.bf16.msra.mxu0 %v6329
  %10266 = vmatprep.subr.bf16.mxu0 %v6322
  %10267 = vmatpush2.bf16.msra.mxu0 %v6321
  %10268 = vmatprep.subr.bf16.mxu0 %v6314
  %10269 = vmatpush2.bf16.msra.mxu0 %v6313
  %10270 = vmatprep.subr.bf16.mxu0 %v6306
  %10271 = vmatpush2.bf16.msra.mxu0 %v6305
  %10272 = vmatprep.subr.bf16.mxu0 %v6298
  %10273 = vmatpush2.bf16.msra.mxu0 %v6297
  %10274 = vmatprep.mubr.bf16.mxu0 %v10118
  %10275 = vmatmul.mubr.bf16.gmra.mxu0 %v10117
  %v10276 = vpop.f32.mrf.mxu0
  %v10277 = vadd.f32 %v10236, %v10276
  %v10278 = vpop.f32.mrf.mxu0
  %v10279 = vadd.f32 %v10238, %v10278
  %v10280 = vpop.f32.mrf.mxu0
  %v10281 = vpop.f32.mrf.mxu0
  %10282 = vdwg.mxu0
  %10283 = vmatprep.subr.bf16.mxu0 %v6164
  %10284 = vmatpush1.bf16.msra.mxu0 %v6163
  %10285 = vmatprep.subr.bf16.mxu0 %v6156
  %10286 = vmatpush1.bf16.msra.mxu0 %v6155
  %10287 = vmatprep.subr.bf16.mxu0 %v6148
  %10288 = vmatpush1.bf16.msra.mxu0 %v6147
  %10289 = vmatprep.subr.bf16.mxu0 %v6140
  %10290 = vmatpush1.bf16.msra.mxu0 %v6139
  %10291 = vmatprep.subr.bf16.mxu0 %v6132
  %10292 = vmatpush1.bf16.msra.mxu0 %v6131
  %10293 = vmatprep.subr.bf16.mxu0 %v6124
  %10294 = vmatpush1.bf16.msra.mxu0 %v6123
  %10295 = vmatprep.subr.bf16.mxu0 %v6116
  %10296 = vmatpush1.bf16.msra.mxu0 %v6115
  %10297 = vmatprep.subr.bf16.mxu0 %v6108
  %10298 = vmatpush1.bf16.msra.mxu0 %v6107
  %10299 = vmatprep.subr.bf16.mxu0 %v6228
  %10300 = vmatpush2.bf16.msra.mxu0 %v6227
  %10301 = vmatprep.subr.bf16.mxu0 %v6220
  %10302 = vmatpush2.bf16.msra.mxu0 %v6219
  %10303 = vmatprep.subr.bf16.mxu0 %v6212
  %10304 = vmatpush2.bf16.msra.mxu0 %v6211
  %10305 = vmatprep.subr.bf16.mxu0 %v6204
  %10306 = vmatpush2.bf16.msra.mxu0 %v6203
  %10307 = vmatprep.subr.bf16.mxu0 %v6196
  %10308 = vmatpush2.bf16.msra.mxu0 %v6195
  %10309 = vmatprep.subr.bf16.mxu0 %v6188
  %10310 = vmatpush2.bf16.msra.mxu0 %v6187
  %10311 = vmatprep.subr.bf16.mxu0 %v6180
  %10312 = vmatpush2.bf16.msra.mxu0 %v6179
  %10313 = vmatprep.subr.bf16.mxu0 %v6172
  %10314 = vmatpush2.bf16.msra.mxu0 %v6171
  %10315 = vmatprep.mubr.bf16.mxu0 %v10116
  %10316 = vmatmul.mubr.bf16.gmra.mxu0 %v10115
  %v10317 = vpop.f32.mrf.mxu0
  %v10318 = vadd.f32 %v2115, %v10317
  %v10319 = vpop.f32.mrf.mxu0
  %v10320 = vadd.f32 %v2119, %v10319
  %v10321 = vpop.f32.mrf.mxu0
  %v10322 = vpop.f32.mrf.mxu0
  %10323 = vdwg.mxu0
  %10324 = vmatprep.subr.bf16.mxu0 %v6292
  %10325 = vmatpush1.bf16.msra.mxu0 %v6291
  %10326 = vmatprep.subr.bf16.mxu0 %v6284
  %10327 = vmatpush1.bf16.msra.mxu0 %v6283
  %10328 = vmatprep.subr.bf16.mxu0 %v6276
  %10329 = vmatpush1.bf16.msra.mxu0 %v6275
  %10330 = vmatprep.subr.bf16.mxu0 %v6268
  %10331 = vmatpush1.bf16.msra.mxu0 %v6267
  %10332 = vmatprep.subr.bf16.mxu0 %v6260
  %10333 = vmatpush1.bf16.msra.mxu0 %v6259
  %10334 = vmatprep.subr.bf16.mxu0 %v6252
  %10335 = vmatpush1.bf16.msra.mxu0 %v6251
  %10336 = vmatprep.subr.bf16.mxu0 %v6244
  %10337 = vmatpush1.bf16.msra.mxu0 %v6243
  %10338 = vmatprep.subr.bf16.mxu0 %v6236
  %10339 = vmatpush1.bf16.msra.mxu0 %v6235
  %10340 = vmatprep.subr.bf16.mxu0 %v6356
  %10341 = vmatpush2.bf16.msra.mxu0 %v6355
  %10342 = vmatprep.subr.bf16.mxu0 %v6348
  %10343 = vmatpush2.bf16.msra.mxu0 %v6347
  %10344 = vmatprep.subr.bf16.mxu0 %v6340
  %10345 = vmatpush2.bf16.msra.mxu0 %v6339
  %10346 = vmatprep.subr.bf16.mxu0 %v6332
  %10347 = vmatpush2.bf16.msra.mxu0 %v6331
  %10348 = vmatprep.subr.bf16.mxu0 %v6324
  %10349 = vmatpush2.bf16.msra.mxu0 %v6323
  %10350 = vmatprep.subr.bf16.mxu0 %v6316
  %10351 = vmatpush2.bf16.msra.mxu0 %v6315
  %10352 = vmatprep.subr.bf16.mxu0 %v6308
  %10353 = vmatpush2.bf16.msra.mxu0 %v6307
  %10354 = vmatprep.subr.bf16.mxu0 %v6300
  %10355 = vmatpush2.bf16.msra.mxu0 %v6299
  %10356 = vmatprep.mubr.bf16.mxu0 %v10118
  %10357 = vmatmul.mubr.bf16.gmra.mxu0 %v10117
  %v10358 = vpop.f32.mrf.mxu0
  %v10359 = vadd.f32 %v10318, %v10358
  %v10360 = vpop.f32.mrf.mxu0
  %v10361 = vadd.f32 %v10320, %v10360
  %v10362 = vpop.f32.mrf.mxu0
  %v10363 = vpop.f32.mrf.mxu0
  %10364 = vdwg.mxu0
  %10365 = vmatprep.subr.bf16.mxu0 %v6166
  %10366 = vmatpush1.bf16.msra.mxu0 %v6165
  %10367 = vmatprep.subr.bf16.mxu0 %v6158
  %10368 = vmatpush1.bf16.msra.mxu0 %v6157
  %10369 = vmatprep.subr.bf16.mxu0 %v6150
  %10370 = vmatpush1.bf16.msra.mxu0 %v6149
  %10371 = vmatprep.subr.bf16.mxu0 %v6142
  %10372 = vmatpush1.bf16.msra.mxu0 %v6141
  %10373 = vmatprep.subr.bf16.mxu0 %v6134
  %10374 = vmatpush1.bf16.msra.mxu0 %v6133
  %10375 = vmatprep.subr.bf16.mxu0 %v6126
  %10376 = vmatpush1.bf16.msra.mxu0 %v6125
  %10377 = vmatprep.subr.bf16.mxu0 %v6118
  %10378 = vmatpush1.bf16.msra.mxu0 %v6117
  %10379 = vmatprep.subr.bf16.mxu0 %v6110
  %10380 = vmatpush1.bf16.msra.mxu0 %v6109
  %10381 = vmatprep.subr.bf16.mxu0 %v6230
  %10382 = vmatpush2.bf16.msra.mxu0 %v6229
  %10383 = vmatprep.subr.bf16.mxu0 %v6222
  %10384 = vmatpush2.bf16.msra.mxu0 %v6221
  %10385 = vmatprep.subr.bf16.mxu0 %v6214
  %10386 = vmatpush2.bf16.msra.mxu0 %v6213
  %10387 = vmatprep.subr.bf16.mxu0 %v6206
  %10388 = vmatpush2.bf16.msra.mxu0 %v6205
  %10389 = vmatprep.subr.bf16.mxu0 %v6198
  %10390 = vmatpush2.bf16.msra.mxu0 %v6197
  %10391 = vmatprep.subr.bf16.mxu0 %v6190
  %10392 = vmatpush2.bf16.msra.mxu0 %v6189
  %10393 = vmatprep.subr.bf16.mxu0 %v6182
  %10394 = vmatpush2.bf16.msra.mxu0 %v6181
  %10395 = vmatprep.subr.bf16.mxu0 %v6174
  %10396 = vmatpush2.bf16.msra.mxu0 %v6173
  %10397 = vmatprep.mubr.bf16.mxu0 %v10116
  %10398 = vmatmul.mubr.bf16.gmra.mxu0 %v10115
  %v10399 = vpop.f32.mrf.mxu0
  %v10400 = vadd.f32 %v2123, %v10399
  %v10401 = vpop.f32.mrf.mxu0
  %v10402 = vadd.f32 %v2127, %v10401
  %v10403 = vpop.f32.mrf.mxu0
  %v10404 = vpop.f32.mrf.mxu0
  %10405 = vdwg.mxu0
  %10406 = vmatprep.subr.bf16.mxu0 %v6294
  %10407 = vmatpush1.bf16.msra.mxu0 %v6293
  %10408 = vmatprep.subr.bf16.mxu0 %v6286
  %10409 = vmatpush1.bf16.msra.mxu0 %v6285
  %10410 = vmatprep.subr.bf16.mxu0 %v6278
  %10411 = vmatpush1.bf16.msra.mxu0 %v6277
  %10412 = vmatprep.subr.bf16.mxu0 %v6270
  %10413 = vmatpush1.bf16.msra.mxu0 %v6269
  %10414 = vmatprep.subr.bf16.mxu0 %v6262
  %10415 = vmatpush1.bf16.msra.mxu0 %v6261
  %10416 = vmatprep.subr.bf16.mxu0 %v6254
  %10417 = vmatpush1.bf16.msra.mxu0 %v6253
  %10418 = vmatprep.subr.bf16.mxu0 %v6246
  %10419 = vmatpush1.bf16.msra.mxu0 %v6245
  %10420 = vmatprep.subr.bf16.mxu0 %v6238
  %10421 = vmatpush1.bf16.msra.mxu0 %v6237
  %10422 = vmatprep.subr.bf16.mxu0 %v6358
  %10423 = vmatpush2.bf16.msra.mxu0 %v6357
  %10424 = vmatprep.subr.bf16.mxu0 %v6350
  %10425 = vmatpush2.bf16.msra.mxu0 %v6349
  %10426 = vmatprep.subr.bf16.mxu0 %v6342
  %10427 = vmatpush2.bf16.msra.mxu0 %v6341
  %10428 = vmatprep.subr.bf16.mxu0 %v6334
  %10429 = vmatpush2.bf16.msra.mxu0 %v6333
  %10430 = vmatprep.subr.bf16.mxu0 %v6326
  %10431 = vmatpush2.bf16.msra.mxu0 %v6325
  %10432 = vmatprep.subr.bf16.mxu0 %v6318
  %10433 = vmatpush2.bf16.msra.mxu0 %v6317
  %10434 = vmatprep.subr.bf16.mxu0 %v6310
  %10435 = vmatpush2.bf16.msra.mxu0 %v6309
  %10436 = vmatprep.subr.bf16.mxu0 %v6302
  %10437 = vmatpush2.bf16.msra.mxu0 %v6301
  %10438 = vmatprep.mubr.bf16.mxu0 %v10118
  %10439 = vmatmul.mubr.bf16.gmra.mxu0 %v10117
  %v10440 = vpop.f32.mrf.mxu0
  %v10441 = vadd.f32 %v10400, %v10440
  %v10442 = vpop.f32.mrf.mxu0
  %v10443 = vadd.f32 %v10402, %v10442
  %v10444 = vpop.f32.mrf.mxu0
  %v10445 = vpop.f32.mrf.mxu0
  %10446 = vdwg.mxu0
  %v10447 = vmul.f32 %v10195, 0.5
  %v10448 = vmul.f32 %v10197, 0.5
  %v10449 = vtanh.pop %v10447
  %v10450 = vtanh.pop %v10448
  %v10451 = vadd.f32 %v10449, 1.0
  %v10452 = vadd.f32 %v10450, 1.0
  %v10453 = vmul.f32 %v10451, 0.5
  %v10454 = vmul.f32 %v10452, 0.5
  %v10455 = vmul.f32 %v10277, 0.5
  %v10456 = vmul.f32 %v10279, 0.5
  %v10457 = vtanh.pop %v10455
  %v10458 = vtanh.pop %v10456
  %v10459 = vadd.f32 %v10457, 1.0
  %v10460 = vadd.f32 %v10458, 1.0
  %v10461 = vmul.f32 %v10459, 0.5
  %v10462 = vmul.f32 %v10460, 0.5
  %v10463 = vtanh.pop %v10359
  %v10464 = vtanh.pop %v10361
  %v10465 = vmul.f32 %v10441, 0.5
  %v10466 = vmul.f32 %v10443, 0.5
  %v10467 = vtanh.pop %v10465
  %v10468 = vtanh.pop %v10466
  %v10469 = vadd.f32 %v10467, 1.0
  %v10470 = vadd.f32 %v10468, 1.0
  %v10471 = vmul.f32 %v10469, 0.5
  %v10472 = vmul.f32 %v10470, 0.5
  %v10473 = vmul.f32 %v10461, %v9893
  %v10474 = vmul.f32 %v10462, %v9894
  %v10475 = vmul.f32 %v10453, %v10463
  %v10476 = vmul.f32 %v10454, %v10464
  %v10477 = vadd.f32 %v10473, %v10475
  %v10478 = vadd.f32 %v10474, %v10476
  %v10479 = vtanh.pop %v10477
  %v10480 = vtanh.pop %v10478
  %v10481 = vmul.f32 %v10471, %v10479
  %v10482 = vmul.f32 %v10472, %v10480
  %v10483 = vpack.c.bf16 %v10481, %v10481
  %v10484 = vpack.c.bf16 %v10482, %v10482
  %v10485 = vld [vmem:[%s4] sm:$0xf]
  %v10486 = vld [vmem:[%s4 + $0x4] sm:$0xf]
  %v10487 = vld [vmem:[%s4 + $0x8] sm:$0xf]
  %v10488 = vld [vmem:[%s4 + $0xc] sm:$0xf]
  %v10489 = vld [vmem:[%s4 + $0x10] sm:$0xf]
  %v10490 = vld [vmem:[%s4 + $0x14] sm:$0xf]
  %v10491 = vld [vmem:[%s4 + $0x18] sm:$0xf]
  %v10492 = vld [vmem:[%s4 + $0x1c] sm:$0xf]
  %v10493 = vld [vmem:[%s4 + $0x20] sm:$0xf]
  %v10494 = vld [vmem:[%s4 + $0x24] sm:$0xf]
  %v10495 = vld [vmem:[%s4 + $0x28] sm:$0xf]
  %v10496 = vld [vmem:[%s4 + $0x2c] sm:$0xf]
  %v10497 = vld [vmem:[%s4 + $0x30] sm:$0xf]
  %v10498 = vld [vmem:[%s4 + $0x34] sm:$0xf]
  %v10499 = vld [vmem:[%s4 + $0x38] sm:$0xf]
  %v10500 = vld [vmem:[%s4 + $0x3c] sm:$0xf]
  %v10501 = vld [vmem:[%s4 + $0x40] sm:$0xf]
  %v10502 = vld [vmem:[%s4 + $0x44] sm:$0xf]
  %v10503 = vld [vmem:[%s4 + $0x48] sm:$0xf]
  %v10504 = vld [vmem:[%s4 + $0x4c] sm:$0xf]
  %v10505 = vld [vmem:[%s4 + $0x50] sm:$0xf]
  %v10506 = vld [vmem:[%s4 + $0x54] sm:$0xf]
  %v10507 = vld [vmem:[%s4 + $0x58] sm:$0xf]
  %v10508 = vld [vmem:[%s4 + $0x5c] sm:$0xf]
  %v10509 = vld [vmem:[%s4 + $0x60] sm:$0xf]
  %v10510 = vld [vmem:[%s4 + $0x64] sm:$0xf]
  %v10511 = vld [vmem:[%s4 + $0x68] sm:$0xf]
  %v10512 = vld [vmem:[%s4 + $0x6c] sm:$0xf]
  %v10513 = vld [vmem:[%s4 + $0x70] sm:$0xf]
  %v10514 = vld [vmem:[%s4 + $0x74] sm:$0xf]
  %v10515 = vld [vmem:[%s4 + $0x78] sm:$0xf]
  %v10516 = vld [vmem:[%s4 + $0x7c] sm:$0xf]
  %v10517 = vld [vmem:[%s5] sm:$0x1]
  %v10519 = vlaneseq
  %v10520 = vshrl.u32 %v10519, 7
  %v10521 = vsub.s32 0, %v10520
  %v10522 = vrot.slane %v10517, %v10521
  %v10556 = vunpack.c.l.b16 %v10485
  %v10557 = vunpack.c.l.b16 %v10486
  %v10558 = vunpack.c.l.b16 %v10487
  %v10559 = vunpack.c.l.b16 %v10488
  %v10560 = vunpack.c.l.b16 %v10489
  %v10561 = vunpack.c.l.b16 %v10490
  %v10562 = vunpack.c.l.b16 %v10491
  %v10563 = vunpack.c.l.b16 %v10492
  %v10564 = vunpack.c.l.b16 %v10493
  %v10565 = vunpack.c.l.b16 %v10494
  %v10566 = vunpack.c.l.b16 %v10495
  %v10567 = vunpack.c.l.b16 %v10496
  %v10568 = vunpack.c.l.b16 %v10497
  %v10569 = vunpack.c.l.b16 %v10498
  %v10570 = vunpack.c.l.b16 %v10499
  %v10571 = vunpack.c.l.b16 %v10500
  %v10572 = vunpack.c.l.b16 %v10501
  %v10573 = vunpack.c.l.b16 %v10502
  %v10574 = vunpack.c.l.b16 %v10503
  %v10575 = vunpack.c.l.b16 %v10504
  %v10576 = vunpack.c.l.b16 %v10505
  %v10577 = vunpack.c.l.b16 %v10506
  %v10578 = vunpack.c.l.b16 %v10507
  %v10579 = vunpack.c.l.b16 %v10508
  %v10580 = vunpack.c.l.b16 %v10509
  %v10581 = vunpack.c.l.b16 %v10510
  %v10582 = vunpack.c.l.b16 %v10511
  %v10583 = vunpack.c.l.b16 %v10512
  %v10584 = vunpack.c.l.b16 %v10513
  %v10585 = vunpack.c.l.b16 %v10514
  %v10586 = vunpack.c.l.b16 %v10515
  %v10587 = vunpack.c.l.b16 %v10516
  %v10588 = vpack.c.b16 %v10557, %v10556
  %v10589 = vpack.c.b16 %v10559, %v10558
  %v10590 = vpack.c.b16 %v10561, %v10560
  %v10591 = vpack.c.b16 %v10563, %v10562
  %v10592 = vpack.c.b16 %v10565, %v10564
  %v10593 = vpack.c.b16 %v10567, %v10566
  %v10594 = vpack.c.b16 %v10569, %v10568
  %v10595 = vpack.c.b16 %v10571, %v10570
  %v10596 = vpack.c.b16 %v10573, %v10572
  %v10597 = vpack.c.b16 %v10575, %v10574
  %v10598 = vpack.c.b16 %v10577, %v10576
  %v10599 = vpack.c.b16 %v10579, %v10578
  %v10600 = vpack.c.b16 %v10581, %v10580
  %v10601 = vpack.c.b16 %v10583, %v10582
  %v10602 = vpack.c.b16 %v10585, %v10584
  %v10603 = vpack.c.b16 %v10587, %v10586
  %10620 = vmatprep.subr.bf16.mxu0 0
  %10621 = vmatpush1.bf16.msra.mxu0 %v10595
  %10622 = vmatprep.subr.bf16.mxu0 0
  %10623 = vmatpush1.bf16.msra.mxu0 %v10594
  %10624 = vmatprep.subr.bf16.mxu0 0
  %10625 = vmatpush1.bf16.msra.mxu0 %v10593
  %10626 = vmatprep.subr.bf16.mxu0 0
  %10627 = vmatpush1.bf16.msra.mxu0 %v10592
  %10628 = vmatprep.subr.bf16.mxu0 0
  %10629 = vmatpush1.bf16.msra.mxu0 %v10591
  %10630 = vmatprep.subr.bf16.mxu0 0
  %10631 = vmatpush1.bf16.msra.mxu0 %v10590
  %10632 = vmatprep.subr.bf16.mxu0 0
  %10633 = vmatpush1.bf16.msra.mxu0 %v10589
  %10634 = vmatprep.subr.bf16.mxu0 0
  %10635 = vmatpush1.bf16.msra.mxu0 %v10588
  %10636 = vmatprep.subr.bf16.mxu0 0
  %10637 = vmatpush2.bf16.msra.mxu0 %v10603
  %10638 = vmatprep.subr.bf16.mxu0 0
  %10639 = vmatpush2.bf16.msra.mxu0 %v10602
  %10640 = vmatprep.subr.bf16.mxu0 0
  %10641 = vmatpush2.bf16.msra.mxu0 %v10601
  %10642 = vmatprep.subr.bf16.mxu0 0
  %10643 = vmatpush2.bf16.msra.mxu0 %v10600
  %10644 = vmatprep.subr.bf16.mxu0 0
  %10645 = vmatpush2.bf16.msra.mxu0 %v10599
  %10646 = vmatprep.subr.bf16.mxu0 0
  %10647 = vmatpush2.bf16.msra.mxu0 %v10598
  %10648 = vmatprep.subr.bf16.mxu0 0
  %10649 = vmatpush2.bf16.msra.mxu0 %v10597
  %10650 = vmatprep.subr.bf16.mxu0 0
  %10651 = vmatpush2.bf16.msra.mxu0 %v10596
  %10652 = vmatprep.mubr.bf16.mxu0 %v10484
  %10653 = vmatmul.mubr.bf16.gmra.mxu0 %v10483
  %v10654 = vpop.f32.mrf.mxu0
  %v10655 = vadd.f32 %v10522, %v10654
  %v10656 = vpop.f32.mrf.mxu0
  %v10657 = vpop.f32.mrf.mxu0
  %v10658 = vpop.f32.mrf.mxu0
  %10659 = vdwg.mxu0
  %vm10660 = vcmask 39936
  %10661 = vst.msk [vmem:[%s8] sm:$0xff] %vm10660, %v10655
  %10662 = vst [vmem:[%s9] sm:$0xff] %v10113
  %10663 = vst [vmem:[%s9 + $0x8] sm:$0xff] %v10114
  %s10664 = scalar_lea.vmem %s9, 16
  %10665 = vst [vmem:[%s10664] sm:$0xff] %v10481
  %10666 = vst [vmem:[%s10664 + $0x8] sm:$0xff] %v10482
  %10667 = vst [vmem:[%s10] sm:$0xff] %v10109
  %10668 = vst [vmem:[%s10 + $0x8] sm:$0xff] %v10110
  %s10669 = scalar_lea.vmem %s10, 16
  %10670 = vst [vmem:[%s10669] sm:$0xff] %v10477
  %10671 = vst [vmem:[%s10669 + $0x8] sm:$0xff] %v10478
  // Predicated region
  $region94: #{lstm_forward.1} parent=0 // pred_check
    _
  $region95: #{lstm_forward.1} parent=0 // pred_check_branch
    %10673 = sbr.rel (0) target = $region97
  $region96: #{lstm_forward.1} parent=0 // pred_region
    _
  $region97: #{lstm_forward.1} parent=0 // pred_fallthru
    _
  // Predicated region
  $region98: #{lstm_forward.1} parent=0 // pred_check
    _
  $region99: #{lstm_forward.1} parent=0 // pred_check_branch
    %10675 = sbr.rel (0) target = $region101
  $region100: #{lstm_forward.1} parent=0 // pred_region
    _
  $region101: #{lstm_forward.1} parent=0 // pred_fallthru
    _
  // Predicated region
  $region102: #{lstm_forward.1} parent=0 // pred_check
    _
  $region103: #{lstm_forward.1} parent=0 // pred_check_branch
    %10677 = sbr.rel (0) target = $region105
  $region104: #{lstm_forward.1} parent=0 // pred_region
    _
  $region105: #{lstm_forward.1} parent=0 // pred_fallthru
    _
  // Predicated region
  $region106: #{lstm_forward.1} parent=0 // pred_check
    _
  $region107: #{lstm_forward.1} parent=0 // pred_check_branch
    %10679 = sbr.rel (0) target = $region109
  $region108: #{lstm_forward.1} parent=0 // pred_region
    _
  $region109: #{lstm_forward.1} parent=0 // pred_fallthru
    _
  // Predicated region
  $region110: #{lstm_forward.1} parent=0 // pred_check
    _
  $region111: #{lstm_forward.1} parent=0 // pred_check_branch
    %10681 = sbr.rel (0) target = $region113
  $region112: #{lstm_forward.1} parent=0 // pred_region
    _
  $region113: #{lstm_forward.1} parent=0 // pred_fallthru
    _
  // Predicated region
  $region114: #{lstm_forward.1} parent=0 // pred_check
    _
  $region115: #{lstm_forward.1} parent=0 // pred_check_branch
    %10683 = sbr.rel (0) target = $region117
  $region116: #{lstm_forward.1} parent=0 // pred_region
    _
  $region117: #{lstm_forward.1} parent=0 // pred_fallthru
    _
  %10684 = vsyncmov [#allocation5]
  %s10685 = vpop.sfrf %10684
  %p10686 = scmp.eq.s32.totalorder %s10685, 0
  %p10687 = pneg %p10686
  %10689 = shalt.err (%p10687)
  %s10690 = scalar_lea.sflag [#allocation5], 1
  %10691 = vsyncmov %s10690
  %s10692 = vpop.sfrf %10691
  %p10693 = scmp.eq.s32.totalorder %s10692, 0
  %p10694 = pneg %p10693
  %10696 = shalt.err (%p10694)

</llo_original>
